<compile_context>
chip_gen: v6e
topology: v6e:2x2x1
jax: 0.10.0
libtpu: 0.0.40
codegen_flags: <defaults>
</compile_context>

<pallas_src>
import numpy as np
import jax
import jax.numpy as jnp
from jax import lax
from jax.experimental import pallas as pl
from jax.experimental.pallas import tpu as pltpu

# ----- model hyper-parameters (from DeepSec.__init__) -----
FILTER_SIZES = (1, 5, 7)
NUM_FILTERS = 50
IN_CHANNELS = 20
GRU_HIDDEN = 32
GRU_LAYERS = 2
FC_HIDDEN = 16
NUM_CLASSES = 2
MAX_PAD = max(FILTER_SIZES) // 2                      # 3
MAX_K = max(FILTER_SIZES)                             # 7
FEAT_DIM = NUM_FILTERS * len(FILTER_SIZES)            # 150
GATE_DIM = 3 * GRU_HIDDEN                             # 96 (r | z | n)
GATE_PAD = 128                                        # lane-dense padded gate width per dir

B_CHUNK = 8   # batch rows folded into each MXU dot (one f32 sublane tile).
              # Raise in multiples of 8 for very large B on single-TC parts (v5e/v6e).


# =============  fused kernel: conv + biGRU(2 layers, batch-folded) + head  =============
def deepsec_kernel(len_ref,                           # (Bc, 1) int32 valid lengths
                   xw_ref,                            # (L, Bc, 7*Cin) time-major im2col
                   wconv_ref, bconv_ref,              # (140, 150), (1, 150)
                   wih0_ref, whh0_ref, bih0_ref, bhh0_ref,   # layer 0 fused fwd|bwd
                   wih1_ref, whh1_ref, bih1_ref, bhh1_ref,   # layer 1 fused fwd|bwd
                   wfc_ref, bfc_ref, wout_ref, bout_ref,     # head
                   out_ref,                           # (Bc, NUM_CLASSES)
                   gx_ref,                            # scratch (L*Bc, 2*GATE_PAD)
                   h0_ref):                           # scratch (L*Bc, 2H): fwd | bwd
    H = GRU_HIDDEN
    GP = GATE_PAD
    L, Bc, KC = xw_ref.shape
    length = len_ref[...]                             # (Bc, 1) pack_padded_sequence masking

    # ---- conv bank: one im2col matmul + bias + ReLU (time-major rows: t*Bc + b) ----
    xw = xw_ref[...].reshape(L * Bc, KC)
    feat = jnp.maximum(
        jnp.dot(xw, wconv_ref[...], preferred_element_type=jnp.float32) + bconv_ref[...],
        0.0)                                          # (L*Bc, FEAT_DIM)

    def gru_gates(gx, gh, h):
        # Gate slicing at 32-lane offsets is a within-vreg extract (XLU); with only one
        # MXU push per step the vector-extended slots have slack, so it is not hoisted
        # onto a 3*128 layout (would cost extra MXU column passes).
        r = jax.nn.sigmoid(gx[:, 0:H] + gh[:, 0:H])
        z = jax.nn.sigmoid(gx[:, H:2 * H] + gh[:, H:2 * H])
        n = jnp.tanh(gx[:, 2 * H:3 * H] + r * gh[:, 2 * H:3 * H])
        return (1.0 - z) * n + z * h

    h_init = jnp.zeros((Bc, H), jnp.float32)

    def run_layer(whh_bd, bhh, store_seq):
        # One fused block-diagonal recurrent matmul per step:
        #   [hf | hb] (Bc, 2H) @ whh_bd (2H, 2*GP) -> fwd gates in lanes 0:GP, bwd in GP:2GP.
        # whh_bd / bhh are loop-invariant values, so the (64, 256) RHS stays resident
        # across the unrolled time loop instead of being re-streamed every step.
        def step(t, carry):
            hf, hb = carry
            tb = L - 1 - t
            hcat = jnp.concatenate([hf, hb], axis=-1)                     # (Bc, 2H)
            gh = jnp.dot(hcat, whh_bd, preferred_element_type=jnp.float32) + bhh
            gx_f = gx_ref[pl.ds(t * Bc, Bc), 0:GP]                        # fwd inputs @ t
            gx_b = gx_ref[pl.ds(tb * Bc, Bc), GP:2 * GP]                  # bwd inputs @ tb
            hf_new = gru_gates(gx_f, gh[:, 0:GP], hf)
            hb_new = gru_gates(gx_b, gh[:, GP:2 * GP], hb)
            # packed-seq masking: freeze fwd hidden beyond length; bwd hidden stays zero
            # until tb < length (== starting the reverse pass at t = length-1).
            hf = jnp.where(t < length, hf_new, hf)
            hb = jnp.where(tb < length, hb_new, hb)
            if store_seq:
                h0_ref[pl.ds(t * Bc, Bc), 0:H] = hf
                h0_ref[pl.ds(tb * Bc, Bc), H:2 * H] = hb
            return hf, hb

        unroll = True if L <= 32 else 8
        return lax.fori_loop(0, L, step, (h_init, h_init), unroll=unroll)

    # ---- layer 0: fused (fwd|bwd) hoisted input projection, then recurrence ----
    gx_ref[...] = (jnp.dot(feat, wih0_ref[...], preferred_element_type=jnp.float32)
                   + bih0_ref[...])
    run_layer(whh0_ref[...], bhh0_ref[...], store_seq=True)

    # ---- layer 1: hoisted projection over the full (L*Bc, 2H) layer-0 output ----
    # NOTE: h0_ref persists across grid steps but every row/half is rewritten by the
    # static 0..L layer-0 loop each chunk, so no stale data can leak between chunks.
    gx_ref[...] = (jnp.dot(h0_ref[...], wih1_ref[...], preferred_element_type=jnp.float32)
                   + bih1_ref[...])
    h1f, h1b = run_layer(whh1_ref[...], bhh1_ref[...], store_seq=False)

    # ---- fused head epilogue: fc + ReLU + out ----
    ctx = jnp.concatenate([h1f, h1b], axis=-1)        # == reshape(transpose(final[-2:],0,1))
    fc = jnp.maximum(jnp.dot(ctx, wfc_ref[...], preferred_element_type=jnp.float32)
                     + bfc_ref[...], 0.0)
    out_ref[...] = (jnp.dot(fc, wout_ref[...], preferred_element_type=jnp.float32)
                    + bout_ref[...])


# =====================  wrapper  =====================
def deepsec_forward(pssm, seq_len, params):
    B, L, Cin = pssm.shape
    H = GRU_HIDDEN
    Bc = B_CHUNK
    Bpad = ((B + Bc - 1) // Bc) * Bc
    n_chunks = Bpad // Bc

    # ---- host-side layout plumbing: time-major im2col windows + fused conv weight ----
    # TODO(synk): build the im2col windows in-kernel from the raw (L+6, Cin) input to
    # avoid the 7x replicated HBM copy once L/B are scaled toward production sizes.
    xpad = jnp.pad(pssm.astype(jnp.float32), ((0, Bpad - B), (MAX_PAD, MAX_PAD), (0, 0)))
    xw = jnp.concatenate([xpad[:, j:j + L, :] for j in range(MAX_K)], axis=-1)  # (Bpad,L,7*Cin)
    xw_tm = jnp.transpose(xw, (1, 0, 2))                                        # (L,Bpad,7*Cin)

    lengths = jnp.pad(seq_len.astype(jnp.int32), (0, Bpad - B)).reshape(Bpad, 1)

    wcols, bcols = [], []
    for k, (W, bias) in zip(FILTER_SIZES, params["conv"]):
        base = MAX_PAD - k // 2
        taps = jnp.transpose(W, (2, 1, 0))                          # (k, Cin, NF)
        full = jnp.zeros((MAX_K, Cin, NUM_FILTERS), jnp.float32).at[base:base + k].set(taps)
        wcols.append(full.reshape(MAX_K * Cin, NUM_FILTERS))
        bcols.append(bias)
    wconv = jnp.concatenate(wcols, axis=1)                          # (7*Cin, FEAT_DIM)
    bconv = jnp.concatenate(bcols).reshape(1, FEAT_DIM)

    # ---- GRU weights: gates (r|z|n) packed into 96-of-128 lanes per direction,
    #      directions concatenated along lanes; recurrent weight is block-diagonal. ----
    def pack_w(Wm):      # (3H, in) -> (in, GATE_PAD)
        return jnp.pad(Wm.T, ((0, 0), (0, GATE_PAD - GATE_DIM)))

    def pack_b(v):       # (3H,) -> (1, GATE_PAD)
        return jnp.pad(v.reshape(1, GATE_DIM), ((0, 0), (0, GATE_PAD - GATE_DIM)))

    def pack_layer(layer):
        wih_f, whh_f, bih_f, bhh_f = params["gru"][layer][0]
        wih_b, whh_b, bih_b, bhh_b = params["gru"][layer][1]
        wih = jnp.concatenate([pack_w(wih_f), pack_w(wih_b)], axis=1)        # (in, 2*GP)
        zero = jnp.zeros((H, GATE_PAD), jnp.float32)
        whh = jnp.concatenate(
            [jnp.concatenate([pack_w(whh_f), zero], axis=1),
             jnp.concatenate([zero, pack_w(whh_b)], axis=1)], axis=0)        # (2H, 2*GP)
        bih = jnp.concatenate([pack_b(bih_f), pack_b(bih_b)], axis=1)        # (1, 2*GP)
        bhh = jnp.concatenate([pack_b(bhh_f), pack_b(bhh_b)], axis=1)        # (1, 2*GP)
        return wih, whh, bih, bhh

    wih0, whh0, bih0, bhh0 = pack_layer(0)
    wih1, whh1, bih1, bhh1 = pack_layer(1)

    Wfc, bfc = params["fc"]
    Wout, bout = params["out"]
    weights = (wconv, bconv,
               wih0, whh0, bih0, bhh0,
               wih1, whh1, bih1, bhh1,
               Wfc.T, bfc.reshape(1, -1), Wout.T, bout.reshape(1, -1))

    def full_spec(a):
        nd = a.ndim
        return pl.BlockSpec(a.shape, lambda c, nd=nd: (0,) * nd)

    in_specs = [pl.BlockSpec((Bc, 1), lambda c: (c, 0)),                 # lengths
                pl.BlockSpec((L, Bc, MAX_K * Cin), lambda c: (0, c, 0))]  # im2col chunk
    in_specs += [full_spec(a) for a in weights]

    out = pl.pallas_call(
        deepsec_kernel,
        grid_spec=pltpu.PrefetchScalarGridSpec(
            num_scalar_prefetch=0,
            grid=(n_chunks,),
            in_specs=in_specs,
            out_specs=pl.BlockSpec((Bc, NUM_CLASSES), lambda c: (c, 0)),
            scratch_shapes=[pltpu.VMEM((L * Bc, 2 * GATE_PAD), jnp.float32),  # hoisted gx
                            pltpu.VMEM((L * Bc, 2 * H), jnp.float32)],        # layer-0 fwd|bwd
        ),
        out_shape=jax.ShapeDtypeStruct((Bpad, NUM_CLASSES), jnp.float32),
        compiler_params=pltpu.CompilerParams(dimension_semantics=("parallel",)),
    )(lengths, xw_tm, *weights)
    return out[:B]


# =====================  deterministic parameters  =====================
def make_params(key):
    def uni(k, shape, fan_in):
        bound = 1.0 / float(np.sqrt(fan_in))
        return jax.random.uniform(k, shape, jnp.float32, -bound, bound)

    keys = iter(jax.random.split(key, 64))
    params = {"conv": [], "gru": []}
    for k in FILTER_SIZES:
        W = uni(next(keys), (NUM_FILTERS, IN_CHANNELS, k), IN_CHANNELS * k)
        b = uni(next(keys), (NUM_FILTERS,), IN_CHANNELS * k)
        params["conv"].append((W, b))
    for layer in range(GRU_LAYERS):
        in_dim = FEAT_DIM if layer == 0 else 2 * GRU_HIDDEN
        dirs = []
        for _ in range(2):
            Wih = uni(next(keys), (3 * GRU_HIDDEN, in_dim), GRU_HIDDEN)
            Whh = uni(next(keys), (3 * GRU_HIDDEN, GRU_HIDDEN), GRU_HIDDEN)
            bih = uni(next(keys), (3 * GRU_HIDDEN,), GRU_HIDDEN)
            bhh = uni(next(keys), (3 * GRU_HIDDEN,), GRU_HIDDEN)
            dirs.append((Wih, Whh, bih, bhh))
        params["gru"].append(dirs)
    params["fc"] = (uni(next(keys), (FC_HIDDEN, 2 * GRU_HIDDEN), 2 * GRU_HIDDEN),
                    uni(next(keys), (FC_HIDDEN,), 2 * GRU_HIDDEN))
    params["out"] = (uni(next(keys), (NUM_CLASSES, FC_HIDDEN), FC_HIDDEN),
                     uni(next(keys), (NUM_CLASSES,), FC_HIDDEN))
    return params


# =====================  pure-numpy reference (PyTorch semantics)  =====================
def reference_forward(pssm, seq_len, params):
    x_in = np.asarray(pssm, np.float64)
    B, L, _ = x_in.shape
    feats = []
    for k, (W, bias) in zip(FILTER_SIZES, params["conv"]):
        W = np.asarray(W, np.float64); bias = np.asarray(bias, np.float64)
        p = k // 2
        xp = np.pad(x_in, ((0, 0), (p, p), (0, 0)))
        out = np.zeros((B, L, NUM_FILTERS))
        for j in range(k):
            out += np.einsum("blc,oc->blo", xp[:, j:j + L, :], W[:, :, j])
        feats.append(out + bias[None, None, :])
    f = np.maximum(np.concatenate(feats, axis=-1), 0.0)

    def sigmoid(v): return 1.0 / (1.0 + np.exp(-v))
    H = GRU_HIDDEN

    def cell(x, h, Wih, Whh, bih, bhh):
        gi = x @ Wih.T + bih
        gh = h @ Whh.T + bhh
        r = sigmoid(gi[:H] + gh[:H])
        z = sigmoid(gi[H:2 * H] + gh[H:2 * H])
        n = np.tanh(gi[2 * H:] + r * gh[2 * H:])
        return (1.0 - z) * n + z * h

    ctx = np.zeros((B, 2 * H))
    for b in range(B):
        Lb = int(seq_len[b])
        x = f[b, :Lb]
        finals = []
        for layer in range(GRU_LAYERS):
            outs, finals = [], []
            for d in range(2):
                Wih, Whh, bih, bhh = [np.asarray(a, np.float64) for a in params["gru"][layer][d]]
                h = np.zeros(H)
                hs = np.zeros((Lb, H))
                ts = range(Lb) if d == 0 else range(Lb - 1, -1, -1)
                for t in ts:
                    h = cell(x[t], h, Wih, Whh, bih, bhh)
                    hs[t] = h
                outs.append(hs)
                finals.append(h)
            x = np.concatenate(outs, axis=-1)
        ctx[b] = np.concatenate(finals)
    Wfc, bfc = [np.asarray(a, np.float64) for a in params["fc"]]
    Wout, bout = [np.asarray(a, np.float64) for a in params["out"]]
    hfc = np.maximum(ctx @ Wfc.T + bfc, 0.0)
    return hfc @ Wout.T + bout


if __name__ == "__main__":
    key = jax.random.PRNGKey(0)
    kp, kx = jax.random.split(key)
    params = make_params(kp)

    B, L = 4, 16
    pssm = jax.random.normal(kx, (B, L, IN_CHANNELS), jnp.float32)   # (batch, seq, 20)
    seq_len = jnp.array([16, 11, 13, 9], jnp.int32)                  # padded-sequence lengths

    logits = deepsec_forward(pssm, seq_len, params)
    logits = jax.block_until_ready(logits)

    ref = reference_forward(np.asarray(pssm), np.asarray(seq_len), params)
    err = float(np.max(np.abs(np.asarray(logits, np.float64) - ref)))
    assert err < 1e-3, f"mismatch vs reference: max abs err = {err}"
    print("KERNEL_OK")
</pallas_src>

<mosaic_0001>
module attributes {stable_mosaic.version = 11 : i64} {
  func.func @deepsec_kernel(%arg0: i32, %arg1: memref<8x1xi32, #tpu.memory_space<vmem>>, %arg2: memref<16x8x140xf32, #tpu.memory_space<vmem>>, %arg3: memref<140x150xf32, #tpu.memory_space<vmem>>, %arg4: memref<1x150xf32, #tpu.memory_space<vmem>>, %arg5: memref<150x256xf32, #tpu.memory_space<vmem>>, %arg6: memref<64x256xf32, #tpu.memory_space<vmem>>, %arg7: memref<1x256xf32, #tpu.memory_space<vmem>>, %arg8: memref<1x256xf32, #tpu.memory_space<vmem>>, %arg9: memref<64x256xf32, #tpu.memory_space<vmem>>, %arg10: memref<64x256xf32, #tpu.memory_space<vmem>>, %arg11: memref<1x256xf32, #tpu.memory_space<vmem>>, %arg12: memref<1x256xf32, #tpu.memory_space<vmem>>, %arg13: memref<64x16xf32, #tpu.memory_space<vmem>>, %arg14: memref<1x16xf32, #tpu.memory_space<vmem>>, %arg15: memref<16x2xf32, #tpu.memory_space<vmem>>, %arg16: memref<1x2xf32, #tpu.memory_space<vmem>>, %arg17: memref<8x2xf32, #tpu.memory_space<vmem>>, %arg18: memref<128x256xf32, #tpu.memory_space<vmem>>, %arg19: memref<128x64xf32, #tpu.memory_space<vmem>>) attributes {dimension_semantics = [#tpu.dimension_semantics<parallel>], iteration_bounds = array<i64: 1>, scalar_prefetch = 0 : i64, scratch_operands = 2 : i64, tpu.core_type = #tpu.core_type<tc>, window_params = [{transform_indices = @transform_0, window_bounds = array<i64: 8, 1>}, {transform_indices = @transform_1, window_bounds = array<i64: 16, 8, 140>}, {pipeline_mode = #tpu.pipeline_mode<synchronous>, transform_indices = @transform_2, window_bounds = array<i64: 140, 150>}, {pipeline_mode = #tpu.pipeline_mode<synchronous>, transform_indices = @transform_3, window_bounds = array<i64: 1, 150>}, {pipeline_mode = #tpu.pipeline_mode<synchronous>, transform_indices = @transform_4, window_bounds = array<i64: 150, 256>}, {pipeline_mode = #tpu.pipeline_mode<synchronous>, transform_indices = @transform_5, window_bounds = array<i64: 64, 256>}, {pipeline_mode = #tpu.pipeline_mode<synchronous>, transform_indices = @transform_6, window_bounds = array<i64: 1, 256>}, {pipeline_mode = #tpu.pipeline_mode<synchronous>, transform_indices = @transform_7, window_bounds = array<i64: 1, 256>}, {pipeline_mode = #tpu.pipeline_mode<synchronous>, transform_indices = @transform_8, window_bounds = array<i64: 64, 256>}, {pipeline_mode = #tpu.pipeline_mode<synchronous>, transform_indices = @transform_9, window_bounds = array<i64: 64, 256>}, {pipeline_mode = #tpu.pipeline_mode<synchronous>, transform_indices = @transform_10, window_bounds = array<i64: 1, 256>}, {pipeline_mode = #tpu.pipeline_mode<synchronous>, transform_indices = @transform_11, window_bounds = array<i64: 1, 256>}, {pipeline_mode = #tpu.pipeline_mode<synchronous>, transform_indices = @transform_12, window_bounds = array<i64: 64, 16>}, {pipeline_mode = #tpu.pipeline_mode<synchronous>, transform_indices = @transform_13, window_bounds = array<i64: 1, 16>}, {pipeline_mode = #tpu.pipeline_mode<synchronous>, transform_indices = @transform_14, window_bounds = array<i64: 16, 2>}, {pipeline_mode = #tpu.pipeline_mode<synchronous>, transform_indices = @transform_15, window_bounds = array<i64: 1, 2>}, {transform_indices = @transform_16, window_bounds = array<i64: 8, 2>}]} {
    %c0 = arith.constant 0 : index
    %c0_0 = arith.constant 0 : index
    %0 = vector.load %arg1[%c0, %c0_0] : memref<8x1xi32, #tpu.memory_space<vmem>>, vector<8x1xi32>
    %c0_1 = arith.constant 0 : index
    %c0_2 = arith.constant 0 : index
    %c0_3 = arith.constant 0 : index
    %1 = vector.load %arg2[%c0_1, %c0_2, %c0_3] : memref<16x8x140xf32, #tpu.memory_space<vmem>>, vector<16x8x140xf32>
    %2 = vector.shape_cast %1 : vector<16x8x140xf32> to vector<128x140xf32>
    %c0_4 = arith.constant 0 : index
    %c0_5 = arith.constant 0 : index
    %3 = vector.load %arg3[%c0_4, %c0_5] : memref<140x150xf32, #tpu.memory_space<vmem>>, vector<140x150xf32>
    %cst = arith.constant dense<0.000000e+00> : vector<128x150xf32>
    %4 = tpu.matmul %2, %3, %cst {dimension_numbers = #tpu.dot_dimension_numbers<[1], [0], [0], [1], [0, 0, 1, 1], [], []>} : vector<128x140xf32>, vector<140x150xf32>, vector<128x150xf32> -> vector<128x150xf32>
    %c0_6 = arith.constant 0 : index
    %c0_7 = arith.constant 0 : index
    %5 = vector.load %arg4[%c0_6, %c0_7] : memref<1x150xf32, #tpu.memory_space<vmem>>, vector<1x150xf32>
    %6 = vector.broadcast %5 : vector<1x150xf32> to vector<128x150xf32>
    %7 = arith.addf %4, %6 : vector<128x150xf32>
    %cst_8 = arith.constant 0.000000e+00 : f32
    %8 = vector.broadcast %cst_8 : f32 to vector<128x150xf32>
    %9 = arith.maximumf %7, %8 : vector<128x150xf32>
    %cst_9 = arith.constant 0.000000e+00 : f32
    %10 = vector.broadcast %cst_9 : f32 to vector<8x32xf32>
    %c0_10 = arith.constant 0 : index
    %c0_11 = arith.constant 0 : index
    %11 = vector.load %arg5[%c0_10, %c0_11] : memref<150x256xf32, #tpu.memory_space<vmem>>, vector<150x256xf32>
    %cst_12 = arith.constant dense<0.000000e+00> : vector<128x256xf32>
    %12 = tpu.matmul %9, %11, %cst_12 {dimension_numbers = #tpu.dot_dimension_numbers<[1], [0], [0], [1], [0, 0, 1, 1], [], []>} : vector<128x150xf32>, vector<150x256xf32>, vector<128x256xf32> -> vector<128x256xf32>
    %c0_13 = arith.constant 0 : index
    %c0_14 = arith.constant 0 : index
    %13 = vector.load %arg7[%c0_13, %c0_14] : memref<1x256xf32, #tpu.memory_space<vmem>>, vector<1x256xf32>
    %14 = vector.broadcast %13 : vector<1x256xf32> to vector<128x256xf32>
    %15 = arith.addf %12, %14 : vector<128x256xf32>
    %c0_15 = arith.constant 0 : index
    %c0_16 = arith.constant 0 : index
    %16 = vector.load %arg18[%c0_15, %c0_16] : memref<128x256xf32, #tpu.memory_space<vmem>>, vector<128x256xf32>
    tpu.vector_store %arg18[%c0_15, %c0_16], %15 {strides = array<i32>} : memref<128x256xf32, #tpu.memory_space<vmem>>, vector<128x256xf32>,
    %c0_17 = arith.constant 0 : index
    %c0_18 = arith.constant 0 : index
    %17 = vector.load %arg6[%c0_17, %c0_18] : memref<64x256xf32, #tpu.memory_space<vmem>>, vector<64x256xf32>
    %c0_19 = arith.constant 0 : index
    %c0_20 = arith.constant 0 : index
    %18 = vector.load %arg8[%c0_19, %c0_20] : memref<1x256xf32, #tpu.memory_space<vmem>>, vector<1x256xf32>
    %c0_i32 = arith.constant 0 : i32
    %c15_i32 = arith.constant 15 : i32
    %19 = arith.subi %c15_i32, %c0_i32 : i32
    %20 = tpu.concatenate %10, %10 in 1 : vector<8x32xf32>, vector<8x32xf32> -> vector<8x64xf32>
    %cst_21 = arith.constant dense<0.000000e+00> : vector<8x256xf32>
    %21 = tpu.matmul %20, %17, %cst_21 {dimension_numbers = #tpu.dot_dimension_numbers<[1], [0], [0], [1], [0, 0, 1, 1], [], []>} : vector<8x64xf32>, vector<64x256xf32>, vector<8x256xf32> -> vector<8x256xf32>
    %22 = vector.broadcast %18 : vector<1x256xf32> to vector<8x256xf32>
    %23 = arith.addf %21, %22 : vector<8x256xf32>
    %c8_i32 = arith.constant 8 : i32
    %24 = arith.muli %c0_i32, %c8_i32 : i32
    %25 = arith.index_cast %24 : i32 to index
    %c0_22 = arith.constant 0 : index
    %26 = vector.load %arg18[%25, %c0_22] : memref<128x256xf32, #tpu.memory_space<vmem>>, vector<8x128xf32>
    %c8_i32_23 = arith.constant 8 : i32
    %27 = arith.muli %19, %c8_i32_23 : i32
    %28 = arith.index_cast %27 : i32 to index
    %c128 = arith.constant 128 : index
    %29 = vector.load %arg18[%28, %c128] : memref<128x256xf32, #tpu.memory_space<vmem>>, vector<8x128xf32>
    %30 = vector.extract_strided_slice %23 {offsets = [0, 0], sizes = [8, 128], strides = [1, 1]} : vector<8x256xf32> to vector<8x128xf32>
    %31 = vector.extract_strided_slice %26 {offsets = [0, 0], sizes = [8, 32], strides = [1, 1]} : vector<8x128xf32> to vector<8x32xf32>
    %32 = vector.extract_strided_slice %30 {offsets = [0, 0], sizes = [8, 32], strides = [1, 1]} : vector<8x128xf32> to vector<8x32xf32>
    %33 = arith.addf %31, %32 : vector<8x32xf32>
    %34 = arith.negf %33 : vector<8x32xf32>
    %35 = math.exp %34 : vector<8x32xf32>
    %cst_24 = arith.constant 1.000000e+00 : f32
    %36 = vector.broadcast %cst_24 : f32 to vector<8x32xf32>
    %37 = arith.addf %36, %35 : vector<8x32xf32>
    %38 = arith.divf %36, %37 : vector<8x32xf32>
    %39 = vector.extract_strided_slice %26 {offsets = [0, 32], sizes = [8, 32], strides = [1, 1]} : vector<8x128xf32> to vector<8x32xf32>
    %40 = vector.extract_strided_slice %30 {offsets = [0, 32], sizes = [8, 32], strides = [1, 1]} : vector<8x128xf32> to vector<8x32xf32>
    %41 = arith.addf %39, %40 : vector<8x32xf32>
    %42 = arith.negf %41 : vector<8x32xf32>
    %43 = math.exp %42 : vector<8x32xf32>
    %cst_25 = arith.constant 1.000000e+00 : f32
    %44 = vector.broadcast %cst_25 : f32 to vector<8x32xf32>
    %45 = arith.addf %44, %43 : vector<8x32xf32>
    %46 = arith.divf %44, %45 : vector<8x32xf32>
    %47 = vector.extract_strided_slice %26 {offsets = [0, 64], sizes = [8, 32], strides = [1, 1]} : vector<8x128xf32> to vector<8x32xf32>
    %48 = vector.extract_strided_slice %30 {offsets = [0, 64], sizes = [8, 32], strides = [1, 1]} : vector<8x128xf32> to vector<8x32xf32>
    %49 = arith.mulf %38, %48 : vector<8x32xf32>
    %50 = arith.addf %47, %49 : vector<8x32xf32>
    %51 = math.tanh %50 : vector<8x32xf32>
    %cst_26 = arith.constant 1.000000e+00 : f32
    %52 = vector.broadcast %cst_26 : f32 to vector<8x32xf32>
    %53 = arith.subf %52, %46 : vector<8x32xf32>
    %54 = arith.mulf %53, %51 : vector<8x32xf32>
    %55 = arith.mulf %46, %10 : vector<8x32xf32>
    %56 = arith.addf %54, %55 : vector<8x32xf32>
    %57 = vector.extract_strided_slice %23 {offsets = [0, 128], sizes = [8, 128], strides = [1, 1]} : vector<8x256xf32> to vector<8x128xf32>
    %58 = vector.extract_strided_slice %29 {offsets = [0, 0], sizes = [8, 32], strides = [1, 1]} : vector<8x128xf32> to vector<8x32xf32>
    %59 = vector.extract_strided_slice %57 {offsets = [0, 0], sizes = [8, 32], strides = [1, 1]} : vector<8x128xf32> to vector<8x32xf32>
    %60 = arith.addf %58, %59 : vector<8x32xf32>
    %61 = arith.negf %60 : vector<8x32xf32>
    %62 = math.exp %61 : vector<8x32xf32>
    %cst_27 = arith.constant 1.000000e+00 : f32
    %63 = vector.broadcast %cst_27 : f32 to vector<8x32xf32>
    %64 = arith.addf %63, %62 : vector<8x32xf32>
    %65 = arith.divf %63, %64 : vector<8x32xf32>
    %66 = vector.extract_strided_slice %29 {offsets = [0, 32], sizes = [8, 32], strides = [1, 1]} : vector<8x128xf32> to vector<8x32xf32>
    %67 = vector.extract_strided_slice %57 {offsets = [0, 32], sizes = [8, 32], strides = [1, 1]} : vector<8x128xf32> to vector<8x32xf32>
    %68 = arith.addf %66, %67 : vector<8x32xf32>
    %69 = arith.negf %68 : vector<8x32xf32>
    %70 = math.exp %69 : vector<8x32xf32>
    %cst_28 = arith.constant 1.000000e+00 : f32
    %71 = vector.broadcast %cst_28 : f32 to vector<8x32xf32>
    %72 = arith.addf %71, %70 : vector<8x32xf32>
    %73 = arith.divf %71, %72 : vector<8x32xf32>
    %74 = vector.extract_strided_slice %29 {offsets = [0, 64], sizes = [8, 32], strides = [1, 1]} : vector<8x128xf32> to vector<8x32xf32>
    %75 = vector.extract_strided_slice %57 {offsets = [0, 64], sizes = [8, 32], strides = [1, 1]} : vector<8x128xf32> to vector<8x32xf32>
    %76 = arith.mulf %65, %75 : vector<8x32xf32>
    %77 = arith.addf %74, %76 : vector<8x32xf32>
    %78 = math.tanh %77 : vector<8x32xf32>
    %cst_29 = arith.constant 1.000000e+00 : f32
    %79 = vector.broadcast %cst_29 : f32 to vector<8x32xf32>
    %80 = arith.subf %79, %73 : vector<8x32xf32>
    %81 = arith.mulf %80, %78 : vector<8x32xf32>
    %82 = arith.mulf %73, %10 : vector<8x32xf32>
    %83 = arith.addf %81, %82 : vector<8x32xf32>
    %84 = vector.broadcast %c0_i32 : i32 to vector<8x1xi32>
    %85 = arith.cmpi slt, %84, %0 : vector<8x1xi32>
    %86 = vector.shape_cast %85 : vector<8x1xi1> to vector<8x1xi1>
    %87 = vector.broadcast %86 : vector<8x1xi1> to vector<8x32xi1>
    %88 = arith.select %87, %56, %10 : vector<8x32xi1>, vector<8x32xf32>
    %89 = vector.broadcast %19 : i32 to vector<8x1xi32>
    %90 = arith.cmpi slt, %89, %0 : vector<8x1xi32>
    %91 = vector.shape_cast %90 : vector<8x1xi1> to vector<8x1xi1>
    %92 = vector.broadcast %91 : vector<8x1xi1> to vector<8x32xi1>
    %93 = arith.select %92, %83, %10 : vector<8x32xi1>, vector<8x32xf32>
    %c8_i32_30 = arith.constant 8 : i32
    %94 = arith.muli %c0_i32, %c8_i32_30 : i32
    %95 = arith.index_cast %94 : i32 to index
    %c0_31 = arith.constant 0 : index
    %96 = vector.load %arg19[%95, %c0_31] : memref<128x64xf32, #tpu.memory_space<vmem>>, vector<8x32xf32>
    tpu.vector_store %arg19[%95, %c0_31], %88 {strides = array<i32>} : memref<128x64xf32, #tpu.memory_space<vmem>>, vector<8x32xf32>,
    %c8_i32_32 = arith.constant 8 : i32
    %97 = arith.muli %19, %c8_i32_32 : i32
    %98 = arith.index_cast %97 : i32 to index
    %c32 = arith.constant 32 : index
    %99 = vector.load %arg19[%98, %c32] : memref<128x64xf32, #tpu.memory_space<vmem>>, vector<8x32xf32>
    tpu.vector_store %arg19[%98, %c32], %93 {strides = array<i32>} : memref<128x64xf32, #tpu.memory_space<vmem>>, vector<8x32xf32>,
    %c1_i32 = arith.constant 1 : i32
    %c15_i32_33 = arith.constant 15 : i32
    %100 = arith.subi %c15_i32_33, %c1_i32 : i32
    %101 = tpu.concatenate %88, %93 in 1 : vector<8x32xf32>, vector<8x32xf32> -> vector<8x64xf32>
    %cst_34 = arith.constant dense<0.000000e+00> : vector<8x256xf32>
    %102 = tpu.matmul %101, %17, %cst_34 {dimension_numbers = #tpu.dot_dimension_numbers<[1], [0], [0], [1], [0, 0, 1, 1], [], []>} : vector<8x64xf32>, vector<64x256xf32>, vector<8x256xf32> -> vector<8x256xf32>
    %103 = vector.broadcast %18 : vector<1x256xf32> to vector<8x256xf32>
    %104 = arith.addf %102, %103 : vector<8x256xf32>
    %c8_i32_35 = arith.constant 8 : i32
    %105 = arith.muli %c1_i32, %c8_i32_35 : i32
    %106 = arith.index_cast %105 : i32 to index
    %c0_36 = arith.constant 0 : index
    %107 = vector.load %arg18[%106, %c0_36] : memref<128x256xf32, #tpu.memory_space<vmem>>, vector<8x128xf32>
    %c8_i32_37 = arith.constant 8 : i32
    %108 = arith.muli %100, %c8_i32_37 : i32
    %109 = arith.index_cast %108 : i32 to index
    %c128_38 = arith.constant 128 : index
    %110 = vector.load %arg18[%109, %c128_38] : memref<128x256xf32, #tpu.memory_space<vmem>>, vector<8x128xf32>
    %111 = vector.extract_strided_slice %104 {offsets = [0, 0], sizes = [8, 128], strides = [1, 1]} : vector<8x256xf32> to vector<8x128xf32>
    %112 = vector.extract_strided_slice %107 {offsets = [0, 0], sizes = [8, 32], strides = [1, 1]} : vector<8x128xf32> to vector<8x32xf32>
    %113 = vector.extract_strided_slice %111 {offsets = [0, 0], sizes = [8, 32], strides = [1, 1]} : vector<8x128xf32> to vector<8x32xf32>
    %114 = arith.addf %112, %113 : vector<8x32xf32>
    %115 = arith.negf %114 : vector<8x32xf32>
    %116 = math.exp %115 : vector<8x32xf32>
    %cst_39 = arith.constant 1.000000e+00 : f32
    %117 = vector.broadcast %cst_39 : f32 to vector<8x32xf32>
    %118 = arith.addf %117, %116 : vector<8x32xf32>
    %119 = arith.divf %117, %118 : vector<8x32xf32>
    %120 = vector.extract_strided_slice %107 {offsets = [0, 32], sizes = [8, 32], strides = [1, 1]} : vector<8x128xf32> to vector<8x32xf32>
    %121 = vector.extract_strided_slice %111 {offsets = [0, 32], sizes = [8, 32], strides = [1, 1]} : vector<8x128xf32> to vector<8x32xf32>
    %122 = arith.addf %120, %121 : vector<8x32xf32>
    %123 = arith.negf %122 : vector<8x32xf32>
    %124 = math.exp %123 : vector<8x32xf32>
    %cst_40 = arith.constant 1.000000e+00 : f32
    %125 = vector.broadcast %cst_40 : f32 to vector<8x32xf32>
    %126 = arith.addf %125, %124 : vector<8x32xf32>
    %127 = arith.divf %125, %126 : vector<8x32xf32>
    %128 = vector.extract_strided_slice %107 {offsets = [0, 64], sizes = [8, 32], strides = [1, 1]} : vector<8x128xf32> to vector<8x32xf32>
    %129 = vector.extract_strided_slice %111 {offsets = [0, 64], sizes = [8, 32], strides = [1, 1]} : vector<8x128xf32> to vector<8x32xf32>
    %130 = arith.mulf %119, %129 : vector<8x32xf32>
    %131 = arith.addf %128, %130 : vector<8x32xf32>
    %132 = math.tanh %131 : vector<8x32xf32>
    %cst_41 = arith.constant 1.000000e+00 : f32
    %133 = vector.broadcast %cst_41 : f32 to vector<8x32xf32>
    %134 = arith.subf %133, %127 : vector<8x32xf32>
    %135 = arith.mulf %134, %132 : vector<8x32xf32>
    %136 = arith.mulf %127, %88 : vector<8x32xf32>
    %137 = arith.addf %135, %136 : vector<8x32xf32>
    %138 = vector.extract_strided_slice %104 {offsets = [0, 128], sizes = [8, 128], strides = [1, 1]} : vector<8x256xf32> to vector<8x128xf32>
    %139 = vector.extract_strided_slice %110 {offsets = [0, 0], sizes = [8, 32], strides = [1, 1]} : vector<8x128xf32> to vector<8x32xf32>
    %140 = vector.extract_strided_slice %138 {offsets = [0, 0], sizes = [8, 32], strides = [1, 1]} : vector<8x128xf32> to vector<8x32xf32>
    %141 = arith.addf %139, %140 : vector<8x32xf32>
    %142 = arith.negf %141 : vector<8x32xf32>
    %143 = math.exp %142 : vector<8x32xf32>
    %cst_42 = arith.constant 1.000000e+00 : f32
    %144 = vector.broadcast %cst_42 : f32 to vector<8x32xf32>
    %145 = arith.addf %144, %143 : vector<8x32xf32>
    %146 = arith.divf %144, %145 : vector<8x32xf32>
    %147 = vector.extract_strided_slice %110 {offsets = [0, 32], sizes = [8, 32], strides = [1, 1]} : vector<8x128xf32> to vector<8x32xf32>
    %148 = vector.extract_strided_slice %138 {offsets = [0, 32], sizes = [8, 32], strides = [1, 1]} : vector<8x128xf32> to vector<8x32xf32>
    %149 = arith.addf %147, %148 : vector<8x32xf32>
    %150 = arith.negf %149 : vector<8x32xf32>
    %151 = math.exp %150 : vector<8x32xf32>
    %cst_43 = arith.constant 1.000000e+00 : f32
    %152 = vector.broadcast %cst_43 : f32 to vector<8x32xf32>
    %153 = arith.addf %152, %151 : vector<8x32xf32>
    %154 = arith.divf %152, %153 : vector<8x32xf32>
    %155 = vector.extract_strided_slice %110 {offsets = [0, 64], sizes = [8, 32], strides = [1, 1]} : vector<8x128xf32> to vector<8x32xf32>
    %156 = vector.extract_strided_slice %138 {offsets = [0, 64], sizes = [8, 32], strides = [1, 1]} : vector<8x128xf32> to vector<8x32xf32>
    %157 = arith.mulf %146, %156 : vector<8x32xf32>
    %158 = arith.addf %155, %157 : vector<8x32xf32>
    %159 = math.tanh %158 : vector<8x32xf32>
    %cst_44 = arith.constant 1.000000e+00 : f32
    %160 = vector.broadcast %cst_44 : f32 to vector<8x32xf32>
    %161 = arith.subf %160, %154 : vector<8x32xf32>
    %162 = arith.mulf %161, %159 : vector<8x32xf32>
    %163 = arith.mulf %154, %93 : vector<8x32xf32>
    %164 = arith.addf %162, %163 : vector<8x32xf32>
    %165 = vector.broadcast %c1_i32 : i32 to vector<8x1xi32>
    %166 = arith.cmpi slt, %165, %0 : vector<8x1xi32>
    %167 = vector.shape_cast %166 : vector<8x1xi1> to vector<8x1xi1>
    %168 = vector.broadcast %167 : vector<8x1xi1> to vector<8x32xi1>
    %169 = arith.select %168, %137, %88 : vector<8x32xi1>, vector<8x32xf32>
    %170 = vector.broadcast %100 : i32 to vector<8x1xi32>
    %171 = arith.cmpi slt, %170, %0 : vector<8x1xi32>
    %172 = vector.shape_cast %171 : vector<8x1xi1> to vector<8x1xi1>
    %173 = vector.broadcast %172 : vector<8x1xi1> to vector<8x32xi1>
    %174 = arith.select %173, %164, %93 : vector<8x32xi1>, vector<8x32xf32>
    %c8_i32_45 = arith.constant 8 : i32
    %175 = arith.muli %c1_i32, %c8_i32_45 : i32
    %176 = arith.index_cast %175 : i32 to index
    %c0_46 = arith.constant 0 : index
    %177 = vector.load %arg19[%176, %c0_46] : memref<128x64xf32, #tpu.memory_space<vmem>>, vector<8x32xf32>
    tpu.vector_store %arg19[%176, %c0_46], %169 {strides = array<i32>} : memref<128x64xf32, #tpu.memory_space<vmem>>, vector<8x32xf32>,
    %c8_i32_47 = arith.constant 8 : i32
    %178 = arith.muli %100, %c8_i32_47 : i32
    %179 = arith.index_cast %178 : i32 to index
    %c32_48 = arith.constant 32 : index
    %180 = vector.load %arg19[%179, %c32_48] : memref<128x64xf32, #tpu.memory_space<vmem>>, vector<8x32xf32>
    tpu.vector_store %arg19[%179, %c32_48], %174 {strides = array<i32>} : memref<128x64xf32, #tpu.memory_space<vmem>>, vector<8x32xf32>,
    %c2_i32 = arith.constant 2 : i32
    %c15_i32_49 = arith.constant 15 : i32
    %181 = arith.subi %c15_i32_49, %c2_i32 : i32
    %182 = tpu.concatenate %169, %174 in 1 : vector<8x32xf32>, vector<8x32xf32> -> vector<8x64xf32>
    %cst_50 = arith.constant dense<0.000000e+00> : vector<8x256xf32>
    %183 = tpu.matmul %182, %17, %cst_50 {dimension_numbers = #tpu.dot_dimension_numbers<[1], [0], [0], [1], [0, 0, 1, 1], [], []>} : vector<8x64xf32>, vector<64x256xf32>, vector<8x256xf32> -> vector<8x256xf32>
    %184 = vector.broadcast %18 : vector<1x256xf32> to vector<8x256xf32>
    %185 = arith.addf %183, %184 : vector<8x256xf32>
    %c8_i32_51 = arith.constant 8 : i32
    %186 = arith.muli %c2_i32, %c8_i32_51 : i32
    %187 = arith.index_cast %186 : i32 to index
    %c0_52 = arith.constant 0 : index
    %188 = vector.load %arg18[%187, %c0_52] : memref<128x256xf32, #tpu.memory_space<vmem>>, vector<8x128xf32>
    %c8_i32_53 = arith.constant 8 : i32
    %189 = arith.muli %181, %c8_i32_53 : i32
    %190 = arith.index_cast %189 : i32 to index
    %c128_54 = arith.constant 128 : index
    %191 = vector.load %arg18[%190, %c128_54] : memref<128x256xf32, #tpu.memory_space<vmem>>, vector<8x128xf32>
    %192 = vector.extract_strided_slice %185 {offsets = [0, 0], sizes = [8, 128], strides = [1, 1]} : vector<8x256xf32> to vector<8x128xf32>
    %193 = vector.extract_strided_slice %188 {offsets = [0, 0], sizes = [8, 32], strides = [1, 1]} : vector<8x128xf32> to vector<8x32xf32>
    %194 = vector.extract_strided_slice %192 {offsets = [0, 0], sizes = [8, 32], strides = [1, 1]} : vector<8x128xf32> to vector<8x32xf32>
    %195 = arith.addf %193, %194 : vector<8x32xf32>
    %196 = arith.negf %195 : vector<8x32xf32>
    %197 = math.exp %196 : vector<8x32xf32>
    %cst_55 = arith.constant 1.000000e+00 : f32
    %198 = vector.broadcast %cst_55 : f32 to vector<8x32xf32>
    %199 = arith.addf %198, %197 : vector<8x32xf32>
    %200 = arith.divf %198, %199 : vector<8x32xf32>
    %201 = vector.extract_strided_slice %188 {offsets = [0, 32], sizes = [8, 32], strides = [1, 1]} : vector<8x128xf32> to vector<8x32xf32>
    %202 = vector.extract_strided_slice %192 {offsets = [0, 32], sizes = [8, 32], strides = [1, 1]} : vector<8x128xf32> to vector<8x32xf32>
    %203 = arith.addf %201, %202 : vector<8x32xf32>
    %204 = arith.negf %203 : vector<8x32xf32>
    %205 = math.exp %204 : vector<8x32xf32>
    %cst_56 = arith.constant 1.000000e+00 : f32
    %206 = vector.broadcast %cst_56 : f32 to vector<8x32xf32>
    %207 = arith.addf %206, %205 : vector<8x32xf32>
    %208 = arith.divf %206, %207 : vector<8x32xf32>
    %209 = vector.extract_strided_slice %188 {offsets = [0, 64], sizes = [8, 32], strides = [1, 1]} : vector<8x128xf32> to vector<8x32xf32>
    %210 = vector.extract_strided_slice %192 {offsets = [0, 64], sizes = [8, 32], strides = [1, 1]} : vector<8x128xf32> to vector<8x32xf32>
    %211 = arith.mulf %200, %210 : vector<8x32xf32>
    %212 = arith.addf %209, %211 : vector<8x32xf32>
    %213 = math.tanh %212 : vector<8x32xf32>
    %cst_57 = arith.constant 1.000000e+00 : f32
    %214 = vector.broadcast %cst_57 : f32 to vector<8x32xf32>
    %215 = arith.subf %214, %208 : vector<8x32xf32>
    %216 = arith.mulf %215, %213 : vector<8x32xf32>
    %217 = arith.mulf %208, %169 : vector<8x32xf32>
    %218 = arith.addf %216, %217 : vector<8x32xf32>
    %219 = vector.extract_strided_slice %185 {offsets = [0, 128], sizes = [8, 128], strides = [1, 1]} : vector<8x256xf32> to vector<8x128xf32>
    %220 = vector.extract_strided_slice %191 {offsets = [0, 0], sizes = [8, 32], strides = [1, 1]} : vector<8x128xf32> to vector<8x32xf32>
    %221 = vector.extract_strided_slice %219 {offsets = [0, 0], sizes = [8, 32], strides = [1, 1]} : vector<8x128xf32> to vector<8x32xf32>
    %222 = arith.addf %220, %221 : vector<8x32xf32>
    %223 = arith.negf %222 : vector<8x32xf32>
    %224 = math.exp %223 : vector<8x32xf32>
    %cst_58 = arith.constant 1.000000e+00 : f32
    %225 = vector.broadcast %cst_58 : f32 to vector<8x32xf32>
    %226 = arith.addf %225, %224 : vector<8x32xf32>
    %227 = arith.divf %225, %226 : vector<8x32xf32>
    %228 = vector.extract_strided_slice %191 {offsets = [0, 32], sizes = [8, 32], strides = [1, 1]} : vector<8x128xf32> to vector<8x32xf32>
    %229 = vector.extract_strided_slice %219 {offsets = [0, 32], sizes = [8, 32], strides = [1, 1]} : vector<8x128xf32> to vector<8x32xf32>
    %230 = arith.addf %228, %229 : vector<8x32xf32>
    %231 = arith.negf %230 : vector<8x32xf32>
    %232 = math.exp %231 : vector<8x32xf32>
    %cst_59 = arith.constant 1.000000e+00 : f32
    %233 = vector.broadcast %cst_59 : f32 to vector<8x32xf32>
    %234 = arith.addf %233, %232 : vector<8x32xf32>
    %235 = arith.divf %233, %234 : vector<8x32xf32>
    %236 = vector.extract_strided_slice %191 {offsets = [0, 64], sizes = [8, 32], strides = [1, 1]} : vector<8x128xf32> to vector<8x32xf32>
    %237 = vector.extract_strided_slice %219 {offsets = [0, 64], sizes = [8, 32], strides = [1, 1]} : vector<8x128xf32> to vector<8x32xf32>
    %238 = arith.mulf %227, %237 : vector<8x32xf32>
    %239 = arith.addf %236, %238 : vector<8x32xf32>
    %240 = math.tanh %239 : vector<8x32xf32>
    %cst_60 = arith.constant 1.000000e+00 : f32
    %241 = vector.broadcast %cst_60 : f32 to vector<8x32xf32>
    %242 = arith.subf %241, %235 : vector<8x32xf32>
    %243 = arith.mulf %242, %240 : vector<8x32xf32>
    %244 = arith.mulf %235, %174 : vector<8x32xf32>
    %245 = arith.addf %243, %244 : vector<8x32xf32>
    %246 = vector.broadcast %c2_i32 : i32 to vector<8x1xi32>
    %247 = arith.cmpi slt, %246, %0 : vector<8x1xi32>
    %248 = vector.shape_cast %247 : vector<8x1xi1> to vector<8x1xi1>
    %249 = vector.broadcast %248 : vector<8x1xi1> to vector<8x32xi1>
    %250 = arith.select %249, %218, %169 : vector<8x32xi1>, vector<8x32xf32>
    %251 = vector.broadcast %181 : i32 to vector<8x1xi32>
    %252 = arith.cmpi slt, %251, %0 : vector<8x1xi32>
    %253 = vector.shape_cast %252 : vector<8x1xi1> to vector<8x1xi1>
    %254 = vector.broadcast %253 : vector<8x1xi1> to vector<8x32xi1>
    %255 = arith.select %254, %245, %174 : vector<8x32xi1>, vector<8x32xf32>
    %c8_i32_61 = arith.constant 8 : i32
    %256 = arith.muli %c2_i32, %c8_i32_61 : i32
    %257 = arith.index_cast %256 : i32 to index
    %c0_62 = arith.constant 0 : index
    %258 = vector.load %arg19[%257, %c0_62] : memref<128x64xf32, #tpu.memory_space<vmem>>, vector<8x32xf32>
    tpu.vector_store %arg19[%257, %c0_62], %250 {strides = array<i32>} : memref<128x64xf32, #tpu.memory_space<vmem>>, vector<8x32xf32>,
    %c8_i32_63 = arith.constant 8 : i32
    %259 = arith.muli %181, %c8_i32_63 : i32
    %260 = arith.index_cast %259 : i32 to index
    %c32_64 = arith.constant 32 : index
    %261 = vector.load %arg19[%260, %c32_64] : memref<128x64xf32, #tpu.memory_space<vmem>>, vector<8x32xf32>
    tpu.vector_store %arg19[%260, %c32_64], %255 {strides = array<i32>} : memref<128x64xf32, #tpu.memory_space<vmem>>, vector<8x32xf32>,
    %c3_i32 = arith.constant 3 : i32
    %c15_i32_65 = arith.constant 15 : i32
    %262 = arith.subi %c15_i32_65, %c3_i32 : i32
    %263 = tpu.concatenate %250, %255 in 1 : vector<8x32xf32>, vector<8x32xf32> -> vector<8x64xf32>
    %cst_66 = arith.constant dense<0.000000e+00> : vector<8x256xf32>
    %264 = tpu.matmul %263, %17, %cst_66 {dimension_numbers = #tpu.dot_dimension_numbers<[1], [0], [0], [1], [0, 0, 1, 1], [], []>} : vector<8x64xf32>, vector<64x256xf32>, vector<8x256xf32> -> vector<8x256xf32>
    %265 = vector.broadcast %18 : vector<1x256xf32> to vector<8x256xf32>
    %266 = arith.addf %264, %265 : vector<8x256xf32>
    %c8_i32_67 = arith.constant 8 : i32
    %267 = arith.muli %c3_i32, %c8_i32_67 : i32
    %268 = arith.index_cast %267 : i32 to index
    %c0_68 = arith.constant 0 : index
    %269 = vector.load %arg18[%268, %c0_68] : memref<128x256xf32, #tpu.memory_space<vmem>>, vector<8x128xf32>
    %c8_i32_69 = arith.constant 8 : i32
    %270 = arith.muli %262, %c8_i32_69 : i32
    %271 = arith.index_cast %270 : i32 to index
    %c128_70 = arith.constant 128 : index
    %272 = vector.load %arg18[%271, %c128_70] : memref<128x256xf32, #tpu.memory_space<vmem>>, vector<8x128xf32>
    %273 = vector.extract_strided_slice %266 {offsets = [0, 0], sizes = [8, 128], strides = [1, 1]} : vector<8x256xf32> to vector<8x128xf32>
    %274 = vector.extract_strided_slice %269 {offsets = [0, 0], sizes = [8, 32], strides = [1, 1]} : vector<8x128xf32> to vector<8x32xf32>
    %275 = vector.extract_strided_slice %273 {offsets = [0, 0], sizes = [8, 32], strides = [1, 1]} : vector<8x128xf32> to vector<8x32xf32>
    %276 = arith.addf %274, %275 : vector<8x32xf32>
    %277 = arith.negf %276 : vector<8x32xf32>
    %278 = math.exp %277 : vector<8x32xf32>
    %cst_71 = arith.constant 1.000000e+00 : f32
    %279 = vector.broadcast %cst_71 : f32 to vector<8x32xf32>
    %280 = arith.addf %279, %278 : vector<8x32xf32>
    %281 = arith.divf %279, %280 : vector<8x32xf32>
    %282 = vector.extract_strided_slice %269 {offsets = [0, 32], sizes = [8, 32], strides = [1, 1]} : vector<8x128xf32> to vector<8x32xf32>
    %283 = vector.extract_strided_slice %273 {offsets = [0, 32], sizes = [8, 32], strides = [1, 1]} : vector<8x128xf32> to vector<8x32xf32>
    %284 = arith.addf %282, %283 : vector<8x32xf32>
    %285 = arith.negf %284 : vector<8x32xf32>
    %286 = math.exp %285 : vector<8x32xf32>
    %cst_72 = arith.constant 1.000000e+00 : f32
    %287 = vector.broadcast %cst_72 : f32 to vector<8x32xf32>
    %288 = arith.addf %287, %286 : vector<8x32xf32>
    %289 = arith.divf %287, %288 : vector<8x32xf32>
    %290 = vector.extract_strided_slice %269 {offsets = [0, 64], sizes = [8, 32], strides = [1, 1]} : vector<8x128xf32> to vector<8x32xf32>
    %291 = vector.extract_strided_slice %273 {offsets = [0, 64], sizes = [8, 32], strides = [1, 1]} : vector<8x128xf32> to vector<8x32xf32>
    %292 = arith.mulf %281, %291 : vector<8x32xf32>
    %293 = arith.addf %290, %292 : vector<8x32xf32>
    %294 = math.tanh %293 : vector<8x32xf32>
    %cst_73 = arith.constant 1.000000e+00 : f32
    %295 = vector.broadcast %cst_73 : f32 to vector<8x32xf32>
    %296 = arith.subf %295, %289 : vector<8x32xf32>
    %297 = arith.mulf %296, %294 : vector<8x32xf32>
    %298 = arith.mulf %289, %250 : vector<8x32xf32>
    %299 = arith.addf %297, %298 : vector<8x32xf32>
    %300 = vector.extract_strided_slice %266 {offsets = [0, 128], sizes = [8, 128], strides = [1, 1]} : vector<8x256xf32> to vector<8x128xf32>
    %301 = vector.extract_strided_slice %272 {offsets = [0, 0], sizes = [8, 32], strides = [1, 1]} : vector<8x128xf32> to vector<8x32xf32>
    %302 = vector.extract_strided_slice %300 {offsets = [0, 0], sizes = [8, 32], strides = [1, 1]} : vector<8x128xf32> to vector<8x32xf32>
    %303 = arith.addf %301, %302 : vector<8x32xf32>
    %304 = arith.negf %303 : vector<8x32xf32>
    %305 = math.exp %304 : vector<8x32xf32>
    %cst_74 = arith.constant 1.000000e+00 : f32
    %306 = vector.broadcast %cst_74 : f32 to vector<8x32xf32>
    %307 = arith.addf %306, %305 : vector<8x32xf32>
    %308 = arith.divf %306, %307 : vector<8x32xf32>
    %309 = vector.extract_strided_slice %272 {offsets = [0, 32], sizes = [8, 32], strides = [1, 1]} : vector<8x128xf32> to vector<8x32xf32>
    %310 = vector.extract_strided_slice %300 {offsets = [0, 32], sizes = [8, 32], strides = [1, 1]} : vector<8x128xf32> to vector<8x32xf32>
    %311 = arith.addf %309, %310 : vector<8x32xf32>
    %312 = arith.negf %311 : vector<8x32xf32>
    %313 = math.exp %312 : vector<8x32xf32>
    %cst_75 = arith.constant 1.000000e+00 : f32
    %314 = vector.broadcast %cst_75 : f32 to vector<8x32xf32>
    %315 = arith.addf %314, %313 : vector<8x32xf32>
    %316 = arith.divf %314, %315 : vector<8x32xf32>
    %317 = vector.extract_strided_slice %272 {offsets = [0, 64], sizes = [8, 32], strides = [1, 1]} : vector<8x128xf32> to vector<8x32xf32>
    %318 = vector.extract_strided_slice %300 {offsets = [0, 64], sizes = [8, 32], strides = [1, 1]} : vector<8x128xf32> to vector<8x32xf32>
    %319 = arith.mulf %308, %318 : vector<8x32xf32>
    %320 = arith.addf %317, %319 : vector<8x32xf32>
    %321 = math.tanh %320 : vector<8x32xf32>
    %cst_76 = arith.constant 1.000000e+00 : f32
    %322 = vector.broadcast %cst_76 : f32 to vector<8x32xf32>
    %323 = arith.subf %322, %316 : vector<8x32xf32>
    %324 = arith.mulf %323, %321 : vector<8x32xf32>
    %325 = arith.mulf %316, %255 : vector<8x32xf32>
    %326 = arith.addf %324, %325 : vector<8x32xf32>
    %327 = vector.broadcast %c3_i32 : i32 to vector<8x1xi32>
    %328 = arith.cmpi slt, %327, %0 : vector<8x1xi32>
    %329 = vector.shape_cast %328 : vector<8x1xi1> to vector<8x1xi1>
    %330 = vector.broadcast %329 : vector<8x1xi1> to vector<8x32xi1>
    %331 = arith.select %330, %299, %250 : vector<8x32xi1>, vector<8x32xf32>
    %332 = vector.broadcast %262 : i32 to vector<8x1xi32>
    %333 = arith.cmpi slt, %332, %0 : vector<8x1xi32>
    %334 = vector.shape_cast %333 : vector<8x1xi1> to vector<8x1xi1>
    %335 = vector.broadcast %334 : vector<8x1xi1> to vector<8x32xi1>
    %336 = arith.select %335, %326, %255 : vector<8x32xi1>, vector<8x32xf32>
    %c8_i32_77 = arith.constant 8 : i32
    %337 = arith.muli %c3_i32, %c8_i32_77 : i32
    %338 = arith.index_cast %337 : i32 to index
    %c0_78 = arith.constant 0 : index
    %339 = vector.load %arg19[%338, %c0_78] : memref<128x64xf32, #tpu.memory_space<vmem>>, vector<8x32xf32>
    tpu.vector_store %arg19[%338, %c0_78], %331 {strides = array<i32>} : memref<128x64xf32, #tpu.memory_space<vmem>>, vector<8x32xf32>,
    %c8_i32_79 = arith.constant 8 : i32
    %340 = arith.muli %262, %c8_i32_79 : i32
    %341 = arith.index_cast %340 : i32 to index
    %c32_80 = arith.constant 32 : index
    %342 = vector.load %arg19[%341, %c32_80] : memref<128x64xf32, #tpu.memory_space<vmem>>, vector<8x32xf32>
    tpu.vector_store %arg19[%341, %c32_80], %336 {strides = array<i32>} : memref<128x64xf32, #tpu.memory_space<vmem>>, vector<8x32xf32>,
    %c4_i32 = arith.constant 4 : i32
    %c15_i32_81 = arith.constant 15 : i32
    %343 = arith.subi %c15_i32_81, %c4_i32 : i32
    %344 = tpu.concatenate %331, %336 in 1 : vector<8x32xf32>, vector<8x32xf32> -> vector<8x64xf32>
    %cst_82 = arith.constant dense<0.000000e+00> : vector<8x256xf32>
    %345 = tpu.matmul %344, %17, %cst_82 {dimension_numbers = #tpu.dot_dimension_numbers<[1], [0], [0], [1], [0, 0, 1, 1], [], []>} : vector<8x64xf32>, vector<64x256xf32>, vector<8x256xf32> -> vector<8x256xf32>
    %346 = vector.broadcast %18 : vector<1x256xf32> to vector<8x256xf32>
    %347 = arith.addf %345, %346 : vector<8x256xf32>
    %c8_i32_83 = arith.constant 8 : i32
    %348 = arith.muli %c4_i32, %c8_i32_83 : i32
    %349 = arith.index_cast %348 : i32 to index
    %c0_84 = arith.constant 0 : index
    %350 = vector.load %arg18[%349, %c0_84] : memref<128x256xf32, #tpu.memory_space<vmem>>, vector<8x128xf32>
    %c8_i32_85 = arith.constant 8 : i32
    %351 = arith.muli %343, %c8_i32_85 : i32
    %352 = arith.index_cast %351 : i32 to index
    %c128_86 = arith.constant 128 : index
    %353 = vector.load %arg18[%352, %c128_86] : memref<128x256xf32, #tpu.memory_space<vmem>>, vector<8x128xf32>
    %354 = vector.extract_strided_slice %347 {offsets = [0, 0], sizes = [8, 128], strides = [1, 1]} : vector<8x256xf32> to vector<8x128xf32>
    %355 = vector.extract_strided_slice %350 {offsets = [0, 0], sizes = [8, 32], strides = [1, 1]} : vector<8x128xf32> to vector<8x32xf32>
    %356 = vector.extract_strided_slice %354 {offsets = [0, 0], sizes = [8, 32], strides = [1, 1]} : vector<8x128xf32> to vector<8x32xf32>
    %357 = arith.addf %355, %356 : vector<8x32xf32>
    %358 = arith.negf %357 : vector<8x32xf32>
    %359 = math.exp %358 : vector<8x32xf32>
    %cst_87 = arith.constant 1.000000e+00 : f32
    %360 = vector.broadcast %cst_87 : f32 to vector<8x32xf32>
    %361 = arith.addf %360, %359 : vector<8x32xf32>
    %362 = arith.divf %360, %361 : vector<8x32xf32>
    %363 = vector.extract_strided_slice %350 {offsets = [0, 32], sizes = [8, 32], strides = [1, 1]} : vector<8x128xf32> to vector<8x32xf32>
    %364 = vector.extract_strided_slice %354 {offsets = [0, 32], sizes = [8, 32], strides = [1, 1]} : vector<8x128xf32> to vector<8x32xf32>
    %365 = arith.addf %363, %364 : vector<8x32xf32>
    %366 = arith.negf %365 : vector<8x32xf32>
    %367 = math.exp %366 : vector<8x32xf32>
    %cst_88 = arith.constant 1.000000e+00 : f32
    %368 = vector.broadcast %cst_88 : f32 to vector<8x32xf32>
    %369 = arith.addf %368, %367 : vector<8x32xf32>
    %370 = arith.divf %368, %369 : vector<8x32xf32>
    %371 = vector.extract_strided_slice %350 {offsets = [0, 64], sizes = [8, 32], strides = [1, 1]} : vector<8x128xf32> to vector<8x32xf32>
    %372 = vector.extract_strided_slice %354 {offsets = [0, 64], sizes = [8, 32], strides = [1, 1]} : vector<8x128xf32> to vector<8x32xf32>
    %373 = arith.mulf %362, %372 : vector<8x32xf32>
    %374 = arith.addf %371, %373 : vector<8x32xf32>
    %375 = math.tanh %374 : vector<8x32xf32>
    %cst_89 = arith.constant 1.000000e+00 : f32
    %376 = vector.broadcast %cst_89 : f32 to vector<8x32xf32>
    %377 = arith.subf %376, %370 : vector<8x32xf32>
    %378 = arith.mulf %377, %375 : vector<8x32xf32>
    %379 = arith.mulf %370, %331 : vector<8x32xf32>
    %380 = arith.addf %378, %379 : vector<8x32xf32>
    %381 = vector.extract_strided_slice %347 {offsets = [0, 128], sizes = [8, 128], strides = [1, 1]} : vector<8x256xf32> to vector<8x128xf32>
    %382 = vector.extract_strided_slice %353 {offsets = [0, 0], sizes = [8, 32], strides = [1, 1]} : vector<8x128xf32> to vector<8x32xf32>
    %383 = vector.extract_strided_slice %381 {offsets = [0, 0], sizes = [8, 32], strides = [1, 1]} : vector<8x128xf32> to vector<8x32xf32>
    %384 = arith.addf %382, %383 : vector<8x32xf32>
    %385 = arith.negf %384 : vector<8x32xf32>
    %386 = math.exp %385 : vector<8x32xf32>
    %cst_90 = arith.constant 1.000000e+00 : f32
    %387 = vector.broadcast %cst_90 : f32 to vector<8x32xf32>
    %388 = arith.addf %387, %386 : vector<8x32xf32>
    %389 = arith.divf %387, %388 : vector<8x32xf32>
    %390 = vector.extract_strided_slice %353 {offsets = [0, 32], sizes = [8, 32], strides = [1, 1]} : vector<8x128xf32> to vector<8x32xf32>
    %391 = vector.extract_strided_slice %381 {offsets = [0, 32], sizes = [8, 32], strides = [1, 1]} : vector<8x128xf32> to vector<8x32xf32>
    %392 = arith.addf %390, %391 : vector<8x32xf32>
    %393 = arith.negf %392 : vector<8x32xf32>
    %394 = math.exp %393 : vector<8x32xf32>
    %cst_91 = arith.constant 1.000000e+00 : f32
    %395 = vector.broadcast %cst_91 : f32 to vector<8x32xf32>
    %396 = arith.addf %395, %394 : vector<8x32xf32>
    %397 = arith.divf %395, %396 : vector<8x32xf32>
    %398 = vector.extract_strided_slice %353 {offsets = [0, 64], sizes = [8, 32], strides = [1, 1]} : vector<8x128xf32> to vector<8x32xf32>
    %399 = vector.extract_strided_slice %381 {offsets = [0, 64], sizes = [8, 32], strides = [1, 1]} : vector<8x128xf32> to vector<8x32xf32>
    %400 = arith.mulf %389, %399 : vector<8x32xf32>
    %401 = arith.addf %398, %400 : vector<8x32xf32>
    %402 = math.tanh %401 : vector<8x32xf32>
    %cst_92 = arith.constant 1.000000e+00 : f32
    %403 = vector.broadcast %cst_92 : f32 to vector<8x32xf32>
    %404 = arith.subf %403, %397 : vector<8x32xf32>
    %405 = arith.mulf %404, %402 : vector<8x32xf32>
    %406 = arith.mulf %397, %336 : vector<8x32xf32>
    %407 = arith.addf %405, %406 : vector<8x32xf32>
    %408 = vector.broadcast %c4_i32 : i32 to vector<8x1xi32>
    %409 = arith.cmpi slt, %408, %0 : vector<8x1xi32>
    %410 = vector.shape_cast %409 : vector<8x1xi1> to vector<8x1xi1>
    %411 = vector.broadcast %410 : vector<8x1xi1> to vector<8x32xi1>
    %412 = arith.select %411, %380, %331 : vector<8x32xi1>, vector<8x32xf32>
    %413 = vector.broadcast %343 : i32 to vector<8x1xi32>
    %414 = arith.cmpi slt, %413, %0 : vector<8x1xi32>
    %415 = vector.shape_cast %414 : vector<8x1xi1> to vector<8x1xi1>
    %416 = vector.broadcast %415 : vector<8x1xi1> to vector<8x32xi1>
    %417 = arith.select %416, %407, %336 : vector<8x32xi1>, vector<8x32xf32>
    %c8_i32_93 = arith.constant 8 : i32
    %418 = arith.muli %c4_i32, %c8_i32_93 : i32
    %419 = arith.index_cast %418 : i32 to index
    %c0_94 = arith.constant 0 : index
    %420 = vector.load %arg19[%419, %c0_94] : memref<128x64xf32, #tpu.memory_space<vmem>>, vector<8x32xf32>
    tpu.vector_store %arg19[%419, %c0_94], %412 {strides = array<i32>} : memref<128x64xf32, #tpu.memory_space<vmem>>, vector<8x32xf32>,
    %c8_i32_95 = arith.constant 8 : i32
    %421 = arith.muli %343, %c8_i32_95 : i32
    %422 = arith.index_cast %421 : i32 to index
    %c32_96 = arith.constant 32 : index
    %423 = vector.load %arg19[%422, %c32_96] : memref<128x64xf32, #tpu.memory_space<vmem>>, vector<8x32xf32>
    tpu.vector_store %arg19[%422, %c32_96], %417 {strides = array<i32>} : memref<128x64xf32, #tpu.memory_space<vmem>>, vector<8x32xf32>,
    %c5_i32 = arith.constant 5 : i32
    %c15_i32_97 = arith.constant 15 : i32
    %424 = arith.subi %c15_i32_97, %c5_i32 : i32
    %425 = tpu.concatenate %412, %417 in 1 : vector<8x32xf32>, vector<8x32xf32> -> vector<8x64xf32>
    %cst_98 = arith.constant dense<0.000000e+00> : vector<8x256xf32>
    %426 = tpu.matmul %425, %17, %cst_98 {dimension_numbers = #tpu.dot_dimension_numbers<[1], [0], [0], [1], [0, 0, 1, 1], [], []>} : vector<8x64xf32>, vector<64x256xf32>, vector<8x256xf32> -> vector<8x256xf32>
    %427 = vector.broadcast %18 : vector<1x256xf32> to vector<8x256xf32>
    %428 = arith.addf %426, %427 : vector<8x256xf32>
    %c8_i32_99 = arith.constant 8 : i32
    %429 = arith.muli %c5_i32, %c8_i32_99 : i32
    %430 = arith.index_cast %429 : i32 to index
    %c0_100 = arith.constant 0 : index
    %431 = vector.load %arg18[%430, %c0_100] : memref<128x256xf32, #tpu.memory_space<vmem>>, vector<8x128xf32>
    %c8_i32_101 = arith.constant 8 : i32
    %432 = arith.muli %424, %c8_i32_101 : i32
    %433 = arith.index_cast %432 : i32 to index
    %c128_102 = arith.constant 128 : index
    %434 = vector.load %arg18[%433, %c128_102] : memref<128x256xf32, #tpu.memory_space<vmem>>, vector<8x128xf32>
    %435 = vector.extract_strided_slice %428 {offsets = [0, 0], sizes = [8, 128], strides = [1, 1]} : vector<8x256xf32> to vector<8x128xf32>
    %436 = vector.extract_strided_slice %431 {offsets = [0, 0], sizes = [8, 32], strides = [1, 1]} : vector<8x128xf32> to vector<8x32xf32>
    %437 = vector.extract_strided_slice %435 {offsets = [0, 0], sizes = [8, 32], strides = [1, 1]} : vector<8x128xf32> to vector<8x32xf32>
    %438 = arith.addf %436, %437 : vector<8x32xf32>
    %439 = arith.negf %438 : vector<8x32xf32>
    %440 = math.exp %439 : vector<8x32xf32>
    %cst_103 = arith.constant 1.000000e+00 : f32
    %441 = vector.broadcast %cst_103 : f32 to vector<8x32xf32>
    %442 = arith.addf %441, %440 : vector<8x32xf32>
    %443 = arith.divf %441, %442 : vector<8x32xf32>
    %444 = vector.extract_strided_slice %431 {offsets = [0, 32], sizes = [8, 32], strides = [1, 1]} : vector<8x128xf32> to vector<8x32xf32>
    %445 = vector.extract_strided_slice %435 {offsets = [0, 32], sizes = [8, 32], strides = [1, 1]} : vector<8x128xf32> to vector<8x32xf32>
    %446 = arith.addf %444, %445 : vector<8x32xf32>
    %447 = arith.negf %446 : vector<8x32xf32>
    %448 = math.exp %447 : vector<8x32xf32>
    %cst_104 = arith.constant 1.000000e+00 : f32
    %449 = vector.broadcast %cst_104 : f32 to vector<8x32xf32>
    %450 = arith.addf %449, %448 : vector<8x32xf32>
    %451 = arith.divf %449, %450 : vector<8x32xf32>
    %452 = vector.extract_strided_slice %431 {offsets = [0, 64], sizes = [8, 32], strides = [1, 1]} : vector<8x128xf32> to vector<8x32xf32>
    %453 = vector.extract_strided_slice %435 {offsets = [0, 64], sizes = [8, 32], strides = [1, 1]} : vector<8x128xf32> to vector<8x32xf32>
    %454 = arith.mulf %443, %453 : vector<8x32xf32>
    %455 = arith.addf %452, %454 : vector<8x32xf32>
    %456 = math.tanh %455 : vector<8x32xf32>
    %cst_105 = arith.constant 1.000000e+00 : f32
    %457 = vector.broadcast %cst_105 : f32 to vector<8x32xf32>
    %458 = arith.subf %457, %451 : vector<8x32xf32>
    %459 = arith.mulf %458, %456 : vector<8x32xf32>
    %460 = arith.mulf %451, %412 : vector<8x32xf32>
    %461 = arith.addf %459, %460 : vector<8x32xf32>
    %462 = vector.extract_strided_slice %428 {offsets = [0, 128], sizes = [8, 128], strides = [1, 1]} : vector<8x256xf32> to vector<8x128xf32>
    %463 = vector.extract_strided_slice %434 {offsets = [0, 0], sizes = [8, 32], strides = [1, 1]} : vector<8x128xf32> to vector<8x32xf32>
    %464 = vector.extract_strided_slice %462 {offsets = [0, 0], sizes = [8, 32], strides = [1, 1]} : vector<8x128xf32> to vector<8x32xf32>
    %465 = arith.addf %463, %464 : vector<8x32xf32>
    %466 = arith.negf %465 : vector<8x32xf32>
    %467 = math.exp %466 : vector<8x32xf32>
    %cst_106 = arith.constant 1.000000e+00 : f32
    %468 = vector.broadcast %cst_106 : f32 to vector<8x32xf32>
    %469 = arith.addf %468, %467 : vector<8x32xf32>
    %470 = arith.divf %468, %469 : vector<8x32xf32>
    %471 = vector.extract_strided_slice %434 {offsets = [0, 32], sizes = [8, 32], strides = [1, 1]} : vector<8x128xf32> to vector<8x32xf32>
    %472 = vector.extract_strided_slice %462 {offsets = [0, 32], sizes = [8, 32], strides = [1, 1]} : vector<8x128xf32> to vector<8x32xf32>
    %473 = arith.addf %471, %472 : vector<8x32xf32>
    %474 = arith.negf %473 : vector<8x32xf32>
    %475 = math.exp %474 : vector<8x32xf32>
    %cst_107 = arith.constant 1.000000e+00 : f32
    %476 = vector.broadcast %cst_107 : f32 to vector<8x32xf32>
    %477 = arith.addf %476, %475 : vector<8x32xf32>
    %478 = arith.divf %476, %477 : vector<8x32xf32>
    %479 = vector.extract_strided_slice %434 {offsets = [0, 64], sizes = [8, 32], strides = [1, 1]} : vector<8x128xf32> to vector<8x32xf32>
    %480 = vector.extract_strided_slice %462 {offsets = [0, 64], sizes = [8, 32], strides = [1, 1]} : vector<8x128xf32> to vector<8x32xf32>
    %481 = arith.mulf %470, %480 : vector<8x32xf32>
    %482 = arith.addf %479, %481 : vector<8x32xf32>
    %483 = math.tanh %482 : vector<8x32xf32>
    %cst_108 = arith.constant 1.000000e+00 : f32
    %484 = vector.broadcast %cst_108 : f32 to vector<8x32xf32>
    %485 = arith.subf %484, %478 : vector<8x32xf32>
    %486 = arith.mulf %485, %483 : vector<8x32xf32>
    %487 = arith.mulf %478, %417 : vector<8x32xf32>
    %488 = arith.addf %486, %487 : vector<8x32xf32>
    %489 = vector.broadcast %c5_i32 : i32 to vector<8x1xi32>
    %490 = arith.cmpi slt, %489, %0 : vector<8x1xi32>
    %491 = vector.shape_cast %490 : vector<8x1xi1> to vector<8x1xi1>
    %492 = vector.broadcast %491 : vector<8x1xi1> to vector<8x32xi1>
    %493 = arith.select %492, %461, %412 : vector<8x32xi1>, vector<8x32xf32>
    %494 = vector.broadcast %424 : i32 to vector<8x1xi32>
    %495 = arith.cmpi slt, %494, %0 : vector<8x1xi32>
    %496 = vector.shape_cast %495 : vector<8x1xi1> to vector<8x1xi1>
    %497 = vector.broadcast %496 : vector<8x1xi1> to vector<8x32xi1>
    %498 = arith.select %497, %488, %417 : vector<8x32xi1>, vector<8x32xf32>
    %c8_i32_109 = arith.constant 8 : i32
    %499 = arith.muli %c5_i32, %c8_i32_109 : i32
    %500 = arith.index_cast %499 : i32 to index
    %c0_110 = arith.constant 0 : index
    %501 = vector.load %arg19[%500, %c0_110] : memref<128x64xf32, #tpu.memory_space<vmem>>, vector<8x32xf32>
    tpu.vector_store %arg19[%500, %c0_110], %493 {strides = array<i32>} : memref<128x64xf32, #tpu.memory_space<vmem>>, vector<8x32xf32>,
    %c8_i32_111 = arith.constant 8 : i32
    %502 = arith.muli %424, %c8_i32_111 : i32
    %503 = arith.index_cast %502 : i32 to index
    %c32_112 = arith.constant 32 : index
    %504 = vector.load %arg19[%503, %c32_112] : memref<128x64xf32, #tpu.memory_space<vmem>>, vector<8x32xf32>
    tpu.vector_store %arg19[%503, %c32_112], %498 {strides = array<i32>} : memref<128x64xf32, #tpu.memory_space<vmem>>, vector<8x32xf32>,
    %c6_i32 = arith.constant 6 : i32
    %c15_i32_113 = arith.constant 15 : i32
    %505 = arith.subi %c15_i32_113, %c6_i32 : i32
    %506 = tpu.concatenate %493, %498 in 1 : vector<8x32xf32>, vector<8x32xf32> -> vector<8x64xf32>
    %cst_114 = arith.constant dense<0.000000e+00> : vector<8x256xf32>
    %507 = tpu.matmul %506, %17, %cst_114 {dimension_numbers = #tpu.dot_dimension_numbers<[1], [0], [0], [1], [0, 0, 1, 1], [], []>} : vector<8x64xf32>, vector<64x256xf32>, vector<8x256xf32> -> vector<8x256xf32>
    %508 = vector.broadcast %18 : vector<1x256xf32> to vector<8x256xf32>
    %509 = arith.addf %507, %508 : vector<8x256xf32>
    %c8_i32_115 = arith.constant 8 : i32
    %510 = arith.muli %c6_i32, %c8_i32_115 : i32
    %511 = arith.index_cast %510 : i32 to index
    %c0_116 = arith.constant 0 : index
    %512 = vector.load %arg18[%511, %c0_116] : memref<128x256xf32, #tpu.memory_space<vmem>>, vector<8x128xf32>
    %c8_i32_117 = arith.constant 8 : i32
    %513 = arith.muli %505, %c8_i32_117 : i32
    %514 = arith.index_cast %513 : i32 to index
    %c128_118 = arith.constant 128 : index
    %515 = vector.load %arg18[%514, %c128_118] : memref<128x256xf32, #tpu.memory_space<vmem>>, vector<8x128xf32>
    %516 = vector.extract_strided_slice %509 {offsets = [0, 0], sizes = [8, 128], strides = [1, 1]} : vector<8x256xf32> to vector<8x128xf32>
    %517 = vector.extract_strided_slice %512 {offsets = [0, 0], sizes = [8, 32], strides = [1, 1]} : vector<8x128xf32> to vector<8x32xf32>
    %518 = vector.extract_strided_slice %516 {offsets = [0, 0], sizes = [8, 32], strides = [1, 1]} : vector<8x128xf32> to vector<8x32xf32>
    %519 = arith.addf %517, %518 : vector<8x32xf32>
    %520 = arith.negf %519 : vector<8x32xf32>
    %521 = math.exp %520 : vector<8x32xf32>
    %cst_119 = arith.constant 1.000000e+00 : f32
    %522 = vector.broadcast %cst_119 : f32 to vector<8x32xf32>
    %523 = arith.addf %522, %521 : vector<8x32xf32>
    %524 = arith.divf %522, %523 : vector<8x32xf32>
    %525 = vector.extract_strided_slice %512 {offsets = [0, 32], sizes = [8, 32], strides = [1, 1]} : vector<8x128xf32> to vector<8x32xf32>
    %526 = vector.extract_strided_slice %516 {offsets = [0, 32], sizes = [8, 32], strides = [1, 1]} : vector<8x128xf32> to vector<8x32xf32>
    %527 = arith.addf %525, %526 : vector<8x32xf32>
    %528 = arith.negf %527 : vector<8x32xf32>
    %529 = math.exp %528 : vector<8x32xf32>
    %cst_120 = arith.constant 1.000000e+00 : f32
    %530 = vector.broadcast %cst_120 : f32 to vector<8x32xf32>
    %531 = arith.addf %530, %529 : vector<8x32xf32>
    %532 = arith.divf %530, %531 : vector<8x32xf32>
    %533 = vector.extract_strided_slice %512 {offsets = [0, 64], sizes = [8, 32], strides = [1, 1]} : vector<8x128xf32> to vector<8x32xf32>
    %534 = vector.extract_strided_slice %516 {offsets = [0, 64], sizes = [8, 32], strides = [1, 1]} : vector<8x128xf32> to vector<8x32xf32>
    %535 = arith.mulf %524, %534 : vector<8x32xf32>
    %536 = arith.addf %533, %535 : vector<8x32xf32>
    %537 = math.tanh %536 : vector<8x32xf32>
    %cst_121 = arith.constant 1.000000e+00 : f32
    %538 = vector.broadcast %cst_121 : f32 to vector<8x32xf32>
    %539 = arith.subf %538, %532 : vector<8x32xf32>
    %540 = arith.mulf %539, %537 : vector<8x32xf32>
    %541 = arith.mulf %532, %493 : vector<8x32xf32>
    %542 = arith.addf %540, %541 : vector<8x32xf32>
    %543 = vector.extract_strided_slice %509 {offsets = [0, 128], sizes = [8, 128], strides = [1, 1]} : vector<8x256xf32> to vector<8x128xf32>
    %544 = vector.extract_strided_slice %515 {offsets = [0, 0], sizes = [8, 32], strides = [1, 1]} : vector<8x128xf32> to vector<8x32xf32>
    %545 = vector.extract_strided_slice %543 {offsets = [0, 0], sizes = [8, 32], strides = [1, 1]} : vector<8x128xf32> to vector<8x32xf32>
    %546 = arith.addf %544, %545 : vector<8x32xf32>
    %547 = arith.negf %546 : vector<8x32xf32>
    %548 = math.exp %547 : vector<8x32xf32>
    %cst_122 = arith.constant 1.000000e+00 : f32
    %549 = vector.broadcast %cst_122 : f32 to vector<8x32xf32>
    %550 = arith.addf %549, %548 : vector<8x32xf32>
    %551 = arith.divf %549, %550 : vector<8x32xf32>
    %552 = vector.extract_strided_slice %515 {offsets = [0, 32], sizes = [8, 32], strides = [1, 1]} : vector<8x128xf32> to vector<8x32xf32>
    %553 = vector.extract_strided_slice %543 {offsets = [0, 32], sizes = [8, 32], strides = [1, 1]} : vector<8x128xf32> to vector<8x32xf32>
    %554 = arith.addf %552, %553 : vector<8x32xf32>
    %555 = arith.negf %554 : vector<8x32xf32>
    %556 = math.exp %555 : vector<8x32xf32>
    %cst_123 = arith.constant 1.000000e+00 : f32
    %557 = vector.broadcast %cst_123 : f32 to vector<8x32xf32>
    %558 = arith.addf %557, %556 : vector<8x32xf32>
    %559 = arith.divf %557, %558 : vector<8x32xf32>
    %560 = vector.extract_strided_slice %515 {offsets = [0, 64], sizes = [8, 32], strides = [1, 1]} : vector<8x128xf32> to vector<8x32xf32>
    %561 = vector.extract_strided_slice %543 {offsets = [0, 64], sizes = [8, 32], strides = [1, 1]} : vector<8x128xf32> to vector<8x32xf32>
    %562 = arith.mulf %551, %561 : vector<8x32xf32>
    %563 = arith.addf %560, %562 : vector<8x32xf32>
    %564 = math.tanh %563 : vector<8x32xf32>
    %cst_124 = arith.constant 1.000000e+00 : f32
    %565 = vector.broadcast %cst_124 : f32 to vector<8x32xf32>
    %566 = arith.subf %565, %559 : vector<8x32xf32>
    %567 = arith.mulf %566, %564 : vector<8x32xf32>
    %568 = arith.mulf %559, %498 : vector<8x32xf32>
    %569 = arith.addf %567, %568 : vector<8x32xf32>
    %570 = vector.broadcast %c6_i32 : i32 to vector<8x1xi32>
    %571 = arith.cmpi slt, %570, %0 : vector<8x1xi32>
    %572 = vector.shape_cast %571 : vector<8x1xi1> to vector<8x1xi1>
    %573 = vector.broadcast %572 : vector<8x1xi1> to vector<8x32xi1>
    %574 = arith.select %573, %542, %493 : vector<8x32xi1>, vector<8x32xf32>
    %575 = vector.broadcast %505 : i32 to vector<8x1xi32>
    %576 = arith.cmpi slt, %575, %0 : vector<8x1xi32>
    %577 = vector.shape_cast %576 : vector<8x1xi1> to vector<8x1xi1>
    %578 = vector.broadcast %577 : vector<8x1xi1> to vector<8x32xi1>
    %579 = arith.select %578, %569, %498 : vector<8x32xi1>, vector<8x32xf32>
    %c8_i32_125 = arith.constant 8 : i32
    %580 = arith.muli %c6_i32, %c8_i32_125 : i32
    %581 = arith.index_cast %580 : i32 to index
    %c0_126 = arith.constant 0 : index
    %582 = vector.load %arg19[%581, %c0_126] : memref<128x64xf32, #tpu.memory_space<vmem>>, vector<8x32xf32>
    tpu.vector_store %arg19[%581, %c0_126], %574 {strides = array<i32>} : memref<128x64xf32, #tpu.memory_space<vmem>>, vector<8x32xf32>,
    %c8_i32_127 = arith.constant 8 : i32
    %583 = arith.muli %505, %c8_i32_127 : i32
    %584 = arith.index_cast %583 : i32 to index
    %c32_128 = arith.constant 32 : index
    %585 = vector.load %arg19[%584, %c32_128] : memref<128x64xf32, #tpu.memory_space<vmem>>, vector<8x32xf32>
    tpu.vector_store %arg19[%584, %c32_128], %579 {strides = array<i32>} : memref<128x64xf32, #tpu.memory_space<vmem>>, vector<8x32xf32>,
    %c7_i32 = arith.constant 7 : i32
    %c15_i32_129 = arith.constant 15 : i32
    %586 = arith.subi %c15_i32_129, %c7_i32 : i32
    %587 = tpu.concatenate %574, %579 in 1 : vector<8x32xf32>, vector<8x32xf32> -> vector<8x64xf32>
    %cst_130 = arith.constant dense<0.000000e+00> : vector<8x256xf32>
    %588 = tpu.matmul %587, %17, %cst_130 {dimension_numbers = #tpu.dot_dimension_numbers<[1], [0], [0], [1], [0, 0, 1, 1], [], []>} : vector<8x64xf32>, vector<64x256xf32>, vector<8x256xf32> -> vector<8x256xf32>
    %589 = vector.broadcast %18 : vector<1x256xf32> to vector<8x256xf32>
    %590 = arith.addf %588, %589 : vector<8x256xf32>
    %c8_i32_131 = arith.constant 8 : i32
    %591 = arith.muli %c7_i32, %c8_i32_131 : i32
    %592 = arith.index_cast %591 : i32 to index
    %c0_132 = arith.constant 0 : index
    %593 = vector.load %arg18[%592, %c0_132] : memref<128x256xf32, #tpu.memory_space<vmem>>, vector<8x128xf32>
    %c8_i32_133 = arith.constant 8 : i32
    %594 = arith.muli %586, %c8_i32_133 : i32
    %595 = arith.index_cast %594 : i32 to index
    %c128_134 = arith.constant 128 : index
    %596 = vector.load %arg18[%595, %c128_134] : memref<128x256xf32, #tpu.memory_space<vmem>>, vector<8x128xf32>
    %597 = vector.extract_strided_slice %590 {offsets = [0, 0], sizes = [8, 128], strides = [1, 1]} : vector<8x256xf32> to vector<8x128xf32>
    %598 = vector.extract_strided_slice %593 {offsets = [0, 0], sizes = [8, 32], strides = [1, 1]} : vector<8x128xf32> to vector<8x32xf32>
    %599 = vector.extract_strided_slice %597 {offsets = [0, 0], sizes = [8, 32], strides = [1, 1]} : vector<8x128xf32> to vector<8x32xf32>
    %600 = arith.addf %598, %599 : vector<8x32xf32>
    %601 = arith.negf %600 : vector<8x32xf32>
    %602 = math.exp %601 : vector<8x32xf32>
    %cst_135 = arith.constant 1.000000e+00 : f32
    %603 = vector.broadcast %cst_135 : f32 to vector<8x32xf32>
    %604 = arith.addf %603, %602 : vector<8x32xf32>
    %605 = arith.divf %603, %604 : vector<8x32xf32>
    %606 = vector.extract_strided_slice %593 {offsets = [0, 32], sizes = [8, 32], strides = [1, 1]} : vector<8x128xf32> to vector<8x32xf32>
    %607 = vector.extract_strided_slice %597 {offsets = [0, 32], sizes = [8, 32], strides = [1, 1]} : vector<8x128xf32> to vector<8x32xf32>
    %608 = arith.addf %606, %607 : vector<8x32xf32>
    %609 = arith.negf %608 : vector<8x32xf32>
    %610 = math.exp %609 : vector<8x32xf32>
    %cst_136 = arith.constant 1.000000e+00 : f32
    %611 = vector.broadcast %cst_136 : f32 to vector<8x32xf32>
    %612 = arith.addf %611, %610 : vector<8x32xf32>
    %613 = arith.divf %611, %612 : vector<8x32xf32>
    %614 = vector.extract_strided_slice %593 {offsets = [0, 64], sizes = [8, 32], strides = [1, 1]} : vector<8x128xf32> to vector<8x32xf32>
    %615 = vector.extract_strided_slice %597 {offsets = [0, 64], sizes = [8, 32], strides = [1, 1]} : vector<8x128xf32> to vector<8x32xf32>
    %616 = arith.mulf %605, %615 : vector<8x32xf32>
    %617 = arith.addf %614, %616 : vector<8x32xf32>
    %618 = math.tanh %617 : vector<8x32xf32>
    %cst_137 = arith.constant 1.000000e+00 : f32
    %619 = vector.broadcast %cst_137 : f32 to vector<8x32xf32>
    %620 = arith.subf %619, %613 : vector<8x32xf32>
    %621 = arith.mulf %620, %618 : vector<8x32xf32>
    %622 = arith.mulf %613, %574 : vector<8x32xf32>
    %623 = arith.addf %621, %622 : vector<8x32xf32>
    %624 = vector.extract_strided_slice %590 {offsets = [0, 128], sizes = [8, 128], strides = [1, 1]} : vector<8x256xf32> to vector<8x128xf32>
    %625 = vector.extract_strided_slice %596 {offsets = [0, 0], sizes = [8, 32], strides = [1, 1]} : vector<8x128xf32> to vector<8x32xf32>
    %626 = vector.extract_strided_slice %624 {offsets = [0, 0], sizes = [8, 32], strides = [1, 1]} : vector<8x128xf32> to vector<8x32xf32>
    %627 = arith.addf %625, %626 : vector<8x32xf32>
    %628 = arith.negf %627 : vector<8x32xf32>
    %629 = math.exp %628 : vector<8x32xf32>
    %cst_138 = arith.constant 1.000000e+00 : f32
    %630 = vector.broadcast %cst_138 : f32 to vector<8x32xf32>
    %631 = arith.addf %630, %629 : vector<8x32xf32>
    %632 = arith.divf %630, %631 : vector<8x32xf32>
    %633 = vector.extract_strided_slice %596 {offsets = [0, 32], sizes = [8, 32], strides = [1, 1]} : vector<8x128xf32> to vector<8x32xf32>
    %634 = vector.extract_strided_slice %624 {offsets = [0, 32], sizes = [8, 32], strides = [1, 1]} : vector<8x128xf32> to vector<8x32xf32>
    %635 = arith.addf %633, %634 : vector<8x32xf32>
    %636 = arith.negf %635 : vector<8x32xf32>
    %637 = math.exp %636 : vector<8x32xf32>
    %cst_139 = arith.constant 1.000000e+00 : f32
    %638 = vector.broadcast %cst_139 : f32 to vector<8x32xf32>
    %639 = arith.addf %638, %637 : vector<8x32xf32>
    %640 = arith.divf %638, %639 : vector<8x32xf32>
    %641 = vector.extract_strided_slice %596 {offsets = [0, 64], sizes = [8, 32], strides = [1, 1]} : vector<8x128xf32> to vector<8x32xf32>
    %642 = vector.extract_strided_slice %624 {offsets = [0, 64], sizes = [8, 32], strides = [1, 1]} : vector<8x128xf32> to vector<8x32xf32>
    %643 = arith.mulf %632, %642 : vector<8x32xf32>
    %644 = arith.addf %641, %643 : vector<8x32xf32>
    %645 = math.tanh %644 : vector<8x32xf32>
    %cst_140 = arith.constant 1.000000e+00 : f32
    %646 = vector.broadcast %cst_140 : f32 to vector<8x32xf32>
    %647 = arith.subf %646, %640 : vector<8x32xf32>
    %648 = arith.mulf %647, %645 : vector<8x32xf32>
    %649 = arith.mulf %640, %579 : vector<8x32xf32>
    %650 = arith.addf %648, %649 : vector<8x32xf32>
    %651 = vector.broadcast %c7_i32 : i32 to vector<8x1xi32>
    %652 = arith.cmpi slt, %651, %0 : vector<8x1xi32>
    %653 = vector.shape_cast %652 : vector<8x1xi1> to vector<8x1xi1>
    %654 = vector.broadcast %653 : vector<8x1xi1> to vector<8x32xi1>
    %655 = arith.select %654, %623, %574 : vector<8x32xi1>, vector<8x32xf32>
    %656 = vector.broadcast %586 : i32 to vector<8x1xi32>
    %657 = arith.cmpi slt, %656, %0 : vector<8x1xi32>
    %658 = vector.shape_cast %657 : vector<8x1xi1> to vector<8x1xi1>
    %659 = vector.broadcast %658 : vector<8x1xi1> to vector<8x32xi1>
    %660 = arith.select %659, %650, %579 : vector<8x32xi1>, vector<8x32xf32>
    %c8_i32_141 = arith.constant 8 : i32
    %661 = arith.muli %c7_i32, %c8_i32_141 : i32
    %662 = arith.index_cast %661 : i32 to index
    %c0_142 = arith.constant 0 : index
    %663 = vector.load %arg19[%662, %c0_142] : memref<128x64xf32, #tpu.memory_space<vmem>>, vector<8x32xf32>
    tpu.vector_store %arg19[%662, %c0_142], %655 {strides = array<i32>} : memref<128x64xf32, #tpu.memory_space<vmem>>, vector<8x32xf32>,
    %c8_i32_143 = arith.constant 8 : i32
    %664 = arith.muli %586, %c8_i32_143 : i32
    %665 = arith.index_cast %664 : i32 to index
    %c32_144 = arith.constant 32 : index
    %666 = vector.load %arg19[%665, %c32_144] : memref<128x64xf32, #tpu.memory_space<vmem>>, vector<8x32xf32>
    tpu.vector_store %arg19[%665, %c32_144], %660 {strides = array<i32>} : memref<128x64xf32, #tpu.memory_space<vmem>>, vector<8x32xf32>,
    %c8_i32_145 = arith.constant 8 : i32
    %c15_i32_146 = arith.constant 15 : i32
    %667 = arith.subi %c15_i32_146, %c8_i32_145 : i32
    %668 = tpu.concatenate %655, %660 in 1 : vector<8x32xf32>, vector<8x32xf32> -> vector<8x64xf32>
    %cst_147 = arith.constant dense<0.000000e+00> : vector<8x256xf32>
    %669 = tpu.matmul %668, %17, %cst_147 {dimension_numbers = #tpu.dot_dimension_numbers<[1], [0], [0], [1], [0, 0, 1, 1], [], []>} : vector<8x64xf32>, vector<64x256xf32>, vector<8x256xf32> -> vector<8x256xf32>
    %670 = vector.broadcast %18 : vector<1x256xf32> to vector<8x256xf32>
    %671 = arith.addf %669, %670 : vector<8x256xf32>
    %c8_i32_148 = arith.constant 8 : i32
    %672 = arith.muli %c8_i32_145, %c8_i32_148 : i32
    %673 = arith.index_cast %672 : i32 to index
    %c0_149 = arith.constant 0 : index
    %674 = vector.load %arg18[%673, %c0_149] : memref<128x256xf32, #tpu.memory_space<vmem>>, vector<8x128xf32>
    %c8_i32_150 = arith.constant 8 : i32
    %675 = arith.muli %667, %c8_i32_150 : i32
    %676 = arith.index_cast %675 : i32 to index
    %c128_151 = arith.constant 128 : index
    %677 = vector.load %arg18[%676, %c128_151] : memref<128x256xf32, #tpu.memory_space<vmem>>, vector<8x128xf32>
    %678 = vector.extract_strided_slice %671 {offsets = [0, 0], sizes = [8, 128], strides = [1, 1]} : vector<8x256xf32> to vector<8x128xf32>
    %679 = vector.extract_strided_slice %674 {offsets = [0, 0], sizes = [8, 32], strides = [1, 1]} : vector<8x128xf32> to vector<8x32xf32>
    %680 = vector.extract_strided_slice %678 {offsets = [0, 0], sizes = [8, 32], strides = [1, 1]} : vector<8x128xf32> to vector<8x32xf32>
    %681 = arith.addf %679, %680 : vector<8x32xf32>
    %682 = arith.negf %681 : vector<8x32xf32>
    %683 = math.exp %682 : vector<8x32xf32>
    %cst_152 = arith.constant 1.000000e+00 : f32
    %684 = vector.broadcast %cst_152 : f32 to vector<8x32xf32>
    %685 = arith.addf %684, %683 : vector<8x32xf32>
    %686 = arith.divf %684, %685 : vector<8x32xf32>
    %687 = vector.extract_strided_slice %674 {offsets = [0, 32], sizes = [8, 32], strides = [1, 1]} : vector<8x128xf32> to vector<8x32xf32>
    %688 = vector.extract_strided_slice %678 {offsets = [0, 32], sizes = [8, 32], strides = [1, 1]} : vector<8x128xf32> to vector<8x32xf32>
    %689 = arith.addf %687, %688 : vector<8x32xf32>
    %690 = arith.negf %689 : vector<8x32xf32>
    %691 = math.exp %690 : vector<8x32xf32>
    %cst_153 = arith.constant 1.000000e+00 : f32
    %692 = vector.broadcast %cst_153 : f32 to vector<8x32xf32>
    %693 = arith.addf %692, %691 : vector<8x32xf32>
    %694 = arith.divf %692, %693 : vector<8x32xf32>
    %695 = vector.extract_strided_slice %674 {offsets = [0, 64], sizes = [8, 32], strides = [1, 1]} : vector<8x128xf32> to vector<8x32xf32>
    %696 = vector.extract_strided_slice %678 {offsets = [0, 64], sizes = [8, 32], strides = [1, 1]} : vector<8x128xf32> to vector<8x32xf32>
    %697 = arith.mulf %686, %696 : vector<8x32xf32>
    %698 = arith.addf %695, %697 : vector<8x32xf32>
    %699 = math.tanh %698 : vector<8x32xf32>
    %cst_154 = arith.constant 1.000000e+00 : f32
    %700 = vector.broadcast %cst_154 : f32 to vector<8x32xf32>
    %701 = arith.subf %700, %694 : vector<8x32xf32>
    %702 = arith.mulf %701, %699 : vector<8x32xf32>
    %703 = arith.mulf %694, %655 : vector<8x32xf32>
    %704 = arith.addf %702, %703 : vector<8x32xf32>
    %705 = vector.extract_strided_slice %671 {offsets = [0, 128], sizes = [8, 128], strides = [1, 1]} : vector<8x256xf32> to vector<8x128xf32>
    %706 = vector.extract_strided_slice %677 {offsets = [0, 0], sizes = [8, 32], strides = [1, 1]} : vector<8x128xf32> to vector<8x32xf32>
    %707 = vector.extract_strided_slice %705 {offsets = [0, 0], sizes = [8, 32], strides = [1, 1]} : vector<8x128xf32> to vector<8x32xf32>
    %708 = arith.addf %706, %707 : vector<8x32xf32>
    %709 = arith.negf %708 : vector<8x32xf32>
    %710 = math.exp %709 : vector<8x32xf32>
    %cst_155 = arith.constant 1.000000e+00 : f32
    %711 = vector.broadcast %cst_155 : f32 to vector<8x32xf32>
    %712 = arith.addf %711, %710 : vector<8x32xf32>
    %713 = arith.divf %711, %712 : vector<8x32xf32>
    %714 = vector.extract_strided_slice %677 {offsets = [0, 32], sizes = [8, 32], strides = [1, 1]} : vector<8x128xf32> to vector<8x32xf32>
    %715 = vector.extract_strided_slice %705 {offsets = [0, 32], sizes = [8, 32], strides = [1, 1]} : vector<8x128xf32> to vector<8x32xf32>
    %716 = arith.addf %714, %715 : vector<8x32xf32>
    %717 = arith.negf %716 : vector<8x32xf32>
    %718 = math.exp %717 : vector<8x32xf32>
    %cst_156 = arith.constant 1.000000e+00 : f32
    %719 = vector.broadcast %cst_156 : f32 to vector<8x32xf32>
    %720 = arith.addf %719, %718 : vector<8x32xf32>
    %721 = arith.divf %719, %720 : vector<8x32xf32>
    %722 = vector.extract_strided_slice %677 {offsets = [0, 64], sizes = [8, 32], strides = [1, 1]} : vector<8x128xf32> to vector<8x32xf32>
    %723 = vector.extract_strided_slice %705 {offsets = [0, 64], sizes = [8, 32], strides = [1, 1]} : vector<8x128xf32> to vector<8x32xf32>
    %724 = arith.mulf %713, %723 : vector<8x32xf32>
    %725 = arith.addf %722, %724 : vector<8x32xf32>
    %726 = math.tanh %725 : vector<8x32xf32>
    %cst_157 = arith.constant 1.000000e+00 : f32
    %727 = vector.broadcast %cst_157 : f32 to vector<8x32xf32>
    %728 = arith.subf %727, %721 : vector<8x32xf32>
    %729 = arith.mulf %728, %726 : vector<8x32xf32>
    %730 = arith.mulf %721, %660 : vector<8x32xf32>
    %731 = arith.addf %729, %730 : vector<8x32xf32>
    %732 = vector.broadcast %c8_i32_145 : i32 to vector<8x1xi32>
    %733 = arith.cmpi slt, %732, %0 : vector<8x1xi32>
    %734 = vector.shape_cast %733 : vector<8x1xi1> to vector<8x1xi1>
    %735 = vector.broadcast %734 : vector<8x1xi1> to vector<8x32xi1>
    %736 = arith.select %735, %704, %655 : vector<8x32xi1>, vector<8x32xf32>
    %737 = vector.broadcast %667 : i32 to vector<8x1xi32>
    %738 = arith.cmpi slt, %737, %0 : vector<8x1xi32>
    %739 = vector.shape_cast %738 : vector<8x1xi1> to vector<8x1xi1>
    %740 = vector.broadcast %739 : vector<8x1xi1> to vector<8x32xi1>
    %741 = arith.select %740, %731, %660 : vector<8x32xi1>, vector<8x32xf32>
    %c8_i32_158 = arith.constant 8 : i32
    %742 = arith.muli %c8_i32_145, %c8_i32_158 : i32
    %743 = arith.index_cast %742 : i32 to index
    %c0_159 = arith.constant 0 : index
    %744 = vector.load %arg19[%743, %c0_159] : memref<128x64xf32, #tpu.memory_space<vmem>>, vector<8x32xf32>
    tpu.vector_store %arg19[%743, %c0_159], %736 {strides = array<i32>} : memref<128x64xf32, #tpu.memory_space<vmem>>, vector<8x32xf32>,
    %c8_i32_160 = arith.constant 8 : i32
    %745 = arith.muli %667, %c8_i32_160 : i32
    %746 = arith.index_cast %745 : i32 to index
    %c32_161 = arith.constant 32 : index
    %747 = vector.load %arg19[%746, %c32_161] : memref<128x64xf32, #tpu.memory_space<vmem>>, vector<8x32xf32>
    tpu.vector_store %arg19[%746, %c32_161], %741 {strides = array<i32>} : memref<128x64xf32, #tpu.memory_space<vmem>>, vector<8x32xf32>,
    %c9_i32 = arith.constant 9 : i32
    %c15_i32_162 = arith.constant 15 : i32
    %748 = arith.subi %c15_i32_162, %c9_i32 : i32
    %749 = tpu.concatenate %736, %741 in 1 : vector<8x32xf32>, vector<8x32xf32> -> vector<8x64xf32>
    %cst_163 = arith.constant dense<0.000000e+00> : vector<8x256xf32>
    %750 = tpu.matmul %749, %17, %cst_163 {dimension_numbers = #tpu.dot_dimension_numbers<[1], [0], [0], [1], [0, 0, 1, 1], [], []>} : vector<8x64xf32>, vector<64x256xf32>, vector<8x256xf32> -> vector<8x256xf32>
    %751 = vector.broadcast %18 : vector<1x256xf32> to vector<8x256xf32>
    %752 = arith.addf %750, %751 : vector<8x256xf32>
    %c8_i32_164 = arith.constant 8 : i32
    %753 = arith.muli %c9_i32, %c8_i32_164 : i32
    %754 = arith.index_cast %753 : i32 to index
    %c0_165 = arith.constant 0 : index
    %755 = vector.load %arg18[%754, %c0_165] : memref<128x256xf32, #tpu.memory_space<vmem>>, vector<8x128xf32>
    %c8_i32_166 = arith.constant 8 : i32
    %756 = arith.muli %748, %c8_i32_166 : i32
    %757 = arith.index_cast %756 : i32 to index
    %c128_167 = arith.constant 128 : index
    %758 = vector.load %arg18[%757, %c128_167] : memref<128x256xf32, #tpu.memory_space<vmem>>, vector<8x128xf32>
    %759 = vector.extract_strided_slice %752 {offsets = [0, 0], sizes = [8, 128], strides = [1, 1]} : vector<8x256xf32> to vector<8x128xf32>
    %760 = vector.extract_strided_slice %755 {offsets = [0, 0], sizes = [8, 32], strides = [1, 1]} : vector<8x128xf32> to vector<8x32xf32>
    %761 = vector.extract_strided_slice %759 {offsets = [0, 0], sizes = [8, 32], strides = [1, 1]} : vector<8x128xf32> to vector<8x32xf32>
    %762 = arith.addf %760, %761 : vector<8x32xf32>
    %763 = arith.negf %762 : vector<8x32xf32>
    %764 = math.exp %763 : vector<8x32xf32>
    %cst_168 = arith.constant 1.000000e+00 : f32
    %765 = vector.broadcast %cst_168 : f32 to vector<8x32xf32>
    %766 = arith.addf %765, %764 : vector<8x32xf32>
    %767 = arith.divf %765, %766 : vector<8x32xf32>
    %768 = vector.extract_strided_slice %755 {offsets = [0, 32], sizes = [8, 32], strides = [1, 1]} : vector<8x128xf32> to vector<8x32xf32>
    %769 = vector.extract_strided_slice %759 {offsets = [0, 32], sizes = [8, 32], strides = [1, 1]} : vector<8x128xf32> to vector<8x32xf32>
    %770 = arith.addf %768, %769 : vector<8x32xf32>
    %771 = arith.negf %770 : vector<8x32xf32>
    %772 = math.exp %771 : vector<8x32xf32>
    %cst_169 = arith.constant 1.000000e+00 : f32
    %773 = vector.broadcast %cst_169 : f32 to vector<8x32xf32>
    %774 = arith.addf %773, %772 : vector<8x32xf32>
    %775 = arith.divf %773, %774 : vector<8x32xf32>
    %776 = vector.extract_strided_slice %755 {offsets = [0, 64], sizes = [8, 32], strides = [1, 1]} : vector<8x128xf32> to vector<8x32xf32>
    %777 = vector.extract_strided_slice %759 {offsets = [0, 64], sizes = [8, 32], strides = [1, 1]} : vector<8x128xf32> to vector<8x32xf32>
    %778 = arith.mulf %767, %777 : vector<8x32xf32>
    %779 = arith.addf %776, %778 : vector<8x32xf32>
    %780 = math.tanh %779 : vector<8x32xf32>
    %cst_170 = arith.constant 1.000000e+00 : f32
    %781 = vector.broadcast %cst_170 : f32 to vector<8x32xf32>
    %782 = arith.subf %781, %775 : vector<8x32xf32>
    %783 = arith.mulf %782, %780 : vector<8x32xf32>
    %784 = arith.mulf %775, %736 : vector<8x32xf32>
    %785 = arith.addf %783, %784 : vector<8x32xf32>
    %786 = vector.extract_strided_slice %752 {offsets = [0, 128], sizes = [8, 128], strides = [1, 1]} : vector<8x256xf32> to vector<8x128xf32>
    %787 = vector.extract_strided_slice %758 {offsets = [0, 0], sizes = [8, 32], strides = [1, 1]} : vector<8x128xf32> to vector<8x32xf32>
    %788 = vector.extract_strided_slice %786 {offsets = [0, 0], sizes = [8, 32], strides = [1, 1]} : vector<8x128xf32> to vector<8x32xf32>
    %789 = arith.addf %787, %788 : vector<8x32xf32>
    %790 = arith.negf %789 : vector<8x32xf32>
    %791 = math.exp %790 : vector<8x32xf32>
    %cst_171 = arith.constant 1.000000e+00 : f32
    %792 = vector.broadcast %cst_171 : f32 to vector<8x32xf32>
    %793 = arith.addf %792, %791 : vector<8x32xf32>
    %794 = arith.divf %792, %793 : vector<8x32xf32>
    %795 = vector.extract_strided_slice %758 {offsets = [0, 32], sizes = [8, 32], strides = [1, 1]} : vector<8x128xf32> to vector<8x32xf32>
    %796 = vector.extract_strided_slice %786 {offsets = [0, 32], sizes = [8, 32], strides = [1, 1]} : vector<8x128xf32> to vector<8x32xf32>
    %797 = arith.addf %795, %796 : vector<8x32xf32>
    %798 = arith.negf %797 : vector<8x32xf32>
    %799 = math.exp %798 : vector<8x32xf32>
    %cst_172 = arith.constant 1.000000e+00 : f32
    %800 = vector.broadcast %cst_172 : f32 to vector<8x32xf32>
    %801 = arith.addf %800, %799 : vector<8x32xf32>
    %802 = arith.divf %800, %801 : vector<8x32xf32>
    %803 = vector.extract_strided_slice %758 {offsets = [0, 64], sizes = [8, 32], strides = [1, 1]} : vector<8x128xf32> to vector<8x32xf32>
    %804 = vector.extract_strided_slice %786 {offsets = [0, 64], sizes = [8, 32], strides = [1, 1]} : vector<8x128xf32> to vector<8x32xf32>
    %805 = arith.mulf %794, %804 : vector<8x32xf32>
    %806 = arith.addf %803, %805 : vector<8x32xf32>
    %807 = math.tanh %806 : vector<8x32xf32>
    %cst_173 = arith.constant 1.000000e+00 : f32
    %808 = vector.broadcast %cst_173 : f32 to vector<8x32xf32>
    %809 = arith.subf %808, %802 : vector<8x32xf32>
    %810 = arith.mulf %809, %807 : vector<8x32xf32>
    %811 = arith.mulf %802, %741 : vector<8x32xf32>
    %812 = arith.addf %810, %811 : vector<8x32xf32>
    %813 = vector.broadcast %c9_i32 : i32 to vector<8x1xi32>
    %814 = arith.cmpi slt, %813, %0 : vector<8x1xi32>
    %815 = vector.shape_cast %814 : vector<8x1xi1> to vector<8x1xi1>
    %816 = vector.broadcast %815 : vector<8x1xi1> to vector<8x32xi1>
    %817 = arith.select %816, %785, %736 : vector<8x32xi1>, vector<8x32xf32>
    %818 = vector.broadcast %748 : i32 to vector<8x1xi32>
    %819 = arith.cmpi slt, %818, %0 : vector<8x1xi32>
    %820 = vector.shape_cast %819 : vector<8x1xi1> to vector<8x1xi1>
    %821 = vector.broadcast %820 : vector<8x1xi1> to vector<8x32xi1>
    %822 = arith.select %821, %812, %741 : vector<8x32xi1>, vector<8x32xf32>
    %c8_i32_174 = arith.constant 8 : i32
    %823 = arith.muli %c9_i32, %c8_i32_174 : i32
    %824 = arith.index_cast %823 : i32 to index
    %c0_175 = arith.constant 0 : index
    %825 = vector.load %arg19[%824, %c0_175] : memref<128x64xf32, #tpu.memory_space<vmem>>, vector<8x32xf32>
    tpu.vector_store %arg19[%824, %c0_175], %817 {strides = array<i32>} : memref<128x64xf32, #tpu.memory_space<vmem>>, vector<8x32xf32>,
    %c8_i32_176 = arith.constant 8 : i32
    %826 = arith.muli %748, %c8_i32_176 : i32
    %827 = arith.index_cast %826 : i32 to index
    %c32_177 = arith.constant 32 : index
    %828 = vector.load %arg19[%827, %c32_177] : memref<128x64xf32, #tpu.memory_space<vmem>>, vector<8x32xf32>
    tpu.vector_store %arg19[%827, %c32_177], %822 {strides = array<i32>} : memref<128x64xf32, #tpu.memory_space<vmem>>, vector<8x32xf32>,
    %c10_i32 = arith.constant 10 : i32
    %c15_i32_178 = arith.constant 15 : i32
    %829 = arith.subi %c15_i32_178, %c10_i32 : i32
    %830 = tpu.concatenate %817, %822 in 1 : vector<8x32xf32>, vector<8x32xf32> -> vector<8x64xf32>
    %cst_179 = arith.constant dense<0.000000e+00> : vector<8x256xf32>
    %831 = tpu.matmul %830, %17, %cst_179 {dimension_numbers = #tpu.dot_dimension_numbers<[1], [0], [0], [1], [0, 0, 1, 1], [], []>} : vector<8x64xf32>, vector<64x256xf32>, vector<8x256xf32> -> vector<8x256xf32>
    %832 = vector.broadcast %18 : vector<1x256xf32> to vector<8x256xf32>
    %833 = arith.addf %831, %832 : vector<8x256xf32>
    %c8_i32_180 = arith.constant 8 : i32
    %834 = arith.muli %c10_i32, %c8_i32_180 : i32
    %835 = arith.index_cast %834 : i32 to index
    %c0_181 = arith.constant 0 : index
    %836 = vector.load %arg18[%835, %c0_181] : memref<128x256xf32, #tpu.memory_space<vmem>>, vector<8x128xf32>
    %c8_i32_182 = arith.constant 8 : i32
    %837 = arith.muli %829, %c8_i32_182 : i32
    %838 = arith.index_cast %837 : i32 to index
    %c128_183 = arith.constant 128 : index
    %839 = vector.load %arg18[%838, %c128_183] : memref<128x256xf32, #tpu.memory_space<vmem>>, vector<8x128xf32>
    %840 = vector.extract_strided_slice %833 {offsets = [0, 0], sizes = [8, 128], strides = [1, 1]} : vector<8x256xf32> to vector<8x128xf32>
    %841 = vector.extract_strided_slice %836 {offsets = [0, 0], sizes = [8, 32], strides = [1, 1]} : vector<8x128xf32> to vector<8x32xf32>
    %842 = vector.extract_strided_slice %840 {offsets = [0, 0], sizes = [8, 32], strides = [1, 1]} : vector<8x128xf32> to vector<8x32xf32>
    %843 = arith.addf %841, %842 : vector<8x32xf32>
    %844 = arith.negf %843 : vector<8x32xf32>
    %845 = math.exp %844 : vector<8x32xf32>
    %cst_184 = arith.constant 1.000000e+00 : f32
    %846 = vector.broadcast %cst_184 : f32 to vector<8x32xf32>
    %847 = arith.addf %846, %845 : vector<8x32xf32>
    %848 = arith.divf %846, %847 : vector<8x32xf32>
    %849 = vector.extract_strided_slice %836 {offsets = [0, 32], sizes = [8, 32], strides = [1, 1]} : vector<8x128xf32> to vector<8x32xf32>
    %850 = vector.extract_strided_slice %840 {offsets = [0, 32], sizes = [8, 32], strides = [1, 1]} : vector<8x128xf32> to vector<8x32xf32>
    %851 = arith.addf %849, %850 : vector<8x32xf32>
    %852 = arith.negf %851 : vector<8x32xf32>
    %853 = math.exp %852 : vector<8x32xf32>
    %cst_185 = arith.constant 1.000000e+00 : f32
    %854 = vector.broadcast %cst_185 : f32 to vector<8x32xf32>
    %855 = arith.addf %854, %853 : vector<8x32xf32>
    %856 = arith.divf %854, %855 : vector<8x32xf32>
    %857 = vector.extract_strided_slice %836 {offsets = [0, 64], sizes = [8, 32], strides = [1, 1]} : vector<8x128xf32> to vector<8x32xf32>
    %858 = vector.extract_strided_slice %840 {offsets = [0, 64], sizes = [8, 32], strides = [1, 1]} : vector<8x128xf32> to vector<8x32xf32>
    %859 = arith.mulf %848, %858 : vector<8x32xf32>
    %860 = arith.addf %857, %859 : vector<8x32xf32>
    %861 = math.tanh %860 : vector<8x32xf32>
    %cst_186 = arith.constant 1.000000e+00 : f32
    %862 = vector.broadcast %cst_186 : f32 to vector<8x32xf32>
    %863 = arith.subf %862, %856 : vector<8x32xf32>
    %864 = arith.mulf %863, %861 : vector<8x32xf32>
    %865 = arith.mulf %856, %817 : vector<8x32xf32>
    %866 = arith.addf %864, %865 : vector<8x32xf32>
    %867 = vector.extract_strided_slice %833 {offsets = [0, 128], sizes = [8, 128], strides = [1, 1]} : vector<8x256xf32> to vector<8x128xf32>
    %868 = vector.extract_strided_slice %839 {offsets = [0, 0], sizes = [8, 32], strides = [1, 1]} : vector<8x128xf32> to vector<8x32xf32>
    %869 = vector.extract_strided_slice %867 {offsets = [0, 0], sizes = [8, 32], strides = [1, 1]} : vector<8x128xf32> to vector<8x32xf32>
    %870 = arith.addf %868, %869 : vector<8x32xf32>
    %871 = arith.negf %870 : vector<8x32xf32>
    %872 = math.exp %871 : vector<8x32xf32>
    %cst_187 = arith.constant 1.000000e+00 : f32
    %873 = vector.broadcast %cst_187 : f32 to vector<8x32xf32>
    %874 = arith.addf %873, %872 : vector<8x32xf32>
    %875 = arith.divf %873, %874 : vector<8x32xf32>
    %876 = vector.extract_strided_slice %839 {offsets = [0, 32], sizes = [8, 32], strides = [1, 1]} : vector<8x128xf32> to vector<8x32xf32>
    %877 = vector.extract_strided_slice %867 {offsets = [0, 32], sizes = [8, 32], strides = [1, 1]} : vector<8x128xf32> to vector<8x32xf32>
    %878 = arith.addf %876, %877 : vector<8x32xf32>
    %879 = arith.negf %878 : vector<8x32xf32>
    %880 = math.exp %879 : vector<8x32xf32>
    %cst_188 = arith.constant 1.000000e+00 : f32
    %881 = vector.broadcast %cst_188 : f32 to vector<8x32xf32>
    %882 = arith.addf %881, %880 : vector<8x32xf32>
    %883 = arith.divf %881, %882 : vector<8x32xf32>
    %884 = vector.extract_strided_slice %839 {offsets = [0, 64], sizes = [8, 32], strides = [1, 1]} : vector<8x128xf32> to vector<8x32xf32>
    %885 = vector.extract_strided_slice %867 {offsets = [0, 64], sizes = [8, 32], strides = [1, 1]} : vector<8x128xf32> to vector<8x32xf32>
    %886 = arith.mulf %875, %885 : vector<8x32xf32>
    %887 = arith.addf %884, %886 : vector<8x32xf32>
    %888 = math.tanh %887 : vector<8x32xf32>
    %cst_189 = arith.constant 1.000000e+00 : f32
    %889 = vector.broadcast %cst_189 : f32 to vector<8x32xf32>
    %890 = arith.subf %889, %883 : vector<8x32xf32>
    %891 = arith.mulf %890, %888 : vector<8x32xf32>
    %892 = arith.mulf %883, %822 : vector<8x32xf32>
    %893 = arith.addf %891, %892 : vector<8x32xf32>
    %894 = vector.broadcast %c10_i32 : i32 to vector<8x1xi32>
    %895 = arith.cmpi slt, %894, %0 : vector<8x1xi32>
    %896 = vector.shape_cast %895 : vector<8x1xi1> to vector<8x1xi1>
    %897 = vector.broadcast %896 : vector<8x1xi1> to vector<8x32xi1>
    %898 = arith.select %897, %866, %817 : vector<8x32xi1>, vector<8x32xf32>
    %899 = vector.broadcast %829 : i32 to vector<8x1xi32>
    %900 = arith.cmpi slt, %899, %0 : vector<8x1xi32>
    %901 = vector.shape_cast %900 : vector<8x1xi1> to vector<8x1xi1>
    %902 = vector.broadcast %901 : vector<8x1xi1> to vector<8x32xi1>
    %903 = arith.select %902, %893, %822 : vector<8x32xi1>, vector<8x32xf32>
    %c8_i32_190 = arith.constant 8 : i32
    %904 = arith.muli %c10_i32, %c8_i32_190 : i32
    %905 = arith.index_cast %904 : i32 to index
    %c0_191 = arith.constant 0 : index
    %906 = vector.load %arg19[%905, %c0_191] : memref<128x64xf32, #tpu.memory_space<vmem>>, vector<8x32xf32>
    tpu.vector_store %arg19[%905, %c0_191], %898 {strides = array<i32>} : memref<128x64xf32, #tpu.memory_space<vmem>>, vector<8x32xf32>,
    %c8_i32_192 = arith.constant 8 : i32
    %907 = arith.muli %829, %c8_i32_192 : i32
    %908 = arith.index_cast %907 : i32 to index
    %c32_193 = arith.constant 32 : index
    %909 = vector.load %arg19[%908, %c32_193] : memref<128x64xf32, #tpu.memory_space<vmem>>, vector<8x32xf32>
    tpu.vector_store %arg19[%908, %c32_193], %903 {strides = array<i32>} : memref<128x64xf32, #tpu.memory_space<vmem>>, vector<8x32xf32>,
    %c11_i32 = arith.constant 11 : i32
    %c15_i32_194 = arith.constant 15 : i32
    %910 = arith.subi %c15_i32_194, %c11_i32 : i32
    %911 = tpu.concatenate %898, %903 in 1 : vector<8x32xf32>, vector<8x32xf32> -> vector<8x64xf32>
    %cst_195 = arith.constant dense<0.000000e+00> : vector<8x256xf32>
    %912 = tpu.matmul %911, %17, %cst_195 {dimension_numbers = #tpu.dot_dimension_numbers<[1], [0], [0], [1], [0, 0, 1, 1], [], []>} : vector<8x64xf32>, vector<64x256xf32>, vector<8x256xf32> -> vector<8x256xf32>
    %913 = vector.broadcast %18 : vector<1x256xf32> to vector<8x256xf32>
    %914 = arith.addf %912, %913 : vector<8x256xf32>
    %c8_i32_196 = arith.constant 8 : i32
    %915 = arith.muli %c11_i32, %c8_i32_196 : i32
    %916 = arith.index_cast %915 : i32 to index
    %c0_197 = arith.constant 0 : index
    %917 = vector.load %arg18[%916, %c0_197] : memref<128x256xf32, #tpu.memory_space<vmem>>, vector<8x128xf32>
    %c8_i32_198 = arith.constant 8 : i32
    %918 = arith.muli %910, %c8_i32_198 : i32
    %919 = arith.index_cast %918 : i32 to index
    %c128_199 = arith.constant 128 : index
    %920 = vector.load %arg18[%919, %c128_199] : memref<128x256xf32, #tpu.memory_space<vmem>>, vector<8x128xf32>
    %921 = vector.extract_strided_slice %914 {offsets = [0, 0], sizes = [8, 128], strides = [1, 1]} : vector<8x256xf32> to vector<8x128xf32>
    %922 = vector.extract_strided_slice %917 {offsets = [0, 0], sizes = [8, 32], strides = [1, 1]} : vector<8x128xf32> to vector<8x32xf32>
    %923 = vector.extract_strided_slice %921 {offsets = [0, 0], sizes = [8, 32], strides = [1, 1]} : vector<8x128xf32> to vector<8x32xf32>
    %924 = arith.addf %922, %923 : vector<8x32xf32>
    %925 = arith.negf %924 : vector<8x32xf32>
    %926 = math.exp %925 : vector<8x32xf32>
    %cst_200 = arith.constant 1.000000e+00 : f32
    %927 = vector.broadcast %cst_200 : f32 to vector<8x32xf32>
    %928 = arith.addf %927, %926 : vector<8x32xf32>
    %929 = arith.divf %927, %928 : vector<8x32xf32>
    %930 = vector.extract_strided_slice %917 {offsets = [0, 32], sizes = [8, 32], strides = [1, 1]} : vector<8x128xf32> to vector<8x32xf32>
    %931 = vector.extract_strided_slice %921 {offsets = [0, 32], sizes = [8, 32], strides = [1, 1]} : vector<8x128xf32> to vector<8x32xf32>
    %932 = arith.addf %930, %931 : vector<8x32xf32>
    %933 = arith.negf %932 : vector<8x32xf32>
    %934 = math.exp %933 : vector<8x32xf32>
    %cst_201 = arith.constant 1.000000e+00 : f32
    %935 = vector.broadcast %cst_201 : f32 to vector<8x32xf32>
    %936 = arith.addf %935, %934 : vector<8x32xf32>
    %937 = arith.divf %935, %936 : vector<8x32xf32>
    %938 = vector.extract_strided_slice %917 {offsets = [0, 64], sizes = [8, 32], strides = [1, 1]} : vector<8x128xf32> to vector<8x32xf32>
    %939 = vector.extract_strided_slice %921 {offsets = [0, 64], sizes = [8, 32], strides = [1, 1]} : vector<8x128xf32> to vector<8x32xf32>
    %940 = arith.mulf %929, %939 : vector<8x32xf32>
    %941 = arith.addf %938, %940 : vector<8x32xf32>
    %942 = math.tanh %941 : vector<8x32xf32>
    %cst_202 = arith.constant 1.000000e+00 : f32
    %943 = vector.broadcast %cst_202 : f32 to vector<8x32xf32>
    %944 = arith.subf %943, %937 : vector<8x32xf32>
    %945 = arith.mulf %944, %942 : vector<8x32xf32>
    %946 = arith.mulf %937, %898 : vector<8x32xf32>
    %947 = arith.addf %945, %946 : vector<8x32xf32>
    %948 = vector.extract_strided_slice %914 {offsets = [0, 128], sizes = [8, 128], strides = [1, 1]} : vector<8x256xf32> to vector<8x128xf32>
    %949 = vector.extract_strided_slice %920 {offsets = [0, 0], sizes = [8, 32], strides = [1, 1]} : vector<8x128xf32> to vector<8x32xf32>
    %950 = vector.extract_strided_slice %948 {offsets = [0, 0], sizes = [8, 32], strides = [1, 1]} : vector<8x128xf32> to vector<8x32xf32>
    %951 = arith.addf %949, %950 : vector<8x32xf32>
    %952 = arith.negf %951 : vector<8x32xf32>
    %953 = math.exp %952 : vector<8x32xf32>
    %cst_203 = arith.constant 1.000000e+00 : f32
    %954 = vector.broadcast %cst_203 : f32 to vector<8x32xf32>
    %955 = arith.addf %954, %953 : vector<8x32xf32>
    %956 = arith.divf %954, %955 : vector<8x32xf32>
    %957 = vector.extract_strided_slice %920 {offsets = [0, 32], sizes = [8, 32], strides = [1, 1]} : vector<8x128xf32> to vector<8x32xf32>
    %958 = vector.extract_strided_slice %948 {offsets = [0, 32], sizes = [8, 32], strides = [1, 1]} : vector<8x128xf32> to vector<8x32xf32>
    %959 = arith.addf %957, %958 : vector<8x32xf32>
    %960 = arith.negf %959 : vector<8x32xf32>
    %961 = math.exp %960 : vector<8x32xf32>
    %cst_204 = arith.constant 1.000000e+00 : f32
    %962 = vector.broadcast %cst_204 : f32 to vector<8x32xf32>
    %963 = arith.addf %962, %961 : vector<8x32xf32>
    %964 = arith.divf %962, %963 : vector<8x32xf32>
    %965 = vector.extract_strided_slice %920 {offsets = [0, 64], sizes = [8, 32], strides = [1, 1]} : vector<8x128xf32> to vector<8x32xf32>
    %966 = vector.extract_strided_slice %948 {offsets = [0, 64], sizes = [8, 32], strides = [1, 1]} : vector<8x128xf32> to vector<8x32xf32>
    %967 = arith.mulf %956, %966 : vector<8x32xf32>
    %968 = arith.addf %965, %967 : vector<8x32xf32>
    %969 = math.tanh %968 : vector<8x32xf32>
    %cst_205 = arith.constant 1.000000e+00 : f32
    %970 = vector.broadcast %cst_205 : f32 to vector<8x32xf32>
    %971 = arith.subf %970, %964 : vector<8x32xf32>
    %972 = arith.mulf %971, %969 : vector<8x32xf32>
    %973 = arith.mulf %964, %903 : vector<8x32xf32>
    %974 = arith.addf %972, %973 : vector<8x32xf32>
    %975 = vector.broadcast %c11_i32 : i32 to vector<8x1xi32>
    %976 = arith.cmpi slt, %975, %0 : vector<8x1xi32>
    %977 = vector.shape_cast %976 : vector<8x1xi1> to vector<8x1xi1>
    %978 = vector.broadcast %977 : vector<8x1xi1> to vector<8x32xi1>
    %979 = arith.select %978, %947, %898 : vector<8x32xi1>, vector<8x32xf32>
    %980 = vector.broadcast %910 : i32 to vector<8x1xi32>
    %981 = arith.cmpi slt, %980, %0 : vector<8x1xi32>
    %982 = vector.shape_cast %981 : vector<8x1xi1> to vector<8x1xi1>
    %983 = vector.broadcast %982 : vector<8x1xi1> to vector<8x32xi1>
    %984 = arith.select %983, %974, %903 : vector<8x32xi1>, vector<8x32xf32>
    %c8_i32_206 = arith.constant 8 : i32
    %985 = arith.muli %c11_i32, %c8_i32_206 : i32
    %986 = arith.index_cast %985 : i32 to index
    %c0_207 = arith.constant 0 : index
    %987 = vector.load %arg19[%986, %c0_207] : memref<128x64xf32, #tpu.memory_space<vmem>>, vector<8x32xf32>
    tpu.vector_store %arg19[%986, %c0_207], %979 {strides = array<i32>} : memref<128x64xf32, #tpu.memory_space<vmem>>, vector<8x32xf32>,
    %c8_i32_208 = arith.constant 8 : i32
    %988 = arith.muli %910, %c8_i32_208 : i32
    %989 = arith.index_cast %988 : i32 to index
    %c32_209 = arith.constant 32 : index
    %990 = vector.load %arg19[%989, %c32_209] : memref<128x64xf32, #tpu.memory_space<vmem>>, vector<8x32xf32>
    tpu.vector_store %arg19[%989, %c32_209], %984 {strides = array<i32>} : memref<128x64xf32, #tpu.memory_space<vmem>>, vector<8x32xf32>,
    %c12_i32 = arith.constant 12 : i32
    %c15_i32_210 = arith.constant 15 : i32
    %991 = arith.subi %c15_i32_210, %c12_i32 : i32
    %992 = tpu.concatenate %979, %984 in 1 : vector<8x32xf32>, vector<8x32xf32> -> vector<8x64xf32>
    %cst_211 = arith.constant dense<0.000000e+00> : vector<8x256xf32>
    %993 = tpu.matmul %992, %17, %cst_211 {dimension_numbers = #tpu.dot_dimension_numbers<[1], [0], [0], [1], [0, 0, 1, 1], [], []>} : vector<8x64xf32>, vector<64x256xf32>, vector<8x256xf32> -> vector<8x256xf32>
    %994 = vector.broadcast %18 : vector<1x256xf32> to vector<8x256xf32>
    %995 = arith.addf %993, %994 : vector<8x256xf32>
    %c8_i32_212 = arith.constant 8 : i32
    %996 = arith.muli %c12_i32, %c8_i32_212 : i32
    %997 = arith.index_cast %996 : i32 to index
    %c0_213 = arith.constant 0 : index
    %998 = vector.load %arg18[%997, %c0_213] : memref<128x256xf32, #tpu.memory_space<vmem>>, vector<8x128xf32>
    %c8_i32_214 = arith.constant 8 : i32
    %999 = arith.muli %991, %c8_i32_214 : i32
    %1000 = arith.index_cast %999 : i32 to index
    %c128_215 = arith.constant 128 : index
    %1001 = vector.load %arg18[%1000, %c128_215] : memref<128x256xf32, #tpu.memory_space<vmem>>, vector<8x128xf32>
    %1002 = vector.extract_strided_slice %995 {offsets = [0, 0], sizes = [8, 128], strides = [1, 1]} : vector<8x256xf32> to vector<8x128xf32>
    %1003 = vector.extract_strided_slice %998 {offsets = [0, 0], sizes = [8, 32], strides = [1, 1]} : vector<8x128xf32> to vector<8x32xf32>
    %1004 = vector.extract_strided_slice %1002 {offsets = [0, 0], sizes = [8, 32], strides = [1, 1]} : vector<8x128xf32> to vector<8x32xf32>
    %1005 = arith.addf %1003, %1004 : vector<8x32xf32>
    %1006 = arith.negf %1005 : vector<8x32xf32>
    %1007 = math.exp %1006 : vector<8x32xf32>
    %cst_216 = arith.constant 1.000000e+00 : f32
    %1008 = vector.broadcast %cst_216 : f32 to vector<8x32xf32>
    %1009 = arith.addf %1008, %1007 : vector<8x32xf32>
    %1010 = arith.divf %1008, %1009 : vector<8x32xf32>
    %1011 = vector.extract_strided_slice %998 {offsets = [0, 32], sizes = [8, 32], strides = [1, 1]} : vector<8x128xf32> to vector<8x32xf32>
    %1012 = vector.extract_strided_slice %1002 {offsets = [0, 32], sizes = [8, 32], strides = [1, 1]} : vector<8x128xf32> to vector<8x32xf32>
    %1013 = arith.addf %1011, %1012 : vector<8x32xf32>
    %1014 = arith.negf %1013 : vector<8x32xf32>
    %1015 = math.exp %1014 : vector<8x32xf32>
    %cst_217 = arith.constant 1.000000e+00 : f32
    %1016 = vector.broadcast %cst_217 : f32 to vector<8x32xf32>
    %1017 = arith.addf %1016, %1015 : vector<8x32xf32>
    %1018 = arith.divf %1016, %1017 : vector<8x32xf32>
    %1019 = vector.extract_strided_slice %998 {offsets = [0, 64], sizes = [8, 32], strides = [1, 1]} : vector<8x128xf32> to vector<8x32xf32>
    %1020 = vector.extract_strided_slice %1002 {offsets = [0, 64], sizes = [8, 32], strides = [1, 1]} : vector<8x128xf32> to vector<8x32xf32>
    %1021 = arith.mulf %1010, %1020 : vector<8x32xf32>
    %1022 = arith.addf %1019, %1021 : vector<8x32xf32>
    %1023 = math.tanh %1022 : vector<8x32xf32>
    %cst_218 = arith.constant 1.000000e+00 : f32
    %1024 = vector.broadcast %cst_218 : f32 to vector<8x32xf32>
    %1025 = arith.subf %1024, %1018 : vector<8x32xf32>
    %1026 = arith.mulf %1025, %1023 : vector<8x32xf32>
    %1027 = arith.mulf %1018, %979 : vector<8x32xf32>
    %1028 = arith.addf %1026, %1027 : vector<8x32xf32>
    %1029 = vector.extract_strided_slice %995 {offsets = [0, 128], sizes = [8, 128], strides = [1, 1]} : vector<8x256xf32> to vector<8x128xf32>
    %1030 = vector.extract_strided_slice %1001 {offsets = [0, 0], sizes = [8, 32], strides = [1, 1]} : vector<8x128xf32> to vector<8x32xf32>
    %1031 = vector.extract_strided_slice %1029 {offsets = [0, 0], sizes = [8, 32], strides = [1, 1]} : vector<8x128xf32> to vector<8x32xf32>
    %1032 = arith.addf %1030, %1031 : vector<8x32xf32>
    %1033 = arith.negf %1032 : vector<8x32xf32>
    %1034 = math.exp %1033 : vector<8x32xf32>
    %cst_219 = arith.constant 1.000000e+00 : f32
    %1035 = vector.broadcast %cst_219 : f32 to vector<8x32xf32>
    %1036 = arith.addf %1035, %1034 : vector<8x32xf32>
    %1037 = arith.divf %1035, %1036 : vector<8x32xf32>
    %1038 = vector.extract_strided_slice %1001 {offsets = [0, 32], sizes = [8, 32], strides = [1, 1]} : vector<8x128xf32> to vector<8x32xf32>
    %1039 = vector.extract_strided_slice %1029 {offsets = [0, 32], sizes = [8, 32], strides = [1, 1]} : vector<8x128xf32> to vector<8x32xf32>
    %1040 = arith.addf %1038, %1039 : vector<8x32xf32>
    %1041 = arith.negf %1040 : vector<8x32xf32>
    %1042 = math.exp %1041 : vector<8x32xf32>
    %cst_220 = arith.constant 1.000000e+00 : f32
    %1043 = vector.broadcast %cst_220 : f32 to vector<8x32xf32>
    %1044 = arith.addf %1043, %1042 : vector<8x32xf32>
    %1045 = arith.divf %1043, %1044 : vector<8x32xf32>
    %1046 = vector.extract_strided_slice %1001 {offsets = [0, 64], sizes = [8, 32], strides = [1, 1]} : vector<8x128xf32> to vector<8x32xf32>
    %1047 = vector.extract_strided_slice %1029 {offsets = [0, 64], sizes = [8, 32], strides = [1, 1]} : vector<8x128xf32> to vector<8x32xf32>
    %1048 = arith.mulf %1037, %1047 : vector<8x32xf32>
    %1049 = arith.addf %1046, %1048 : vector<8x32xf32>
    %1050 = math.tanh %1049 : vector<8x32xf32>
    %cst_221 = arith.constant 1.000000e+00 : f32
    %1051 = vector.broadcast %cst_221 : f32 to vector<8x32xf32>
    %1052 = arith.subf %1051, %1045 : vector<8x32xf32>
    %1053 = arith.mulf %1052, %1050 : vector<8x32xf32>
    %1054 = arith.mulf %1045, %984 : vector<8x32xf32>
    %1055 = arith.addf %1053, %1054 : vector<8x32xf32>
    %1056 = vector.broadcast %c12_i32 : i32 to vector<8x1xi32>
    %1057 = arith.cmpi slt, %1056, %0 : vector<8x1xi32>
    %1058 = vector.shape_cast %1057 : vector<8x1xi1> to vector<8x1xi1>
    %1059 = vector.broadcast %1058 : vector<8x1xi1> to vector<8x32xi1>
    %1060 = arith.select %1059, %1028, %979 : vector<8x32xi1>, vector<8x32xf32>
    %1061 = vector.broadcast %991 : i32 to vector<8x1xi32>
    %1062 = arith.cmpi slt, %1061, %0 : vector<8x1xi32>
    %1063 = vector.shape_cast %1062 : vector<8x1xi1> to vector<8x1xi1>
    %1064 = vector.broadcast %1063 : vector<8x1xi1> to vector<8x32xi1>
    %1065 = arith.select %1064, %1055, %984 : vector<8x32xi1>, vector<8x32xf32>
    %c8_i32_222 = arith.constant 8 : i32
    %1066 = arith.muli %c12_i32, %c8_i32_222 : i32
    %1067 = arith.index_cast %1066 : i32 to index
    %c0_223 = arith.constant 0 : index
    %1068 = vector.load %arg19[%1067, %c0_223] : memref<128x64xf32, #tpu.memory_space<vmem>>, vector<8x32xf32>
    tpu.vector_store %arg19[%1067, %c0_223], %1060 {strides = array<i32>} : memref<128x64xf32, #tpu.memory_space<vmem>>, vector<8x32xf32>,
    %c8_i32_224 = arith.constant 8 : i32
    %1069 = arith.muli %991, %c8_i32_224 : i32
    %1070 = arith.index_cast %1069 : i32 to index
    %c32_225 = arith.constant 32 : index
    %1071 = vector.load %arg19[%1070, %c32_225] : memref<128x64xf32, #tpu.memory_space<vmem>>, vector<8x32xf32>
    tpu.vector_store %arg19[%1070, %c32_225], %1065 {strides = array<i32>} : memref<128x64xf32, #tpu.memory_space<vmem>>, vector<8x32xf32>,
    %c13_i32 = arith.constant 13 : i32
    %c15_i32_226 = arith.constant 15 : i32
    %1072 = arith.subi %c15_i32_226, %c13_i32 : i32
    %1073 = tpu.concatenate %1060, %1065 in 1 : vector<8x32xf32>, vector<8x32xf32> -> vector<8x64xf32>
    %cst_227 = arith.constant dense<0.000000e+00> : vector<8x256xf32>
    %1074 = tpu.matmul %1073, %17, %cst_227 {dimension_numbers = #tpu.dot_dimension_numbers<[1], [0], [0], [1], [0, 0, 1, 1], [], []>} : vector<8x64xf32>, vector<64x256xf32>, vector<8x256xf32> -> vector<8x256xf32>
    %1075 = vector.broadcast %18 : vector<1x256xf32> to vector<8x256xf32>
    %1076 = arith.addf %1074, %1075 : vector<8x256xf32>
    %c8_i32_228 = arith.constant 8 : i32
    %1077 = arith.muli %c13_i32, %c8_i32_228 : i32
    %1078 = arith.index_cast %1077 : i32 to index
    %c0_229 = arith.constant 0 : index
    %1079 = vector.load %arg18[%1078, %c0_229] : memref<128x256xf32, #tpu.memory_space<vmem>>, vector<8x128xf32>
    %c8_i32_230 = arith.constant 8 : i32
    %1080 = arith.muli %1072, %c8_i32_230 : i32
    %1081 = arith.index_cast %1080 : i32 to index
    %c128_231 = arith.constant 128 : index
    %1082 = vector.load %arg18[%1081, %c128_231] : memref<128x256xf32, #tpu.memory_space<vmem>>, vector<8x128xf32>
    %1083 = vector.extract_strided_slice %1076 {offsets = [0, 0], sizes = [8, 128], strides = [1, 1]} : vector<8x256xf32> to vector<8x128xf32>
    %1084 = vector.extract_strided_slice %1079 {offsets = [0, 0], sizes = [8, 32], strides = [1, 1]} : vector<8x128xf32> to vector<8x32xf32>
    %1085 = vector.extract_strided_slice %1083 {offsets = [0, 0], sizes = [8, 32], strides = [1, 1]} : vector<8x128xf32> to vector<8x32xf32>
    %1086 = arith.addf %1084, %1085 : vector<8x32xf32>
    %1087 = arith.negf %1086 : vector<8x32xf32>
    %1088 = math.exp %1087 : vector<8x32xf32>
    %cst_232 = arith.constant 1.000000e+00 : f32
    %1089 = vector.broadcast %cst_232 : f32 to vector<8x32xf32>
    %1090 = arith.addf %1089, %1088 : vector<8x32xf32>
    %1091 = arith.divf %1089, %1090 : vector<8x32xf32>
    %1092 = vector.extract_strided_slice %1079 {offsets = [0, 32], sizes = [8, 32], strides = [1, 1]} : vector<8x128xf32> to vector<8x32xf32>
    %1093 = vector.extract_strided_slice %1083 {offsets = [0, 32], sizes = [8, 32], strides = [1, 1]} : vector<8x128xf32> to vector<8x32xf32>
    %1094 = arith.addf %1092, %1093 : vector<8x32xf32>
    %1095 = arith.negf %1094 : vector<8x32xf32>
    %1096 = math.exp %1095 : vector<8x32xf32>
    %cst_233 = arith.constant 1.000000e+00 : f32
    %1097 = vector.broadcast %cst_233 : f32 to vector<8x32xf32>
    %1098 = arith.addf %1097, %1096 : vector<8x32xf32>
    %1099 = arith.divf %1097, %1098 : vector<8x32xf32>
    %1100 = vector.extract_strided_slice %1079 {offsets = [0, 64], sizes = [8, 32], strides = [1, 1]} : vector<8x128xf32> to vector<8x32xf32>
    %1101 = vector.extract_strided_slice %1083 {offsets = [0, 64], sizes = [8, 32], strides = [1, 1]} : vector<8x128xf32> to vector<8x32xf32>
    %1102 = arith.mulf %1091, %1101 : vector<8x32xf32>
    %1103 = arith.addf %1100, %1102 : vector<8x32xf32>
    %1104 = math.tanh %1103 : vector<8x32xf32>
    %cst_234 = arith.constant 1.000000e+00 : f32
    %1105 = vector.broadcast %cst_234 : f32 to vector<8x32xf32>
    %1106 = arith.subf %1105, %1099 : vector<8x32xf32>
    %1107 = arith.mulf %1106, %1104 : vector<8x32xf32>
    %1108 = arith.mulf %1099, %1060 : vector<8x32xf32>
    %1109 = arith.addf %1107, %1108 : vector<8x32xf32>
    %1110 = vector.extract_strided_slice %1076 {offsets = [0, 128], sizes = [8, 128], strides = [1, 1]} : vector<8x256xf32> to vector<8x128xf32>
    %1111 = vector.extract_strided_slice %1082 {offsets = [0, 0], sizes = [8, 32], strides = [1, 1]} : vector<8x128xf32> to vector<8x32xf32>
    %1112 = vector.extract_strided_slice %1110 {offsets = [0, 0], sizes = [8, 32], strides = [1, 1]} : vector<8x128xf32> to vector<8x32xf32>
    %1113 = arith.addf %1111, %1112 : vector<8x32xf32>
    %1114 = arith.negf %1113 : vector<8x32xf32>
    %1115 = math.exp %1114 : vector<8x32xf32>
    %cst_235 = arith.constant 1.000000e+00 : f32
    %1116 = vector.broadcast %cst_235 : f32 to vector<8x32xf32>
    %1117 = arith.addf %1116, %1115 : vector<8x32xf32>
    %1118 = arith.divf %1116, %1117 : vector<8x32xf32>
    %1119 = vector.extract_strided_slice %1082 {offsets = [0, 32], sizes = [8, 32], strides = [1, 1]} : vector<8x128xf32> to vector<8x32xf32>
    %1120 = vector.extract_strided_slice %1110 {offsets = [0, 32], sizes = [8, 32], strides = [1, 1]} : vector<8x128xf32> to vector<8x32xf32>
    %1121 = arith.addf %1119, %1120 : vector<8x32xf32>
    %1122 = arith.negf %1121 : vector<8x32xf32>
    %1123 = math.exp %1122 : vector<8x32xf32>
    %cst_236 = arith.constant 1.000000e+00 : f32
    %1124 = vector.broadcast %cst_236 : f32 to vector<8x32xf32>
    %1125 = arith.addf %1124, %1123 : vector<8x32xf32>
    %1126 = arith.divf %1124, %1125 : vector<8x32xf32>
    %1127 = vector.extract_strided_slice %1082 {offsets = [0, 64], sizes = [8, 32], strides = [1, 1]} : vector<8x128xf32> to vector<8x32xf32>
    %1128 = vector.extract_strided_slice %1110 {offsets = [0, 64], sizes = [8, 32], strides = [1, 1]} : vector<8x128xf32> to vector<8x32xf32>
    %1129 = arith.mulf %1118, %1128 : vector<8x32xf32>
    %1130 = arith.addf %1127, %1129 : vector<8x32xf32>
    %1131 = math.tanh %1130 : vector<8x32xf32>
    %cst_237 = arith.constant 1.000000e+00 : f32
    %1132 = vector.broadcast %cst_237 : f32 to vector<8x32xf32>
    %1133 = arith.subf %1132, %1126 : vector<8x32xf32>
    %1134 = arith.mulf %1133, %1131 : vector<8x32xf32>
    %1135 = arith.mulf %1126, %1065 : vector<8x32xf32>
    %1136 = arith.addf %1134, %1135 : vector<8x32xf32>
    %1137 = vector.broadcast %c13_i32 : i32 to vector<8x1xi32>
    %1138 = arith.cmpi slt, %1137, %0 : vector<8x1xi32>
    %1139 = vector.shape_cast %1138 : vector<8x1xi1> to vector<8x1xi1>
    %1140 = vector.broadcast %1139 : vector<8x1xi1> to vector<8x32xi1>
    %1141 = arith.select %1140, %1109, %1060 : vector<8x32xi1>, vector<8x32xf32>
    %1142 = vector.broadcast %1072 : i32 to vector<8x1xi32>
    %1143 = arith.cmpi slt, %1142, %0 : vector<8x1xi32>
    %1144 = vector.shape_cast %1143 : vector<8x1xi1> to vector<8x1xi1>
    %1145 = vector.broadcast %1144 : vector<8x1xi1> to vector<8x32xi1>
    %1146 = arith.select %1145, %1136, %1065 : vector<8x32xi1>, vector<8x32xf32>
    %c8_i32_238 = arith.constant 8 : i32
    %1147 = arith.muli %c13_i32, %c8_i32_238 : i32
    %1148 = arith.index_cast %1147 : i32 to index
    %c0_239 = arith.constant 0 : index
    %1149 = vector.load %arg19[%1148, %c0_239] : memref<128x64xf32, #tpu.memory_space<vmem>>, vector<8x32xf32>
    tpu.vector_store %arg19[%1148, %c0_239], %1141 {strides = array<i32>} : memref<128x64xf32, #tpu.memory_space<vmem>>, vector<8x32xf32>,
    %c8_i32_240 = arith.constant 8 : i32
    %1150 = arith.muli %1072, %c8_i32_240 : i32
    %1151 = arith.index_cast %1150 : i32 to index
    %c32_241 = arith.constant 32 : index
    %1152 = vector.load %arg19[%1151, %c32_241] : memref<128x64xf32, #tpu.memory_space<vmem>>, vector<8x32xf32>
    tpu.vector_store %arg19[%1151, %c32_241], %1146 {strides = array<i32>} : memref<128x64xf32, #tpu.memory_space<vmem>>, vector<8x32xf32>,
    %c14_i32 = arith.constant 14 : i32
    %c15_i32_242 = arith.constant 15 : i32
    %1153 = arith.subi %c15_i32_242, %c14_i32 : i32
    %1154 = tpu.concatenate %1141, %1146 in 1 : vector<8x32xf32>, vector<8x32xf32> -> vector<8x64xf32>
    %cst_243 = arith.constant dense<0.000000e+00> : vector<8x256xf32>
    %1155 = tpu.matmul %1154, %17, %cst_243 {dimension_numbers = #tpu.dot_dimension_numbers<[1], [0], [0], [1], [0, 0, 1, 1], [], []>} : vector<8x64xf32>, vector<64x256xf32>, vector<8x256xf32> -> vector<8x256xf32>
    %1156 = vector.broadcast %18 : vector<1x256xf32> to vector<8x256xf32>
    %1157 = arith.addf %1155, %1156 : vector<8x256xf32>
    %c8_i32_244 = arith.constant 8 : i32
    %1158 = arith.muli %c14_i32, %c8_i32_244 : i32
    %1159 = arith.index_cast %1158 : i32 to index
    %c0_245 = arith.constant 0 : index
    %1160 = vector.load %arg18[%1159, %c0_245] : memref<128x256xf32, #tpu.memory_space<vmem>>, vector<8x128xf32>
    %c8_i32_246 = arith.constant 8 : i32
    %1161 = arith.muli %1153, %c8_i32_246 : i32
    %1162 = arith.index_cast %1161 : i32 to index
    %c128_247 = arith.constant 128 : index
    %1163 = vector.load %arg18[%1162, %c128_247] : memref<128x256xf32, #tpu.memory_space<vmem>>, vector<8x128xf32>
    %1164 = vector.extract_strided_slice %1157 {offsets = [0, 0], sizes = [8, 128], strides = [1, 1]} : vector<8x256xf32> to vector<8x128xf32>
    %1165 = vector.extract_strided_slice %1160 {offsets = [0, 0], sizes = [8, 32], strides = [1, 1]} : vector<8x128xf32> to vector<8x32xf32>
    %1166 = vector.extract_strided_slice %1164 {offsets = [0, 0], sizes = [8, 32], strides = [1, 1]} : vector<8x128xf32> to vector<8x32xf32>
    %1167 = arith.addf %1165, %1166 : vector<8x32xf32>
    %1168 = arith.negf %1167 : vector<8x32xf32>
    %1169 = math.exp %1168 : vector<8x32xf32>
    %cst_248 = arith.constant 1.000000e+00 : f32
    %1170 = vector.broadcast %cst_248 : f32 to vector<8x32xf32>
    %1171 = arith.addf %1170, %1169 : vector<8x32xf32>
    %1172 = arith.divf %1170, %1171 : vector<8x32xf32>
    %1173 = vector.extract_strided_slice %1160 {offsets = [0, 32], sizes = [8, 32], strides = [1, 1]} : vector<8x128xf32> to vector<8x32xf32>
    %1174 = vector.extract_strided_slice %1164 {offsets = [0, 32], sizes = [8, 32], strides = [1, 1]} : vector<8x128xf32> to vector<8x32xf32>
    %1175 = arith.addf %1173, %1174 : vector<8x32xf32>
    %1176 = arith.negf %1175 : vector<8x32xf32>
    %1177 = math.exp %1176 : vector<8x32xf32>
    %cst_249 = arith.constant 1.000000e+00 : f32
    %1178 = vector.broadcast %cst_249 : f32 to vector<8x32xf32>
    %1179 = arith.addf %1178, %1177 : vector<8x32xf32>
    %1180 = arith.divf %1178, %1179 : vector<8x32xf32>
    %1181 = vector.extract_strided_slice %1160 {offsets = [0, 64], sizes = [8, 32], strides = [1, 1]} : vector<8x128xf32> to vector<8x32xf32>
    %1182 = vector.extract_strided_slice %1164 {offsets = [0, 64], sizes = [8, 32], strides = [1, 1]} : vector<8x128xf32> to vector<8x32xf32>
    %1183 = arith.mulf %1172, %1182 : vector<8x32xf32>
    %1184 = arith.addf %1181, %1183 : vector<8x32xf32>
    %1185 = math.tanh %1184 : vector<8x32xf32>
    %cst_250 = arith.constant 1.000000e+00 : f32
    %1186 = vector.broadcast %cst_250 : f32 to vector<8x32xf32>
    %1187 = arith.subf %1186, %1180 : vector<8x32xf32>
    %1188 = arith.mulf %1187, %1185 : vector<8x32xf32>
    %1189 = arith.mulf %1180, %1141 : vector<8x32xf32>
    %1190 = arith.addf %1188, %1189 : vector<8x32xf32>
    %1191 = vector.extract_strided_slice %1157 {offsets = [0, 128], sizes = [8, 128], strides = [1, 1]} : vector<8x256xf32> to vector<8x128xf32>
    %1192 = vector.extract_strided_slice %1163 {offsets = [0, 0], sizes = [8, 32], strides = [1, 1]} : vector<8x128xf32> to vector<8x32xf32>
    %1193 = vector.extract_strided_slice %1191 {offsets = [0, 0], sizes = [8, 32], strides = [1, 1]} : vector<8x128xf32> to vector<8x32xf32>
    %1194 = arith.addf %1192, %1193 : vector<8x32xf32>
    %1195 = arith.negf %1194 : vector<8x32xf32>
    %1196 = math.exp %1195 : vector<8x32xf32>
    %cst_251 = arith.constant 1.000000e+00 : f32
    %1197 = vector.broadcast %cst_251 : f32 to vector<8x32xf32>
    %1198 = arith.addf %1197, %1196 : vector<8x32xf32>
    %1199 = arith.divf %1197, %1198 : vector<8x32xf32>
    %1200 = vector.extract_strided_slice %1163 {offsets = [0, 32], sizes = [8, 32], strides = [1, 1]} : vector<8x128xf32> to vector<8x32xf32>
    %1201 = vector.extract_strided_slice %1191 {offsets = [0, 32], sizes = [8, 32], strides = [1, 1]} : vector<8x128xf32> to vector<8x32xf32>
    %1202 = arith.addf %1200, %1201 : vector<8x32xf32>
    %1203 = arith.negf %1202 : vector<8x32xf32>
    %1204 = math.exp %1203 : vector<8x32xf32>
    %cst_252 = arith.constant 1.000000e+00 : f32
    %1205 = vector.broadcast %cst_252 : f32 to vector<8x32xf32>
    %1206 = arith.addf %1205, %1204 : vector<8x32xf32>
    %1207 = arith.divf %1205, %1206 : vector<8x32xf32>
    %1208 = vector.extract_strided_slice %1163 {offsets = [0, 64], sizes = [8, 32], strides = [1, 1]} : vector<8x128xf32> to vector<8x32xf32>
    %1209 = vector.extract_strided_slice %1191 {offsets = [0, 64], sizes = [8, 32], strides = [1, 1]} : vector<8x128xf32> to vector<8x32xf32>
    %1210 = arith.mulf %1199, %1209 : vector<8x32xf32>
    %1211 = arith.addf %1208, %1210 : vector<8x32xf32>
    %1212 = math.tanh %1211 : vector<8x32xf32>
    %cst_253 = arith.constant 1.000000e+00 : f32
    %1213 = vector.broadcast %cst_253 : f32 to vector<8x32xf32>
    %1214 = arith.subf %1213, %1207 : vector<8x32xf32>
    %1215 = arith.mulf %1214, %1212 : vector<8x32xf32>
    %1216 = arith.mulf %1207, %1146 : vector<8x32xf32>
    %1217 = arith.addf %1215, %1216 : vector<8x32xf32>
    %1218 = vector.broadcast %c14_i32 : i32 to vector<8x1xi32>
    %1219 = arith.cmpi slt, %1218, %0 : vector<8x1xi32>
    %1220 = vector.shape_cast %1219 : vector<8x1xi1> to vector<8x1xi1>
    %1221 = vector.broadcast %1220 : vector<8x1xi1> to vector<8x32xi1>
    %1222 = arith.select %1221, %1190, %1141 : vector<8x32xi1>, vector<8x32xf32>
    %1223 = vector.broadcast %1153 : i32 to vector<8x1xi32>
    %1224 = arith.cmpi slt, %1223, %0 : vector<8x1xi32>
    %1225 = vector.shape_cast %1224 : vector<8x1xi1> to vector<8x1xi1>
    %1226 = vector.broadcast %1225 : vector<8x1xi1> to vector<8x32xi1>
    %1227 = arith.select %1226, %1217, %1146 : vector<8x32xi1>, vector<8x32xf32>
    %c8_i32_254 = arith.constant 8 : i32
    %1228 = arith.muli %c14_i32, %c8_i32_254 : i32
    %1229 = arith.index_cast %1228 : i32 to index
    %c0_255 = arith.constant 0 : index
    %1230 = vector.load %arg19[%1229, %c0_255] : memref<128x64xf32, #tpu.memory_space<vmem>>, vector<8x32xf32>
    tpu.vector_store %arg19[%1229, %c0_255], %1222 {strides = array<i32>} : memref<128x64xf32, #tpu.memory_space<vmem>>, vector<8x32xf32>,
    %c8_i32_256 = arith.constant 8 : i32
    %1231 = arith.muli %1153, %c8_i32_256 : i32
    %1232 = arith.index_cast %1231 : i32 to index
    %c32_257 = arith.constant 32 : index
    %1233 = vector.load %arg19[%1232, %c32_257] : memref<128x64xf32, #tpu.memory_space<vmem>>, vector<8x32xf32>
    tpu.vector_store %arg19[%1232, %c32_257], %1227 {strides = array<i32>} : memref<128x64xf32, #tpu.memory_space<vmem>>, vector<8x32xf32>,
    %c15_i32_258 = arith.constant 15 : i32
    %c15_i32_259 = arith.constant 15 : i32
    %1234 = arith.subi %c15_i32_259, %c15_i32_258 : i32
    %1235 = tpu.concatenate %1222, %1227 in 1 : vector<8x32xf32>, vector<8x32xf32> -> vector<8x64xf32>
    %cst_260 = arith.constant dense<0.000000e+00> : vector<8x256xf32>
    %1236 = tpu.matmul %1235, %17, %cst_260 {dimension_numbers = #tpu.dot_dimension_numbers<[1], [0], [0], [1], [0, 0, 1, 1], [], []>} : vector<8x64xf32>, vector<64x256xf32>, vector<8x256xf32> -> vector<8x256xf32>
    %1237 = vector.broadcast %18 : vector<1x256xf32> to vector<8x256xf32>
    %1238 = arith.addf %1236, %1237 : vector<8x256xf32>
    %c8_i32_261 = arith.constant 8 : i32
    %1239 = arith.muli %c15_i32_258, %c8_i32_261 : i32
    %1240 = arith.index_cast %1239 : i32 to index
    %c0_262 = arith.constant 0 : index
    %1241 = vector.load %arg18[%1240, %c0_262] : memref<128x256xf32, #tpu.memory_space<vmem>>, vector<8x128xf32>
    %c8_i32_263 = arith.constant 8 : i32
    %1242 = arith.muli %1234, %c8_i32_263 : i32
    %1243 = arith.index_cast %1242 : i32 to index
    %c128_264 = arith.constant 128 : index
    %1244 = vector.load %arg18[%1243, %c128_264] : memref<128x256xf32, #tpu.memory_space<vmem>>, vector<8x128xf32>
    %1245 = vector.extract_strided_slice %1238 {offsets = [0, 0], sizes = [8, 128], strides = [1, 1]} : vector<8x256xf32> to vector<8x128xf32>
    %1246 = vector.extract_strided_slice %1241 {offsets = [0, 0], sizes = [8, 32], strides = [1, 1]} : vector<8x128xf32> to vector<8x32xf32>
    %1247 = vector.extract_strided_slice %1245 {offsets = [0, 0], sizes = [8, 32], strides = [1, 1]} : vector<8x128xf32> to vector<8x32xf32>
    %1248 = arith.addf %1246, %1247 : vector<8x32xf32>
    %1249 = arith.negf %1248 : vector<8x32xf32>
    %1250 = math.exp %1249 : vector<8x32xf32>
    %cst_265 = arith.constant 1.000000e+00 : f32
    %1251 = vector.broadcast %cst_265 : f32 to vector<8x32xf32>
    %1252 = arith.addf %1251, %1250 : vector<8x32xf32>
    %1253 = arith.divf %1251, %1252 : vector<8x32xf32>
    %1254 = vector.extract_strided_slice %1241 {offsets = [0, 32], sizes = [8, 32], strides = [1, 1]} : vector<8x128xf32> to vector<8x32xf32>
    %1255 = vector.extract_strided_slice %1245 {offsets = [0, 32], sizes = [8, 32], strides = [1, 1]} : vector<8x128xf32> to vector<8x32xf32>
    %1256 = arith.addf %1254, %1255 : vector<8x32xf32>
    %1257 = arith.negf %1256 : vector<8x32xf32>
    %1258 = math.exp %1257 : vector<8x32xf32>
    %cst_266 = arith.constant 1.000000e+00 : f32
    %1259 = vector.broadcast %cst_266 : f32 to vector<8x32xf32>
    %1260 = arith.addf %1259, %1258 : vector<8x32xf32>
    %1261 = arith.divf %1259, %1260 : vector<8x32xf32>
    %1262 = vector.extract_strided_slice %1241 {offsets = [0, 64], sizes = [8, 32], strides = [1, 1]} : vector<8x128xf32> to vector<8x32xf32>
    %1263 = vector.extract_strided_slice %1245 {offsets = [0, 64], sizes = [8, 32], strides = [1, 1]} : vector<8x128xf32> to vector<8x32xf32>
    %1264 = arith.mulf %1253, %1263 : vector<8x32xf32>
    %1265 = arith.addf %1262, %1264 : vector<8x32xf32>
    %1266 = math.tanh %1265 : vector<8x32xf32>
    %cst_267 = arith.constant 1.000000e+00 : f32
    %1267 = vector.broadcast %cst_267 : f32 to vector<8x32xf32>
    %1268 = arith.subf %1267, %1261 : vector<8x32xf32>
    %1269 = arith.mulf %1268, %1266 : vector<8x32xf32>
    %1270 = arith.mulf %1261, %1222 : vector<8x32xf32>
    %1271 = arith.addf %1269, %1270 : vector<8x32xf32>
    %1272 = vector.extract_strided_slice %1238 {offsets = [0, 128], sizes = [8, 128], strides = [1, 1]} : vector<8x256xf32> to vector<8x128xf32>
    %1273 = vector.extract_strided_slice %1244 {offsets = [0, 0], sizes = [8, 32], strides = [1, 1]} : vector<8x128xf32> to vector<8x32xf32>
    %1274 = vector.extract_strided_slice %1272 {offsets = [0, 0], sizes = [8, 32], strides = [1, 1]} : vector<8x128xf32> to vector<8x32xf32>
    %1275 = arith.addf %1273, %1274 : vector<8x32xf32>
    %1276 = arith.negf %1275 : vector<8x32xf32>
    %1277 = math.exp %1276 : vector<8x32xf32>
    %cst_268 = arith.constant 1.000000e+00 : f32
    %1278 = vector.broadcast %cst_268 : f32 to vector<8x32xf32>
    %1279 = arith.addf %1278, %1277 : vector<8x32xf32>
    %1280 = arith.divf %1278, %1279 : vector<8x32xf32>
    %1281 = vector.extract_strided_slice %1244 {offsets = [0, 32], sizes = [8, 32], strides = [1, 1]} : vector<8x128xf32> to vector<8x32xf32>
    %1282 = vector.extract_strided_slice %1272 {offsets = [0, 32], sizes = [8, 32], strides = [1, 1]} : vector<8x128xf32> to vector<8x32xf32>
    %1283 = arith.addf %1281, %1282 : vector<8x32xf32>
    %1284 = arith.negf %1283 : vector<8x32xf32>
    %1285 = math.exp %1284 : vector<8x32xf32>
    %cst_269 = arith.constant 1.000000e+00 : f32
    %1286 = vector.broadcast %cst_269 : f32 to vector<8x32xf32>
    %1287 = arith.addf %1286, %1285 : vector<8x32xf32>
    %1288 = arith.divf %1286, %1287 : vector<8x32xf32>
    %1289 = vector.extract_strided_slice %1244 {offsets = [0, 64], sizes = [8, 32], strides = [1, 1]} : vector<8x128xf32> to vector<8x32xf32>
    %1290 = vector.extract_strided_slice %1272 {offsets = [0, 64], sizes = [8, 32], strides = [1, 1]} : vector<8x128xf32> to vector<8x32xf32>
    %1291 = arith.mulf %1280, %1290 : vector<8x32xf32>
    %1292 = arith.addf %1289, %1291 : vector<8x32xf32>
    %1293 = math.tanh %1292 : vector<8x32xf32>
    %cst_270 = arith.constant 1.000000e+00 : f32
    %1294 = vector.broadcast %cst_270 : f32 to vector<8x32xf32>
    %1295 = arith.subf %1294, %1288 : vector<8x32xf32>
    %1296 = arith.mulf %1295, %1293 : vector<8x32xf32>
    %1297 = arith.mulf %1288, %1227 : vector<8x32xf32>
    %1298 = arith.addf %1296, %1297 : vector<8x32xf32>
    %1299 = vector.broadcast %c15_i32_258 : i32 to vector<8x1xi32>
    %1300 = arith.cmpi slt, %1299, %0 : vector<8x1xi32>
    %1301 = vector.shape_cast %1300 : vector<8x1xi1> to vector<8x1xi1>
    %1302 = vector.broadcast %1301 : vector<8x1xi1> to vector<8x32xi1>
    %1303 = arith.select %1302, %1271, %1222 : vector<8x32xi1>, vector<8x32xf32>
    %1304 = vector.broadcast %1234 : i32 to vector<8x1xi32>
    %1305 = arith.cmpi slt, %1304, %0 : vector<8x1xi32>
    %1306 = vector.shape_cast %1305 : vector<8x1xi1> to vector<8x1xi1>
    %1307 = vector.broadcast %1306 : vector<8x1xi1> to vector<8x32xi1>
    %1308 = arith.select %1307, %1298, %1227 : vector<8x32xi1>, vector<8x32xf32>
    %c8_i32_271 = arith.constant 8 : i32
    %1309 = arith.muli %c15_i32_258, %c8_i32_271 : i32
    %1310 = arith.index_cast %1309 : i32 to index
    %c0_272 = arith.constant 0 : index
    %1311 = vector.load %arg19[%1310, %c0_272] : memref<128x64xf32, #tpu.memory_space<vmem>>, vector<8x32xf32>
    tpu.vector_store %arg19[%1310, %c0_272], %1303 {strides = array<i32>} : memref<128x64xf32, #tpu.memory_space<vmem>>, vector<8x32xf32>,
    %c8_i32_273 = arith.constant 8 : i32
    %1312 = arith.muli %1234, %c8_i32_273 : i32
    %1313 = arith.index_cast %1312 : i32 to index
    %c32_274 = arith.constant 32 : index
    %1314 = vector.load %arg19[%1313, %c32_274] : memref<128x64xf32, #tpu.memory_space<vmem>>, vector<8x32xf32>
    tpu.vector_store %arg19[%1313, %c32_274], %1308 {strides = array<i32>} : memref<128x64xf32, #tpu.memory_space<vmem>>, vector<8x32xf32>,
    %c16_i32 = arith.constant 16 : i32
    %c0_275 = arith.constant 0 : index
    %c0_276 = arith.constant 0 : index
    %1315 = vector.load %arg19[%c0_275, %c0_276] : memref<128x64xf32, #tpu.memory_space<vmem>>, vector<128x64xf32>
    %c0_277 = arith.constant 0 : index
    %c0_278 = arith.constant 0 : index
    %1316 = vector.load %arg9[%c0_277, %c0_278] : memref<64x256xf32, #tpu.memory_space<vmem>>, vector<64x256xf32>
    %cst_279 = arith.constant dense<0.000000e+00> : vector<128x256xf32>
    %1317 = tpu.matmul %1315, %1316, %cst_279 {dimension_numbers = #tpu.dot_dimension_numbers<[1], [0], [0], [1], [0, 0, 1, 1], [], []>} : vector<128x64xf32>, vector<64x256xf32>, vector<128x256xf32> -> vector<128x256xf32>
    %c0_280 = arith.constant 0 : index
    %c0_281 = arith.constant 0 : index
    %1318 = vector.load %arg11[%c0_280, %c0_281] : memref<1x256xf32, #tpu.memory_space<vmem>>, vector<1x256xf32>
    %1319 = vector.broadcast %1318 : vector<1x256xf32> to vector<128x256xf32>
    %1320 = arith.addf %1317, %1319 : vector<128x256xf32>
    %c0_282 = arith.constant 0 : index
    %c0_283 = arith.constant 0 : index
    %1321 = vector.load %arg18[%c0_282, %c0_283] : memref<128x256xf32, #tpu.memory_space<vmem>>, vector<128x256xf32>
    tpu.vector_store %arg18[%c0_282, %c0_283], %1320 {strides = array<i32>} : memref<128x256xf32, #tpu.memory_space<vmem>>, vector<128x256xf32>,
    %c0_284 = arith.constant 0 : index
    %c0_285 = arith.constant 0 : index
    %1322 = vector.load %arg10[%c0_284, %c0_285] : memref<64x256xf32, #tpu.memory_space<vmem>>, vector<64x256xf32>
    %c0_286 = arith.constant 0 : index
    %c0_287 = arith.constant 0 : index
    %1323 = vector.load %arg12[%c0_286, %c0_287] : memref<1x256xf32, #tpu.memory_space<vmem>>, vector<1x256xf32>
    %c0_i32_288 = arith.constant 0 : i32
    %c15_i32_289 = arith.constant 15 : i32
    %1324 = arith.subi %c15_i32_289, %c0_i32_288 : i32
    %1325 = tpu.concatenate %10, %10 in 1 : vector<8x32xf32>, vector<8x32xf32> -> vector<8x64xf32>
    %cst_290 = arith.constant dense<0.000000e+00> : vector<8x256xf32>
    %1326 = tpu.matmul %1325, %1322, %cst_290 {dimension_numbers = #tpu.dot_dimension_numbers<[1], [0], [0], [1], [0, 0, 1, 1], [], []>} : vector<8x64xf32>, vector<64x256xf32>, vector<8x256xf32> -> vector<8x256xf32>
    %1327 = vector.broadcast %1323 : vector<1x256xf32> to vector<8x256xf32>
    %1328 = arith.addf %1326, %1327 : vector<8x256xf32>
    %c8_i32_291 = arith.constant 8 : i32
    %1329 = arith.muli %c0_i32_288, %c8_i32_291 : i32
    %1330 = arith.index_cast %1329 : i32 to index
    %c0_292 = arith.constant 0 : index
    %1331 = vector.load %arg18[%1330, %c0_292] : memref<128x256xf32, #tpu.memory_space<vmem>>, vector<8x128xf32>
    %c8_i32_293 = arith.constant 8 : i32
    %1332 = arith.muli %1324, %c8_i32_293 : i32
    %1333 = arith.index_cast %1332 : i32 to index
    %c128_294 = arith.constant 128 : index
    %1334 = vector.load %arg18[%1333, %c128_294] : memref<128x256xf32, #tpu.memory_space<vmem>>, vector<8x128xf32>
    %1335 = vector.extract_strided_slice %1328 {offsets = [0, 0], sizes = [8, 128], strides = [1, 1]} : vector<8x256xf32> to vector<8x128xf32>
    %1336 = vector.extract_strided_slice %1331 {offsets = [0, 0], sizes = [8, 32], strides = [1, 1]} : vector<8x128xf32> to vector<8x32xf32>
    %1337 = vector.extract_strided_slice %1335 {offsets = [0, 0], sizes = [8, 32], strides = [1, 1]} : vector<8x128xf32> to vector<8x32xf32>
    %1338 = arith.addf %1336, %1337 : vector<8x32xf32>
    %1339 = arith.negf %1338 : vector<8x32xf32>
    %1340 = math.exp %1339 : vector<8x32xf32>
    %cst_295 = arith.constant 1.000000e+00 : f32
    %1341 = vector.broadcast %cst_295 : f32 to vector<8x32xf32>
    %1342 = arith.addf %1341, %1340 : vector<8x32xf32>
    %1343 = arith.divf %1341, %1342 : vector<8x32xf32>
    %1344 = vector.extract_strided_slice %1331 {offsets = [0, 32], sizes = [8, 32], strides = [1, 1]} : vector<8x128xf32> to vector<8x32xf32>
    %1345 = vector.extract_strided_slice %1335 {offsets = [0, 32], sizes = [8, 32], strides = [1, 1]} : vector<8x128xf32> to vector<8x32xf32>
    %1346 = arith.addf %1344, %1345 : vector<8x32xf32>
    %1347 = arith.negf %1346 : vector<8x32xf32>
    %1348 = math.exp %1347 : vector<8x32xf32>
    %cst_296 = arith.constant 1.000000e+00 : f32
    %1349 = vector.broadcast %cst_296 : f32 to vector<8x32xf32>
    %1350 = arith.addf %1349, %1348 : vector<8x32xf32>
    %1351 = arith.divf %1349, %1350 : vector<8x32xf32>
    %1352 = vector.extract_strided_slice %1331 {offsets = [0, 64], sizes = [8, 32], strides = [1, 1]} : vector<8x128xf32> to vector<8x32xf32>
    %1353 = vector.extract_strided_slice %1335 {offsets = [0, 64], sizes = [8, 32], strides = [1, 1]} : vector<8x128xf32> to vector<8x32xf32>
    %1354 = arith.mulf %1343, %1353 : vector<8x32xf32>
    %1355 = arith.addf %1352, %1354 : vector<8x32xf32>
    %1356 = math.tanh %1355 : vector<8x32xf32>
    %cst_297 = arith.constant 1.000000e+00 : f32
    %1357 = vector.broadcast %cst_297 : f32 to vector<8x32xf32>
    %1358 = arith.subf %1357, %1351 : vector<8x32xf32>
    %1359 = arith.mulf %1358, %1356 : vector<8x32xf32>
    %1360 = arith.mulf %1351, %10 : vector<8x32xf32>
    %1361 = arith.addf %1359, %1360 : vector<8x32xf32>
    %1362 = vector.extract_strided_slice %1328 {offsets = [0, 128], sizes = [8, 128], strides = [1, 1]} : vector<8x256xf32> to vector<8x128xf32>
    %1363 = vector.extract_strided_slice %1334 {offsets = [0, 0], sizes = [8, 32], strides = [1, 1]} : vector<8x128xf32> to vector<8x32xf32>
    %1364 = vector.extract_strided_slice %1362 {offsets = [0, 0], sizes = [8, 32], strides = [1, 1]} : vector<8x128xf32> to vector<8x32xf32>
    %1365 = arith.addf %1363, %1364 : vector<8x32xf32>
    %1366 = arith.negf %1365 : vector<8x32xf32>
    %1367 = math.exp %1366 : vector<8x32xf32>
    %cst_298 = arith.constant 1.000000e+00 : f32
    %1368 = vector.broadcast %cst_298 : f32 to vector<8x32xf32>
    %1369 = arith.addf %1368, %1367 : vector<8x32xf32>
    %1370 = arith.divf %1368, %1369 : vector<8x32xf32>
    %1371 = vector.extract_strided_slice %1334 {offsets = [0, 32], sizes = [8, 32], strides = [1, 1]} : vector<8x128xf32> to vector<8x32xf32>
    %1372 = vector.extract_strided_slice %1362 {offsets = [0, 32], sizes = [8, 32], strides = [1, 1]} : vector<8x128xf32> to vector<8x32xf32>
    %1373 = arith.addf %1371, %1372 : vector<8x32xf32>
    %1374 = arith.negf %1373 : vector<8x32xf32>
    %1375 = math.exp %1374 : vector<8x32xf32>
    %cst_299 = arith.constant 1.000000e+00 : f32
    %1376 = vector.broadcast %cst_299 : f32 to vector<8x32xf32>
    %1377 = arith.addf %1376, %1375 : vector<8x32xf32>
    %1378 = arith.divf %1376, %1377 : vector<8x32xf32>
    %1379 = vector.extract_strided_slice %1334 {offsets = [0, 64], sizes = [8, 32], strides = [1, 1]} : vector<8x128xf32> to vector<8x32xf32>
    %1380 = vector.extract_strided_slice %1362 {offsets = [0, 64], sizes = [8, 32], strides = [1, 1]} : vector<8x128xf32> to vector<8x32xf32>
    %1381 = arith.mulf %1370, %1380 : vector<8x32xf32>
    %1382 = arith.addf %1379, %1381 : vector<8x32xf32>
    %1383 = math.tanh %1382 : vector<8x32xf32>
    %cst_300 = arith.constant 1.000000e+00 : f32
    %1384 = vector.broadcast %cst_300 : f32 to vector<8x32xf32>
    %1385 = arith.subf %1384, %1378 : vector<8x32xf32>
    %1386 = arith.mulf %1385, %1383 : vector<8x32xf32>
    %1387 = arith.mulf %1378, %10 : vector<8x32xf32>
    %1388 = arith.addf %1386, %1387 : vector<8x32xf32>
    %1389 = vector.broadcast %c0_i32_288 : i32 to vector<8x1xi32>
    %1390 = arith.cmpi slt, %1389, %0 : vector<8x1xi32>
    %1391 = vector.shape_cast %1390 : vector<8x1xi1> to vector<8x1xi1>
    %1392 = vector.broadcast %1391 : vector<8x1xi1> to vector<8x32xi1>
    %1393 = arith.select %1392, %1361, %10 : vector<8x32xi1>, vector<8x32xf32>
    %1394 = vector.broadcast %1324 : i32 to vector<8x1xi32>
    %1395 = arith.cmpi slt, %1394, %0 : vector<8x1xi32>
    %1396 = vector.shape_cast %1395 : vector<8x1xi1> to vector<8x1xi1>
    %1397 = vector.broadcast %1396 : vector<8x1xi1> to vector<8x32xi1>
    %1398 = arith.select %1397, %1388, %10 : vector<8x32xi1>, vector<8x32xf32>
    %c1_i32_301 = arith.constant 1 : i32
    %c15_i32_302 = arith.constant 15 : i32
    %1399 = arith.subi %c15_i32_302, %c1_i32_301 : i32
    %1400 = tpu.concatenate %1393, %1398 in 1 : vector<8x32xf32>, vector<8x32xf32> -> vector<8x64xf32>
    %cst_303 = arith.constant dense<0.000000e+00> : vector<8x256xf32>
    %1401 = tpu.matmul %1400, %1322, %cst_303 {dimension_numbers = #tpu.dot_dimension_numbers<[1], [0], [0], [1], [0, 0, 1, 1], [], []>} : vector<8x64xf32>, vector<64x256xf32>, vector<8x256xf32> -> vector<8x256xf32>
    %1402 = vector.broadcast %1323 : vector<1x256xf32> to vector<8x256xf32>
    %1403 = arith.addf %1401, %1402 : vector<8x256xf32>
    %c8_i32_304 = arith.constant 8 : i32
    %1404 = arith.muli %c1_i32_301, %c8_i32_304 : i32
    %1405 = arith.index_cast %1404 : i32 to index
    %c0_305 = arith.constant 0 : index
    %1406 = vector.load %arg18[%1405, %c0_305] : memref<128x256xf32, #tpu.memory_space<vmem>>, vector<8x128xf32>
    %c8_i32_306 = arith.constant 8 : i32
    %1407 = arith.muli %1399, %c8_i32_306 : i32
    %1408 = arith.index_cast %1407 : i32 to index
    %c128_307 = arith.constant 128 : index
    %1409 = vector.load %arg18[%1408, %c128_307] : memref<128x256xf32, #tpu.memory_space<vmem>>, vector<8x128xf32>
    %1410 = vector.extract_strided_slice %1403 {offsets = [0, 0], sizes = [8, 128], strides = [1, 1]} : vector<8x256xf32> to vector<8x128xf32>
    %1411 = vector.extract_strided_slice %1406 {offsets = [0, 0], sizes = [8, 32], strides = [1, 1]} : vector<8x128xf32> to vector<8x32xf32>
    %1412 = vector.extract_strided_slice %1410 {offsets = [0, 0], sizes = [8, 32], strides = [1, 1]} : vector<8x128xf32> to vector<8x32xf32>
    %1413 = arith.addf %1411, %1412 : vector<8x32xf32>
    %1414 = arith.negf %1413 : vector<8x32xf32>
    %1415 = math.exp %1414 : vector<8x32xf32>
    %cst_308 = arith.constant 1.000000e+00 : f32
    %1416 = vector.broadcast %cst_308 : f32 to vector<8x32xf32>
    %1417 = arith.addf %1416, %1415 : vector<8x32xf32>
    %1418 = arith.divf %1416, %1417 : vector<8x32xf32>
    %1419 = vector.extract_strided_slice %1406 {offsets = [0, 32], sizes = [8, 32], strides = [1, 1]} : vector<8x128xf32> to vector<8x32xf32>
    %1420 = vector.extract_strided_slice %1410 {offsets = [0, 32], sizes = [8, 32], strides = [1, 1]} : vector<8x128xf32> to vector<8x32xf32>
    %1421 = arith.addf %1419, %1420 : vector<8x32xf32>
    %1422 = arith.negf %1421 : vector<8x32xf32>
    %1423 = math.exp %1422 : vector<8x32xf32>
    %cst_309 = arith.constant 1.000000e+00 : f32
    %1424 = vector.broadcast %cst_309 : f32 to vector<8x32xf32>
    %1425 = arith.addf %1424, %1423 : vector<8x32xf32>
    %1426 = arith.divf %1424, %1425 : vector<8x32xf32>
    %1427 = vector.extract_strided_slice %1406 {offsets = [0, 64], sizes = [8, 32], strides = [1, 1]} : vector<8x128xf32> to vector<8x32xf32>
    %1428 = vector.extract_strided_slice %1410 {offsets = [0, 64], sizes = [8, 32], strides = [1, 1]} : vector<8x128xf32> to vector<8x32xf32>
    %1429 = arith.mulf %1418, %1428 : vector<8x32xf32>
    %1430 = arith.addf %1427, %1429 : vector<8x32xf32>
    %1431 = math.tanh %1430 : vector<8x32xf32>
    %cst_310 = arith.constant 1.000000e+00 : f32
    %1432 = vector.broadcast %cst_310 : f32 to vector<8x32xf32>
    %1433 = arith.subf %1432, %1426 : vector<8x32xf32>
    %1434 = arith.mulf %1433, %1431 : vector<8x32xf32>
    %1435 = arith.mulf %1426, %1393 : vector<8x32xf32>
    %1436 = arith.addf %1434, %1435 : vector<8x32xf32>
    %1437 = vector.extract_strided_slice %1403 {offsets = [0, 128], sizes = [8, 128], strides = [1, 1]} : vector<8x256xf32> to vector<8x128xf32>
    %1438 = vector.extract_strided_slice %1409 {offsets = [0, 0], sizes = [8, 32], strides = [1, 1]} : vector<8x128xf32> to vector<8x32xf32>
    %1439 = vector.extract_strided_slice %1437 {offsets = [0, 0], sizes = [8, 32], strides = [1, 1]} : vector<8x128xf32> to vector<8x32xf32>
    %1440 = arith.addf %1438, %1439 : vector<8x32xf32>
    %1441 = arith.negf %1440 : vector<8x32xf32>
    %1442 = math.exp %1441 : vector<8x32xf32>
    %cst_311 = arith.constant 1.000000e+00 : f32
    %1443 = vector.broadcast %cst_311 : f32 to vector<8x32xf32>
    %1444 = arith.addf %1443, %1442 : vector<8x32xf32>
    %1445 = arith.divf %1443, %1444 : vector<8x32xf32>
    %1446 = vector.extract_strided_slice %1409 {offsets = [0, 32], sizes = [8, 32], strides = [1, 1]} : vector<8x128xf32> to vector<8x32xf32>
    %1447 = vector.extract_strided_slice %1437 {offsets = [0, 32], sizes = [8, 32], strides = [1, 1]} : vector<8x128xf32> to vector<8x32xf32>
    %1448 = arith.addf %1446, %1447 : vector<8x32xf32>
    %1449 = arith.negf %1448 : vector<8x32xf32>
    %1450 = math.exp %1449 : vector<8x32xf32>
    %cst_312 = arith.constant 1.000000e+00 : f32
    %1451 = vector.broadcast %cst_312 : f32 to vector<8x32xf32>
    %1452 = arith.addf %1451, %1450 : vector<8x32xf32>
    %1453 = arith.divf %1451, %1452 : vector<8x32xf32>
    %1454 = vector.extract_strided_slice %1409 {offsets = [0, 64], sizes = [8, 32], strides = [1, 1]} : vector<8x128xf32> to vector<8x32xf32>
    %1455 = vector.extract_strided_slice %1437 {offsets = [0, 64], sizes = [8, 32], strides = [1, 1]} : vector<8x128xf32> to vector<8x32xf32>
    %1456 = arith.mulf %1445, %1455 : vector<8x32xf32>
    %1457 = arith.addf %1454, %1456 : vector<8x32xf32>
    %1458 = math.tanh %1457 : vector<8x32xf32>
    %cst_313 = arith.constant 1.000000e+00 : f32
    %1459 = vector.broadcast %cst_313 : f32 to vector<8x32xf32>
    %1460 = arith.subf %1459, %1453 : vector<8x32xf32>
    %1461 = arith.mulf %1460, %1458 : vector<8x32xf32>
    %1462 = arith.mulf %1453, %1398 : vector<8x32xf32>
    %1463 = arith.addf %1461, %1462 : vector<8x32xf32>
    %1464 = vector.broadcast %c1_i32_301 : i32 to vector<8x1xi32>
    %1465 = arith.cmpi slt, %1464, %0 : vector<8x1xi32>
    %1466 = vector.shape_cast %1465 : vector<8x1xi1> to vector<8x1xi1>
    %1467 = vector.broadcast %1466 : vector<8x1xi1> to vector<8x32xi1>
    %1468 = arith.select %1467, %1436, %1393 : vector<8x32xi1>, vector<8x32xf32>
    %1469 = vector.broadcast %1399 : i32 to vector<8x1xi32>
    %1470 = arith.cmpi slt, %1469, %0 : vector<8x1xi32>
    %1471 = vector.shape_cast %1470 : vector<8x1xi1> to vector<8x1xi1>
    %1472 = vector.broadcast %1471 : vector<8x1xi1> to vector<8x32xi1>
    %1473 = arith.select %1472, %1463, %1398 : vector<8x32xi1>, vector<8x32xf32>
    %c2_i32_314 = arith.constant 2 : i32
    %c15_i32_315 = arith.constant 15 : i32
    %1474 = arith.subi %c15_i32_315, %c2_i32_314 : i32
    %1475 = tpu.concatenate %1468, %1473 in 1 : vector<8x32xf32>, vector<8x32xf32> -> vector<8x64xf32>
    %cst_316 = arith.constant dense<0.000000e+00> : vector<8x256xf32>
    %1476 = tpu.matmul %1475, %1322, %cst_316 {dimension_numbers = #tpu.dot_dimension_numbers<[1], [0], [0], [1], [0, 0, 1, 1], [], []>} : vector<8x64xf32>, vector<64x256xf32>, vector<8x256xf32> -> vector<8x256xf32>
    %1477 = vector.broadcast %1323 : vector<1x256xf32> to vector<8x256xf32>
    %1478 = arith.addf %1476, %1477 : vector<8x256xf32>
    %c8_i32_317 = arith.constant 8 : i32
    %1479 = arith.muli %c2_i32_314, %c8_i32_317 : i32
    %1480 = arith.index_cast %1479 : i32 to index
    %c0_318 = arith.constant 0 : index
    %1481 = vector.load %arg18[%1480, %c0_318] : memref<128x256xf32, #tpu.memory_space<vmem>>, vector<8x128xf32>
    %c8_i32_319 = arith.constant 8 : i32
    %1482 = arith.muli %1474, %c8_i32_319 : i32
    %1483 = arith.index_cast %1482 : i32 to index
    %c128_320 = arith.constant 128 : index
    %1484 = vector.load %arg18[%1483, %c128_320] : memref<128x256xf32, #tpu.memory_space<vmem>>, vector<8x128xf32>
    %1485 = vector.extract_strided_slice %1478 {offsets = [0, 0], sizes = [8, 128], strides = [1, 1]} : vector<8x256xf32> to vector<8x128xf32>
    %1486 = vector.extract_strided_slice %1481 {offsets = [0, 0], sizes = [8, 32], strides = [1, 1]} : vector<8x128xf32> to vector<8x32xf32>
    %1487 = vector.extract_strided_slice %1485 {offsets = [0, 0], sizes = [8, 32], strides = [1, 1]} : vector<8x128xf32> to vector<8x32xf32>
    %1488 = arith.addf %1486, %1487 : vector<8x32xf32>
    %1489 = arith.negf %1488 : vector<8x32xf32>
    %1490 = math.exp %1489 : vector<8x32xf32>
    %cst_321 = arith.constant 1.000000e+00 : f32
    %1491 = vector.broadcast %cst_321 : f32 to vector<8x32xf32>
    %1492 = arith.addf %1491, %1490 : vector<8x32xf32>
    %1493 = arith.divf %1491, %1492 : vector<8x32xf32>
    %1494 = vector.extract_strided_slice %1481 {offsets = [0, 32], sizes = [8, 32], strides = [1, 1]} : vector<8x128xf32> to vector<8x32xf32>
    %1495 = vector.extract_strided_slice %1485 {offsets = [0, 32], sizes = [8, 32], strides = [1, 1]} : vector<8x128xf32> to vector<8x32xf32>
    %1496 = arith.addf %1494, %1495 : vector<8x32xf32>
    %1497 = arith.negf %1496 : vector<8x32xf32>
    %1498 = math.exp %1497 : vector<8x32xf32>
    %cst_322 = arith.constant 1.000000e+00 : f32
    %1499 = vector.broadcast %cst_322 : f32 to vector<8x32xf32>
    %1500 = arith.addf %1499, %1498 : vector<8x32xf32>
    %1501 = arith.divf %1499, %1500 : vector<8x32xf32>
    %1502 = vector.extract_strided_slice %1481 {offsets = [0, 64], sizes = [8, 32], strides = [1, 1]} : vector<8x128xf32> to vector<8x32xf32>
    %1503 = vector.extract_strided_slice %1485 {offsets = [0, 64], sizes = [8, 32], strides = [1, 1]} : vector<8x128xf32> to vector<8x32xf32>
    %1504 = arith.mulf %1493, %1503 : vector<8x32xf32>
    %1505 = arith.addf %1502, %1504 : vector<8x32xf32>
    %1506 = math.tanh %1505 : vector<8x32xf32>
    %cst_323 = arith.constant 1.000000e+00 : f32
    %1507 = vector.broadcast %cst_323 : f32 to vector<8x32xf32>
    %1508 = arith.subf %1507, %1501 : vector<8x32xf32>
    %1509 = arith.mulf %1508, %1506 : vector<8x32xf32>
    %1510 = arith.mulf %1501, %1468 : vector<8x32xf32>
    %1511 = arith.addf %1509, %1510 : vector<8x32xf32>
    %1512 = vector.extract_strided_slice %1478 {offsets = [0, 128], sizes = [8, 128], strides = [1, 1]} : vector<8x256xf32> to vector<8x128xf32>
    %1513 = vector.extract_strided_slice %1484 {offsets = [0, 0], sizes = [8, 32], strides = [1, 1]} : vector<8x128xf32> to vector<8x32xf32>
    %1514 = vector.extract_strided_slice %1512 {offsets = [0, 0], sizes = [8, 32], strides = [1, 1]} : vector<8x128xf32> to vector<8x32xf32>
    %1515 = arith.addf %1513, %1514 : vector<8x32xf32>
    %1516 = arith.negf %1515 : vector<8x32xf32>
    %1517 = math.exp %1516 : vector<8x32xf32>
    %cst_324 = arith.constant 1.000000e+00 : f32
    %1518 = vector.broadcast %cst_324 : f32 to vector<8x32xf32>
    %1519 = arith.addf %1518, %1517 : vector<8x32xf32>
    %1520 = arith.divf %1518, %1519 : vector<8x32xf32>
    %1521 = vector.extract_strided_slice %1484 {offsets = [0, 32], sizes = [8, 32], strides = [1, 1]} : vector<8x128xf32> to vector<8x32xf32>
    %1522 = vector.extract_strided_slice %1512 {offsets = [0, 32], sizes = [8, 32], strides = [1, 1]} : vector<8x128xf32> to vector<8x32xf32>
    %1523 = arith.addf %1521, %1522 : vector<8x32xf32>
    %1524 = arith.negf %1523 : vector<8x32xf32>
    %1525 = math.exp %1524 : vector<8x32xf32>
    %cst_325 = arith.constant 1.000000e+00 : f32
    %1526 = vector.broadcast %cst_325 : f32 to vector<8x32xf32>
    %1527 = arith.addf %1526, %1525 : vector<8x32xf32>
    %1528 = arith.divf %1526, %1527 : vector<8x32xf32>
    %1529 = vector.extract_strided_slice %1484 {offsets = [0, 64], sizes = [8, 32], strides = [1, 1]} : vector<8x128xf32> to vector<8x32xf32>
    %1530 = vector.extract_strided_slice %1512 {offsets = [0, 64], sizes = [8, 32], strides = [1, 1]} : vector<8x128xf32> to vector<8x32xf32>
    %1531 = arith.mulf %1520, %1530 : vector<8x32xf32>
    %1532 = arith.addf %1529, %1531 : vector<8x32xf32>
    %1533 = math.tanh %1532 : vector<8x32xf32>
    %cst_326 = arith.constant 1.000000e+00 : f32
    %1534 = vector.broadcast %cst_326 : f32 to vector<8x32xf32>
    %1535 = arith.subf %1534, %1528 : vector<8x32xf32>
    %1536 = arith.mulf %1535, %1533 : vector<8x32xf32>
    %1537 = arith.mulf %1528, %1473 : vector<8x32xf32>
    %1538 = arith.addf %1536, %1537 : vector<8x32xf32>
    %1539 = vector.broadcast %c2_i32_314 : i32 to vector<8x1xi32>
    %1540 = arith.cmpi slt, %1539, %0 : vector<8x1xi32>
    %1541 = vector.shape_cast %1540 : vector<8x1xi1> to vector<8x1xi1>
    %1542 = vector.broadcast %1541 : vector<8x1xi1> to vector<8x32xi1>
    %1543 = arith.select %1542, %1511, %1468 : vector<8x32xi1>, vector<8x32xf32>
    %1544 = vector.broadcast %1474 : i32 to vector<8x1xi32>
    %1545 = arith.cmpi slt, %1544, %0 : vector<8x1xi32>
    %1546 = vector.shape_cast %1545 : vector<8x1xi1> to vector<8x1xi1>
    %1547 = vector.broadcast %1546 : vector<8x1xi1> to vector<8x32xi1>
    %1548 = arith.select %1547, %1538, %1473 : vector<8x32xi1>, vector<8x32xf32>
    %c3_i32_327 = arith.constant 3 : i32
    %c15_i32_328 = arith.constant 15 : i32
    %1549 = arith.subi %c15_i32_328, %c3_i32_327 : i32
    %1550 = tpu.concatenate %1543, %1548 in 1 : vector<8x32xf32>, vector<8x32xf32> -> vector<8x64xf32>
    %cst_329 = arith.constant dense<0.000000e+00> : vector<8x256xf32>
    %1551 = tpu.matmul %1550, %1322, %cst_329 {dimension_numbers = #tpu.dot_dimension_numbers<[1], [0], [0], [1], [0, 0, 1, 1], [], []>} : vector<8x64xf32>, vector<64x256xf32>, vector<8x256xf32> -> vector<8x256xf32>
    %1552 = vector.broadcast %1323 : vector<1x256xf32> to vector<8x256xf32>
    %1553 = arith.addf %1551, %1552 : vector<8x256xf32>
    %c8_i32_330 = arith.constant 8 : i32
    %1554 = arith.muli %c3_i32_327, %c8_i32_330 : i32
    %1555 = arith.index_cast %1554 : i32 to index
    %c0_331 = arith.constant 0 : index
    %1556 = vector.load %arg18[%1555, %c0_331] : memref<128x256xf32, #tpu.memory_space<vmem>>, vector<8x128xf32>
    %c8_i32_332 = arith.constant 8 : i32
    %1557 = arith.muli %1549, %c8_i32_332 : i32
    %1558 = arith.index_cast %1557 : i32 to index
    %c128_333 = arith.constant 128 : index
    %1559 = vector.load %arg18[%1558, %c128_333] : memref<128x256xf32, #tpu.memory_space<vmem>>, vector<8x128xf32>
    %1560 = vector.extract_strided_slice %1553 {offsets = [0, 0], sizes = [8, 128], strides = [1, 1]} : vector<8x256xf32> to vector<8x128xf32>
    %1561 = vector.extract_strided_slice %1556 {offsets = [0, 0], sizes = [8, 32], strides = [1, 1]} : vector<8x128xf32> to vector<8x32xf32>
    %1562 = vector.extract_strided_slice %1560 {offsets = [0, 0], sizes = [8, 32], strides = [1, 1]} : vector<8x128xf32> to vector<8x32xf32>
    %1563 = arith.addf %1561, %1562 : vector<8x32xf32>
    %1564 = arith.negf %1563 : vector<8x32xf32>
    %1565 = math.exp %1564 : vector<8x32xf32>
    %cst_334 = arith.constant 1.000000e+00 : f32
    %1566 = vector.broadcast %cst_334 : f32 to vector<8x32xf32>
    %1567 = arith.addf %1566, %1565 : vector<8x32xf32>
    %1568 = arith.divf %1566, %1567 : vector<8x32xf32>
    %1569 = vector.extract_strided_slice %1556 {offsets = [0, 32], sizes = [8, 32], strides = [1, 1]} : vector<8x128xf32> to vector<8x32xf32>
    %1570 = vector.extract_strided_slice %1560 {offsets = [0, 32], sizes = [8, 32], strides = [1, 1]} : vector<8x128xf32> to vector<8x32xf32>
    %1571 = arith.addf %1569, %1570 : vector<8x32xf32>
    %1572 = arith.negf %1571 : vector<8x32xf32>
    %1573 = math.exp %1572 : vector<8x32xf32>
    %cst_335 = arith.constant 1.000000e+00 : f32
    %1574 = vector.broadcast %cst_335 : f32 to vector<8x32xf32>
    %1575 = arith.addf %1574, %1573 : vector<8x32xf32>
    %1576 = arith.divf %1574, %1575 : vector<8x32xf32>
    %1577 = vector.extract_strided_slice %1556 {offsets = [0, 64], sizes = [8, 32], strides = [1, 1]} : vector<8x128xf32> to vector<8x32xf32>
    %1578 = vector.extract_strided_slice %1560 {offsets = [0, 64], sizes = [8, 32], strides = [1, 1]} : vector<8x128xf32> to vector<8x32xf32>
    %1579 = arith.mulf %1568, %1578 : vector<8x32xf32>
    %1580 = arith.addf %1577, %1579 : vector<8x32xf32>
    %1581 = math.tanh %1580 : vector<8x32xf32>
    %cst_336 = arith.constant 1.000000e+00 : f32
    %1582 = vector.broadcast %cst_336 : f32 to vector<8x32xf32>
    %1583 = arith.subf %1582, %1576 : vector<8x32xf32>
    %1584 = arith.mulf %1583, %1581 : vector<8x32xf32>
    %1585 = arith.mulf %1576, %1543 : vector<8x32xf32>
    %1586 = arith.addf %1584, %1585 : vector<8x32xf32>
    %1587 = vector.extract_strided_slice %1553 {offsets = [0, 128], sizes = [8, 128], strides = [1, 1]} : vector<8x256xf32> to vector<8x128xf32>
    %1588 = vector.extract_strided_slice %1559 {offsets = [0, 0], sizes = [8, 32], strides = [1, 1]} : vector<8x128xf32> to vector<8x32xf32>
    %1589 = vector.extract_strided_slice %1587 {offsets = [0, 0], sizes = [8, 32], strides = [1, 1]} : vector<8x128xf32> to vector<8x32xf32>
    %1590 = arith.addf %1588, %1589 : vector<8x32xf32>
    %1591 = arith.negf %1590 : vector<8x32xf32>
    %1592 = math.exp %1591 : vector<8x32xf32>
    %cst_337 = arith.constant 1.000000e+00 : f32
    %1593 = vector.broadcast %cst_337 : f32 to vector<8x32xf32>
    %1594 = arith.addf %1593, %1592 : vector<8x32xf32>
    %1595 = arith.divf %1593, %1594 : vector<8x32xf32>
    %1596 = vector.extract_strided_slice %1559 {offsets = [0, 32], sizes = [8, 32], strides = [1, 1]} : vector<8x128xf32> to vector<8x32xf32>
    %1597 = vector.extract_strided_slice %1587 {offsets = [0, 32], sizes = [8, 32], strides = [1, 1]} : vector<8x128xf32> to vector<8x32xf32>
    %1598 = arith.addf %1596, %1597 : vector<8x32xf32>
    %1599 = arith.negf %1598 : vector<8x32xf32>
    %1600 = math.exp %1599 : vector<8x32xf32>
    %cst_338 = arith.constant 1.000000e+00 : f32
    %1601 = vector.broadcast %cst_338 : f32 to vector<8x32xf32>
    %1602 = arith.addf %1601, %1600 : vector<8x32xf32>
    %1603 = arith.divf %1601, %1602 : vector<8x32xf32>
    %1604 = vector.extract_strided_slice %1559 {offsets = [0, 64], sizes = [8, 32], strides = [1, 1]} : vector<8x128xf32> to vector<8x32xf32>
    %1605 = vector.extract_strided_slice %1587 {offsets = [0, 64], sizes = [8, 32], strides = [1, 1]} : vector<8x128xf32> to vector<8x32xf32>
    %1606 = arith.mulf %1595, %1605 : vector<8x32xf32>
    %1607 = arith.addf %1604, %1606 : vector<8x32xf32>
    %1608 = math.tanh %1607 : vector<8x32xf32>
    %cst_339 = arith.constant 1.000000e+00 : f32
    %1609 = vector.broadcast %cst_339 : f32 to vector<8x32xf32>
    %1610 = arith.subf %1609, %1603 : vector<8x32xf32>
    %1611 = arith.mulf %1610, %1608 : vector<8x32xf32>
    %1612 = arith.mulf %1603, %1548 : vector<8x32xf32>
    %1613 = arith.addf %1611, %1612 : vector<8x32xf32>
    %1614 = vector.broadcast %c3_i32_327 : i32 to vector<8x1xi32>
    %1615 = arith.cmpi slt, %1614, %0 : vector<8x1xi32>
    %1616 = vector.shape_cast %1615 : vector<8x1xi1> to vector<8x1xi1>
    %1617 = vector.broadcast %1616 : vector<8x1xi1> to vector<8x32xi1>
    %1618 = arith.select %1617, %1586, %1543 : vector<8x32xi1>, vector<8x32xf32>
    %1619 = vector.broadcast %1549 : i32 to vector<8x1xi32>
    %1620 = arith.cmpi slt, %1619, %0 : vector<8x1xi32>
    %1621 = vector.shape_cast %1620 : vector<8x1xi1> to vector<8x1xi1>
    %1622 = vector.broadcast %1621 : vector<8x1xi1> to vector<8x32xi1>
    %1623 = arith.select %1622, %1613, %1548 : vector<8x32xi1>, vector<8x32xf32>
    %c4_i32_340 = arith.constant 4 : i32
    %c15_i32_341 = arith.constant 15 : i32
    %1624 = arith.subi %c15_i32_341, %c4_i32_340 : i32
    %1625 = tpu.concatenate %1618, %1623 in 1 : vector<8x32xf32>, vector<8x32xf32> -> vector<8x64xf32>
    %cst_342 = arith.constant dense<0.000000e+00> : vector<8x256xf32>
    %1626 = tpu.matmul %1625, %1322, %cst_342 {dimension_numbers = #tpu.dot_dimension_numbers<[1], [0], [0], [1], [0, 0, 1, 1], [], []>} : vector<8x64xf32>, vector<64x256xf32>, vector<8x256xf32> -> vector<8x256xf32>
    %1627 = vector.broadcast %1323 : vector<1x256xf32> to vector<8x256xf32>
    %1628 = arith.addf %1626, %1627 : vector<8x256xf32>
    %c8_i32_343 = arith.constant 8 : i32
    %1629 = arith.muli %c4_i32_340, %c8_i32_343 : i32
    %1630 = arith.index_cast %1629 : i32 to index
    %c0_344 = arith.constant 0 : index
    %1631 = vector.load %arg18[%1630, %c0_344] : memref<128x256xf32, #tpu.memory_space<vmem>>, vector<8x128xf32>
    %c8_i32_345 = arith.constant 8 : i32
    %1632 = arith.muli %1624, %c8_i32_345 : i32
    %1633 = arith.index_cast %1632 : i32 to index
    %c128_346 = arith.constant 128 : index
    %1634 = vector.load %arg18[%1633, %c128_346] : memref<128x256xf32, #tpu.memory_space<vmem>>, vector<8x128xf32>
    %1635 = vector.extract_strided_slice %1628 {offsets = [0, 0], sizes = [8, 128], strides = [1, 1]} : vector<8x256xf32> to vector<8x128xf32>
    %1636 = vector.extract_strided_slice %1631 {offsets = [0, 0], sizes = [8, 32], strides = [1, 1]} : vector<8x128xf32> to vector<8x32xf32>
    %1637 = vector.extract_strided_slice %1635 {offsets = [0, 0], sizes = [8, 32], strides = [1, 1]} : vector<8x128xf32> to vector<8x32xf32>
    %1638 = arith.addf %1636, %1637 : vector<8x32xf32>
    %1639 = arith.negf %1638 : vector<8x32xf32>
    %1640 = math.exp %1639 : vector<8x32xf32>
    %cst_347 = arith.constant 1.000000e+00 : f32
    %1641 = vector.broadcast %cst_347 : f32 to vector<8x32xf32>
    %1642 = arith.addf %1641, %1640 : vector<8x32xf32>
    %1643 = arith.divf %1641, %1642 : vector<8x32xf32>
    %1644 = vector.extract_strided_slice %1631 {offsets = [0, 32], sizes = [8, 32], strides = [1, 1]} : vector<8x128xf32> to vector<8x32xf32>
    %1645 = vector.extract_strided_slice %1635 {offsets = [0, 32], sizes = [8, 32], strides = [1, 1]} : vector<8x128xf32> to vector<8x32xf32>
    %1646 = arith.addf %1644, %1645 : vector<8x32xf32>
    %1647 = arith.negf %1646 : vector<8x32xf32>
    %1648 = math.exp %1647 : vector<8x32xf32>
    %cst_348 = arith.constant 1.000000e+00 : f32
    %1649 = vector.broadcast %cst_348 : f32 to vector<8x32xf32>
    %1650 = arith.addf %1649, %1648 : vector<8x32xf32>
    %1651 = arith.divf %1649, %1650 : vector<8x32xf32>
    %1652 = vector.extract_strided_slice %1631 {offsets = [0, 64], sizes = [8, 32], strides = [1, 1]} : vector<8x128xf32> to vector<8x32xf32>
    %1653 = vector.extract_strided_slice %1635 {offsets = [0, 64], sizes = [8, 32], strides = [1, 1]} : vector<8x128xf32> to vector<8x32xf32>
    %1654 = arith.mulf %1643, %1653 : vector<8x32xf32>
    %1655 = arith.addf %1652, %1654 : vector<8x32xf32>
    %1656 = math.tanh %1655 : vector<8x32xf32>
    %cst_349 = arith.constant 1.000000e+00 : f32
    %1657 = vector.broadcast %cst_349 : f32 to vector<8x32xf32>
    %1658 = arith.subf %1657, %1651 : vector<8x32xf32>
    %1659 = arith.mulf %1658, %1656 : vector<8x32xf32>
    %1660 = arith.mulf %1651, %1618 : vector<8x32xf32>
    %1661 = arith.addf %1659, %1660 : vector<8x32xf32>
    %1662 = vector.extract_strided_slice %1628 {offsets = [0, 128], sizes = [8, 128], strides = [1, 1]} : vector<8x256xf32> to vector<8x128xf32>
    %1663 = vector.extract_strided_slice %1634 {offsets = [0, 0], sizes = [8, 32], strides = [1, 1]} : vector<8x128xf32> to vector<8x32xf32>
    %1664 = vector.extract_strided_slice %1662 {offsets = [0, 0], sizes = [8, 32], strides = [1, 1]} : vector<8x128xf32> to vector<8x32xf32>
    %1665 = arith.addf %1663, %1664 : vector<8x32xf32>
    %1666 = arith.negf %1665 : vector<8x32xf32>
    %1667 = math.exp %1666 : vector<8x32xf32>
    %cst_350 = arith.constant 1.000000e+00 : f32
    %1668 = vector.broadcast %cst_350 : f32 to vector<8x32xf32>
    %1669 = arith.addf %1668, %1667 : vector<8x32xf32>
    %1670 = arith.divf %1668, %1669 : vector<8x32xf32>
    %1671 = vector.extract_strided_slice %1634 {offsets = [0, 32], sizes = [8, 32], strides = [1, 1]} : vector<8x128xf32> to vector<8x32xf32>
    %1672 = vector.extract_strided_slice %1662 {offsets = [0, 32], sizes = [8, 32], strides = [1, 1]} : vector<8x128xf32> to vector<8x32xf32>
    %1673 = arith.addf %1671, %1672 : vector<8x32xf32>
    %1674 = arith.negf %1673 : vector<8x32xf32>
    %1675 = math.exp %1674 : vector<8x32xf32>
    %cst_351 = arith.constant 1.000000e+00 : f32
    %1676 = vector.broadcast %cst_351 : f32 to vector<8x32xf32>
    %1677 = arith.addf %1676, %1675 : vector<8x32xf32>
    %1678 = arith.divf %1676, %1677 : vector<8x32xf32>
    %1679 = vector.extract_strided_slice %1634 {offsets = [0, 64], sizes = [8, 32], strides = [1, 1]} : vector<8x128xf32> to vector<8x32xf32>
    %1680 = vector.extract_strided_slice %1662 {offsets = [0, 64], sizes = [8, 32], strides = [1, 1]} : vector<8x128xf32> to vector<8x32xf32>
    %1681 = arith.mulf %1670, %1680 : vector<8x32xf32>
    %1682 = arith.addf %1679, %1681 : vector<8x32xf32>
    %1683 = math.tanh %1682 : vector<8x32xf32>
    %cst_352 = arith.constant 1.000000e+00 : f32
    %1684 = vector.broadcast %cst_352 : f32 to vector<8x32xf32>
    %1685 = arith.subf %1684, %1678 : vector<8x32xf32>
    %1686 = arith.mulf %1685, %1683 : vector<8x32xf32>
    %1687 = arith.mulf %1678, %1623 : vector<8x32xf32>
    %1688 = arith.addf %1686, %1687 : vector<8x32xf32>
    %1689 = vector.broadcast %c4_i32_340 : i32 to vector<8x1xi32>
    %1690 = arith.cmpi slt, %1689, %0 : vector<8x1xi32>
    %1691 = vector.shape_cast %1690 : vector<8x1xi1> to vector<8x1xi1>
    %1692 = vector.broadcast %1691 : vector<8x1xi1> to vector<8x32xi1>
    %1693 = arith.select %1692, %1661, %1618 : vector<8x32xi1>, vector<8x32xf32>
    %1694 = vector.broadcast %1624 : i32 to vector<8x1xi32>
    %1695 = arith.cmpi slt, %1694, %0 : vector<8x1xi32>
    %1696 = vector.shape_cast %1695 : vector<8x1xi1> to vector<8x1xi1>
    %1697 = vector.broadcast %1696 : vector<8x1xi1> to vector<8x32xi1>
    %1698 = arith.select %1697, %1688, %1623 : vector<8x32xi1>, vector<8x32xf32>
    %c5_i32_353 = arith.constant 5 : i32
    %c15_i32_354 = arith.constant 15 : i32
    %1699 = arith.subi %c15_i32_354, %c5_i32_353 : i32
    %1700 = tpu.concatenate %1693, %1698 in 1 : vector<8x32xf32>, vector<8x32xf32> -> vector<8x64xf32>
    %cst_355 = arith.constant dense<0.000000e+00> : vector<8x256xf32>
    %1701 = tpu.matmul %1700, %1322, %cst_355 {dimension_numbers = #tpu.dot_dimension_numbers<[1], [0], [0], [1], [0, 0, 1, 1], [], []>} : vector<8x64xf32>, vector<64x256xf32>, vector<8x256xf32> -> vector<8x256xf32>
    %1702 = vector.broadcast %1323 : vector<1x256xf32> to vector<8x256xf32>
    %1703 = arith.addf %1701, %1702 : vector<8x256xf32>
    %c8_i32_356 = arith.constant 8 : i32
    %1704 = arith.muli %c5_i32_353, %c8_i32_356 : i32
    %1705 = arith.index_cast %1704 : i32 to index
    %c0_357 = arith.constant 0 : index
    %1706 = vector.load %arg18[%1705, %c0_357] : memref<128x256xf32, #tpu.memory_space<vmem>>, vector<8x128xf32>
    %c8_i32_358 = arith.constant 8 : i32
    %1707 = arith.muli %1699, %c8_i32_358 : i32
    %1708 = arith.index_cast %1707 : i32 to index
    %c128_359 = arith.constant 128 : index
    %1709 = vector.load %arg18[%1708, %c128_359] : memref<128x256xf32, #tpu.memory_space<vmem>>, vector<8x128xf32>
    %1710 = vector.extract_strided_slice %1703 {offsets = [0, 0], sizes = [8, 128], strides = [1, 1]} : vector<8x256xf32> to vector<8x128xf32>
    %1711 = vector.extract_strided_slice %1706 {offsets = [0, 0], sizes = [8, 32], strides = [1, 1]} : vector<8x128xf32> to vector<8x32xf32>
    %1712 = vector.extract_strided_slice %1710 {offsets = [0, 0], sizes = [8, 32], strides = [1, 1]} : vector<8x128xf32> to vector<8x32xf32>
    %1713 = arith.addf %1711, %1712 : vector<8x32xf32>
    %1714 = arith.negf %1713 : vector<8x32xf32>
    %1715 = math.exp %1714 : vector<8x32xf32>
    %cst_360 = arith.constant 1.000000e+00 : f32
    %1716 = vector.broadcast %cst_360 : f32 to vector<8x32xf32>
    %1717 = arith.addf %1716, %1715 : vector<8x32xf32>
    %1718 = arith.divf %1716, %1717 : vector<8x32xf32>
    %1719 = vector.extract_strided_slice %1706 {offsets = [0, 32], sizes = [8, 32], strides = [1, 1]} : vector<8x128xf32> to vector<8x32xf32>
    %1720 = vector.extract_strided_slice %1710 {offsets = [0, 32], sizes = [8, 32], strides = [1, 1]} : vector<8x128xf32> to vector<8x32xf32>
    %1721 = arith.addf %1719, %1720 : vector<8x32xf32>
    %1722 = arith.negf %1721 : vector<8x32xf32>
    %1723 = math.exp %1722 : vector<8x32xf32>
    %cst_361 = arith.constant 1.000000e+00 : f32
    %1724 = vector.broadcast %cst_361 : f32 to vector<8x32xf32>
    %1725 = arith.addf %1724, %1723 : vector<8x32xf32>
    %1726 = arith.divf %1724, %1725 : vector<8x32xf32>
    %1727 = vector.extract_strided_slice %1706 {offsets = [0, 64], sizes = [8, 32], strides = [1, 1]} : vector<8x128xf32> to vector<8x32xf32>
    %1728 = vector.extract_strided_slice %1710 {offsets = [0, 64], sizes = [8, 32], strides = [1, 1]} : vector<8x128xf32> to vector<8x32xf32>
    %1729 = arith.mulf %1718, %1728 : vector<8x32xf32>
    %1730 = arith.addf %1727, %1729 : vector<8x32xf32>
    %1731 = math.tanh %1730 : vector<8x32xf32>
    %cst_362 = arith.constant 1.000000e+00 : f32
    %1732 = vector.broadcast %cst_362 : f32 to vector<8x32xf32>
    %1733 = arith.subf %1732, %1726 : vector<8x32xf32>
    %1734 = arith.mulf %1733, %1731 : vector<8x32xf32>
    %1735 = arith.mulf %1726, %1693 : vector<8x32xf32>
    %1736 = arith.addf %1734, %1735 : vector<8x32xf32>
    %1737 = vector.extract_strided_slice %1703 {offsets = [0, 128], sizes = [8, 128], strides = [1, 1]} : vector<8x256xf32> to vector<8x128xf32>
    %1738 = vector.extract_strided_slice %1709 {offsets = [0, 0], sizes = [8, 32], strides = [1, 1]} : vector<8x128xf32> to vector<8x32xf32>
    %1739 = vector.extract_strided_slice %1737 {offsets = [0, 0], sizes = [8, 32], strides = [1, 1]} : vector<8x128xf32> to vector<8x32xf32>
    %1740 = arith.addf %1738, %1739 : vector<8x32xf32>
    %1741 = arith.negf %1740 : vector<8x32xf32>
    %1742 = math.exp %1741 : vector<8x32xf32>
    %cst_363 = arith.constant 1.000000e+00 : f32
    %1743 = vector.broadcast %cst_363 : f32 to vector<8x32xf32>
    %1744 = arith.addf %1743, %1742 : vector<8x32xf32>
    %1745 = arith.divf %1743, %1744 : vector<8x32xf32>
    %1746 = vector.extract_strided_slice %1709 {offsets = [0, 32], sizes = [8, 32], strides = [1, 1]} : vector<8x128xf32> to vector<8x32xf32>
    %1747 = vector.extract_strided_slice %1737 {offsets = [0, 32], sizes = [8, 32], strides = [1, 1]} : vector<8x128xf32> to vector<8x32xf32>
    %1748 = arith.addf %1746, %1747 : vector<8x32xf32>
    %1749 = arith.negf %1748 : vector<8x32xf32>
    %1750 = math.exp %1749 : vector<8x32xf32>
    %cst_364 = arith.constant 1.000000e+00 : f32
    %1751 = vector.broadcast %cst_364 : f32 to vector<8x32xf32>
    %1752 = arith.addf %1751, %1750 : vector<8x32xf32>
    %1753 = arith.divf %1751, %1752 : vector<8x32xf32>
    %1754 = vector.extract_strided_slice %1709 {offsets = [0, 64], sizes = [8, 32], strides = [1, 1]} : vector<8x128xf32> to vector<8x32xf32>
    %1755 = vector.extract_strided_slice %1737 {offsets = [0, 64], sizes = [8, 32], strides = [1, 1]} : vector<8x128xf32> to vector<8x32xf32>
    %1756 = arith.mulf %1745, %1755 : vector<8x32xf32>
    %1757 = arith.addf %1754, %1756 : vector<8x32xf32>
    %1758 = math.tanh %1757 : vector<8x32xf32>
    %cst_365 = arith.constant 1.000000e+00 : f32
    %1759 = vector.broadcast %cst_365 : f32 to vector<8x32xf32>
    %1760 = arith.subf %1759, %1753 : vector<8x32xf32>
    %1761 = arith.mulf %1760, %1758 : vector<8x32xf32>
    %1762 = arith.mulf %1753, %1698 : vector<8x32xf32>
    %1763 = arith.addf %1761, %1762 : vector<8x32xf32>
    %1764 = vector.broadcast %c5_i32_353 : i32 to vector<8x1xi32>
    %1765 = arith.cmpi slt, %1764, %0 : vector<8x1xi32>
    %1766 = vector.shape_cast %1765 : vector<8x1xi1> to vector<8x1xi1>
    %1767 = vector.broadcast %1766 : vector<8x1xi1> to vector<8x32xi1>
    %1768 = arith.select %1767, %1736, %1693 : vector<8x32xi1>, vector<8x32xf32>
    %1769 = vector.broadcast %1699 : i32 to vector<8x1xi32>
    %1770 = arith.cmpi slt, %1769, %0 : vector<8x1xi32>
    %1771 = vector.shape_cast %1770 : vector<8x1xi1> to vector<8x1xi1>
    %1772 = vector.broadcast %1771 : vector<8x1xi1> to vector<8x32xi1>
    %1773 = arith.select %1772, %1763, %1698 : vector<8x32xi1>, vector<8x32xf32>
    %c6_i32_366 = arith.constant 6 : i32
    %c15_i32_367 = arith.constant 15 : i32
    %1774 = arith.subi %c15_i32_367, %c6_i32_366 : i32
    %1775 = tpu.concatenate %1768, %1773 in 1 : vector<8x32xf32>, vector<8x32xf32> -> vector<8x64xf32>
    %cst_368 = arith.constant dense<0.000000e+00> : vector<8x256xf32>
    %1776 = tpu.matmul %1775, %1322, %cst_368 {dimension_numbers = #tpu.dot_dimension_numbers<[1], [0], [0], [1], [0, 0, 1, 1], [], []>} : vector<8x64xf32>, vector<64x256xf32>, vector<8x256xf32> -> vector<8x256xf32>
    %1777 = vector.broadcast %1323 : vector<1x256xf32> to vector<8x256xf32>
    %1778 = arith.addf %1776, %1777 : vector<8x256xf32>
    %c8_i32_369 = arith.constant 8 : i32
    %1779 = arith.muli %c6_i32_366, %c8_i32_369 : i32
    %1780 = arith.index_cast %1779 : i32 to index
    %c0_370 = arith.constant 0 : index
    %1781 = vector.load %arg18[%1780, %c0_370] : memref<128x256xf32, #tpu.memory_space<vmem>>, vector<8x128xf32>
    %c8_i32_371 = arith.constant 8 : i32
    %1782 = arith.muli %1774, %c8_i32_371 : i32
    %1783 = arith.index_cast %1782 : i32 to index
    %c128_372 = arith.constant 128 : index
    %1784 = vector.load %arg18[%1783, %c128_372] : memref<128x256xf32, #tpu.memory_space<vmem>>, vector<8x128xf32>
    %1785 = vector.extract_strided_slice %1778 {offsets = [0, 0], sizes = [8, 128], strides = [1, 1]} : vector<8x256xf32> to vector<8x128xf32>
    %1786 = vector.extract_strided_slice %1781 {offsets = [0, 0], sizes = [8, 32], strides = [1, 1]} : vector<8x128xf32> to vector<8x32xf32>
    %1787 = vector.extract_strided_slice %1785 {offsets = [0, 0], sizes = [8, 32], strides = [1, 1]} : vector<8x128xf32> to vector<8x32xf32>
    %1788 = arith.addf %1786, %1787 : vector<8x32xf32>
    %1789 = arith.negf %1788 : vector<8x32xf32>
    %1790 = math.exp %1789 : vector<8x32xf32>
    %cst_373 = arith.constant 1.000000e+00 : f32
    %1791 = vector.broadcast %cst_373 : f32 to vector<8x32xf32>
    %1792 = arith.addf %1791, %1790 : vector<8x32xf32>
    %1793 = arith.divf %1791, %1792 : vector<8x32xf32>
    %1794 = vector.extract_strided_slice %1781 {offsets = [0, 32], sizes = [8, 32], strides = [1, 1]} : vector<8x128xf32> to vector<8x32xf32>
    %1795 = vector.extract_strided_slice %1785 {offsets = [0, 32], sizes = [8, 32], strides = [1, 1]} : vector<8x128xf32> to vector<8x32xf32>
    %1796 = arith.addf %1794, %1795 : vector<8x32xf32>
    %1797 = arith.negf %1796 : vector<8x32xf32>
    %1798 = math.exp %1797 : vector<8x32xf32>
    %cst_374 = arith.constant 1.000000e+00 : f32
    %1799 = vector.broadcast %cst_374 : f32 to vector<8x32xf32>
    %1800 = arith.addf %1799, %1798 : vector<8x32xf32>
    %1801 = arith.divf %1799, %1800 : vector<8x32xf32>
    %1802 = vector.extract_strided_slice %1781 {offsets = [0, 64], sizes = [8, 32], strides = [1, 1]} : vector<8x128xf32> to vector<8x32xf32>
    %1803 = vector.extract_strided_slice %1785 {offsets = [0, 64], sizes = [8, 32], strides = [1, 1]} : vector<8x128xf32> to vector<8x32xf32>
    %1804 = arith.mulf %1793, %1803 : vector<8x32xf32>
    %1805 = arith.addf %1802, %1804 : vector<8x32xf32>
    %1806 = math.tanh %1805 : vector<8x32xf32>
    %cst_375 = arith.constant 1.000000e+00 : f32
    %1807 = vector.broadcast %cst_375 : f32 to vector<8x32xf32>
    %1808 = arith.subf %1807, %1801 : vector<8x32xf32>
    %1809 = arith.mulf %1808, %1806 : vector<8x32xf32>
    %1810 = arith.mulf %1801, %1768 : vector<8x32xf32>
    %1811 = arith.addf %1809, %1810 : vector<8x32xf32>
    %1812 = vector.extract_strided_slice %1778 {offsets = [0, 128], sizes = [8, 128], strides = [1, 1]} : vector<8x256xf32> to vector<8x128xf32>
    %1813 = vector.extract_strided_slice %1784 {offsets = [0, 0], sizes = [8, 32], strides = [1, 1]} : vector<8x128xf32> to vector<8x32xf32>
    %1814 = vector.extract_strided_slice %1812 {offsets = [0, 0], sizes = [8, 32], strides = [1, 1]} : vector<8x128xf32> to vector<8x32xf32>
    %1815 = arith.addf %1813, %1814 : vector<8x32xf32>
    %1816 = arith.negf %1815 : vector<8x32xf32>
    %1817 = math.exp %1816 : vector<8x32xf32>
    %cst_376 = arith.constant 1.000000e+00 : f32
    %1818 = vector.broadcast %cst_376 : f32 to vector<8x32xf32>
    %1819 = arith.addf %1818, %1817 : vector<8x32xf32>
    %1820 = arith.divf %1818, %1819 : vector<8x32xf32>
    %1821 = vector.extract_strided_slice %1784 {offsets = [0, 32], sizes = [8, 32], strides = [1, 1]} : vector<8x128xf32> to vector<8x32xf32>
    %1822 = vector.extract_strided_slice %1812 {offsets = [0, 32], sizes = [8, 32], strides = [1, 1]} : vector<8x128xf32> to vector<8x32xf32>
    %1823 = arith.addf %1821, %1822 : vector<8x32xf32>
    %1824 = arith.negf %1823 : vector<8x32xf32>
    %1825 = math.exp %1824 : vector<8x32xf32>
    %cst_377 = arith.constant 1.000000e+00 : f32
    %1826 = vector.broadcast %cst_377 : f32 to vector<8x32xf32>
    %1827 = arith.addf %1826, %1825 : vector<8x32xf32>
    %1828 = arith.divf %1826, %1827 : vector<8x32xf32>
    %1829 = vector.extract_strided_slice %1784 {offsets = [0, 64], sizes = [8, 32], strides = [1, 1]} : vector<8x128xf32> to vector<8x32xf32>
    %1830 = vector.extract_strided_slice %1812 {offsets = [0, 64], sizes = [8, 32], strides = [1, 1]} : vector<8x128xf32> to vector<8x32xf32>
    %1831 = arith.mulf %1820, %1830 : vector<8x32xf32>
    %1832 = arith.addf %1829, %1831 : vector<8x32xf32>
    %1833 = math.tanh %1832 : vector<8x32xf32>
    %cst_378 = arith.constant 1.000000e+00 : f32
    %1834 = vector.broadcast %cst_378 : f32 to vector<8x32xf32>
    %1835 = arith.subf %1834, %1828 : vector<8x32xf32>
    %1836 = arith.mulf %1835, %1833 : vector<8x32xf32>
    %1837 = arith.mulf %1828, %1773 : vector<8x32xf32>
    %1838 = arith.addf %1836, %1837 : vector<8x32xf32>
    %1839 = vector.broadcast %c6_i32_366 : i32 to vector<8x1xi32>
    %1840 = arith.cmpi slt, %1839, %0 : vector<8x1xi32>
    %1841 = vector.shape_cast %1840 : vector<8x1xi1> to vector<8x1xi1>
    %1842 = vector.broadcast %1841 : vector<8x1xi1> to vector<8x32xi1>
    %1843 = arith.select %1842, %1811, %1768 : vector<8x32xi1>, vector<8x32xf32>
    %1844 = vector.broadcast %1774 : i32 to vector<8x1xi32>
    %1845 = arith.cmpi slt, %1844, %0 : vector<8x1xi32>
    %1846 = vector.shape_cast %1845 : vector<8x1xi1> to vector<8x1xi1>
    %1847 = vector.broadcast %1846 : vector<8x1xi1> to vector<8x32xi1>
    %1848 = arith.select %1847, %1838, %1773 : vector<8x32xi1>, vector<8x32xf32>
    %c7_i32_379 = arith.constant 7 : i32
    %c15_i32_380 = arith.constant 15 : i32
    %1849 = arith.subi %c15_i32_380, %c7_i32_379 : i32
    %1850 = tpu.concatenate %1843, %1848 in 1 : vector<8x32xf32>, vector<8x32xf32> -> vector<8x64xf32>
    %cst_381 = arith.constant dense<0.000000e+00> : vector<8x256xf32>
    %1851 = tpu.matmul %1850, %1322, %cst_381 {dimension_numbers = #tpu.dot_dimension_numbers<[1], [0], [0], [1], [0, 0, 1, 1], [], []>} : vector<8x64xf32>, vector<64x256xf32>, vector<8x256xf32> -> vector<8x256xf32>
    %1852 = vector.broadcast %1323 : vector<1x256xf32> to vector<8x256xf32>
    %1853 = arith.addf %1851, %1852 : vector<8x256xf32>
    %c8_i32_382 = arith.constant 8 : i32
    %1854 = arith.muli %c7_i32_379, %c8_i32_382 : i32
    %1855 = arith.index_cast %1854 : i32 to index
    %c0_383 = arith.constant 0 : index
    %1856 = vector.load %arg18[%1855, %c0_383] : memref<128x256xf32, #tpu.memory_space<vmem>>, vector<8x128xf32>
    %c8_i32_384 = arith.constant 8 : i32
    %1857 = arith.muli %1849, %c8_i32_384 : i32
    %1858 = arith.index_cast %1857 : i32 to index
    %c128_385 = arith.constant 128 : index
    %1859 = vector.load %arg18[%1858, %c128_385] : memref<128x256xf32, #tpu.memory_space<vmem>>, vector<8x128xf32>
    %1860 = vector.extract_strided_slice %1853 {offsets = [0, 0], sizes = [8, 128], strides = [1, 1]} : vector<8x256xf32> to vector<8x128xf32>
    %1861 = vector.extract_strided_slice %1856 {offsets = [0, 0], sizes = [8, 32], strides = [1, 1]} : vector<8x128xf32> to vector<8x32xf32>
    %1862 = vector.extract_strided_slice %1860 {offsets = [0, 0], sizes = [8, 32], strides = [1, 1]} : vector<8x128xf32> to vector<8x32xf32>
    %1863 = arith.addf %1861, %1862 : vector<8x32xf32>
    %1864 = arith.negf %1863 : vector<8x32xf32>
    %1865 = math.exp %1864 : vector<8x32xf32>
    %cst_386 = arith.constant 1.000000e+00 : f32
    %1866 = vector.broadcast %cst_386 : f32 to vector<8x32xf32>
    %1867 = arith.addf %1866, %1865 : vector<8x32xf32>
    %1868 = arith.divf %1866, %1867 : vector<8x32xf32>
    %1869 = vector.extract_strided_slice %1856 {offsets = [0, 32], sizes = [8, 32], strides = [1, 1]} : vector<8x128xf32> to vector<8x32xf32>
    %1870 = vector.extract_strided_slice %1860 {offsets = [0, 32], sizes = [8, 32], strides = [1, 1]} : vector<8x128xf32> to vector<8x32xf32>
    %1871 = arith.addf %1869, %1870 : vector<8x32xf32>
    %1872 = arith.negf %1871 : vector<8x32xf32>
    %1873 = math.exp %1872 : vector<8x32xf32>
    %cst_387 = arith.constant 1.000000e+00 : f32
    %1874 = vector.broadcast %cst_387 : f32 to vector<8x32xf32>
    %1875 = arith.addf %1874, %1873 : vector<8x32xf32>
    %1876 = arith.divf %1874, %1875 : vector<8x32xf32>
    %1877 = vector.extract_strided_slice %1856 {offsets = [0, 64], sizes = [8, 32], strides = [1, 1]} : vector<8x128xf32> to vector<8x32xf32>
    %1878 = vector.extract_strided_slice %1860 {offsets = [0, 64], sizes = [8, 32], strides = [1, 1]} : vector<8x128xf32> to vector<8x32xf32>
    %1879 = arith.mulf %1868, %1878 : vector<8x32xf32>
    %1880 = arith.addf %1877, %1879 : vector<8x32xf32>
    %1881 = math.tanh %1880 : vector<8x32xf32>
    %cst_388 = arith.constant 1.000000e+00 : f32
    %1882 = vector.broadcast %cst_388 : f32 to vector<8x32xf32>
    %1883 = arith.subf %1882, %1876 : vector<8x32xf32>
    %1884 = arith.mulf %1883, %1881 : vector<8x32xf32>
    %1885 = arith.mulf %1876, %1843 : vector<8x32xf32>
    %1886 = arith.addf %1884, %1885 : vector<8x32xf32>
    %1887 = vector.extract_strided_slice %1853 {offsets = [0, 128], sizes = [8, 128], strides = [1, 1]} : vector<8x256xf32> to vector<8x128xf32>
    %1888 = vector.extract_strided_slice %1859 {offsets = [0, 0], sizes = [8, 32], strides = [1, 1]} : vector<8x128xf32> to vector<8x32xf32>
    %1889 = vector.extract_strided_slice %1887 {offsets = [0, 0], sizes = [8, 32], strides = [1, 1]} : vector<8x128xf32> to vector<8x32xf32>
    %1890 = arith.addf %1888, %1889 : vector<8x32xf32>
    %1891 = arith.negf %1890 : vector<8x32xf32>
    %1892 = math.exp %1891 : vector<8x32xf32>
    %cst_389 = arith.constant 1.000000e+00 : f32
    %1893 = vector.broadcast %cst_389 : f32 to vector<8x32xf32>
    %1894 = arith.addf %1893, %1892 : vector<8x32xf32>
    %1895 = arith.divf %1893, %1894 : vector<8x32xf32>
    %1896 = vector.extract_strided_slice %1859 {offsets = [0, 32], sizes = [8, 32], strides = [1, 1]} : vector<8x128xf32> to vector<8x32xf32>
    %1897 = vector.extract_strided_slice %1887 {offsets = [0, 32], sizes = [8, 32], strides = [1, 1]} : vector<8x128xf32> to vector<8x32xf32>
    %1898 = arith.addf %1896, %1897 : vector<8x32xf32>
    %1899 = arith.negf %1898 : vector<8x32xf32>
    %1900 = math.exp %1899 : vector<8x32xf32>
    %cst_390 = arith.constant 1.000000e+00 : f32
    %1901 = vector.broadcast %cst_390 : f32 to vector<8x32xf32>
    %1902 = arith.addf %1901, %1900 : vector<8x32xf32>
    %1903 = arith.divf %1901, %1902 : vector<8x32xf32>
    %1904 = vector.extract_strided_slice %1859 {offsets = [0, 64], sizes = [8, 32], strides = [1, 1]} : vector<8x128xf32> to vector<8x32xf32>
    %1905 = vector.extract_strided_slice %1887 {offsets = [0, 64], sizes = [8, 32], strides = [1, 1]} : vector<8x128xf32> to vector<8x32xf32>
    %1906 = arith.mulf %1895, %1905 : vector<8x32xf32>
    %1907 = arith.addf %1904, %1906 : vector<8x32xf32>
    %1908 = math.tanh %1907 : vector<8x32xf32>
    %cst_391 = arith.constant 1.000000e+00 : f32
    %1909 = vector.broadcast %cst_391 : f32 to vector<8x32xf32>
    %1910 = arith.subf %1909, %1903 : vector<8x32xf32>
    %1911 = arith.mulf %1910, %1908 : vector<8x32xf32>
    %1912 = arith.mulf %1903, %1848 : vector<8x32xf32>
    %1913 = arith.addf %1911, %1912 : vector<8x32xf32>
    %1914 = vector.broadcast %c7_i32_379 : i32 to vector<8x1xi32>
    %1915 = arith.cmpi slt, %1914, %0 : vector<8x1xi32>
    %1916 = vector.shape_cast %1915 : vector<8x1xi1> to vector<8x1xi1>
    %1917 = vector.broadcast %1916 : vector<8x1xi1> to vector<8x32xi1>
    %1918 = arith.select %1917, %1886, %1843 : vector<8x32xi1>, vector<8x32xf32>
    %1919 = vector.broadcast %1849 : i32 to vector<8x1xi32>
    %1920 = arith.cmpi slt, %1919, %0 : vector<8x1xi32>
    %1921 = vector.shape_cast %1920 : vector<8x1xi1> to vector<8x1xi1>
    %1922 = vector.broadcast %1921 : vector<8x1xi1> to vector<8x32xi1>
    %1923 = arith.select %1922, %1913, %1848 : vector<8x32xi1>, vector<8x32xf32>
    %c8_i32_392 = arith.constant 8 : i32
    %c15_i32_393 = arith.constant 15 : i32
    %1924 = arith.subi %c15_i32_393, %c8_i32_392 : i32
    %1925 = tpu.concatenate %1918, %1923 in 1 : vector<8x32xf32>, vector<8x32xf32> -> vector<8x64xf32>
    %cst_394 = arith.constant dense<0.000000e+00> : vector<8x256xf32>
    %1926 = tpu.matmul %1925, %1322, %cst_394 {dimension_numbers = #tpu.dot_dimension_numbers<[1], [0], [0], [1], [0, 0, 1, 1], [], []>} : vector<8x64xf32>, vector<64x256xf32>, vector<8x256xf32> -> vector<8x256xf32>
    %1927 = vector.broadcast %1323 : vector<1x256xf32> to vector<8x256xf32>
    %1928 = arith.addf %1926, %1927 : vector<8x256xf32>
    %c8_i32_395 = arith.constant 8 : i32
    %1929 = arith.muli %c8_i32_392, %c8_i32_395 : i32
    %1930 = arith.index_cast %1929 : i32 to index
    %c0_396 = arith.constant 0 : index
    %1931 = vector.load %arg18[%1930, %c0_396] : memref<128x256xf32, #tpu.memory_space<vmem>>, vector<8x128xf32>
    %c8_i32_397 = arith.constant 8 : i32
    %1932 = arith.muli %1924, %c8_i32_397 : i32
    %1933 = arith.index_cast %1932 : i32 to index
    %c128_398 = arith.constant 128 : index
    %1934 = vector.load %arg18[%1933, %c128_398] : memref<128x256xf32, #tpu.memory_space<vmem>>, vector<8x128xf32>
    %1935 = vector.extract_strided_slice %1928 {offsets = [0, 0], sizes = [8, 128], strides = [1, 1]} : vector<8x256xf32> to vector<8x128xf32>
    %1936 = vector.extract_strided_slice %1931 {offsets = [0, 0], sizes = [8, 32], strides = [1, 1]} : vector<8x128xf32> to vector<8x32xf32>
    %1937 = vector.extract_strided_slice %1935 {offsets = [0, 0], sizes = [8, 32], strides = [1, 1]} : vector<8x128xf32> to vector<8x32xf32>
    %1938 = arith.addf %1936, %1937 : vector<8x32xf32>
    %1939 = arith.negf %1938 : vector<8x32xf32>
    %1940 = math.exp %1939 : vector<8x32xf32>
    %cst_399 = arith.constant 1.000000e+00 : f32
    %1941 = vector.broadcast %cst_399 : f32 to vector<8x32xf32>
    %1942 = arith.addf %1941, %1940 : vector<8x32xf32>
    %1943 = arith.divf %1941, %1942 : vector<8x32xf32>
    %1944 = vector.extract_strided_slice %1931 {offsets = [0, 32], sizes = [8, 32], strides = [1, 1]} : vector<8x128xf32> to vector<8x32xf32>
    %1945 = vector.extract_strided_slice %1935 {offsets = [0, 32], sizes = [8, 32], strides = [1, 1]} : vector<8x128xf32> to vector<8x32xf32>
    %1946 = arith.addf %1944, %1945 : vector<8x32xf32>
    %1947 = arith.negf %1946 : vector<8x32xf32>
    %1948 = math.exp %1947 : vector<8x32xf32>
    %cst_400 = arith.constant 1.000000e+00 : f32
    %1949 = vector.broadcast %cst_400 : f32 to vector<8x32xf32>
    %1950 = arith.addf %1949, %1948 : vector<8x32xf32>
    %1951 = arith.divf %1949, %1950 : vector<8x32xf32>
    %1952 = vector.extract_strided_slice %1931 {offsets = [0, 64], sizes = [8, 32], strides = [1, 1]} : vector<8x128xf32> to vector<8x32xf32>
    %1953 = vector.extract_strided_slice %1935 {offsets = [0, 64], sizes = [8, 32], strides = [1, 1]} : vector<8x128xf32> to vector<8x32xf32>
    %1954 = arith.mulf %1943, %1953 : vector<8x32xf32>
    %1955 = arith.addf %1952, %1954 : vector<8x32xf32>
    %1956 = math.tanh %1955 : vector<8x32xf32>
    %cst_401 = arith.constant 1.000000e+00 : f32
    %1957 = vector.broadcast %cst_401 : f32 to vector<8x32xf32>
    %1958 = arith.subf %1957, %1951 : vector<8x32xf32>
    %1959 = arith.mulf %1958, %1956 : vector<8x32xf32>
    %1960 = arith.mulf %1951, %1918 : vector<8x32xf32>
    %1961 = arith.addf %1959, %1960 : vector<8x32xf32>
    %1962 = vector.extract_strided_slice %1928 {offsets = [0, 128], sizes = [8, 128], strides = [1, 1]} : vector<8x256xf32> to vector<8x128xf32>
    %1963 = vector.extract_strided_slice %1934 {offsets = [0, 0], sizes = [8, 32], strides = [1, 1]} : vector<8x128xf32> to vector<8x32xf32>
    %1964 = vector.extract_strided_slice %1962 {offsets = [0, 0], sizes = [8, 32], strides = [1, 1]} : vector<8x128xf32> to vector<8x32xf32>
    %1965 = arith.addf %1963, %1964 : vector<8x32xf32>
    %1966 = arith.negf %1965 : vector<8x32xf32>
    %1967 = math.exp %1966 : vector<8x32xf32>
    %cst_402 = arith.constant 1.000000e+00 : f32
    %1968 = vector.broadcast %cst_402 : f32 to vector<8x32xf32>
    %1969 = arith.addf %1968, %1967 : vector<8x32xf32>
    %1970 = arith.divf %1968, %1969 : vector<8x32xf32>
    %1971 = vector.extract_strided_slice %1934 {offsets = [0, 32], sizes = [8, 32], strides = [1, 1]} : vector<8x128xf32> to vector<8x32xf32>
    %1972 = vector.extract_strided_slice %1962 {offsets = [0, 32], sizes = [8, 32], strides = [1, 1]} : vector<8x128xf32> to vector<8x32xf32>
    %1973 = arith.addf %1971, %1972 : vector<8x32xf32>
    %1974 = arith.negf %1973 : vector<8x32xf32>
    %1975 = math.exp %1974 : vector<8x32xf32>
    %cst_403 = arith.constant 1.000000e+00 : f32
    %1976 = vector.broadcast %cst_403 : f32 to vector<8x32xf32>
    %1977 = arith.addf %1976, %1975 : vector<8x32xf32>
    %1978 = arith.divf %1976, %1977 : vector<8x32xf32>
    %1979 = vector.extract_strided_slice %1934 {offsets = [0, 64], sizes = [8, 32], strides = [1, 1]} : vector<8x128xf32> to vector<8x32xf32>
    %1980 = vector.extract_strided_slice %1962 {offsets = [0, 64], sizes = [8, 32], strides = [1, 1]} : vector<8x128xf32> to vector<8x32xf32>
    %1981 = arith.mulf %1970, %1980 : vector<8x32xf32>
    %1982 = arith.addf %1979, %1981 : vector<8x32xf32>
    %1983 = math.tanh %1982 : vector<8x32xf32>
    %cst_404 = arith.constant 1.000000e+00 : f32
    %1984 = vector.broadcast %cst_404 : f32 to vector<8x32xf32>
    %1985 = arith.subf %1984, %1978 : vector<8x32xf32>
    %1986 = arith.mulf %1985, %1983 : vector<8x32xf32>
    %1987 = arith.mulf %1978, %1923 : vector<8x32xf32>
    %1988 = arith.addf %1986, %1987 : vector<8x32xf32>
    %1989 = vector.broadcast %c8_i32_392 : i32 to vector<8x1xi32>
    %1990 = arith.cmpi slt, %1989, %0 : vector<8x1xi32>
    %1991 = vector.shape_cast %1990 : vector<8x1xi1> to vector<8x1xi1>
    %1992 = vector.broadcast %1991 : vector<8x1xi1> to vector<8x32xi1>
    %1993 = arith.select %1992, %1961, %1918 : vector<8x32xi1>, vector<8x32xf32>
    %1994 = vector.broadcast %1924 : i32 to vector<8x1xi32>
    %1995 = arith.cmpi slt, %1994, %0 : vector<8x1xi32>
    %1996 = vector.shape_cast %1995 : vector<8x1xi1> to vector<8x1xi1>
    %1997 = vector.broadcast %1996 : vector<8x1xi1> to vector<8x32xi1>
    %1998 = arith.select %1997, %1988, %1923 : vector<8x32xi1>, vector<8x32xf32>
    %c9_i32_405 = arith.constant 9 : i32
    %c15_i32_406 = arith.constant 15 : i32
    %1999 = arith.subi %c15_i32_406, %c9_i32_405 : i32
    %2000 = tpu.concatenate %1993, %1998 in 1 : vector<8x32xf32>, vector<8x32xf32> -> vector<8x64xf32>
    %cst_407 = arith.constant dense<0.000000e+00> : vector<8x256xf32>
    %2001 = tpu.matmul %2000, %1322, %cst_407 {dimension_numbers = #tpu.dot_dimension_numbers<[1], [0], [0], [1], [0, 0, 1, 1], [], []>} : vector<8x64xf32>, vector<64x256xf32>, vector<8x256xf32> -> vector<8x256xf32>
    %2002 = vector.broadcast %1323 : vector<1x256xf32> to vector<8x256xf32>
    %2003 = arith.addf %2001, %2002 : vector<8x256xf32>
    %c8_i32_408 = arith.constant 8 : i32
    %2004 = arith.muli %c9_i32_405, %c8_i32_408 : i32
    %2005 = arith.index_cast %2004 : i32 to index
    %c0_409 = arith.constant 0 : index
    %2006 = vector.load %arg18[%2005, %c0_409] : memref<128x256xf32, #tpu.memory_space<vmem>>, vector<8x128xf32>
    %c8_i32_410 = arith.constant 8 : i32
    %2007 = arith.muli %1999, %c8_i32_410 : i32
    %2008 = arith.index_cast %2007 : i32 to index
    %c128_411 = arith.constant 128 : index
    %2009 = vector.load %arg18[%2008, %c128_411] : memref<128x256xf32, #tpu.memory_space<vmem>>, vector<8x128xf32>
    %2010 = vector.extract_strided_slice %2003 {offsets = [0, 0], sizes = [8, 128], strides = [1, 1]} : vector<8x256xf32> to vector<8x128xf32>
    %2011 = vector.extract_strided_slice %2006 {offsets = [0, 0], sizes = [8, 32], strides = [1, 1]} : vector<8x128xf32> to vector<8x32xf32>
    %2012 = vector.extract_strided_slice %2010 {offsets = [0, 0], sizes = [8, 32], strides = [1, 1]} : vector<8x128xf32> to vector<8x32xf32>
    %2013 = arith.addf %2011, %2012 : vector<8x32xf32>
    %2014 = arith.negf %2013 : vector<8x32xf32>
    %2015 = math.exp %2014 : vector<8x32xf32>
    %cst_412 = arith.constant 1.000000e+00 : f32
    %2016 = vector.broadcast %cst_412 : f32 to vector<8x32xf32>
    %2017 = arith.addf %2016, %2015 : vector<8x32xf32>
    %2018 = arith.divf %2016, %2017 : vector<8x32xf32>
    %2019 = vector.extract_strided_slice %2006 {offsets = [0, 32], sizes = [8, 32], strides = [1, 1]} : vector<8x128xf32> to vector<8x32xf32>
    %2020 = vector.extract_strided_slice %2010 {offsets = [0, 32], sizes = [8, 32], strides = [1, 1]} : vector<8x128xf32> to vector<8x32xf32>
    %2021 = arith.addf %2019, %2020 : vector<8x32xf32>
    %2022 = arith.negf %2021 : vector<8x32xf32>
    %2023 = math.exp %2022 : vector<8x32xf32>
    %cst_413 = arith.constant 1.000000e+00 : f32
    %2024 = vector.broadcast %cst_413 : f32 to vector<8x32xf32>
    %2025 = arith.addf %2024, %2023 : vector<8x32xf32>
    %2026 = arith.divf %2024, %2025 : vector<8x32xf32>
    %2027 = vector.extract_strided_slice %2006 {offsets = [0, 64], sizes = [8, 32], strides = [1, 1]} : vector<8x128xf32> to vector<8x32xf32>
    %2028 = vector.extract_strided_slice %2010 {offsets = [0, 64], sizes = [8, 32], strides = [1, 1]} : vector<8x128xf32> to vector<8x32xf32>
    %2029 = arith.mulf %2018, %2028 : vector<8x32xf32>
    %2030 = arith.addf %2027, %2029 : vector<8x32xf32>
    %2031 = math.tanh %2030 : vector<8x32xf32>
    %cst_414 = arith.constant 1.000000e+00 : f32
    %2032 = vector.broadcast %cst_414 : f32 to vector<8x32xf32>
    %2033 = arith.subf %2032, %2026 : vector<8x32xf32>
    %2034 = arith.mulf %2033, %2031 : vector<8x32xf32>
    %2035 = arith.mulf %2026, %1993 : vector<8x32xf32>
    %2036 = arith.addf %2034, %2035 : vector<8x32xf32>
    %2037 = vector.extract_strided_slice %2003 {offsets = [0, 128], sizes = [8, 128], strides = [1, 1]} : vector<8x256xf32> to vector<8x128xf32>
    %2038 = vector.extract_strided_slice %2009 {offsets = [0, 0], sizes = [8, 32], strides = [1, 1]} : vector<8x128xf32> to vector<8x32xf32>
    %2039 = vector.extract_strided_slice %2037 {offsets = [0, 0], sizes = [8, 32], strides = [1, 1]} : vector<8x128xf32> to vector<8x32xf32>
    %2040 = arith.addf %2038, %2039 : vector<8x32xf32>
    %2041 = arith.negf %2040 : vector<8x32xf32>
    %2042 = math.exp %2041 : vector<8x32xf32>
    %cst_415 = arith.constant 1.000000e+00 : f32
    %2043 = vector.broadcast %cst_415 : f32 to vector<8x32xf32>
    %2044 = arith.addf %2043, %2042 : vector<8x32xf32>
    %2045 = arith.divf %2043, %2044 : vector<8x32xf32>
    %2046 = vector.extract_strided_slice %2009 {offsets = [0, 32], sizes = [8, 32], strides = [1, 1]} : vector<8x128xf32> to vector<8x32xf32>
    %2047 = vector.extract_strided_slice %2037 {offsets = [0, 32], sizes = [8, 32], strides = [1, 1]} : vector<8x128xf32> to vector<8x32xf32>
    %2048 = arith.addf %2046, %2047 : vector<8x32xf32>
    %2049 = arith.negf %2048 : vector<8x32xf32>
    %2050 = math.exp %2049 : vector<8x32xf32>
    %cst_416 = arith.constant 1.000000e+00 : f32
    %2051 = vector.broadcast %cst_416 : f32 to vector<8x32xf32>
    %2052 = arith.addf %2051, %2050 : vector<8x32xf32>
    %2053 = arith.divf %2051, %2052 : vector<8x32xf32>
    %2054 = vector.extract_strided_slice %2009 {offsets = [0, 64], sizes = [8, 32], strides = [1, 1]} : vector<8x128xf32> to vector<8x32xf32>
    %2055 = vector.extract_strided_slice %2037 {offsets = [0, 64], sizes = [8, 32], strides = [1, 1]} : vector<8x128xf32> to vector<8x32xf32>
    %2056 = arith.mulf %2045, %2055 : vector<8x32xf32>
    %2057 = arith.addf %2054, %2056 : vector<8x32xf32>
    %2058 = math.tanh %2057 : vector<8x32xf32>
    %cst_417 = arith.constant 1.000000e+00 : f32
    %2059 = vector.broadcast %cst_417 : f32 to vector<8x32xf32>
    %2060 = arith.subf %2059, %2053 : vector<8x32xf32>
    %2061 = arith.mulf %2060, %2058 : vector<8x32xf32>
    %2062 = arith.mulf %2053, %1998 : vector<8x32xf32>
    %2063 = arith.addf %2061, %2062 : vector<8x32xf32>
    %2064 = vector.broadcast %c9_i32_405 : i32 to vector<8x1xi32>
    %2065 = arith.cmpi slt, %2064, %0 : vector<8x1xi32>
    %2066 = vector.shape_cast %2065 : vector<8x1xi1> to vector<8x1xi1>
    %2067 = vector.broadcast %2066 : vector<8x1xi1> to vector<8x32xi1>
    %2068 = arith.select %2067, %2036, %1993 : vector<8x32xi1>, vector<8x32xf32>
    %2069 = vector.broadcast %1999 : i32 to vector<8x1xi32>
    %2070 = arith.cmpi slt, %2069, %0 : vector<8x1xi32>
    %2071 = vector.shape_cast %2070 : vector<8x1xi1> to vector<8x1xi1>
    %2072 = vector.broadcast %2071 : vector<8x1xi1> to vector<8x32xi1>
    %2073 = arith.select %2072, %2063, %1998 : vector<8x32xi1>, vector<8x32xf32>
    %c10_i32_418 = arith.constant 10 : i32
    %c15_i32_419 = arith.constant 15 : i32
    %2074 = arith.subi %c15_i32_419, %c10_i32_418 : i32
    %2075 = tpu.concatenate %2068, %2073 in 1 : vector<8x32xf32>, vector<8x32xf32> -> vector<8x64xf32>
    %cst_420 = arith.constant dense<0.000000e+00> : vector<8x256xf32>
    %2076 = tpu.matmul %2075, %1322, %cst_420 {dimension_numbers = #tpu.dot_dimension_numbers<[1], [0], [0], [1], [0, 0, 1, 1], [], []>} : vector<8x64xf32>, vector<64x256xf32>, vector<8x256xf32> -> vector<8x256xf32>
    %2077 = vector.broadcast %1323 : vector<1x256xf32> to vector<8x256xf32>
    %2078 = arith.addf %2076, %2077 : vector<8x256xf32>
    %c8_i32_421 = arith.constant 8 : i32
    %2079 = arith.muli %c10_i32_418, %c8_i32_421 : i32
    %2080 = arith.index_cast %2079 : i32 to index
    %c0_422 = arith.constant 0 : index
    %2081 = vector.load %arg18[%2080, %c0_422] : memref<128x256xf32, #tpu.memory_space<vmem>>, vector<8x128xf32>
    %c8_i32_423 = arith.constant 8 : i32
    %2082 = arith.muli %2074, %c8_i32_423 : i32
    %2083 = arith.index_cast %2082 : i32 to index
    %c128_424 = arith.constant 128 : index
    %2084 = vector.load %arg18[%2083, %c128_424] : memref<128x256xf32, #tpu.memory_space<vmem>>, vector<8x128xf32>
    %2085 = vector.extract_strided_slice %2078 {offsets = [0, 0], sizes = [8, 128], strides = [1, 1]} : vector<8x256xf32> to vector<8x128xf32>
    %2086 = vector.extract_strided_slice %2081 {offsets = [0, 0], sizes = [8, 32], strides = [1, 1]} : vector<8x128xf32> to vector<8x32xf32>
    %2087 = vector.extract_strided_slice %2085 {offsets = [0, 0], sizes = [8, 32], strides = [1, 1]} : vector<8x128xf32> to vector<8x32xf32>
    %2088 = arith.addf %2086, %2087 : vector<8x32xf32>
    %2089 = arith.negf %2088 : vector<8x32xf32>
    %2090 = math.exp %2089 : vector<8x32xf32>
    %cst_425 = arith.constant 1.000000e+00 : f32
    %2091 = vector.broadcast %cst_425 : f32 to vector<8x32xf32>
    %2092 = arith.addf %2091, %2090 : vector<8x32xf32>
    %2093 = arith.divf %2091, %2092 : vector<8x32xf32>
    %2094 = vector.extract_strided_slice %2081 {offsets = [0, 32], sizes = [8, 32], strides = [1, 1]} : vector<8x128xf32> to vector<8x32xf32>
    %2095 = vector.extract_strided_slice %2085 {offsets = [0, 32], sizes = [8, 32], strides = [1, 1]} : vector<8x128xf32> to vector<8x32xf32>
    %2096 = arith.addf %2094, %2095 : vector<8x32xf32>
    %2097 = arith.negf %2096 : vector<8x32xf32>
    %2098 = math.exp %2097 : vector<8x32xf32>
    %cst_426 = arith.constant 1.000000e+00 : f32
    %2099 = vector.broadcast %cst_426 : f32 to vector<8x32xf32>
    %2100 = arith.addf %2099, %2098 : vector<8x32xf32>
    %2101 = arith.divf %2099, %2100 : vector<8x32xf32>
    %2102 = vector.extract_strided_slice %2081 {offsets = [0, 64], sizes = [8, 32], strides = [1, 1]} : vector<8x128xf32> to vector<8x32xf32>
    %2103 = vector.extract_strided_slice %2085 {offsets = [0, 64], sizes = [8, 32], strides = [1, 1]} : vector<8x128xf32> to vector<8x32xf32>
    %2104 = arith.mulf %2093, %2103 : vector<8x32xf32>
    %2105 = arith.addf %2102, %2104 : vector<8x32xf32>
    %2106 = math.tanh %2105 : vector<8x32xf32>
    %cst_427 = arith.constant 1.000000e+00 : f32
    %2107 = vector.broadcast %cst_427 : f32 to vector<8x32xf32>
    %2108 = arith.subf %2107, %2101 : vector<8x32xf32>
    %2109 = arith.mulf %2108, %2106 : vector<8x32xf32>
    %2110 = arith.mulf %2101, %2068 : vector<8x32xf32>
    %2111 = arith.addf %2109, %2110 : vector<8x32xf32>
    %2112 = vector.extract_strided_slice %2078 {offsets = [0, 128], sizes = [8, 128], strides = [1, 1]} : vector<8x256xf32> to vector<8x128xf32>
    %2113 = vector.extract_strided_slice %2084 {offsets = [0, 0], sizes = [8, 32], strides = [1, 1]} : vector<8x128xf32> to vector<8x32xf32>
    %2114 = vector.extract_strided_slice %2112 {offsets = [0, 0], sizes = [8, 32], strides = [1, 1]} : vector<8x128xf32> to vector<8x32xf32>
    %2115 = arith.addf %2113, %2114 : vector<8x32xf32>
    %2116 = arith.negf %2115 : vector<8x32xf32>
    %2117 = math.exp %2116 : vector<8x32xf32>
    %cst_428 = arith.constant 1.000000e+00 : f32
    %2118 = vector.broadcast %cst_428 : f32 to vector<8x32xf32>
    %2119 = arith.addf %2118, %2117 : vector<8x32xf32>
    %2120 = arith.divf %2118, %2119 : vector<8x32xf32>
    %2121 = vector.extract_strided_slice %2084 {offsets = [0, 32], sizes = [8, 32], strides = [1, 1]} : vector<8x128xf32> to vector<8x32xf32>
    %2122 = vector.extract_strided_slice %2112 {offsets = [0, 32], sizes = [8, 32], strides = [1, 1]} : vector<8x128xf32> to vector<8x32xf32>
    %2123 = arith.addf %2121, %2122 : vector<8x32xf32>
    %2124 = arith.negf %2123 : vector<8x32xf32>
    %2125 = math.exp %2124 : vector<8x32xf32>
    %cst_429 = arith.constant 1.000000e+00 : f32
    %2126 = vector.broadcast %cst_429 : f32 to vector<8x32xf32>
    %2127 = arith.addf %2126, %2125 : vector<8x32xf32>
    %2128 = arith.divf %2126, %2127 : vector<8x32xf32>
    %2129 = vector.extract_strided_slice %2084 {offsets = [0, 64], sizes = [8, 32], strides = [1, 1]} : vector<8x128xf32> to vector<8x32xf32>
    %2130 = vector.extract_strided_slice %2112 {offsets = [0, 64], sizes = [8, 32], strides = [1, 1]} : vector<8x128xf32> to vector<8x32xf32>
    %2131 = arith.mulf %2120, %2130 : vector<8x32xf32>
    %2132 = arith.addf %2129, %2131 : vector<8x32xf32>
    %2133 = math.tanh %2132 : vector<8x32xf32>
    %cst_430 = arith.constant 1.000000e+00 : f32
    %2134 = vector.broadcast %cst_430 : f32 to vector<8x32xf32>
    %2135 = arith.subf %2134, %2128 : vector<8x32xf32>
    %2136 = arith.mulf %2135, %2133 : vector<8x32xf32>
    %2137 = arith.mulf %2128, %2073 : vector<8x32xf32>
    %2138 = arith.addf %2136, %2137 : vector<8x32xf32>
    %2139 = vector.broadcast %c10_i32_418 : i32 to vector<8x1xi32>
    %2140 = arith.cmpi slt, %2139, %0 : vector<8x1xi32>
    %2141 = vector.shape_cast %2140 : vector<8x1xi1> to vector<8x1xi1>
    %2142 = vector.broadcast %2141 : vector<8x1xi1> to vector<8x32xi1>
    %2143 = arith.select %2142, %2111, %2068 : vector<8x32xi1>, vector<8x32xf32>
    %2144 = vector.broadcast %2074 : i32 to vector<8x1xi32>
    %2145 = arith.cmpi slt, %2144, %0 : vector<8x1xi32>
    %2146 = vector.shape_cast %2145 : vector<8x1xi1> to vector<8x1xi1>
    %2147 = vector.broadcast %2146 : vector<8x1xi1> to vector<8x32xi1>
    %2148 = arith.select %2147, %2138, %2073 : vector<8x32xi1>, vector<8x32xf32>
    %c11_i32_431 = arith.constant 11 : i32
    %c15_i32_432 = arith.constant 15 : i32
    %2149 = arith.subi %c15_i32_432, %c11_i32_431 : i32
    %2150 = tpu.concatenate %2143, %2148 in 1 : vector<8x32xf32>, vector<8x32xf32> -> vector<8x64xf32>
    %cst_433 = arith.constant dense<0.000000e+00> : vector<8x256xf32>
    %2151 = tpu.matmul %2150, %1322, %cst_433 {dimension_numbers = #tpu.dot_dimension_numbers<[1], [0], [0], [1], [0, 0, 1, 1], [], []>} : vector<8x64xf32>, vector<64x256xf32>, vector<8x256xf32> -> vector<8x256xf32>
    %2152 = vector.broadcast %1323 : vector<1x256xf32> to vector<8x256xf32>
    %2153 = arith.addf %2151, %2152 : vector<8x256xf32>
    %c8_i32_434 = arith.constant 8 : i32
    %2154 = arith.muli %c11_i32_431, %c8_i32_434 : i32
    %2155 = arith.index_cast %2154 : i32 to index
    %c0_435 = arith.constant 0 : index
    %2156 = vector.load %arg18[%2155, %c0_435] : memref<128x256xf32, #tpu.memory_space<vmem>>, vector<8x128xf32>
    %c8_i32_436 = arith.constant 8 : i32
    %2157 = arith.muli %2149, %c8_i32_436 : i32
    %2158 = arith.index_cast %2157 : i32 to index
    %c128_437 = arith.constant 128 : index
    %2159 = vector.load %arg18[%2158, %c128_437] : memref<128x256xf32, #tpu.memory_space<vmem>>, vector<8x128xf32>
    %2160 = vector.extract_strided_slice %2153 {offsets = [0, 0], sizes = [8, 128], strides = [1, 1]} : vector<8x256xf32> to vector<8x128xf32>
    %2161 = vector.extract_strided_slice %2156 {offsets = [0, 0], sizes = [8, 32], strides = [1, 1]} : vector<8x128xf32> to vector<8x32xf32>
    %2162 = vector.extract_strided_slice %2160 {offsets = [0, 0], sizes = [8, 32], strides = [1, 1]} : vector<8x128xf32> to vector<8x32xf32>
    %2163 = arith.addf %2161, %2162 : vector<8x32xf32>
    %2164 = arith.negf %2163 : vector<8x32xf32>
    %2165 = math.exp %2164 : vector<8x32xf32>
    %cst_438 = arith.constant 1.000000e+00 : f32
    %2166 = vector.broadcast %cst_438 : f32 to vector<8x32xf32>
    %2167 = arith.addf %2166, %2165 : vector<8x32xf32>
    %2168 = arith.divf %2166, %2167 : vector<8x32xf32>
    %2169 = vector.extract_strided_slice %2156 {offsets = [0, 32], sizes = [8, 32], strides = [1, 1]} : vector<8x128xf32> to vector<8x32xf32>
    %2170 = vector.extract_strided_slice %2160 {offsets = [0, 32], sizes = [8, 32], strides = [1, 1]} : vector<8x128xf32> to vector<8x32xf32>
    %2171 = arith.addf %2169, %2170 : vector<8x32xf32>
    %2172 = arith.negf %2171 : vector<8x32xf32>
    %2173 = math.exp %2172 : vector<8x32xf32>
    %cst_439 = arith.constant 1.000000e+00 : f32
    %2174 = vector.broadcast %cst_439 : f32 to vector<8x32xf32>
    %2175 = arith.addf %2174, %2173 : vector<8x32xf32>
    %2176 = arith.divf %2174, %2175 : vector<8x32xf32>
    %2177 = vector.extract_strided_slice %2156 {offsets = [0, 64], sizes = [8, 32], strides = [1, 1]} : vector<8x128xf32> to vector<8x32xf32>
    %2178 = vector.extract_strided_slice %2160 {offsets = [0, 64], sizes = [8, 32], strides = [1, 1]} : vector<8x128xf32> to vector<8x32xf32>
    %2179 = arith.mulf %2168, %2178 : vector<8x32xf32>
    %2180 = arith.addf %2177, %2179 : vector<8x32xf32>
    %2181 = math.tanh %2180 : vector<8x32xf32>
    %cst_440 = arith.constant 1.000000e+00 : f32
    %2182 = vector.broadcast %cst_440 : f32 to vector<8x32xf32>
    %2183 = arith.subf %2182, %2176 : vector<8x32xf32>
    %2184 = arith.mulf %2183, %2181 : vector<8x32xf32>
    %2185 = arith.mulf %2176, %2143 : vector<8x32xf32>
    %2186 = arith.addf %2184, %2185 : vector<8x32xf32>
    %2187 = vector.extract_strided_slice %2153 {offsets = [0, 128], sizes = [8, 128], strides = [1, 1]} : vector<8x256xf32> to vector<8x128xf32>
    %2188 = vector.extract_strided_slice %2159 {offsets = [0, 0], sizes = [8, 32], strides = [1, 1]} : vector<8x128xf32> to vector<8x32xf32>
    %2189 = vector.extract_strided_slice %2187 {offsets = [0, 0], sizes = [8, 32], strides = [1, 1]} : vector<8x128xf32> to vector<8x32xf32>
    %2190 = arith.addf %2188, %2189 : vector<8x32xf32>
    %2191 = arith.negf %2190 : vector<8x32xf32>
    %2192 = math.exp %2191 : vector<8x32xf32>
    %cst_441 = arith.constant 1.000000e+00 : f32
    %2193 = vector.broadcast %cst_441 : f32 to vector<8x32xf32>
    %2194 = arith.addf %2193, %2192 : vector<8x32xf32>
    %2195 = arith.divf %2193, %2194 : vector<8x32xf32>
    %2196 = vector.extract_strided_slice %2159 {offsets = [0, 32], sizes = [8, 32], strides = [1, 1]} : vector<8x128xf32> to vector<8x32xf32>
    %2197 = vector.extract_strided_slice %2187 {offsets = [0, 32], sizes = [8, 32], strides = [1, 1]} : vector<8x128xf32> to vector<8x32xf32>
    %2198 = arith.addf %2196, %2197 : vector<8x32xf32>
    %2199 = arith.negf %2198 : vector<8x32xf32>
    %2200 = math.exp %2199 : vector<8x32xf32>
    %cst_442 = arith.constant 1.000000e+00 : f32
    %2201 = vector.broadcast %cst_442 : f32 to vector<8x32xf32>
    %2202 = arith.addf %2201, %2200 : vector<8x32xf32>
    %2203 = arith.divf %2201, %2202 : vector<8x32xf32>
    %2204 = vector.extract_strided_slice %2159 {offsets = [0, 64], sizes = [8, 32], strides = [1, 1]} : vector<8x128xf32> to vector<8x32xf32>
    %2205 = vector.extract_strided_slice %2187 {offsets = [0, 64], sizes = [8, 32], strides = [1, 1]} : vector<8x128xf32> to vector<8x32xf32>
    %2206 = arith.mulf %2195, %2205 : vector<8x32xf32>
    %2207 = arith.addf %2204, %2206 : vector<8x32xf32>
    %2208 = math.tanh %2207 : vector<8x32xf32>
    %cst_443 = arith.constant 1.000000e+00 : f32
    %2209 = vector.broadcast %cst_443 : f32 to vector<8x32xf32>
    %2210 = arith.subf %2209, %2203 : vector<8x32xf32>
    %2211 = arith.mulf %2210, %2208 : vector<8x32xf32>
    %2212 = arith.mulf %2203, %2148 : vector<8x32xf32>
    %2213 = arith.addf %2211, %2212 : vector<8x32xf32>
    %2214 = vector.broadcast %c11_i32_431 : i32 to vector<8x1xi32>
    %2215 = arith.cmpi slt, %2214, %0 : vector<8x1xi32>
    %2216 = vector.shape_cast %2215 : vector<8x1xi1> to vector<8x1xi1>
    %2217 = vector.broadcast %2216 : vector<8x1xi1> to vector<8x32xi1>
    %2218 = arith.select %2217, %2186, %2143 : vector<8x32xi1>, vector<8x32xf32>
    %2219 = vector.broadcast %2149 : i32 to vector<8x1xi32>
    %2220 = arith.cmpi slt, %2219, %0 : vector<8x1xi32>
    %2221 = vector.shape_cast %2220 : vector<8x1xi1> to vector<8x1xi1>
    %2222 = vector.broadcast %2221 : vector<8x1xi1> to vector<8x32xi1>
    %2223 = arith.select %2222, %2213, %2148 : vector<8x32xi1>, vector<8x32xf32>
    %c12_i32_444 = arith.constant 12 : i32
    %c15_i32_445 = arith.constant 15 : i32
    %2224 = arith.subi %c15_i32_445, %c12_i32_444 : i32
    %2225 = tpu.concatenate %2218, %2223 in 1 : vector<8x32xf32>, vector<8x32xf32> -> vector<8x64xf32>
    %cst_446 = arith.constant dense<0.000000e+00> : vector<8x256xf32>
    %2226 = tpu.matmul %2225, %1322, %cst_446 {dimension_numbers = #tpu.dot_dimension_numbers<[1], [0], [0], [1], [0, 0, 1, 1], [], []>} : vector<8x64xf32>, vector<64x256xf32>, vector<8x256xf32> -> vector<8x256xf32>
    %2227 = vector.broadcast %1323 : vector<1x256xf32> to vector<8x256xf32>
    %2228 = arith.addf %2226, %2227 : vector<8x256xf32>
    %c8_i32_447 = arith.constant 8 : i32
    %2229 = arith.muli %c12_i32_444, %c8_i32_447 : i32
    %2230 = arith.index_cast %2229 : i32 to index
    %c0_448 = arith.constant 0 : index
    %2231 = vector.load %arg18[%2230, %c0_448] : memref<128x256xf32, #tpu.memory_space<vmem>>, vector<8x128xf32>
    %c8_i32_449 = arith.constant 8 : i32
    %2232 = arith.muli %2224, %c8_i32_449 : i32
    %2233 = arith.index_cast %2232 : i32 to index
    %c128_450 = arith.constant 128 : index
    %2234 = vector.load %arg18[%2233, %c128_450] : memref<128x256xf32, #tpu.memory_space<vmem>>, vector<8x128xf32>
    %2235 = vector.extract_strided_slice %2228 {offsets = [0, 0], sizes = [8, 128], strides = [1, 1]} : vector<8x256xf32> to vector<8x128xf32>
    %2236 = vector.extract_strided_slice %2231 {offsets = [0, 0], sizes = [8, 32], strides = [1, 1]} : vector<8x128xf32> to vector<8x32xf32>
    %2237 = vector.extract_strided_slice %2235 {offsets = [0, 0], sizes = [8, 32], strides = [1, 1]} : vector<8x128xf32> to vector<8x32xf32>
    %2238 = arith.addf %2236, %2237 : vector<8x32xf32>
    %2239 = arith.negf %2238 : vector<8x32xf32>
    %2240 = math.exp %2239 : vector<8x32xf32>
    %cst_451 = arith.constant 1.000000e+00 : f32
    %2241 = vector.broadcast %cst_451 : f32 to vector<8x32xf32>
    %2242 = arith.addf %2241, %2240 : vector<8x32xf32>
    %2243 = arith.divf %2241, %2242 : vector<8x32xf32>
    %2244 = vector.extract_strided_slice %2231 {offsets = [0, 32], sizes = [8, 32], strides = [1, 1]} : vector<8x128xf32> to vector<8x32xf32>
    %2245 = vector.extract_strided_slice %2235 {offsets = [0, 32], sizes = [8, 32], strides = [1, 1]} : vector<8x128xf32> to vector<8x32xf32>
    %2246 = arith.addf %2244, %2245 : vector<8x32xf32>
    %2247 = arith.negf %2246 : vector<8x32xf32>
    %2248 = math.exp %2247 : vector<8x32xf32>
    %cst_452 = arith.constant 1.000000e+00 : f32
    %2249 = vector.broadcast %cst_452 : f32 to vector<8x32xf32>
    %2250 = arith.addf %2249, %2248 : vector<8x32xf32>
    %2251 = arith.divf %2249, %2250 : vector<8x32xf32>
    %2252 = vector.extract_strided_slice %2231 {offsets = [0, 64], sizes = [8, 32], strides = [1, 1]} : vector<8x128xf32> to vector<8x32xf32>
    %2253 = vector.extract_strided_slice %2235 {offsets = [0, 64], sizes = [8, 32], strides = [1, 1]} : vector<8x128xf32> to vector<8x32xf32>
    %2254 = arith.mulf %2243, %2253 : vector<8x32xf32>
    %2255 = arith.addf %2252, %2254 : vector<8x32xf32>
    %2256 = math.tanh %2255 : vector<8x32xf32>
    %cst_453 = arith.constant 1.000000e+00 : f32
    %2257 = vector.broadcast %cst_453 : f32 to vector<8x32xf32>
    %2258 = arith.subf %2257, %2251 : vector<8x32xf32>
    %2259 = arith.mulf %2258, %2256 : vector<8x32xf32>
    %2260 = arith.mulf %2251, %2218 : vector<8x32xf32>
    %2261 = arith.addf %2259, %2260 : vector<8x32xf32>
    %2262 = vector.extract_strided_slice %2228 {offsets = [0, 128], sizes = [8, 128], strides = [1, 1]} : vector<8x256xf32> to vector<8x128xf32>
    %2263 = vector.extract_strided_slice %2234 {offsets = [0, 0], sizes = [8, 32], strides = [1, 1]} : vector<8x128xf32> to vector<8x32xf32>
    %2264 = vector.extract_strided_slice %2262 {offsets = [0, 0], sizes = [8, 32], strides = [1, 1]} : vector<8x128xf32> to vector<8x32xf32>
    %2265 = arith.addf %2263, %2264 : vector<8x32xf32>
    %2266 = arith.negf %2265 : vector<8x32xf32>
    %2267 = math.exp %2266 : vector<8x32xf32>
    %cst_454 = arith.constant 1.000000e+00 : f32
    %2268 = vector.broadcast %cst_454 : f32 to vector<8x32xf32>
    %2269 = arith.addf %2268, %2267 : vector<8x32xf32>
    %2270 = arith.divf %2268, %2269 : vector<8x32xf32>
    %2271 = vector.extract_strided_slice %2234 {offsets = [0, 32], sizes = [8, 32], strides = [1, 1]} : vector<8x128xf32> to vector<8x32xf32>
    %2272 = vector.extract_strided_slice %2262 {offsets = [0, 32], sizes = [8, 32], strides = [1, 1]} : vector<8x128xf32> to vector<8x32xf32>
    %2273 = arith.addf %2271, %2272 : vector<8x32xf32>
    %2274 = arith.negf %2273 : vector<8x32xf32>
    %2275 = math.exp %2274 : vector<8x32xf32>
    %cst_455 = arith.constant 1.000000e+00 : f32
    %2276 = vector.broadcast %cst_455 : f32 to vector<8x32xf32>
    %2277 = arith.addf %2276, %2275 : vector<8x32xf32>
    %2278 = arith.divf %2276, %2277 : vector<8x32xf32>
    %2279 = vector.extract_strided_slice %2234 {offsets = [0, 64], sizes = [8, 32], strides = [1, 1]} : vector<8x128xf32> to vector<8x32xf32>
    %2280 = vector.extract_strided_slice %2262 {offsets = [0, 64], sizes = [8, 32], strides = [1, 1]} : vector<8x128xf32> to vector<8x32xf32>
    %2281 = arith.mulf %2270, %2280 : vector<8x32xf32>
    %2282 = arith.addf %2279, %2281 : vector<8x32xf32>
    %2283 = math.tanh %2282 : vector<8x32xf32>
    %cst_456 = arith.constant 1.000000e+00 : f32
    %2284 = vector.broadcast %cst_456 : f32 to vector<8x32xf32>
    %2285 = arith.subf %2284, %2278 : vector<8x32xf32>
    %2286 = arith.mulf %2285, %2283 : vector<8x32xf32>
    %2287 = arith.mulf %2278, %2223 : vector<8x32xf32>
    %2288 = arith.addf %2286, %2287 : vector<8x32xf32>
    %2289 = vector.broadcast %c12_i32_444 : i32 to vector<8x1xi32>
    %2290 = arith.cmpi slt, %2289, %0 : vector<8x1xi32>
    %2291 = vector.shape_cast %2290 : vector<8x1xi1> to vector<8x1xi1>
    %2292 = vector.broadcast %2291 : vector<8x1xi1> to vector<8x32xi1>
    %2293 = arith.select %2292, %2261, %2218 : vector<8x32xi1>, vector<8x32xf32>
    %2294 = vector.broadcast %2224 : i32 to vector<8x1xi32>
    %2295 = arith.cmpi slt, %2294, %0 : vector<8x1xi32>
    %2296 = vector.shape_cast %2295 : vector<8x1xi1> to vector<8x1xi1>
    %2297 = vector.broadcast %2296 : vector<8x1xi1> to vector<8x32xi1>
    %2298 = arith.select %2297, %2288, %2223 : vector<8x32xi1>, vector<8x32xf32>
    %c13_i32_457 = arith.constant 13 : i32
    %c15_i32_458 = arith.constant 15 : i32
    %2299 = arith.subi %c15_i32_458, %c13_i32_457 : i32
    %2300 = tpu.concatenate %2293, %2298 in 1 : vector<8x32xf32>, vector<8x32xf32> -> vector<8x64xf32>
    %cst_459 = arith.constant dense<0.000000e+00> : vector<8x256xf32>
    %2301 = tpu.matmul %2300, %1322, %cst_459 {dimension_numbers = #tpu.dot_dimension_numbers<[1], [0], [0], [1], [0, 0, 1, 1], [], []>} : vector<8x64xf32>, vector<64x256xf32>, vector<8x256xf32> -> vector<8x256xf32>
    %2302 = vector.broadcast %1323 : vector<1x256xf32> to vector<8x256xf32>
    %2303 = arith.addf %2301, %2302 : vector<8x256xf32>
    %c8_i32_460 = arith.constant 8 : i32
    %2304 = arith.muli %c13_i32_457, %c8_i32_460 : i32
    %2305 = arith.index_cast %2304 : i32 to index
    %c0_461 = arith.constant 0 : index
    %2306 = vector.load %arg18[%2305, %c0_461] : memref<128x256xf32, #tpu.memory_space<vmem>>, vector<8x128xf32>
    %c8_i32_462 = arith.constant 8 : i32
    %2307 = arith.muli %2299, %c8_i32_462 : i32
    %2308 = arith.index_cast %2307 : i32 to index
    %c128_463 = arith.constant 128 : index
    %2309 = vector.load %arg18[%2308, %c128_463] : memref<128x256xf32, #tpu.memory_space<vmem>>, vector<8x128xf32>
    %2310 = vector.extract_strided_slice %2303 {offsets = [0, 0], sizes = [8, 128], strides = [1, 1]} : vector<8x256xf32> to vector<8x128xf32>
    %2311 = vector.extract_strided_slice %2306 {offsets = [0, 0], sizes = [8, 32], strides = [1, 1]} : vector<8x128xf32> to vector<8x32xf32>
    %2312 = vector.extract_strided_slice %2310 {offsets = [0, 0], sizes = [8, 32], strides = [1, 1]} : vector<8x128xf32> to vector<8x32xf32>
    %2313 = arith.addf %2311, %2312 : vector<8x32xf32>
    %2314 = arith.negf %2313 : vector<8x32xf32>
    %2315 = math.exp %2314 : vector<8x32xf32>
    %cst_464 = arith.constant 1.000000e+00 : f32
    %2316 = vector.broadcast %cst_464 : f32 to vector<8x32xf32>
    %2317 = arith.addf %2316, %2315 : vector<8x32xf32>
    %2318 = arith.divf %2316, %2317 : vector<8x32xf32>
    %2319 = vector.extract_strided_slice %2306 {offsets = [0, 32], sizes = [8, 32], strides = [1, 1]} : vector<8x128xf32> to vector<8x32xf32>
    %2320 = vector.extract_strided_slice %2310 {offsets = [0, 32], sizes = [8, 32], strides = [1, 1]} : vector<8x128xf32> to vector<8x32xf32>
    %2321 = arith.addf %2319, %2320 : vector<8x32xf32>
    %2322 = arith.negf %2321 : vector<8x32xf32>
    %2323 = math.exp %2322 : vector<8x32xf32>
    %cst_465 = arith.constant 1.000000e+00 : f32
    %2324 = vector.broadcast %cst_465 : f32 to vector<8x32xf32>
    %2325 = arith.addf %2324, %2323 : vector<8x32xf32>
    %2326 = arith.divf %2324, %2325 : vector<8x32xf32>
    %2327 = vector.extract_strided_slice %2306 {offsets = [0, 64], sizes = [8, 32], strides = [1, 1]} : vector<8x128xf32> to vector<8x32xf32>
    %2328 = vector.extract_strided_slice %2310 {offsets = [0, 64], sizes = [8, 32], strides = [1, 1]} : vector<8x128xf32> to vector<8x32xf32>
    %2329 = arith.mulf %2318, %2328 : vector<8x32xf32>
    %2330 = arith.addf %2327, %2329 : vector<8x32xf32>
    %2331 = math.tanh %2330 : vector<8x32xf32>
    %cst_466 = arith.constant 1.000000e+00 : f32
    %2332 = vector.broadcast %cst_466 : f32 to vector<8x32xf32>
    %2333 = arith.subf %2332, %2326 : vector<8x32xf32>
    %2334 = arith.mulf %2333, %2331 : vector<8x32xf32>
    %2335 = arith.mulf %2326, %2293 : vector<8x32xf32>
    %2336 = arith.addf %2334, %2335 : vector<8x32xf32>
    %2337 = vector.extract_strided_slice %2303 {offsets = [0, 128], sizes = [8, 128], strides = [1, 1]} : vector<8x256xf32> to vector<8x128xf32>
    %2338 = vector.extract_strided_slice %2309 {offsets = [0, 0], sizes = [8, 32], strides = [1, 1]} : vector<8x128xf32> to vector<8x32xf32>
    %2339 = vector.extract_strided_slice %2337 {offsets = [0, 0], sizes = [8, 32], strides = [1, 1]} : vector<8x128xf32> to vector<8x32xf32>
    %2340 = arith.addf %2338, %2339 : vector<8x32xf32>
    %2341 = arith.negf %2340 : vector<8x32xf32>
    %2342 = math.exp %2341 : vector<8x32xf32>
    %cst_467 = arith.constant 1.000000e+00 : f32
    %2343 = vector.broadcast %cst_467 : f32 to vector<8x32xf32>
    %2344 = arith.addf %2343, %2342 : vector<8x32xf32>
    %2345 = arith.divf %2343, %2344 : vector<8x32xf32>
    %2346 = vector.extract_strided_slice %2309 {offsets = [0, 32], sizes = [8, 32], strides = [1, 1]} : vector<8x128xf32> to vector<8x32xf32>
    %2347 = vector.extract_strided_slice %2337 {offsets = [0, 32], sizes = [8, 32], strides = [1, 1]} : vector<8x128xf32> to vector<8x32xf32>
    %2348 = arith.addf %2346, %2347 : vector<8x32xf32>
    %2349 = arith.negf %2348 : vector<8x32xf32>
    %2350 = math.exp %2349 : vector<8x32xf32>
    %cst_468 = arith.constant 1.000000e+00 : f32
    %2351 = vector.broadcast %cst_468 : f32 to vector<8x32xf32>
    %2352 = arith.addf %2351, %2350 : vector<8x32xf32>
    %2353 = arith.divf %2351, %2352 : vector<8x32xf32>
    %2354 = vector.extract_strided_slice %2309 {offsets = [0, 64], sizes = [8, 32], strides = [1, 1]} : vector<8x128xf32> to vector<8x32xf32>
    %2355 = vector.extract_strided_slice %2337 {offsets = [0, 64], sizes = [8, 32], strides = [1, 1]} : vector<8x128xf32> to vector<8x32xf32>
    %2356 = arith.mulf %2345, %2355 : vector<8x32xf32>
    %2357 = arith.addf %2354, %2356 : vector<8x32xf32>
    %2358 = math.tanh %2357 : vector<8x32xf32>
    %cst_469 = arith.constant 1.000000e+00 : f32
    %2359 = vector.broadcast %cst_469 : f32 to vector<8x32xf32>
    %2360 = arith.subf %2359, %2353 : vector<8x32xf32>
    %2361 = arith.mulf %2360, %2358 : vector<8x32xf32>
    %2362 = arith.mulf %2353, %2298 : vector<8x32xf32>
    %2363 = arith.addf %2361, %2362 : vector<8x32xf32>
    %2364 = vector.broadcast %c13_i32_457 : i32 to vector<8x1xi32>
    %2365 = arith.cmpi slt, %2364, %0 : vector<8x1xi32>
    %2366 = vector.shape_cast %2365 : vector<8x1xi1> to vector<8x1xi1>
    %2367 = vector.broadcast %2366 : vector<8x1xi1> to vector<8x32xi1>
    %2368 = arith.select %2367, %2336, %2293 : vector<8x32xi1>, vector<8x32xf32>
    %2369 = vector.broadcast %2299 : i32 to vector<8x1xi32>
    %2370 = arith.cmpi slt, %2369, %0 : vector<8x1xi32>
    %2371 = vector.shape_cast %2370 : vector<8x1xi1> to vector<8x1xi1>
    %2372 = vector.broadcast %2371 : vector<8x1xi1> to vector<8x32xi1>
    %2373 = arith.select %2372, %2363, %2298 : vector<8x32xi1>, vector<8x32xf32>
    %c14_i32_470 = arith.constant 14 : i32
    %c15_i32_471 = arith.constant 15 : i32
    %2374 = arith.subi %c15_i32_471, %c14_i32_470 : i32
    %2375 = tpu.concatenate %2368, %2373 in 1 : vector<8x32xf32>, vector<8x32xf32> -> vector<8x64xf32>
    %cst_472 = arith.constant dense<0.000000e+00> : vector<8x256xf32>
    %2376 = tpu.matmul %2375, %1322, %cst_472 {dimension_numbers = #tpu.dot_dimension_numbers<[1], [0], [0], [1], [0, 0, 1, 1], [], []>} : vector<8x64xf32>, vector<64x256xf32>, vector<8x256xf32> -> vector<8x256xf32>
    %2377 = vector.broadcast %1323 : vector<1x256xf32> to vector<8x256xf32>
    %2378 = arith.addf %2376, %2377 : vector<8x256xf32>
    %c8_i32_473 = arith.constant 8 : i32
    %2379 = arith.muli %c14_i32_470, %c8_i32_473 : i32
    %2380 = arith.index_cast %2379 : i32 to index
    %c0_474 = arith.constant 0 : index
    %2381 = vector.load %arg18[%2380, %c0_474] : memref<128x256xf32, #tpu.memory_space<vmem>>, vector<8x128xf32>
    %c8_i32_475 = arith.constant 8 : i32
    %2382 = arith.muli %2374, %c8_i32_475 : i32
    %2383 = arith.index_cast %2382 : i32 to index
    %c128_476 = arith.constant 128 : index
    %2384 = vector.load %arg18[%2383, %c128_476] : memref<128x256xf32, #tpu.memory_space<vmem>>, vector<8x128xf32>
    %2385 = vector.extract_strided_slice %2378 {offsets = [0, 0], sizes = [8, 128], strides = [1, 1]} : vector<8x256xf32> to vector<8x128xf32>
    %2386 = vector.extract_strided_slice %2381 {offsets = [0, 0], sizes = [8, 32], strides = [1, 1]} : vector<8x128xf32> to vector<8x32xf32>
    %2387 = vector.extract_strided_slice %2385 {offsets = [0, 0], sizes = [8, 32], strides = [1, 1]} : vector<8x128xf32> to vector<8x32xf32>
    %2388 = arith.addf %2386, %2387 : vector<8x32xf32>
    %2389 = arith.negf %2388 : vector<8x32xf32>
    %2390 = math.exp %2389 : vector<8x32xf32>
    %cst_477 = arith.constant 1.000000e+00 : f32
    %2391 = vector.broadcast %cst_477 : f32 to vector<8x32xf32>
    %2392 = arith.addf %2391, %2390 : vector<8x32xf32>
    %2393 = arith.divf %2391, %2392 : vector<8x32xf32>
    %2394 = vector.extract_strided_slice %2381 {offsets = [0, 32], sizes = [8, 32], strides = [1, 1]} : vector<8x128xf32> to vector<8x32xf32>
    %2395 = vector.extract_strided_slice %2385 {offsets = [0, 32], sizes = [8, 32], strides = [1, 1]} : vector<8x128xf32> to vector<8x32xf32>
    %2396 = arith.addf %2394, %2395 : vector<8x32xf32>
    %2397 = arith.negf %2396 : vector<8x32xf32>
    %2398 = math.exp %2397 : vector<8x32xf32>
    %cst_478 = arith.constant 1.000000e+00 : f32
    %2399 = vector.broadcast %cst_478 : f32 to vector<8x32xf32>
    %2400 = arith.addf %2399, %2398 : vector<8x32xf32>
    %2401 = arith.divf %2399, %2400 : vector<8x32xf32>
    %2402 = vector.extract_strided_slice %2381 {offsets = [0, 64], sizes = [8, 32], strides = [1, 1]} : vector<8x128xf32> to vector<8x32xf32>
    %2403 = vector.extract_strided_slice %2385 {offsets = [0, 64], sizes = [8, 32], strides = [1, 1]} : vector<8x128xf32> to vector<8x32xf32>
    %2404 = arith.mulf %2393, %2403 : vector<8x32xf32>
    %2405 = arith.addf %2402, %2404 : vector<8x32xf32>
    %2406 = math.tanh %2405 : vector<8x32xf32>
    %cst_479 = arith.constant 1.000000e+00 : f32
    %2407 = vector.broadcast %cst_479 : f32 to vector<8x32xf32>
    %2408 = arith.subf %2407, %2401 : vector<8x32xf32>
    %2409 = arith.mulf %2408, %2406 : vector<8x32xf32>
    %2410 = arith.mulf %2401, %2368 : vector<8x32xf32>
    %2411 = arith.addf %2409, %2410 : vector<8x32xf32>
    %2412 = vector.extract_strided_slice %2378 {offsets = [0, 128], sizes = [8, 128], strides = [1, 1]} : vector<8x256xf32> to vector<8x128xf32>
    %2413 = vector.extract_strided_slice %2384 {offsets = [0, 0], sizes = [8, 32], strides = [1, 1]} : vector<8x128xf32> to vector<8x32xf32>
    %2414 = vector.extract_strided_slice %2412 {offsets = [0, 0], sizes = [8, 32], strides = [1, 1]} : vector<8x128xf32> to vector<8x32xf32>
    %2415 = arith.addf %2413, %2414 : vector<8x32xf32>
    %2416 = arith.negf %2415 : vector<8x32xf32>
    %2417 = math.exp %2416 : vector<8x32xf32>
    %cst_480 = arith.constant 1.000000e+00 : f32
    %2418 = vector.broadcast %cst_480 : f32 to vector<8x32xf32>
    %2419 = arith.addf %2418, %2417 : vector<8x32xf32>
    %2420 = arith.divf %2418, %2419 : vector<8x32xf32>
    %2421 = vector.extract_strided_slice %2384 {offsets = [0, 32], sizes = [8, 32], strides = [1, 1]} : vector<8x128xf32> to vector<8x32xf32>
    %2422 = vector.extract_strided_slice %2412 {offsets = [0, 32], sizes = [8, 32], strides = [1, 1]} : vector<8x128xf32> to vector<8x32xf32>
    %2423 = arith.addf %2421, %2422 : vector<8x32xf32>
    %2424 = arith.negf %2423 : vector<8x32xf32>
    %2425 = math.exp %2424 : vector<8x32xf32>
    %cst_481 = arith.constant 1.000000e+00 : f32
    %2426 = vector.broadcast %cst_481 : f32 to vector<8x32xf32>
    %2427 = arith.addf %2426, %2425 : vector<8x32xf32>
    %2428 = arith.divf %2426, %2427 : vector<8x32xf32>
    %2429 = vector.extract_strided_slice %2384 {offsets = [0, 64], sizes = [8, 32], strides = [1, 1]} : vector<8x128xf32> to vector<8x32xf32>
    %2430 = vector.extract_strided_slice %2412 {offsets = [0, 64], sizes = [8, 32], strides = [1, 1]} : vector<8x128xf32> to vector<8x32xf32>
    %2431 = arith.mulf %2420, %2430 : vector<8x32xf32>
    %2432 = arith.addf %2429, %2431 : vector<8x32xf32>
    %2433 = math.tanh %2432 : vector<8x32xf32>
    %cst_482 = arith.constant 1.000000e+00 : f32
    %2434 = vector.broadcast %cst_482 : f32 to vector<8x32xf32>
    %2435 = arith.subf %2434, %2428 : vector<8x32xf32>
    %2436 = arith.mulf %2435, %2433 : vector<8x32xf32>
    %2437 = arith.mulf %2428, %2373 : vector<8x32xf32>
    %2438 = arith.addf %2436, %2437 : vector<8x32xf32>
    %2439 = vector.broadcast %c14_i32_470 : i32 to vector<8x1xi32>
    %2440 = arith.cmpi slt, %2439, %0 : vector<8x1xi32>
    %2441 = vector.shape_cast %2440 : vector<8x1xi1> to vector<8x1xi1>
    %2442 = vector.broadcast %2441 : vector<8x1xi1> to vector<8x32xi1>
    %2443 = arith.select %2442, %2411, %2368 : vector<8x32xi1>, vector<8x32xf32>
    %2444 = vector.broadcast %2374 : i32 to vector<8x1xi32>
    %2445 = arith.cmpi slt, %2444, %0 : vector<8x1xi32>
    %2446 = vector.shape_cast %2445 : vector<8x1xi1> to vector<8x1xi1>
    %2447 = vector.broadcast %2446 : vector<8x1xi1> to vector<8x32xi1>
    %2448 = arith.select %2447, %2438, %2373 : vector<8x32xi1>, vector<8x32xf32>
    %c15_i32_483 = arith.constant 15 : i32
    %c15_i32_484 = arith.constant 15 : i32
    %2449 = arith.subi %c15_i32_484, %c15_i32_483 : i32
    %2450 = tpu.concatenate %2443, %2448 in 1 : vector<8x32xf32>, vector<8x32xf32> -> vector<8x64xf32>
    %cst_485 = arith.constant dense<0.000000e+00> : vector<8x256xf32>
    %2451 = tpu.matmul %2450, %1322, %cst_485 {dimension_numbers = #tpu.dot_dimension_numbers<[1], [0], [0], [1], [0, 0, 1, 1], [], []>} : vector<8x64xf32>, vector<64x256xf32>, vector<8x256xf32> -> vector<8x256xf32>
    %2452 = vector.broadcast %1323 : vector<1x256xf32> to vector<8x256xf32>
    %2453 = arith.addf %2451, %2452 : vector<8x256xf32>
    %c8_i32_486 = arith.constant 8 : i32
    %2454 = arith.muli %c15_i32_483, %c8_i32_486 : i32
    %2455 = arith.index_cast %2454 : i32 to index
    %c0_487 = arith.constant 0 : index
    %2456 = vector.load %arg18[%2455, %c0_487] : memref<128x256xf32, #tpu.memory_space<vmem>>, vector<8x128xf32>
    %c8_i32_488 = arith.constant 8 : i32
    %2457 = arith.muli %2449, %c8_i32_488 : i32
    %2458 = arith.index_cast %2457 : i32 to index
    %c128_489 = arith.constant 128 : index
    %2459 = vector.load %arg18[%2458, %c128_489] : memref<128x256xf32, #tpu.memory_space<vmem>>, vector<8x128xf32>
    %2460 = vector.extract_strided_slice %2453 {offsets = [0, 0], sizes = [8, 128], strides = [1, 1]} : vector<8x256xf32> to vector<8x128xf32>
    %2461 = vector.extract_strided_slice %2456 {offsets = [0, 0], sizes = [8, 32], strides = [1, 1]} : vector<8x128xf32> to vector<8x32xf32>
    %2462 = vector.extract_strided_slice %2460 {offsets = [0, 0], sizes = [8, 32], strides = [1, 1]} : vector<8x128xf32> to vector<8x32xf32>
    %2463 = arith.addf %2461, %2462 : vector<8x32xf32>
    %2464 = arith.negf %2463 : vector<8x32xf32>
    %2465 = math.exp %2464 : vector<8x32xf32>
    %cst_490 = arith.constant 1.000000e+00 : f32
    %2466 = vector.broadcast %cst_490 : f32 to vector<8x32xf32>
    %2467 = arith.addf %2466, %2465 : vector<8x32xf32>
    %2468 = arith.divf %2466, %2467 : vector<8x32xf32>
    %2469 = vector.extract_strided_slice %2456 {offsets = [0, 32], sizes = [8, 32], strides = [1, 1]} : vector<8x128xf32> to vector<8x32xf32>
    %2470 = vector.extract_strided_slice %2460 {offsets = [0, 32], sizes = [8, 32], strides = [1, 1]} : vector<8x128xf32> to vector<8x32xf32>
    %2471 = arith.addf %2469, %2470 : vector<8x32xf32>
    %2472 = arith.negf %2471 : vector<8x32xf32>
    %2473 = math.exp %2472 : vector<8x32xf32>
    %cst_491 = arith.constant 1.000000e+00 : f32
    %2474 = vector.broadcast %cst_491 : f32 to vector<8x32xf32>
    %2475 = arith.addf %2474, %2473 : vector<8x32xf32>
    %2476 = arith.divf %2474, %2475 : vector<8x32xf32>
    %2477 = vector.extract_strided_slice %2456 {offsets = [0, 64], sizes = [8, 32], strides = [1, 1]} : vector<8x128xf32> to vector<8x32xf32>
    %2478 = vector.extract_strided_slice %2460 {offsets = [0, 64], sizes = [8, 32], strides = [1, 1]} : vector<8x128xf32> to vector<8x32xf32>
    %2479 = arith.mulf %2468, %2478 : vector<8x32xf32>
    %2480 = arith.addf %2477, %2479 : vector<8x32xf32>
    %2481 = math.tanh %2480 : vector<8x32xf32>
    %cst_492 = arith.constant 1.000000e+00 : f32
    %2482 = vector.broadcast %cst_492 : f32 to vector<8x32xf32>
    %2483 = arith.subf %2482, %2476 : vector<8x32xf32>
    %2484 = arith.mulf %2483, %2481 : vector<8x32xf32>
    %2485 = arith.mulf %2476, %2443 : vector<8x32xf32>
    %2486 = arith.addf %2484, %2485 : vector<8x32xf32>
    %2487 = vector.extract_strided_slice %2453 {offsets = [0, 128], sizes = [8, 128], strides = [1, 1]} : vector<8x256xf32> to vector<8x128xf32>
    %2488 = vector.extract_strided_slice %2459 {offsets = [0, 0], sizes = [8, 32], strides = [1, 1]} : vector<8x128xf32> to vector<8x32xf32>
    %2489 = vector.extract_strided_slice %2487 {offsets = [0, 0], sizes = [8, 32], strides = [1, 1]} : vector<8x128xf32> to vector<8x32xf32>
    %2490 = arith.addf %2488, %2489 : vector<8x32xf32>
    %2491 = arith.negf %2490 : vector<8x32xf32>
    %2492 = math.exp %2491 : vector<8x32xf32>
    %cst_493 = arith.constant 1.000000e+00 : f32
    %2493 = vector.broadcast %cst_493 : f32 to vector<8x32xf32>
    %2494 = arith.addf %2493, %2492 : vector<8x32xf32>
    %2495 = arith.divf %2493, %2494 : vector<8x32xf32>
    %2496 = vector.extract_strided_slice %2459 {offsets = [0, 32], sizes = [8, 32], strides = [1, 1]} : vector<8x128xf32> to vector<8x32xf32>
    %2497 = vector.extract_strided_slice %2487 {offsets = [0, 32], sizes = [8, 32], strides = [1, 1]} : vector<8x128xf32> to vector<8x32xf32>
    %2498 = arith.addf %2496, %2497 : vector<8x32xf32>
    %2499 = arith.negf %2498 : vector<8x32xf32>
    %2500 = math.exp %2499 : vector<8x32xf32>
    %cst_494 = arith.constant 1.000000e+00 : f32
    %2501 = vector.broadcast %cst_494 : f32 to vector<8x32xf32>
    %2502 = arith.addf %2501, %2500 : vector<8x32xf32>
    %2503 = arith.divf %2501, %2502 : vector<8x32xf32>
    %2504 = vector.extract_strided_slice %2459 {offsets = [0, 64], sizes = [8, 32], strides = [1, 1]} : vector<8x128xf32> to vector<8x32xf32>
    %2505 = vector.extract_strided_slice %2487 {offsets = [0, 64], sizes = [8, 32], strides = [1, 1]} : vector<8x128xf32> to vector<8x32xf32>
    %2506 = arith.mulf %2495, %2505 : vector<8x32xf32>
    %2507 = arith.addf %2504, %2506 : vector<8x32xf32>
    %2508 = math.tanh %2507 : vector<8x32xf32>
    %cst_495 = arith.constant 1.000000e+00 : f32
    %2509 = vector.broadcast %cst_495 : f32 to vector<8x32xf32>
    %2510 = arith.subf %2509, %2503 : vector<8x32xf32>
    %2511 = arith.mulf %2510, %2508 : vector<8x32xf32>
    %2512 = arith.mulf %2503, %2448 : vector<8x32xf32>
    %2513 = arith.addf %2511, %2512 : vector<8x32xf32>
    %2514 = vector.broadcast %c15_i32_483 : i32 to vector<8x1xi32>
    %2515 = arith.cmpi slt, %2514, %0 : vector<8x1xi32>
    %2516 = vector.shape_cast %2515 : vector<8x1xi1> to vector<8x1xi1>
    %2517 = vector.broadcast %2516 : vector<8x1xi1> to vector<8x32xi1>
    %2518 = arith.select %2517, %2486, %2443 : vector<8x32xi1>, vector<8x32xf32>
    %2519 = vector.broadcast %2449 : i32 to vector<8x1xi32>
    %2520 = arith.cmpi slt, %2519, %0 : vector<8x1xi32>
    %2521 = vector.shape_cast %2520 : vector<8x1xi1> to vector<8x1xi1>
    %2522 = vector.broadcast %2521 : vector<8x1xi1> to vector<8x32xi1>
    %2523 = arith.select %2522, %2513, %2448 : vector<8x32xi1>, vector<8x32xf32>
    %c16_i32_496 = arith.constant 16 : i32
    %2524 = tpu.concatenate %2518, %2523 in 1 : vector<8x32xf32>, vector<8x32xf32> -> vector<8x64xf32>
    %c0_497 = arith.constant 0 : index
    %c0_498 = arith.constant 0 : index
    %2525 = vector.load %arg13[%c0_497, %c0_498] : memref<64x16xf32, #tpu.memory_space<vmem>>, vector<64x16xf32>
    %cst_499 = arith.constant dense<0.000000e+00> : vector<8x16xf32>
    %2526 = tpu.matmul %2524, %2525, %cst_499 {dimension_numbers = #tpu.dot_dimension_numbers<[1], [0], [0], [1], [0, 0, 1, 1], [], []>} : vector<8x64xf32>, vector<64x16xf32>, vector<8x16xf32> -> vector<8x16xf32>
    %c0_500 = arith.constant 0 : index
    %c0_501 = arith.constant 0 : index
    %2527 = vector.load %arg14[%c0_500, %c0_501] : memref<1x16xf32, #tpu.memory_space<vmem>>, vector<1x16xf32>
    %2528 = vector.broadcast %2527 : vector<1x16xf32> to vector<8x16xf32>
    %2529 = arith.addf %2526, %2528 : vector<8x16xf32>
    %cst_502 = arith.constant 0.000000e+00 : f32
    %2530 = vector.broadcast %cst_502 : f32 to vector<8x16xf32>
    %2531 = arith.maximumf %2529, %2530 : vector<8x16xf32>
    %c0_503 = arith.constant 0 : index
    %c0_504 = arith.constant 0 : index
    %2532 = vector.load %arg15[%c0_503, %c0_504] : memref<16x2xf32, #tpu.memory_space<vmem>>, vector<16x2xf32>
    %cst_505 = arith.constant dense<0.000000e+00> : vector<8x2xf32>
    %2533 = tpu.matmul %2531, %2532, %cst_505 {dimension_numbers = #tpu.dot_dimension_numbers<[1], [0], [0], [1], [0, 0, 1, 1], [], []>} : vector<8x16xf32>, vector<16x2xf32>, vector<8x2xf32> -> vector<8x2xf32>
    %c0_506 = arith.constant 0 : index
    %c0_507 = arith.constant 0 : index
    %2534 = vector.load %arg16[%c0_506, %c0_507] : memref<1x2xf32, #tpu.memory_space<vmem>>, vector<1x2xf32>
    %2535 = vector.broadcast %2534 : vector<1x2xf32> to vector<8x2xf32>
    %2536 = arith.addf %2533, %2535 : vector<8x2xf32>
    %c0_508 = arith.constant 0 : index
    %c0_509 = arith.constant 0 : index
    %2537 = vector.load %arg17[%c0_508, %c0_509] : memref<8x2xf32, #tpu.memory_space<vmem>>, vector<8x2xf32>
    tpu.vector_store %arg17[%c0_508, %c0_509], %2536 {strides = array<i32>} : memref<8x2xf32, #tpu.memory_space<vmem>>, vector<8x2xf32>,
    return
  }
  func.func @transform_0(%arg0: i32) -> (i32, i32) {
    %c0_i32 = arith.constant 0 : i32
    %c0_i32_0 = arith.constant 0 : i32
    return %arg0, %c0_i32 : i32, i32
  }
  func.func @transform_1(%arg0: i32) -> (i32, i32, i32) {
    %c0_i32 = arith.constant 0 : i32
    %c0_i32_0 = arith.constant 0 : i32
    %c0_i32_1 = arith.constant 0 : i32
    return %c0_i32, %arg0, %c0_i32_0 : i32, i32, i32
  }
  func.func @transform_2(%arg0: i32) -> (i32, i32) {
    %c0_i32 = arith.constant 0 : i32
    %c0_i32_0 = arith.constant 0 : i32
    %c0_i32_1 = arith.constant 0 : i32
    return %c0_i32, %c0_i32_0 : i32, i32
  }
  func.func @transform_3(%arg0: i32) -> (i32, i32) {
    %c0_i32 = arith.constant 0 : i32
    %c0_i32_0 = arith.constant 0 : i32
    %c0_i32_1 = arith.constant 0 : i32
    return %c0_i32, %c0_i32_0 : i32, i32
  }
  func.func @transform_4(%arg0: i32) -> (i32, i32) {
    %c0_i32 = arith.constant 0 : i32
    %c0_i32_0 = arith.constant 0 : i32
    %c0_i32_1 = arith.constant 0 : i32
    return %c0_i32, %c0_i32_0 : i32, i32
  }
  func.func @transform_5(%arg0: i32) -> (i32, i32) {
    %c0_i32 = arith.constant 0 : i32
    %c0_i32_0 = arith.constant 0 : i32
    %c0_i32_1 = arith.constant 0 : i32
    return %c0_i32, %c0_i32_0 : i32, i32
  }
  func.func @transform_6(%arg0: i32) -> (i32, i32) {
    %c0_i32 = arith.constant 0 : i32
    %c0_i32_0 = arith.constant 0 : i32
    %c0_i32_1 = arith.constant 0 : i32
    return %c0_i32, %c0_i32_0 : i32, i32
  }
  func.func @transform_7(%arg0: i32) -> (i32, i32) {
    %c0_i32 = arith.constant 0 : i32
    %c0_i32_0 = arith.constant 0 : i32
    %c0_i32_1 = arith.constant 0 : i32
    return %c0_i32, %c0_i32_0 : i32, i32
  }
  func.func @transform_8(%arg0: i32) -> (i32, i32) {
    %c0_i32 = arith.constant 0 : i32
    %c0_i32_0 = arith.constant 0 : i32
    %c0_i32_1 = arith.constant 0 : i32
    return %c0_i32, %c0_i32_0 : i32, i32
  }
  func.func @transform_9(%arg0: i32) -> (i32, i32) {
    %c0_i32 = arith.constant 0 : i32
    %c0_i32_0 = arith.constant 0 : i32
    %c0_i32_1 = arith.constant 0 : i32
    return %c0_i32, %c0_i32_0 : i32, i32
  }
  func.func @transform_10(%arg0: i32) -> (i32, i32) {
    %c0_i32 = arith.constant 0 : i32
    %c0_i32_0 = arith.constant 0 : i32
    %c0_i32_1 = arith.constant 0 : i32
    return %c0_i32, %c0_i32_0 : i32, i32
  }
  func.func @transform_11(%arg0: i32) -> (i32, i32) {
    %c0_i32 = arith.constant 0 : i32
    %c0_i32_0 = arith.constant 0 : i32
    %c0_i32_1 = arith.constant 0 : i32
    return %c0_i32, %c0_i32_0 : i32, i32
  }
  func.func @transform_12(%arg0: i32) -> (i32, i32) {
    %c0_i32 = arith.constant 0 : i32
    %c0_i32_0 = arith.constant 0 : i32
    %c0_i32_1 = arith.constant 0 : i32
    return %c0_i32, %c0_i32_0 : i32, i32
  }
  func.func @transform_13(%arg0: i32) -> (i32, i32) {
    %c0_i32 = arith.constant 0 : i32
    %c0_i32_0 = arith.constant 0 : i32
    %c0_i32_1 = arith.constant 0 : i32
    return %c0_i32, %c0_i32_0 : i32, i32
  }
  func.func @transform_14(%arg0: i32) -> (i32, i32) {
    %c0_i32 = arith.constant 0 : i32
    %c0_i32_0 = arith.constant 0 : i32
    %c0_i32_1 = arith.constant 0 : i32
    return %c0_i32, %c0_i32_0 : i32, i32
  }
  func.func @transform_15(%arg0: i32) -> (i32, i32) {
    %c0_i32 = arith.constant 0 : i32
    %c0_i32_0 = arith.constant 0 : i32
    %c0_i32_1 = arith.constant 0 : i32
    return %c0_i32, %c0_i32_0 : i32, i32
  }
  func.func @transform_16(%arg0: i32) -> (i32, i32) {
    %c0_i32 = arith.constant 0 : i32
    %c0_i32_0 = arith.constant 0 : i32
    return %arg0, %c0_i32 : i32, i32
  }
}

</mosaic_0001>

<llo_original>
// kernel: tpu_custom_call.1
$region0: #{tpu_custom_call.1}
  #allocation0 [shape = 'u32[]', space=smem, size = 0x4, offset = 0x4, fixed_abs, tag = 'smem constant byte address 0x4 - core index']
  #allocation1 [shape = 'u32[144,128]{1,0:T(1,128)}', space=vmem, size = 0x12000, scoped, tag = 'internal scratch']
  #allocation2 [shape = 'f32[128,256]{1,0:T(8,128)}', space=vmem, size = 0x20000, scoped, tag = 'scratch operand']
  #allocation3 [shape = 'f32[128,64]{1,0:T(8,128)}', space=vmem, size = 0x10000, scoped, tag = 'scratch operand']
  %s0 = inlined_call_operand.vmem [shape: s32[8,1], index: 0, kind: input, shape index: {}]
  %s1 = inlined_call_operand.hbm [shape: f32[16,8,140], index: 1, kind: input, shape index: {}]
  %s2 = inlined_call_operand.hbm [shape: f32[140,150], index: 2, kind: input, shape index: {}]
  %s3 = inlined_call_operand.vmem [shape: f32[1,150], index: 3, kind: input, shape index: {}]
  %s4 = inlined_call_operand.hbm [shape: f32[150,256], index: 4, kind: input, shape index: {}]
  %s5 = inlined_call_operand.hbm [shape: f32[64,256], index: 5, kind: input, shape index: {}]
  %s6 = inlined_call_operand.vmem [shape: f32[1,256], index: 6, kind: input, shape index: {}]
  %s7 = inlined_call_operand.vmem [shape: f32[1,256], index: 7, kind: input, shape index: {}]
  %s8 = inlined_call_operand.hbm [shape: f32[64,256], index: 8, kind: input, shape index: {}]
  %s9 = inlined_call_operand.hbm [shape: f32[64,256], index: 9, kind: input, shape index: {}]
  %s10 = inlined_call_operand.vmem [shape: f32[1,256], index: 10, kind: input, shape index: {}]
  %s11 = inlined_call_operand.vmem [shape: f32[1,256], index: 11, kind: input, shape index: {}]
  %s12 = inlined_call_operand.vmem [shape: f32[64,16], index: 12, kind: input, shape index: {}]
  %s13 = inlined_call_operand.vmem [shape: f32[1,16], index: 13, kind: input, shape index: {}]
  %s14 = inlined_call_operand.vmem [shape: f32[16,2], index: 14, kind: input, shape index: {}]
  %s15 = inlined_call_operand.vmem [shape: f32[1,2], index: 15, kind: input, shape index: {}]
  %s16 = inlined_call_operand.vmem [shape: f32[8,2], index: 16, kind: output, shape index: {}]
  %s17 = sld [smem:[#allocation0]]
  $region98: #{tpu_custom_call.1} parent=0
    _
  %s19 = ssub.s32 1, %s17
  %s20 = scalar_select 0, %s19, %s17
  $region1: #{tpu_custom_call.1} parent=0
    #allocation4 [shape = 'u8[131072]{0}', space=vmem, size = 0x20000, scoped, tag = 'input window, operand 1, single buffered']
    #allocation5 [shape = 's32[1]{0}', space=sflag, size = 0x4, scoped, tag = 'scoped memory for tpu_custom_call.1']
    #allocation6 [shape = 'u8[147456]{0}', space=vmem, size = 0x24000, scoped, tag = 'input window, operand 2, single buffered']
    #allocation7 [shape = 's32[1]{0}', space=sflag, size = 0x4, scoped, tag = 'scoped memory for tpu_custom_call.1']
    #allocation8 [shape = 'u8[155648]{0}', space=vmem, size = 0x26000, scoped, tag = 'input window, operand 4, single buffered']
    #allocation9 [shape = 'u8[65536]{0}', space=vmem, size = 0x10000, scoped, tag = 'input window, operand 5, single buffered']
    #allocation10 [shape = 's32[1]{0}', space=sflag, size = 0x4, scoped, tag = 'scoped memory for tpu_custom_call.1']
    #allocation11 [shape = 'u8[65536]{0}', space=vmem, size = 0x10000, scoped, tag = 'input window, operand 8, single buffered']
    #allocation12 [shape = 'u8[65536]{0}', space=vmem, size = 0x10000, scoped, tag = 'input window, operand 9, single buffered']
    #allocation13 [shape = 's32[1]{0}', space=sflag, size = 0x4, scoped, tag = 'scoped memory for tpu_custom_call.1']
    %21 = vsyncpa [#allocation5], 0
    %22 = vsyncpa [#allocation7], 0
    %23 = vsyncpa [#allocation10], 0
    %24 = vsyncpa [#allocation13], 0
    // Predicated region
    $region2: #{tpu_custom_call.1} parent=1 // pred_check
      _
    $region3: #{tpu_custom_call.1} parent=1 // pred_check_branch
      %26 = sbr.rel (0) target = $region5
    $region4: #{tpu_custom_call.1} parent=1 // pred_region
      _
    $region5: #{tpu_custom_call.1} parent=1 // pred_fallthru
      _
    // Predicated region
    $region6: #{tpu_custom_call.1} parent=1 // pred_check
      _
    $region7: #{tpu_custom_call.1} parent=1 // pred_check_branch
      %28 = sbr.rel (0) target = $region9
    $region8: #{tpu_custom_call.1} parent=1 // pred_region
      %s30 = ssub.s32 4096, 4096
      %31 = vsyncadd [#allocation5], %s30
      %s32 = sshll.u32 [#allocation4], 4
      %s33 = int_to_ptr.vmem [resolvable:$true] %s32
      %38 = dma.hbm_to_vmem [thread:$0]  %s1, 4096, %s33, [#allocation5], 256, 256, 16
    $region9: #{tpu_custom_call.1} parent=1 // pred_fallthru
      _
    // Predicated region
    $region10: #{tpu_custom_call.1} parent=1 // pred_check
      _
    $region11: #{tpu_custom_call.1} parent=1 // pred_check_branch
      %40 = sbr.rel (0) target = $region13
    $region12: #{tpu_custom_call.1} parent=1 // pred_region
      %s42 = ssub.s32 4608, 4608
      %43 = vsyncadd [#allocation7], %s42
      %s44 = sshll.u32 [#allocation6], 4
      %s45 = int_to_ptr.vmem [resolvable:$true] %s44
      %50 = dma.hbm_to_vmem [thread:$0]  %s2, 4608, %s45, [#allocation7], 256, 256, 16
    $region13: #{tpu_custom_call.1} parent=1 // pred_fallthru
      _
    // Predicated region
    $region14: #{tpu_custom_call.1} parent=1 // pred_check
      _
    $region15: #{tpu_custom_call.1} parent=1 // pred_check_branch
      %52 = sbr.rel (0) target = $region17
    $region16: #{tpu_custom_call.1} parent=1 // pred_region
      _
    $region17: #{tpu_custom_call.1} parent=1 // pred_fallthru
      _
    // Predicated region
    $region18: #{tpu_custom_call.1} parent=1 // pred_check
      _
    $region19: #{tpu_custom_call.1} parent=1 // pred_check_branch
      %54 = sbr.rel (0) target = $region21
    $region20: #{tpu_custom_call.1} parent=1 // pred_region
      %s56 = ssub.s32 4864, 4864
      %57 = vsyncadd [#allocation7], %s56
      %s58 = sshll.u32 [#allocation8], 4
      %s59 = int_to_ptr.vmem [resolvable:$true] %s58
      %64 = dma.hbm_to_vmem [thread:$0]  %s4, 4864, %s59, [#allocation7], 256, 256, 16
    $region21: #{tpu_custom_call.1} parent=1 // pred_fallthru
      _
    // Predicated region
    $region22: #{tpu_custom_call.1} parent=1 // pred_check
      _
    $region23: #{tpu_custom_call.1} parent=1 // pred_check_branch
      %66 = sbr.rel (0) target = $region25
    $region24: #{tpu_custom_call.1} parent=1 // pred_region
      %s68 = ssub.s32 2048, 2048
      %69 = vsyncadd [#allocation10], %s68
      %s70 = sshll.u32 [#allocation9], 4
      %s71 = int_to_ptr.vmem [resolvable:$true] %s70
      %76 = dma.hbm_to_vmem [thread:$0]  %s5, 2048, %s71, [#allocation10], 256, 256, 16
    $region25: #{tpu_custom_call.1} parent=1 // pred_fallthru
      _
    // Predicated region
    $region26: #{tpu_custom_call.1} parent=1 // pred_check
      _
    $region27: #{tpu_custom_call.1} parent=1 // pred_check_branch
      %78 = sbr.rel (0) target = $region29
    $region28: #{tpu_custom_call.1} parent=1 // pred_region
      _
    $region29: #{tpu_custom_call.1} parent=1 // pred_fallthru
      _
    // Predicated region
    $region30: #{tpu_custom_call.1} parent=1 // pred_check
      _
    $region31: #{tpu_custom_call.1} parent=1 // pred_check_branch
      %80 = sbr.rel (0) target = $region33
    $region32: #{tpu_custom_call.1} parent=1 // pred_region
      _
    $region33: #{tpu_custom_call.1} parent=1 // pred_fallthru
      _
    // Predicated region
    $region34: #{tpu_custom_call.1} parent=1 // pred_check
      _
    $region35: #{tpu_custom_call.1} parent=1 // pred_check_branch
      %82 = sbr.rel (0) target = $region37
    $region36: #{tpu_custom_call.1} parent=1 // pred_region
      %s84 = ssub.s32 2048, 2048
      %85 = vsyncadd [#allocation10], %s84
      %s86 = sshll.u32 [#allocation11], 4
      %s87 = int_to_ptr.vmem [resolvable:$true] %s86
      %92 = dma.hbm_to_vmem [thread:$0]  %s8, 2048, %s87, [#allocation10], 256, 256, 16
    $region37: #{tpu_custom_call.1} parent=1 // pred_fallthru
      _
    // Predicated region
    $region38: #{tpu_custom_call.1} parent=1 // pred_check
      _
    $region39: #{tpu_custom_call.1} parent=1 // pred_check_branch
      %94 = sbr.rel (0) target = $region41
    $region40: #{tpu_custom_call.1} parent=1 // pred_region
      %s96 = ssub.s32 2048, 2048
      %97 = vsyncadd [#allocation13], %s96
      %s98 = sshll.u32 [#allocation12], 4
      %s99 = int_to_ptr.vmem [resolvable:$true] %s98
      %104 = dma.hbm_to_vmem [thread:$0]  %s9, 2048, %s99, [#allocation13], 256, 256, 16
    $region41: #{tpu_custom_call.1} parent=1 // pred_fallthru
      _
    // Predicated region
    $region42: #{tpu_custom_call.1} parent=1 // pred_check
      _
    $region43: #{tpu_custom_call.1} parent=1 // pred_check_branch
      %106 = sbr.rel (0) target = $region45
    $region44: #{tpu_custom_call.1} parent=1 // pred_region
      _
    $region45: #{tpu_custom_call.1} parent=1 // pred_fallthru
      _
    // Predicated region
    $region46: #{tpu_custom_call.1} parent=1 // pred_check
      _
    $region47: #{tpu_custom_call.1} parent=1 // pred_check_branch
      %108 = sbr.rel (0) target = $region49
    $region48: #{tpu_custom_call.1} parent=1 // pred_region
      _
    $region49: #{tpu_custom_call.1} parent=1 // pred_fallthru
      _
    // Predicated region
    $region50: #{tpu_custom_call.1} parent=1 // pred_check
      _
    $region51: #{tpu_custom_call.1} parent=1 // pred_check_branch
      %110 = sbr.rel (0) target = $region53
    $region52: #{tpu_custom_call.1} parent=1 // pred_region
      _
    $region53: #{tpu_custom_call.1} parent=1 // pred_fallthru
      _
    // Predicated region
    $region54: #{tpu_custom_call.1} parent=1 // pred_check
      _
    $region55: #{tpu_custom_call.1} parent=1 // pred_check_branch
      %112 = sbr.rel (0) target = $region57
    $region56: #{tpu_custom_call.1} parent=1 // pred_region
      _
    $region57: #{tpu_custom_call.1} parent=1 // pred_fallthru
      _
    // Predicated region
    $region58: #{tpu_custom_call.1} parent=1 // pred_check
      _
    $region59: #{tpu_custom_call.1} parent=1 // pred_check_branch
      %114 = sbr.rel (0) target = $region61
    $region60: #{tpu_custom_call.1} parent=1 // pred_region
      _
    $region61: #{tpu_custom_call.1} parent=1 // pred_fallthru
      _
    // Predicated region
    $region62: #{tpu_custom_call.1} parent=1 // pred_check
      _
    $region63: #{tpu_custom_call.1} parent=1 // pred_check_branch
      %116 = sbr.rel (0) target = $region65
    $region64: #{tpu_custom_call.1} parent=1 // pred_region
      _
    $region65: #{tpu_custom_call.1} parent=1 // pred_fallthru
      _
    // Predicated region
    $region66: #{tpu_custom_call.1} parent=1 // pred_check
      _
    $region67: #{tpu_custom_call.1} parent=1 // pred_check_branch
      %118 = sbr.rel (0) target = $region69
    $region68: #{tpu_custom_call.1} parent=1 // pred_region
      %119 = dma.done [#allocation5], 4096
    $region69: #{tpu_custom_call.1} parent=1 // pred_fallthru
      _
    // Predicated region
    $region70: #{tpu_custom_call.1} parent=1 // pred_check
      _
    $region71: #{tpu_custom_call.1} parent=1 // pred_check_branch
      %121 = sbr.rel (0) target = $region73
    $region72: #{tpu_custom_call.1} parent=1 // pred_region
      %122 = dma.done [#allocation7], 4608
    $region73: #{tpu_custom_call.1} parent=1 // pred_fallthru
      _
    // Predicated region
    $region74: #{tpu_custom_call.1} parent=1 // pred_check
      _
    $region75: #{tpu_custom_call.1} parent=1 // pred_check_branch
      %124 = sbr.rel (0) target = $region77
    $region76: #{tpu_custom_call.1} parent=1 // pred_region
      %125 = dma.done [#allocation7], 4864
    $region77: #{tpu_custom_call.1} parent=1 // pred_fallthru
      _
    // Predicated region
    $region78: #{tpu_custom_call.1} parent=1 // pred_check
      _
    $region79: #{tpu_custom_call.1} parent=1 // pred_check_branch
      %127 = sbr.rel (0) target = $region81
    $region80: #{tpu_custom_call.1} parent=1 // pred_region
      %128 = dma.done [#allocation10], 2048
    $region81: #{tpu_custom_call.1} parent=1 // pred_fallthru
      _
    // Predicated region
    $region82: #{tpu_custom_call.1} parent=1 // pred_check
      _
    $region83: #{tpu_custom_call.1} parent=1 // pred_check_branch
      %130 = sbr.rel (0) target = $region85
    $region84: #{tpu_custom_call.1} parent=1 // pred_region
      %131 = dma.done [#allocation10], 2048
    $region85: #{tpu_custom_call.1} parent=1 // pred_fallthru
      _
    // Predicated region
    $region86: #{tpu_custom_call.1} parent=1 // pred_check
      _
    $region87: #{tpu_custom_call.1} parent=1 // pred_check_branch
      %133 = sbr.rel (0) target = $region89
    $region88: #{tpu_custom_call.1} parent=1 // pred_region
      %134 = dma.done [#allocation13], 2048
    $region89: #{tpu_custom_call.1} parent=1 // pred_fallthru
      _
    %v135 = vld [vmem:[%s0] sm:$0xff]
    %v136 = vld [vmem:[#allocation4] sm:$0xff]
    %v137 = vld [vmem:[#allocation4 + $0x8] sm:$0xff]
    %v138 = vld [vmem:[#allocation4 + $0x10] sm:$0xff]
    %v139 = vld [vmem:[#allocation4 + $0x18] sm:$0xff]
    %v140 = vld [vmem:[#allocation4 + $0x20] sm:$0xff]
    %v141 = vld [vmem:[#allocation4 + $0x28] sm:$0xff]
    %v142 = vld [vmem:[#allocation4 + $0x30] sm:$0xff]
    %v143 = vld [vmem:[#allocation4 + $0x38] sm:$0xff]
    %v144 = vld [vmem:[#allocation4 + $0x40] sm:$0xff]
    %v145 = vld [vmem:[#allocation4 + $0x48] sm:$0xff]
    %v146 = vld [vmem:[#allocation4 + $0x50] sm:$0xff]
    %v147 = vld [vmem:[#allocation4 + $0x58] sm:$0xff]
    %v148 = vld [vmem:[#allocation4 + $0x60] sm:$0xff]
    %v149 = vld [vmem:[#allocation4 + $0x68] sm:$0xff]
    %v150 = vld [vmem:[#allocation4 + $0x70] sm:$0xff]
    %v151 = vld [vmem:[#allocation4 + $0x78] sm:$0xff]
    %v152 = vld [vmem:[#allocation4 + $0x80] sm:$0xff]
    %v153 = vld [vmem:[#allocation4 + $0x88] sm:$0xff]
    %v154 = vld [vmem:[#allocation4 + $0x90] sm:$0xff]
    %v155 = vld [vmem:[#allocation4 + $0x98] sm:$0xff]
    %v156 = vld [vmem:[#allocation4 + $0xa0] sm:$0xff]
    %v157 = vld [vmem:[#allocation4 + $0xa8] sm:$0xff]
    %v158 = vld [vmem:[#allocation4 + $0xb0] sm:$0xff]
    %v159 = vld [vmem:[#allocation4 + $0xb8] sm:$0xff]
    %v160 = vld [vmem:[#allocation4 + $0xc0] sm:$0xff]
    %v161 = vld [vmem:[#allocation4 + $0xc8] sm:$0xff]
    %v162 = vld [vmem:[#allocation4 + $0xd0] sm:$0xff]
    %v163 = vld [vmem:[#allocation4 + $0xd8] sm:$0xff]
    %v164 = vld [vmem:[#allocation4 + $0xe0] sm:$0xff]
    %v165 = vld [vmem:[#allocation4 + $0xe8] sm:$0xff]
    %v166 = vld [vmem:[#allocation4 + $0xf0] sm:$0xff]
    %v167 = vld [vmem:[#allocation4 + $0xf8] sm:$0xff]
    %v168 = vld [vmem:[#allocation6] sm:$0xff]
    %v169 = vld [vmem:[#allocation6 + $0x8] sm:$0xff]
    %v170 = vld [vmem:[#allocation6 + $0x10] sm:$0xff]
    %v171 = vld [vmem:[#allocation6 + $0x18] sm:$0xff]
    %v172 = vld [vmem:[#allocation6 + $0x20] sm:$0xff]
    %v173 = vld [vmem:[#allocation6 + $0x28] sm:$0xff]
    %v174 = vld [vmem:[#allocation6 + $0x30] sm:$0xff]
    %v175 = vld [vmem:[#allocation6 + $0x38] sm:$0xff]
    %v176 = vld [vmem:[#allocation6 + $0x40] sm:$0xff]
    %v177 = vld [vmem:[#allocation6 + $0x48] sm:$0xff]
    %v178 = vld [vmem:[#allocation6 + $0x50] sm:$0xff]
    %v179 = vld [vmem:[#allocation6 + $0x58] sm:$0xff]
    %v180 = vld [vmem:[#allocation6 + $0x60] sm:$0xff]
    %v181 = vld [vmem:[#allocation6 + $0x68] sm:$0xff]
    %v182 = vld [vmem:[#allocation6 + $0x70] sm:$0xff]
    %v183 = vld [vmem:[#allocation6 + $0x78] sm:$0xff]
    %v184 = vld [vmem:[#allocation6 + $0x80] sm:$0xff]
    %v185 = vld [vmem:[#allocation6 + $0x88] sm:$0xff]
    %v186 = vld [vmem:[#allocation6 + $0x90] sm:$0xff]
    %v187 = vld [vmem:[#allocation6 + $0x98] sm:$0xff]
    %v188 = vld [vmem:[#allocation6 + $0xa0] sm:$0xff]
    %v189 = vld [vmem:[#allocation6 + $0xa8] sm:$0xff]
    %v190 = vld [vmem:[#allocation6 + $0xb0] sm:$0xff]
    %v191 = vld [vmem:[#allocation6 + $0xb8] sm:$0xff]
    %v192 = vld [vmem:[#allocation6 + $0xc0] sm:$0xff]
    %v193 = vld [vmem:[#allocation6 + $0xc8] sm:$0xff]
    %v194 = vld [vmem:[#allocation6 + $0xd0] sm:$0xff]
    %v195 = vld [vmem:[#allocation6 + $0xd8] sm:$0xff]
    %v196 = vld [vmem:[#allocation6 + $0xe0] sm:$0xff]
    %v197 = vld [vmem:[#allocation6 + $0xe8] sm:$0xff]
    %v198 = vld [vmem:[#allocation6 + $0xf0] sm:$0xff]
    %v199 = vld [vmem:[#allocation6 + $0xf8] sm:$0xff]
    %v200 = vld [vmem:[#allocation6 + $0x100] sm:$0xff]
    %v201 = vld [vmem:[#allocation6 + $0x108] sm:$0xff]
    %v202 = vld [vmem:[#allocation6 + $0x110] sm:$0xf]
    %v203 = vld [vmem:[#allocation6 + $0x118] sm:$0xf]
    %v204 = vld [vmem:[%s3] sm:$0x3]
    %v206 = vlaneseq
    %v207 = vshrl.u32 %v206, 7
    %v208 = vsub.s32 0, %v207
    %v209 = vrot.slane %v204, %v208
    %v210 = vlaneseq
    %v211 = vshrl.u32 %v210, 7
    %v212 = vsub.s32 1, %v211
    %v213 = vrot.slane %v204, %v212
    %vm216 = vcmask 97280
    %v218 = vsel %vm216, %v137, 0
    %v221 = vsel %vm216, %v139, 0
    %v224 = vsel %vm216, %v141, 0
    %v227 = vsel %vm216, %v143, 0
    %v230 = vsel %vm216, %v145, 0
    %v233 = vsel %vm216, %v147, 0
    %v236 = vsel %vm216, %v149, 0
    %v239 = vsel %vm216, %v151, 0
    %v242 = vsel %vm216, %v153, 0
    %v245 = vsel %vm216, %v155, 0
    %v248 = vsel %vm216, %v157, 0
    %v251 = vsel %vm216, %v159, 0
    %v254 = vsel %vm216, %v161, 0
    %v257 = vsel %vm216, %v163, 0
    %v260 = vsel %vm216, %v165, 0
    %v263 = vsel %vm216, %v167, 0
    %vm265 = vcmask 1043456
    %v267 = vsel %vm265, %v202, 0
    %v270 = vsel %vm265, %v203, 0
    %272 = vmatprep.subr.mxu0 %v199
    %273 = vmatpush1.msra.mxu0 %v198
    %274 = vmatprep.subr.mxu0 %v197
    %275 = vmatpush1.msra.mxu0 %v196
    %276 = vmatprep.subr.mxu0 %v195
    %277 = vmatpush1.msra.mxu0 %v194
    %278 = vmatprep.subr.mxu0 %v193
    %279 = vmatpush1.msra.mxu0 %v192
    %280 = vmatprep.subr.mxu0 %v191
    %281 = vmatpush1.msra.mxu0 %v190
    %282 = vmatprep.subr.mxu0 %v189
    %283 = vmatpush1.msra.mxu0 %v188
    %284 = vmatprep.subr.mxu0 %v187
    %285 = vmatpush1.msra.mxu0 %v186
    %286 = vmatprep.subr.mxu0 %v185
    %287 = vmatpush1.msra.mxu0 %v184
    %288 = vmatprep.subr.mxu0 %v183
    %289 = vmatpush1.msra.mxu0 %v182
    %290 = vmatprep.subr.mxu0 %v181
    %291 = vmatpush1.msra.mxu0 %v180
    %292 = vmatprep.subr.mxu0 %v179
    %293 = vmatpush1.msra.mxu0 %v178
    %294 = vmatprep.subr.mxu0 %v177
    %295 = vmatpush1.msra.mxu0 %v176
    %296 = vmatprep.subr.mxu0 %v175
    %297 = vmatpush1.msra.mxu0 %v174
    %298 = vmatprep.subr.mxu0 %v173
    %299 = vmatpush1.msra.mxu0 %v172
    %300 = vmatprep.subr.mxu0 %v171
    %301 = vmatpush1.msra.mxu0 %v170
    %302 = vmatprep.subr.mxu0 %v169
    %303 = vmatpush1.msra.mxu0 %v168
    %304 = vmatprep.subr.mxu0 0.0
    %305 = vmatpush2.msra.mxu0 0.0
    %306 = vmatprep.subr.mxu0 0.0
    %307 = vmatpush2.msra.mxu0 0.0
    %308 = vmatprep.subr.mxu0 0.0
    %309 = vmatpush2.msra.mxu0 0.0
    %310 = vmatprep.subr.mxu0 0.0
    %311 = vmatpush2.msra.mxu0 0.0
    %312 = vmatprep.subr.mxu0 0.0
    %313 = vmatpush2.msra.mxu0 0.0
    %314 = vmatprep.subr.mxu0 0.0
    %315 = vmatpush2.msra.mxu0 0.0
    %316 = vmatprep.subr.mxu0 0.0
    %317 = vmatpush2.msra.mxu0 0.0
    %318 = vmatprep.subr.mxu0 0.0
    %319 = vmatpush2.msra.mxu0 0.0
    %320 = vmatprep.subr.mxu0 0.0
    %321 = vmatpush2.msra.mxu0 0.0
    %322 = vmatprep.subr.mxu0 0.0
    %323 = vmatpush2.msra.mxu0 0.0
    %324 = vmatprep.subr.mxu0 0.0
    %325 = vmatpush2.msra.mxu0 0.0
    %326 = vmatprep.subr.mxu0 0.0
    %327 = vmatpush2.msra.mxu0 0.0
    %328 = vmatprep.subr.mxu0 0.0
    %329 = vmatpush2.msra.mxu0 0.0
    %330 = vmatprep.subr.mxu0 0.0
    %331 = vmatpush2.msra.mxu0 0.0
    %332 = vmatprep.subr.mxu0 %v270
    %333 = vmatpush2.msra.mxu0 %v267
    %334 = vmatprep.subr.mxu0 %v201
    %335 = vmatpush2.msra.mxu0 %v200
    %336 = vmatprep.mubr.f32.mxu0 %v218
    %337 = vmatmul.mubr.f32.gmra.mxu0 %v136
    %v338 = vpop.f32.mrf.mxu0
    %v339 = vadd.f32 %v209, %v338
    %v340 = vpop.f32.mrf.mxu0
    %v341 = vadd.f32 %v213, %v340
    %342 = vmatprep.mubr.f32.mxu0 %v221
    %343 = vmatmul.mubr.f32.gmra.mxu0 %v138
    %v344 = vpop.f32.mrf.mxu0
    %v345 = vadd.f32 %v209, %v344
    %v346 = vpop.f32.mrf.mxu0
    %v347 = vadd.f32 %v213, %v346
    %348 = vmatprep.mubr.f32.mxu0 %v224
    %349 = vmatmul.mubr.f32.gmra.mxu0 %v140
    %v350 = vpop.f32.mrf.mxu0
    %v351 = vadd.f32 %v209, %v350
    %v352 = vpop.f32.mrf.mxu0
    %v353 = vadd.f32 %v213, %v352
    %354 = vmatprep.mubr.f32.mxu0 %v227
    %355 = vmatmul.mubr.f32.gmra.mxu0 %v142
    %v356 = vpop.f32.mrf.mxu0
    %v357 = vadd.f32 %v209, %v356
    %v358 = vpop.f32.mrf.mxu0
    %v359 = vadd.f32 %v213, %v358
    %360 = vmatprep.mubr.f32.mxu0 %v230
    %361 = vmatmul.mubr.f32.gmra.mxu0 %v144
    %v362 = vpop.f32.mrf.mxu0
    %v363 = vadd.f32 %v209, %v362
    %v364 = vpop.f32.mrf.mxu0
    %v365 = vadd.f32 %v213, %v364
    %366 = vmatprep.mubr.f32.mxu0 %v233
    %367 = vmatmul.mubr.f32.gmra.mxu0 %v146
    %v368 = vpop.f32.mrf.mxu0
    %v369 = vadd.f32 %v209, %v368
    %v370 = vpop.f32.mrf.mxu0
    %v371 = vadd.f32 %v213, %v370
    %372 = vmatprep.mubr.f32.mxu0 %v236
    %373 = vmatmul.mubr.f32.gmra.mxu0 %v148
    %v374 = vpop.f32.mrf.mxu0
    %v375 = vadd.f32 %v209, %v374
    %v376 = vpop.f32.mrf.mxu0
    %v377 = vadd.f32 %v213, %v376
    %378 = vmatprep.mubr.f32.mxu0 %v239
    %379 = vmatmul.mubr.f32.gmra.mxu0 %v150
    %v380 = vpop.f32.mrf.mxu0
    %v381 = vadd.f32 %v209, %v380
    %v382 = vpop.f32.mrf.mxu0
    %v383 = vadd.f32 %v213, %v382
    %384 = vmatprep.mubr.f32.mxu0 %v242
    %385 = vmatmul.mubr.f32.gmra.mxu0 %v152
    %v386 = vpop.f32.mrf.mxu0
    %v387 = vadd.f32 %v209, %v386
    %v388 = vpop.f32.mrf.mxu0
    %v389 = vadd.f32 %v213, %v388
    %390 = vmatprep.mubr.f32.mxu0 %v245
    %391 = vmatmul.mubr.f32.gmra.mxu0 %v154
    %v392 = vpop.f32.mrf.mxu0
    %v393 = vadd.f32 %v209, %v392
    %v394 = vpop.f32.mrf.mxu0
    %v395 = vadd.f32 %v213, %v394
    %396 = vmatprep.mubr.f32.mxu0 %v248
    %397 = vmatmul.mubr.f32.gmra.mxu0 %v156
    %v398 = vpop.f32.mrf.mxu0
    %v399 = vadd.f32 %v209, %v398
    %v400 = vpop.f32.mrf.mxu0
    %v401 = vadd.f32 %v213, %v400
    %402 = vmatprep.mubr.f32.mxu0 %v251
    %403 = vmatmul.mubr.f32.gmra.mxu0 %v158
    %v404 = vpop.f32.mrf.mxu0
    %v405 = vadd.f32 %v209, %v404
    %v406 = vpop.f32.mrf.mxu0
    %v407 = vadd.f32 %v213, %v406
    %408 = vmatprep.mubr.f32.mxu0 %v254
    %409 = vmatmul.mubr.f32.gmra.mxu0 %v160
    %v410 = vpop.f32.mrf.mxu0
    %v411 = vadd.f32 %v209, %v410
    %v412 = vpop.f32.mrf.mxu0
    %v413 = vadd.f32 %v213, %v412
    %414 = vmatprep.mubr.f32.mxu0 %v257
    %415 = vmatmul.mubr.f32.gmra.mxu0 %v162
    %v416 = vpop.f32.mrf.mxu0
    %v417 = vadd.f32 %v209, %v416
    %v418 = vpop.f32.mrf.mxu0
    %v419 = vadd.f32 %v213, %v418
    %420 = vmatprep.mubr.f32.mxu0 %v260
    %421 = vmatmul.mubr.f32.gmra.mxu0 %v164
    %v422 = vpop.f32.mrf.mxu0
    %v423 = vadd.f32 %v209, %v422
    %v424 = vpop.f32.mrf.mxu0
    %v425 = vadd.f32 %v213, %v424
    %426 = vmatprep.mubr.f32.mxu0 %v263
    %427 = vmatmul.mubr.f32.gmra.mxu0 %v166
    %v428 = vpop.f32.mrf.mxu0
    %v429 = vadd.f32 %v209, %v428
    %v430 = vpop.f32.mrf.mxu0
    %v431 = vadd.f32 %v213, %v430
    %432 = vdwg.mxu0
    %v433 = vmax.f32 %v339, 0.0
    %v434 = vmax.f32 %v341, 0.0
    %v435 = vmax.f32 %v345, 0.0
    %v436 = vmax.f32 %v347, 0.0
    %v437 = vmax.f32 %v351, 0.0
    %v438 = vmax.f32 %v353, 0.0
    %v439 = vmax.f32 %v357, 0.0
    %v440 = vmax.f32 %v359, 0.0
    %v441 = vmax.f32 %v363, 0.0
    %v442 = vmax.f32 %v365, 0.0
    %v443 = vmax.f32 %v369, 0.0
    %v444 = vmax.f32 %v371, 0.0
    %v445 = vmax.f32 %v375, 0.0
    %v446 = vmax.f32 %v377, 0.0
    %v447 = vmax.f32 %v381, 0.0
    %v448 = vmax.f32 %v383, 0.0
    %v449 = vmax.f32 %v387, 0.0
    %v450 = vmax.f32 %v389, 0.0
    %v451 = vmax.f32 %v393, 0.0
    %v452 = vmax.f32 %v395, 0.0
    %v453 = vmax.f32 %v399, 0.0
    %v454 = vmax.f32 %v401, 0.0
    %v455 = vmax.f32 %v405, 0.0
    %v456 = vmax.f32 %v407, 0.0
    %v457 = vmax.f32 %v411, 0.0
    %v458 = vmax.f32 %v413, 0.0
    %v459 = vmax.f32 %v417, 0.0
    %v460 = vmax.f32 %v419, 0.0
    %v461 = vmax.f32 %v423, 0.0
    %v462 = vmax.f32 %v425, 0.0
    %v463 = vmax.f32 %v429, 0.0
    %v464 = vmax.f32 %v431, 0.0
    %v465 = vld [vmem:[#allocation8] sm:$0xff]
    %v466 = vld [vmem:[#allocation8 + $0x8] sm:$0xff]
    %v467 = vld [vmem:[#allocation8 + $0x10] sm:$0xff]
    %v468 = vld [vmem:[#allocation8 + $0x18] sm:$0xff]
    %v469 = vld [vmem:[#allocation8 + $0x20] sm:$0xff]
    %v470 = vld [vmem:[#allocation8 + $0x28] sm:$0xff]
    %v471 = vld [vmem:[#allocation8 + $0x30] sm:$0xff]
    %v472 = vld [vmem:[#allocation8 + $0x38] sm:$0xff]
    %v473 = vld [vmem:[#allocation8 + $0x40] sm:$0xff]
    %v474 = vld [vmem:[#allocation8 + $0x48] sm:$0xff]
    %v475 = vld [vmem:[#allocation8 + $0x50] sm:$0xff]
    %v476 = vld [vmem:[#allocation8 + $0x58] sm:$0xff]
    %v477 = vld [vmem:[#allocation8 + $0x60] sm:$0xff]
    %v478 = vld [vmem:[#allocation8 + $0x68] sm:$0xff]
    %v479 = vld [vmem:[#allocation8 + $0x70] sm:$0xff]
    %v480 = vld [vmem:[#allocation8 + $0x78] sm:$0xff]
    %v481 = vld [vmem:[#allocation8 + $0x80] sm:$0xff]
    %v482 = vld [vmem:[#allocation8 + $0x88] sm:$0xff]
    %v483 = vld [vmem:[#allocation8 + $0x90] sm:$0xff]
    %v484 = vld [vmem:[#allocation8 + $0x98] sm:$0xff]
    %v485 = vld [vmem:[#allocation8 + $0xa0] sm:$0xff]
    %v486 = vld [vmem:[#allocation8 + $0xa8] sm:$0xff]
    %v487 = vld [vmem:[#allocation8 + $0xb0] sm:$0xff]
    %v488 = vld [vmem:[#allocation8 + $0xb8] sm:$0xff]
    %v489 = vld [vmem:[#allocation8 + $0xc0] sm:$0xff]
    %v490 = vld [vmem:[#allocation8 + $0xc8] sm:$0xff]
    %v491 = vld [vmem:[#allocation8 + $0xd0] sm:$0xff]
    %v492 = vld [vmem:[#allocation8 + $0xd8] sm:$0xff]
    %v493 = vld [vmem:[#allocation8 + $0xe0] sm:$0xff]
    %v494 = vld [vmem:[#allocation8 + $0xe8] sm:$0xff]
    %v495 = vld [vmem:[#allocation8 + $0xf0] sm:$0xff]
    %v496 = vld [vmem:[#allocation8 + $0xf8] sm:$0xff]
    %v497 = vld [vmem:[#allocation8 + $0x100] sm:$0xff]
    %v498 = vld [vmem:[#allocation8 + $0x108] sm:$0xff]
    %v499 = vld [vmem:[#allocation8 + $0x110] sm:$0xff]
    %v500 = vld [vmem:[#allocation8 + $0x118] sm:$0xff]
    %v501 = vld [vmem:[#allocation8 + $0x120] sm:$0x3f]
    %v502 = vld [vmem:[#allocation8 + $0x128] sm:$0x3f]
    %v503 = vld [vmem:[%s6] sm:$0x3]
    %v505 = vlaneseq
    %v506 = vshrl.u32 %v505, 7
    %v507 = vsub.s32 0, %v506
    %v508 = vrot.slane %v503, %v507
    %v509 = vlaneseq
    %v510 = vshrl.u32 %v509, 7
    %v511 = vsub.s32 1, %v510
    %v512 = vrot.slane %v503, %v511
    %vm515 = vcmask 179200
    %v517 = vsel %vm515, %v434, 0
    %v520 = vsel %vm515, %v436, 0
    %v523 = vsel %vm515, %v438, 0
    %v526 = vsel %vm515, %v440, 0
    %v529 = vsel %vm515, %v442, 0
    %v532 = vsel %vm515, %v444, 0
    %v535 = vsel %vm515, %v446, 0
    %v538 = vsel %vm515, %v448, 0
    %v541 = vsel %vm515, %v450, 0
    %v544 = vsel %vm515, %v452, 0
    %v547 = vsel %vm515, %v454, 0
    %v550 = vsel %vm515, %v456, 0
    %v553 = vsel %vm515, %v458, 0
    %v556 = vsel %vm515, %v460, 0
    %v559 = vsel %vm515, %v462, 0
    %v562 = vsel %vm515, %v464, 0
    %vm564 = vcmask 1045504
    %v566 = vsel %vm564, %v501, 0
    %v569 = vsel %vm564, %v502, 0
    %571 = vmatprep.subr.mxu0 %v496
    %572 = vmatpush1.msra.mxu0 %v495
    %573 = vmatprep.subr.mxu0 %v494
    %574 = vmatpush1.msra.mxu0 %v493
    %575 = vmatprep.subr.mxu0 %v492
    %576 = vmatpush1.msra.mxu0 %v491
    %577 = vmatprep.subr.mxu0 %v490
    %578 = vmatpush1.msra.mxu0 %v489
    %579 = vmatprep.subr.mxu0 %v488
    %580 = vmatpush1.msra.mxu0 %v487
    %581 = vmatprep.subr.mxu0 %v486
    %582 = vmatpush1.msra.mxu0 %v485
    %583 = vmatprep.subr.mxu0 %v484
    %584 = vmatpush1.msra.mxu0 %v483
    %585 = vmatprep.subr.mxu0 %v482
    %586 = vmatpush1.msra.mxu0 %v481
    %587 = vmatprep.subr.mxu0 %v480
    %588 = vmatpush1.msra.mxu0 %v479
    %589 = vmatprep.subr.mxu0 %v478
    %590 = vmatpush1.msra.mxu0 %v477
    %591 = vmatprep.subr.mxu0 %v476
    %592 = vmatpush1.msra.mxu0 %v475
    %593 = vmatprep.subr.mxu0 %v474
    %594 = vmatpush1.msra.mxu0 %v473
    %595 = vmatprep.subr.mxu0 %v472
    %596 = vmatpush1.msra.mxu0 %v471
    %597 = vmatprep.subr.mxu0 %v470
    %598 = vmatpush1.msra.mxu0 %v469
    %599 = vmatprep.subr.mxu0 %v468
    %600 = vmatpush1.msra.mxu0 %v467
    %601 = vmatprep.subr.mxu0 %v466
    %602 = vmatpush1.msra.mxu0 %v465
    %603 = vmatprep.subr.mxu0 0.0
    %604 = vmatpush2.msra.mxu0 0.0
    %605 = vmatprep.subr.mxu0 0.0
    %606 = vmatpush2.msra.mxu0 0.0
    %607 = vmatprep.subr.mxu0 0.0
    %608 = vmatpush2.msra.mxu0 0.0
    %609 = vmatprep.subr.mxu0 0.0
    %610 = vmatpush2.msra.mxu0 0.0
    %611 = vmatprep.subr.mxu0 0.0
    %612 = vmatpush2.msra.mxu0 0.0
    %613 = vmatprep.subr.mxu0 0.0
    %614 = vmatpush2.msra.mxu0 0.0
    %615 = vmatprep.subr.mxu0 0.0
    %616 = vmatpush2.msra.mxu0 0.0
    %617 = vmatprep.subr.mxu0 0.0
    %618 = vmatpush2.msra.mxu0 0.0
    %619 = vmatprep.subr.mxu0 0.0
    %620 = vmatpush2.msra.mxu0 0.0
    %621 = vmatprep.subr.mxu0 0.0
    %622 = vmatpush2.msra.mxu0 0.0
    %623 = vmatprep.subr.mxu0 0.0
    %624 = vmatpush2.msra.mxu0 0.0
    %625 = vmatprep.subr.mxu0 0.0
    %626 = vmatpush2.msra.mxu0 0.0
    %627 = vmatprep.subr.mxu0 0.0
    %628 = vmatpush2.msra.mxu0 0.0
    %629 = vmatprep.subr.mxu0 %v569
    %630 = vmatpush2.msra.mxu0 %v566
    %631 = vmatprep.subr.mxu0 %v500
    %632 = vmatpush2.msra.mxu0 %v499
    %633 = vmatprep.subr.mxu0 %v498
    %634 = vmatpush2.msra.mxu0 %v497
    %635 = vmatprep.mubr.f32.mxu0 %v517
    %636 = vmatmul.mubr.f32.gmra.mxu0 %v433
    %v637 = vpop.f32.mrf.mxu0
    %v638 = vadd.f32 %v508, %v637
    %v639 = vpop.f32.mrf.mxu0
    %v640 = vadd.f32 %v512, %v639
    %641 = vmatprep.mubr.f32.mxu0 %v520
    %642 = vmatmul.mubr.f32.gmra.mxu0 %v435
    %v643 = vpop.f32.mrf.mxu0
    %v644 = vadd.f32 %v508, %v643
    %v645 = vpop.f32.mrf.mxu0
    %v646 = vadd.f32 %v512, %v645
    %647 = vmatprep.mubr.f32.mxu0 %v523
    %648 = vmatmul.mubr.f32.gmra.mxu0 %v437
    %v649 = vpop.f32.mrf.mxu0
    %v650 = vadd.f32 %v508, %v649
    %v651 = vpop.f32.mrf.mxu0
    %v652 = vadd.f32 %v512, %v651
    %653 = vmatprep.mubr.f32.mxu0 %v526
    %654 = vmatmul.mubr.f32.gmra.mxu0 %v439
    %v655 = vpop.f32.mrf.mxu0
    %v656 = vadd.f32 %v508, %v655
    %v657 = vpop.f32.mrf.mxu0
    %v658 = vadd.f32 %v512, %v657
    %659 = vmatprep.mubr.f32.mxu0 %v529
    %660 = vmatmul.mubr.f32.gmra.mxu0 %v441
    %v661 = vpop.f32.mrf.mxu0
    %v662 = vadd.f32 %v508, %v661
    %v663 = vpop.f32.mrf.mxu0
    %v664 = vadd.f32 %v512, %v663
    %665 = vmatprep.mubr.f32.mxu0 %v532
    %666 = vmatmul.mubr.f32.gmra.mxu0 %v443
    %v667 = vpop.f32.mrf.mxu0
    %v668 = vadd.f32 %v508, %v667
    %v669 = vpop.f32.mrf.mxu0
    %v670 = vadd.f32 %v512, %v669
    %671 = vmatprep.mubr.f32.mxu0 %v535
    %672 = vmatmul.mubr.f32.gmra.mxu0 %v445
    %v673 = vpop.f32.mrf.mxu0
    %v674 = vadd.f32 %v508, %v673
    %v675 = vpop.f32.mrf.mxu0
    %v676 = vadd.f32 %v512, %v675
    %677 = vmatprep.mubr.f32.mxu0 %v538
    %678 = vmatmul.mubr.f32.gmra.mxu0 %v447
    %v679 = vpop.f32.mrf.mxu0
    %v680 = vadd.f32 %v508, %v679
    %v681 = vpop.f32.mrf.mxu0
    %v682 = vadd.f32 %v512, %v681
    %683 = vmatprep.mubr.f32.mxu0 %v541
    %684 = vmatmul.mubr.f32.gmra.mxu0 %v449
    %v685 = vpop.f32.mrf.mxu0
    %v686 = vadd.f32 %v508, %v685
    %v687 = vpop.f32.mrf.mxu0
    %v688 = vadd.f32 %v512, %v687
    %689 = vmatprep.mubr.f32.mxu0 %v544
    %690 = vmatmul.mubr.f32.gmra.mxu0 %v451
    %v691 = vpop.f32.mrf.mxu0
    %v692 = vadd.f32 %v508, %v691
    %v693 = vpop.f32.mrf.mxu0
    %v694 = vadd.f32 %v512, %v693
    %695 = vmatprep.mubr.f32.mxu0 %v547
    %696 = vmatmul.mubr.f32.gmra.mxu0 %v453
    %v697 = vpop.f32.mrf.mxu0
    %v698 = vadd.f32 %v508, %v697
    %v699 = vpop.f32.mrf.mxu0
    %v700 = vadd.f32 %v512, %v699
    %701 = vmatprep.mubr.f32.mxu0 %v550
    %702 = vmatmul.mubr.f32.gmra.mxu0 %v455
    %v703 = vpop.f32.mrf.mxu0
    %v704 = vadd.f32 %v508, %v703
    %v705 = vpop.f32.mrf.mxu0
    %v706 = vadd.f32 %v512, %v705
    %707 = vmatprep.mubr.f32.mxu0 %v553
    %708 = vmatmul.mubr.f32.gmra.mxu0 %v457
    %v709 = vpop.f32.mrf.mxu0
    %v710 = vadd.f32 %v508, %v709
    %v711 = vpop.f32.mrf.mxu0
    %v712 = vadd.f32 %v512, %v711
    %713 = vmatprep.mubr.f32.mxu0 %v556
    %714 = vmatmul.mubr.f32.gmra.mxu0 %v459
    %v715 = vpop.f32.mrf.mxu0
    %v716 = vadd.f32 %v508, %v715
    %v717 = vpop.f32.mrf.mxu0
    %v718 = vadd.f32 %v512, %v717
    %719 = vmatprep.mubr.f32.mxu0 %v559
    %720 = vmatmul.mubr.f32.gmra.mxu0 %v461
    %v721 = vpop.f32.mrf.mxu0
    %v722 = vadd.f32 %v508, %v721
    %v723 = vpop.f32.mrf.mxu0
    %v724 = vadd.f32 %v512, %v723
    %725 = vmatprep.mubr.f32.mxu0 %v562
    %726 = vmatmul.mubr.f32.gmra.mxu0 %v463
    %v727 = vpop.f32.mrf.mxu0
    %v728 = vadd.f32 %v508, %v727
    %v729 = vpop.f32.mrf.mxu0
    %v730 = vadd.f32 %v512, %v729
    %731 = vdwg.mxu0
    %732 = vst [vmem:[#allocation2] sm:$0xff] %v638
    %733 = vst [vmem:[#allocation2 + $0x8] sm:$0xff] %v640
    %734 = vst [vmem:[#allocation2 + $0x10] sm:$0xff] %v644
    %735 = vst [vmem:[#allocation2 + $0x18] sm:$0xff] %v646
    %736 = vst [vmem:[#allocation2 + $0x20] sm:$0xff] %v650
    %737 = vst [vmem:[#allocation2 + $0x28] sm:$0xff] %v652
    %738 = vst [vmem:[#allocation2 + $0x30] sm:$0xff] %v656
    %739 = vst [vmem:[#allocation2 + $0x38] sm:$0xff] %v658
    %740 = vst [vmem:[#allocation2 + $0x40] sm:$0xff] %v662
    %741 = vst [vmem:[#allocation2 + $0x48] sm:$0xff] %v664
    %742 = vst [vmem:[#allocation2 + $0x50] sm:$0xff] %v668
    %743 = vst [vmem:[#allocation2 + $0x58] sm:$0xff] %v670
    %744 = vst [vmem:[#allocation2 + $0x60] sm:$0xff] %v674
    %745 = vst [vmem:[#allocation2 + $0x68] sm:$0xff] %v676
    %746 = vst [vmem:[#allocation2 + $0x70] sm:$0xff] %v680
    %747 = vst [vmem:[#allocation2 + $0x78] sm:$0xff] %v682
    %748 = vst [vmem:[#allocation2 + $0x80] sm:$0xff] %v686
    %749 = vst [vmem:[#allocation2 + $0x88] sm:$0xff] %v688
    %750 = vst [vmem:[#allocation2 + $0x90] sm:$0xff] %v692
    %751 = vst [vmem:[#allocation2 + $0x98] sm:$0xff] %v694
    %752 = vst [vmem:[#allocation2 + $0xa0] sm:$0xff] %v698
    %753 = vst [vmem:[#allocation2 + $0xa8] sm:$0xff] %v700
    %754 = vst [vmem:[#allocation2 + $0xb0] sm:$0xff] %v704
    %755 = vst [vmem:[#allocation2 + $0xb8] sm:$0xff] %v706
    %756 = vst [vmem:[#allocation2 + $0xc0] sm:$0xff] %v710
    %757 = vst [vmem:[#allocation2 + $0xc8] sm:$0xff] %v712
    %758 = vst [vmem:[#allocation2 + $0xd0] sm:$0xff] %v716
    %759 = vst [vmem:[#allocation2 + $0xd8] sm:$0xff] %v718
    %760 = vst [vmem:[#allocation2 + $0xe0] sm:$0xff] %v722
    %761 = vst [vmem:[#allocation2 + $0xe8] sm:$0xff] %v724
    %762 = vst [vmem:[#allocation2 + $0xf0] sm:$0xff] %v728
    %763 = vst [vmem:[#allocation2 + $0xf8] sm:$0xff] %v730
    %v764 = vld [vmem:[#allocation9] sm:$0xff]
    %v765 = vld [vmem:[#allocation9 + $0x8] sm:$0xff]
    %v766 = vld [vmem:[#allocation9 + $0x10] sm:$0xff]
    %v767 = vld [vmem:[#allocation9 + $0x18] sm:$0xff]
    %v768 = vld [vmem:[#allocation9 + $0x20] sm:$0xff]
    %v769 = vld [vmem:[#allocation9 + $0x28] sm:$0xff]
    %v770 = vld [vmem:[#allocation9 + $0x30] sm:$0xff]
    %v771 = vld [vmem:[#allocation9 + $0x38] sm:$0xff]
    %v772 = vld [vmem:[#allocation9 + $0x40] sm:$0xff]
    %v773 = vld [vmem:[#allocation9 + $0x48] sm:$0xff]
    %v774 = vld [vmem:[#allocation9 + $0x50] sm:$0xff]
    %v775 = vld [vmem:[#allocation9 + $0x58] sm:$0xff]
    %v776 = vld [vmem:[#allocation9 + $0x60] sm:$0xff]
    %v777 = vld [vmem:[#allocation9 + $0x68] sm:$0xff]
    %v778 = vld [vmem:[#allocation9 + $0x70] sm:$0xff]
    %v779 = vld [vmem:[#allocation9 + $0x78] sm:$0xff]
    %v780 = vld [vmem:[%s7] sm:$0x3]
    %v782 = vlaneseq
    %v783 = vshrl.u32 %v782, 7
    %v784 = vsub.s32 0, %v783
    %v785 = vrot.slane %v780, %v784
    %v786 = vlaneseq
    %v787 = vshrl.u32 %v786, 7
    %v788 = vsub.s32 1, %v787
    %v789 = vrot.slane %v780, %v788
    %vm792 = vcmask 523264
    %v794 = vsel %vm792, 0.0, 0
    %796 = vmatprep.subr.mxu0 0.0
    %797 = vmatpush1.msra.mxu0 0.0
    %798 = vmatprep.subr.mxu0 0.0
    %799 = vmatpush1.msra.mxu0 0.0
    %800 = vmatprep.subr.mxu0 0.0
    %801 = vmatpush1.msra.mxu0 0.0
    %802 = vmatprep.subr.mxu0 0.0
    %803 = vmatpush1.msra.mxu0 0.0
    %804 = vmatprep.subr.mxu0 0.0
    %805 = vmatpush1.msra.mxu0 0.0
    %806 = vmatprep.subr.mxu0 0.0
    %807 = vmatpush1.msra.mxu0 0.0
    %808 = vmatprep.subr.mxu0 0.0
    %809 = vmatpush1.msra.mxu0 0.0
    %810 = vmatprep.subr.mxu0 0.0
    %811 = vmatpush1.msra.mxu0 0.0
    %812 = vmatprep.subr.mxu0 %v779
    %813 = vmatpush1.msra.mxu0 %v778
    %814 = vmatprep.subr.mxu0 %v777
    %815 = vmatpush1.msra.mxu0 %v776
    %816 = vmatprep.subr.mxu0 %v775
    %817 = vmatpush1.msra.mxu0 %v774
    %818 = vmatprep.subr.mxu0 %v773
    %819 = vmatpush1.msra.mxu0 %v772
    %820 = vmatprep.subr.mxu0 %v771
    %821 = vmatpush1.msra.mxu0 %v770
    %822 = vmatprep.subr.mxu0 %v769
    %823 = vmatpush1.msra.mxu0 %v768
    %824 = vmatprep.subr.mxu0 %v767
    %825 = vmatpush1.msra.mxu0 %v766
    %826 = vmatprep.subr.mxu0 %v765
    %827 = vmatpush1.msra.mxu0 %v764
    %828 = vmatprep.subr.mxu0 0.0
    %829 = vmatpush2.msra.mxu0 0.0
    %830 = vmatprep.subr.mxu0 0.0
    %831 = vmatpush2.msra.mxu0 0.0
    %832 = vmatprep.subr.mxu0 0.0
    %833 = vmatpush2.msra.mxu0 0.0
    %834 = vmatprep.subr.mxu0 0.0
    %835 = vmatpush2.msra.mxu0 0.0
    %836 = vmatprep.subr.mxu0 0.0
    %837 = vmatpush2.msra.mxu0 0.0
    %838 = vmatprep.subr.mxu0 0.0
    %839 = vmatpush2.msra.mxu0 0.0
    %840 = vmatprep.subr.mxu0 0.0
    %841 = vmatpush2.msra.mxu0 0.0
    %842 = vmatprep.subr.mxu0 0.0
    %843 = vmatpush2.msra.mxu0 0.0
    %844 = vmatprep.subr.mxu0 0.0
    %845 = vmatpush2.msra.mxu0 0.0
    %846 = vmatprep.subr.mxu0 0.0
    %847 = vmatpush2.msra.mxu0 0.0
    %848 = vmatprep.subr.mxu0 0.0
    %849 = vmatpush2.msra.mxu0 0.0
    %850 = vmatprep.subr.mxu0 0.0
    %851 = vmatpush2.msra.mxu0 0.0
    %852 = vmatprep.subr.mxu0 0.0
    %853 = vmatpush2.msra.mxu0 0.0
    %854 = vmatprep.subr.mxu0 0.0
    %855 = vmatpush2.msra.mxu0 0.0
    %856 = vmatprep.subr.mxu0 0.0
    %857 = vmatpush2.msra.mxu0 0.0
    %858 = vmatprep.subr.mxu0 0.0
    %859 = vmatpush2.msra.mxu0 0.0
    %860 = vmatprep.mubr.f32.mxu0 0.0
    %861 = vmatmul.mubr.f32.gmra.mxu0 %v794
    %v862 = vpop.f32.mrf.mxu0
    %v863 = vadd.f32 %v785, %v862
    %v864 = vpop.f32.mrf.mxu0
    %v865 = vadd.f32 %v789, %v864
    %866 = vdwg.mxu0
    %v867 = vld [vmem:[#allocation2] sm:$0xff]
    %v868 = vld [vmem:[#allocation2 + $0xf8] sm:$0xff]
    %v869 = vadd.f32 %v867, %v863
    %v870 = vxor.u32 %v869, 2147483648
    %v871 = vmul.f32 %v870, 1.442695
    %v872 = vpow.pop %v871
    %v873 = vadd.f32 %v872, 1.0
    %v874 = vrcp.pop %v873
    %v875 = vmul.f32 1.0, %v874
    %877 = vrot.lane.b32.xlu0 %v863, 64
    %v878 = vpop.permute.xlu0 %877
    %v880 = vmul.f32 %v875, %v878
    %882 = vrot.lane.b32.xlu0 %v880, 64
    %v883 = vpop.permute.xlu0 %882
    %v885 = vadd.f32 %v867, %v883
    %v886 = vtanh.pop %v885
    %v887 = vsub.f32 1.0, %v875
    %889 = vrot.lane.b32.xlu0 %v886, 96
    %v890 = vpop.permute.xlu0 %889
    %v892 = vmul.f32 %v887, %v890
    %v893 = vmul.f32 %v875, 0.0
    %v894 = vadd.f32 %v892, %v893
    %v895 = vadd.f32 %v868, %v865
    %v896 = vxor.u32 %v895, 2147483648
    %v897 = vmul.f32 %v896, 1.442695
    %v898 = vpow.pop %v897
    %v899 = vadd.f32 %v898, 1.0
    %v900 = vrcp.pop %v899
    %v901 = vmul.f32 1.0, %v900
    %903 = vrot.lane.b32.xlu0 %v865, 64
    %v904 = vpop.permute.xlu0 %903
    %v906 = vmul.f32 %v901, %v904
    %908 = vrot.lane.b32.xlu0 %v906, 64
    %v909 = vpop.permute.xlu0 %908
    %v911 = vadd.f32 %v868, %v909
    %v912 = vtanh.pop %v911
    %v913 = vsub.f32 1.0, %v901
    %915 = vrot.lane.b32.xlu0 %v912, 96
    %v916 = vpop.permute.xlu0 %915
    %v918 = vmul.f32 %v913, %v916
    %v919 = vmul.f32 %v901, 0.0
    %v920 = vadd.f32 %v918, %v919
    %vm921 = vcmp.gt.s32.totalorder %v135, 0
    %v922 = vsel %vm921, 1, 0
    %923 = vset.pattern.permute.xlu0 0
    %924 = vperm.xlu0 %923, %v922
    %v925 = vpop.permute.xlu0 %924
    %vm926 = vcmp.eq.s32.totalorder %v925, 1
    %v927 = vsel %vm926, %v894, 0.0
    %vm928 = vcmp.gt.s32.totalorder %v135, 15
    %v929 = vsel %vm928, 1, 0
    %930 = vset.pattern.permute.xlu0 0
    %931 = vperm.xlu0 %930, %v929
    %v932 = vpop.permute.xlu0 %931
    %vm933 = vcmp.eq.s32.totalorder %v932, 1
    %v934 = vsel %vm933, %v920, 0.0
    %936 = vrot.lane.b32.xlu0 %v927, 96
    %v937 = vpop.permute.xlu0 %936
    %vm939 = vcmask 261120
    %940 = vst.msk [vmem:[#allocation3] sm:$0xff] %vm939, %v937
    %vm941 = vcmask 523520
    %942 = vst.msk [vmem:[#allocation3 + $0x78] sm:$0xff] %vm941, %v934
    %v943 = vsel %vm939, %v937, %v934
    %v945 = vsel %vm792, %v943, 0
    %947 = vmatprep.subr.mxu0 0.0
    %948 = vmatpush1.msra.mxu0 0.0
    %949 = vmatprep.subr.mxu0 0.0
    %950 = vmatpush1.msra.mxu0 0.0
    %951 = vmatprep.subr.mxu0 0.0
    %952 = vmatpush1.msra.mxu0 0.0
    %953 = vmatprep.subr.mxu0 0.0
    %954 = vmatpush1.msra.mxu0 0.0
    %955 = vmatprep.subr.mxu0 0.0
    %956 = vmatpush1.msra.mxu0 0.0
    %957 = vmatprep.subr.mxu0 0.0
    %958 = vmatpush1.msra.mxu0 0.0
    %959 = vmatprep.subr.mxu0 0.0
    %960 = vmatpush1.msra.mxu0 0.0
    %961 = vmatprep.subr.mxu0 0.0
    %962 = vmatpush1.msra.mxu0 0.0
    %963 = vmatprep.subr.mxu0 %v779
    %964 = vmatpush1.msra.mxu0 %v778
    %965 = vmatprep.subr.mxu0 %v777
    %966 = vmatpush1.msra.mxu0 %v776
    %967 = vmatprep.subr.mxu0 %v775
    %968 = vmatpush1.msra.mxu0 %v774
    %969 = vmatprep.subr.mxu0 %v773
    %970 = vmatpush1.msra.mxu0 %v772
    %971 = vmatprep.subr.mxu0 %v771
    %972 = vmatpush1.msra.mxu0 %v770
    %973 = vmatprep.subr.mxu0 %v769
    %974 = vmatpush1.msra.mxu0 %v768
    %975 = vmatprep.subr.mxu0 %v767
    %976 = vmatpush1.msra.mxu0 %v766
    %977 = vmatprep.subr.mxu0 %v765
    %978 = vmatpush1.msra.mxu0 %v764
    %979 = vmatprep.subr.mxu0 0.0
    %980 = vmatpush2.msra.mxu0 0.0
    %981 = vmatprep.subr.mxu0 0.0
    %982 = vmatpush2.msra.mxu0 0.0
    %983 = vmatprep.subr.mxu0 0.0
    %984 = vmatpush2.msra.mxu0 0.0
    %985 = vmatprep.subr.mxu0 0.0
    %986 = vmatpush2.msra.mxu0 0.0
    %987 = vmatprep.subr.mxu0 0.0
    %988 = vmatpush2.msra.mxu0 0.0
    %989 = vmatprep.subr.mxu0 0.0
    %990 = vmatpush2.msra.mxu0 0.0
    %991 = vmatprep.subr.mxu0 0.0
    %992 = vmatpush2.msra.mxu0 0.0
    %993 = vmatprep.subr.mxu0 0.0
    %994 = vmatpush2.msra.mxu0 0.0
    %995 = vmatprep.subr.mxu0 0.0
    %996 = vmatpush2.msra.mxu0 0.0
    %997 = vmatprep.subr.mxu0 0.0
    %998 = vmatpush2.msra.mxu0 0.0
    %999 = vmatprep.subr.mxu0 0.0
    %1000 = vmatpush2.msra.mxu0 0.0
    %1001 = vmatprep.subr.mxu0 0.0
    %1002 = vmatpush2.msra.mxu0 0.0
    %1003 = vmatprep.subr.mxu0 0.0
    %1004 = vmatpush2.msra.mxu0 0.0
    %1005 = vmatprep.subr.mxu0 0.0
    %1006 = vmatpush2.msra.mxu0 0.0
    %1007 = vmatprep.subr.mxu0 0.0
    %1008 = vmatpush2.msra.mxu0 0.0
    %1009 = vmatprep.subr.mxu0 0.0
    %1010 = vmatpush2.msra.mxu0 0.0
    %1011 = vmatprep.mubr.f32.mxu0 0.0
    %1012 = vmatmul.mubr.f32.gmra.mxu0 %v945
    %v1013 = vpop.f32.mrf.mxu0
    %v1014 = vadd.f32 %v785, %v1013
    %v1015 = vpop.f32.mrf.mxu0
    %v1016 = vadd.f32 %v789, %v1015
    %1017 = vdwg.mxu0
    %v1018 = vld [vmem:[#allocation2 + $0x10] sm:$0xff]
    %v1019 = vld [vmem:[#allocation2 + $0xe8] sm:$0xff]
    %v1020 = vadd.f32 %v1018, %v1014
    %v1021 = vxor.u32 %v1020, 2147483648
    %v1022 = vmul.f32 %v1021, 1.442695
    %v1023 = vpow.pop %v1022
    %v1024 = vadd.f32 %v1023, 1.0
    %v1025 = vrcp.pop %v1024
    %v1026 = vmul.f32 1.0, %v1025
    %1028 = vrot.lane.b32.xlu0 %v1014, 64
    %v1029 = vpop.permute.xlu0 %1028
    %v1031 = vmul.f32 %v1026, %v1029
    %1033 = vrot.lane.b32.xlu0 %v1031, 64
    %v1034 = vpop.permute.xlu0 %1033
    %v1036 = vadd.f32 %v1018, %v1034
    %v1037 = vtanh.pop %v1036
    %v1038 = vsub.f32 1.0, %v1026
    %1040 = vrot.lane.b32.xlu0 %v1037, 96
    %v1041 = vpop.permute.xlu0 %1040
    %v1043 = vmul.f32 %v1038, %v1041
    %v1044 = vmul.f32 %v1026, %v927
    %v1045 = vadd.f32 %v1043, %v1044
    %v1046 = vadd.f32 %v1019, %v1016
    %v1047 = vxor.u32 %v1046, 2147483648
    %v1048 = vmul.f32 %v1047, 1.442695
    %v1049 = vpow.pop %v1048
    %v1050 = vadd.f32 %v1049, 1.0
    %v1051 = vrcp.pop %v1050
    %v1052 = vmul.f32 1.0, %v1051
    %1054 = vrot.lane.b32.xlu0 %v1016, 64
    %v1055 = vpop.permute.xlu0 %1054
    %v1057 = vmul.f32 %v1052, %v1055
    %1059 = vrot.lane.b32.xlu0 %v1057, 64
    %v1060 = vpop.permute.xlu0 %1059
    %v1062 = vadd.f32 %v1019, %v1060
    %v1063 = vtanh.pop %v1062
    %v1064 = vsub.f32 1.0, %v1052
    %1066 = vrot.lane.b32.xlu0 %v1063, 96
    %v1067 = vpop.permute.xlu0 %1066
    %v1069 = vmul.f32 %v1064, %v1067
    %v1070 = vmul.f32 %v1052, %v934
    %v1071 = vadd.f32 %v1069, %v1070
    %vm1072 = vcmp.gt.s32.totalorder %v135, 1
    %v1073 = vsel %vm1072, 1, 0
    %1074 = vset.pattern.permute.xlu0 0
    %1075 = vperm.xlu0 %1074, %v1073
    %v1076 = vpop.permute.xlu0 %1075
    %vm1077 = vcmp.eq.s32.totalorder %v1076, 1
    %v1078 = vsel %vm1077, %v1045, %v927
    %vm1079 = vcmp.gt.s32.totalorder %v135, 14
    %v1080 = vsel %vm1079, 1, 0
    %1081 = vset.pattern.permute.xlu0 0
    %1082 = vperm.xlu0 %1081, %v1080
    %v1083 = vpop.permute.xlu0 %1082
    %vm1084 = vcmp.eq.s32.totalorder %v1083, 1
    %v1085 = vsel %vm1084, %v1071, %v934
    %1087 = vrot.lane.b32.xlu0 %v1078, 96
    %v1088 = vpop.permute.xlu0 %1087
    %1090 = vst.msk [vmem:[#allocation3 + $0x8] sm:$0xff] %vm939, %v1088
    %1091 = vst.msk [vmem:[#allocation3 + $0x70] sm:$0xff] %vm941, %v1085
    %v1092 = vsel %vm939, %v1088, %v1085
    %v1094 = vsel %vm792, %v1092, 0
    %1096 = vmatprep.subr.mxu0 0.0
    %1097 = vmatpush1.msra.mxu0 0.0
    %1098 = vmatprep.subr.mxu0 0.0
    %1099 = vmatpush1.msra.mxu0 0.0
    %1100 = vmatprep.subr.mxu0 0.0
    %1101 = vmatpush1.msra.mxu0 0.0
    %1102 = vmatprep.subr.mxu0 0.0
    %1103 = vmatpush1.msra.mxu0 0.0
    %1104 = vmatprep.subr.mxu0 0.0
    %1105 = vmatpush1.msra.mxu0 0.0
    %1106 = vmatprep.subr.mxu0 0.0
    %1107 = vmatpush1.msra.mxu0 0.0
    %1108 = vmatprep.subr.mxu0 0.0
    %1109 = vmatpush1.msra.mxu0 0.0
    %1110 = vmatprep.subr.mxu0 0.0
    %1111 = vmatpush1.msra.mxu0 0.0
    %1112 = vmatprep.subr.mxu0 %v779
    %1113 = vmatpush1.msra.mxu0 %v778
    %1114 = vmatprep.subr.mxu0 %v777
    %1115 = vmatpush1.msra.mxu0 %v776
    %1116 = vmatprep.subr.mxu0 %v775
    %1117 = vmatpush1.msra.mxu0 %v774
    %1118 = vmatprep.subr.mxu0 %v773
    %1119 = vmatpush1.msra.mxu0 %v772
    %1120 = vmatprep.subr.mxu0 %v771
    %1121 = vmatpush1.msra.mxu0 %v770
    %1122 = vmatprep.subr.mxu0 %v769
    %1123 = vmatpush1.msra.mxu0 %v768
    %1124 = vmatprep.subr.mxu0 %v767
    %1125 = vmatpush1.msra.mxu0 %v766
    %1126 = vmatprep.subr.mxu0 %v765
    %1127 = vmatpush1.msra.mxu0 %v764
    %1128 = vmatprep.subr.mxu0 0.0
    %1129 = vmatpush2.msra.mxu0 0.0
    %1130 = vmatprep.subr.mxu0 0.0
    %1131 = vmatpush2.msra.mxu0 0.0
    %1132 = vmatprep.subr.mxu0 0.0
    %1133 = vmatpush2.msra.mxu0 0.0
    %1134 = vmatprep.subr.mxu0 0.0
    %1135 = vmatpush2.msra.mxu0 0.0
    %1136 = vmatprep.subr.mxu0 0.0
    %1137 = vmatpush2.msra.mxu0 0.0
    %1138 = vmatprep.subr.mxu0 0.0
    %1139 = vmatpush2.msra.mxu0 0.0
    %1140 = vmatprep.subr.mxu0 0.0
    %1141 = vmatpush2.msra.mxu0 0.0
    %1142 = vmatprep.subr.mxu0 0.0
    %1143 = vmatpush2.msra.mxu0 0.0
    %1144 = vmatprep.subr.mxu0 0.0
    %1145 = vmatpush2.msra.mxu0 0.0
    %1146 = vmatprep.subr.mxu0 0.0
    %1147 = vmatpush2.msra.mxu0 0.0
    %1148 = vmatprep.subr.mxu0 0.0
    %1149 = vmatpush2.msra.mxu0 0.0
    %1150 = vmatprep.subr.mxu0 0.0
    %1151 = vmatpush2.msra.mxu0 0.0
    %1152 = vmatprep.subr.mxu0 0.0
    %1153 = vmatpush2.msra.mxu0 0.0
    %1154 = vmatprep.subr.mxu0 0.0
    %1155 = vmatpush2.msra.mxu0 0.0
    %1156 = vmatprep.subr.mxu0 0.0
    %1157 = vmatpush2.msra.mxu0 0.0
    %1158 = vmatprep.subr.mxu0 0.0
    %1159 = vmatpush2.msra.mxu0 0.0
    %1160 = vmatprep.mubr.f32.mxu0 0.0
    %1161 = vmatmul.mubr.f32.gmra.mxu0 %v1094
    %v1162 = vpop.f32.mrf.mxu0
    %v1163 = vadd.f32 %v785, %v1162
    %v1164 = vpop.f32.mrf.mxu0
    %v1165 = vadd.f32 %v789, %v1164
    %1166 = vdwg.mxu0
    %v1167 = vld [vmem:[#allocation2 + $0x20] sm:$0xff]
    %v1168 = vld [vmem:[#allocation2 + $0xd8] sm:$0xff]
    %v1169 = vadd.f32 %v1167, %v1163
    %v1170 = vxor.u32 %v1169, 2147483648
    %v1171 = vmul.f32 %v1170, 1.442695
    %v1172 = vpow.pop %v1171
    %v1173 = vadd.f32 %v1172, 1.0
    %v1174 = vrcp.pop %v1173
    %v1175 = vmul.f32 1.0, %v1174
    %1177 = vrot.lane.b32.xlu0 %v1163, 64
    %v1178 = vpop.permute.xlu0 %1177
    %v1180 = vmul.f32 %v1175, %v1178
    %1182 = vrot.lane.b32.xlu0 %v1180, 64
    %v1183 = vpop.permute.xlu0 %1182
    %v1185 = vadd.f32 %v1167, %v1183
    %v1186 = vtanh.pop %v1185
    %v1187 = vsub.f32 1.0, %v1175
    %1189 = vrot.lane.b32.xlu0 %v1186, 96
    %v1190 = vpop.permute.xlu0 %1189
    %v1192 = vmul.f32 %v1187, %v1190
    %v1193 = vmul.f32 %v1175, %v1078
    %v1194 = vadd.f32 %v1192, %v1193
    %v1195 = vadd.f32 %v1168, %v1165
    %v1196 = vxor.u32 %v1195, 2147483648
    %v1197 = vmul.f32 %v1196, 1.442695
    %v1198 = vpow.pop %v1197
    %v1199 = vadd.f32 %v1198, 1.0
    %v1200 = vrcp.pop %v1199
    %v1201 = vmul.f32 1.0, %v1200
    %1203 = vrot.lane.b32.xlu0 %v1165, 64
    %v1204 = vpop.permute.xlu0 %1203
    %v1206 = vmul.f32 %v1201, %v1204
    %1208 = vrot.lane.b32.xlu0 %v1206, 64
    %v1209 = vpop.permute.xlu0 %1208
    %v1211 = vadd.f32 %v1168, %v1209
    %v1212 = vtanh.pop %v1211
    %v1213 = vsub.f32 1.0, %v1201
    %1215 = vrot.lane.b32.xlu0 %v1212, 96
    %v1216 = vpop.permute.xlu0 %1215
    %v1218 = vmul.f32 %v1213, %v1216
    %v1219 = vmul.f32 %v1201, %v1085
    %v1220 = vadd.f32 %v1218, %v1219
    %vm1221 = vcmp.gt.s32.totalorder %v135, 2
    %v1222 = vsel %vm1221, 1, 0
    %1223 = vset.pattern.permute.xlu0 0
    %1224 = vperm.xlu0 %1223, %v1222
    %v1225 = vpop.permute.xlu0 %1224
    %vm1226 = vcmp.eq.s32.totalorder %v1225, 1
    %v1227 = vsel %vm1226, %v1194, %v1078
    %vm1228 = vcmp.gt.s32.totalorder %v135, 13
    %v1229 = vsel %vm1228, 1, 0
    %1230 = vset.pattern.permute.xlu0 0
    %1231 = vperm.xlu0 %1230, %v1229
    %v1232 = vpop.permute.xlu0 %1231
    %vm1233 = vcmp.eq.s32.totalorder %v1232, 1
    %v1234 = vsel %vm1233, %v1220, %v1085
    %1236 = vrot.lane.b32.xlu0 %v1227, 96
    %v1237 = vpop.permute.xlu0 %1236
    %1239 = vst.msk [vmem:[#allocation3 + $0x10] sm:$0xff] %vm939, %v1237
    %1240 = vst.msk [vmem:[#allocation3 + $0x68] sm:$0xff] %vm941, %v1234
    %v1241 = vsel %vm939, %v1237, %v1234
    %v1243 = vsel %vm792, %v1241, 0
    %1245 = vmatprep.subr.mxu0 0.0
    %1246 = vmatpush1.msra.mxu0 0.0
    %1247 = vmatprep.subr.mxu0 0.0
    %1248 = vmatpush1.msra.mxu0 0.0
    %1249 = vmatprep.subr.mxu0 0.0
    %1250 = vmatpush1.msra.mxu0 0.0
    %1251 = vmatprep.subr.mxu0 0.0
    %1252 = vmatpush1.msra.mxu0 0.0
    %1253 = vmatprep.subr.mxu0 0.0
    %1254 = vmatpush1.msra.mxu0 0.0
    %1255 = vmatprep.subr.mxu0 0.0
    %1256 = vmatpush1.msra.mxu0 0.0
    %1257 = vmatprep.subr.mxu0 0.0
    %1258 = vmatpush1.msra.mxu0 0.0
    %1259 = vmatprep.subr.mxu0 0.0
    %1260 = vmatpush1.msra.mxu0 0.0
    %1261 = vmatprep.subr.mxu0 %v779
    %1262 = vmatpush1.msra.mxu0 %v778
    %1263 = vmatprep.subr.mxu0 %v777
    %1264 = vmatpush1.msra.mxu0 %v776
    %1265 = vmatprep.subr.mxu0 %v775
    %1266 = vmatpush1.msra.mxu0 %v774
    %1267 = vmatprep.subr.mxu0 %v773
    %1268 = vmatpush1.msra.mxu0 %v772
    %1269 = vmatprep.subr.mxu0 %v771
    %1270 = vmatpush1.msra.mxu0 %v770
    %1271 = vmatprep.subr.mxu0 %v769
    %1272 = vmatpush1.msra.mxu0 %v768
    %1273 = vmatprep.subr.mxu0 %v767
    %1274 = vmatpush1.msra.mxu0 %v766
    %1275 = vmatprep.subr.mxu0 %v765
    %1276 = vmatpush1.msra.mxu0 %v764
    %1277 = vmatprep.subr.mxu0 0.0
    %1278 = vmatpush2.msra.mxu0 0.0
    %1279 = vmatprep.subr.mxu0 0.0
    %1280 = vmatpush2.msra.mxu0 0.0
    %1281 = vmatprep.subr.mxu0 0.0
    %1282 = vmatpush2.msra.mxu0 0.0
    %1283 = vmatprep.subr.mxu0 0.0
    %1284 = vmatpush2.msra.mxu0 0.0
    %1285 = vmatprep.subr.mxu0 0.0
    %1286 = vmatpush2.msra.mxu0 0.0
    %1287 = vmatprep.subr.mxu0 0.0
    %1288 = vmatpush2.msra.mxu0 0.0
    %1289 = vmatprep.subr.mxu0 0.0
    %1290 = vmatpush2.msra.mxu0 0.0
    %1291 = vmatprep.subr.mxu0 0.0
    %1292 = vmatpush2.msra.mxu0 0.0
    %1293 = vmatprep.subr.mxu0 0.0
    %1294 = vmatpush2.msra.mxu0 0.0
    %1295 = vmatprep.subr.mxu0 0.0
    %1296 = vmatpush2.msra.mxu0 0.0
    %1297 = vmatprep.subr.mxu0 0.0
    %1298 = vmatpush2.msra.mxu0 0.0
    %1299 = vmatprep.subr.mxu0 0.0
    %1300 = vmatpush2.msra.mxu0 0.0
    %1301 = vmatprep.subr.mxu0 0.0
    %1302 = vmatpush2.msra.mxu0 0.0
    %1303 = vmatprep.subr.mxu0 0.0
    %1304 = vmatpush2.msra.mxu0 0.0
    %1305 = vmatprep.subr.mxu0 0.0
    %1306 = vmatpush2.msra.mxu0 0.0
    %1307 = vmatprep.subr.mxu0 0.0
    %1308 = vmatpush2.msra.mxu0 0.0
    %1309 = vmatprep.mubr.f32.mxu0 0.0
    %1310 = vmatmul.mubr.f32.gmra.mxu0 %v1243
    %v1311 = vpop.f32.mrf.mxu0
    %v1312 = vadd.f32 %v785, %v1311
    %v1313 = vpop.f32.mrf.mxu0
    %v1314 = vadd.f32 %v789, %v1313
    %1315 = vdwg.mxu0
    %v1316 = vld [vmem:[#allocation2 + $0x30] sm:$0xff]
    %v1317 = vld [vmem:[#allocation2 + $0xc8] sm:$0xff]
    %v1318 = vadd.f32 %v1316, %v1312
    %v1319 = vxor.u32 %v1318, 2147483648
    %v1320 = vmul.f32 %v1319, 1.442695
    %v1321 = vpow.pop %v1320
    %v1322 = vadd.f32 %v1321, 1.0
    %v1323 = vrcp.pop %v1322
    %v1324 = vmul.f32 1.0, %v1323
    %1326 = vrot.lane.b32.xlu0 %v1312, 64
    %v1327 = vpop.permute.xlu0 %1326
    %v1329 = vmul.f32 %v1324, %v1327
    %1331 = vrot.lane.b32.xlu0 %v1329, 64
    %v1332 = vpop.permute.xlu0 %1331
    %v1334 = vadd.f32 %v1316, %v1332
    %v1335 = vtanh.pop %v1334
    %v1336 = vsub.f32 1.0, %v1324
    %1338 = vrot.lane.b32.xlu0 %v1335, 96
    %v1339 = vpop.permute.xlu0 %1338
    %v1341 = vmul.f32 %v1336, %v1339
    %v1342 = vmul.f32 %v1324, %v1227
    %v1343 = vadd.f32 %v1341, %v1342
    %v1344 = vadd.f32 %v1317, %v1314
    %v1345 = vxor.u32 %v1344, 2147483648
    %v1346 = vmul.f32 %v1345, 1.442695
    %v1347 = vpow.pop %v1346
    %v1348 = vadd.f32 %v1347, 1.0
    %v1349 = vrcp.pop %v1348
    %v1350 = vmul.f32 1.0, %v1349
    %1352 = vrot.lane.b32.xlu0 %v1314, 64
    %v1353 = vpop.permute.xlu0 %1352
    %v1355 = vmul.f32 %v1350, %v1353
    %1357 = vrot.lane.b32.xlu0 %v1355, 64
    %v1358 = vpop.permute.xlu0 %1357
    %v1360 = vadd.f32 %v1317, %v1358
    %v1361 = vtanh.pop %v1360
    %v1362 = vsub.f32 1.0, %v1350
    %1364 = vrot.lane.b32.xlu0 %v1361, 96
    %v1365 = vpop.permute.xlu0 %1364
    %v1367 = vmul.f32 %v1362, %v1365
    %v1368 = vmul.f32 %v1350, %v1234
    %v1369 = vadd.f32 %v1367, %v1368
    %vm1370 = vcmp.gt.s32.totalorder %v135, 3
    %v1371 = vsel %vm1370, 1, 0
    %1372 = vset.pattern.permute.xlu0 0
    %1373 = vperm.xlu0 %1372, %v1371
    %v1374 = vpop.permute.xlu0 %1373
    %vm1375 = vcmp.eq.s32.totalorder %v1374, 1
    %v1376 = vsel %vm1375, %v1343, %v1227
    %vm1377 = vcmp.gt.s32.totalorder %v135, 12
    %v1378 = vsel %vm1377, 1, 0
    %1379 = vset.pattern.permute.xlu0 0
    %1380 = vperm.xlu0 %1379, %v1378
    %v1381 = vpop.permute.xlu0 %1380
    %vm1382 = vcmp.eq.s32.totalorder %v1381, 1
    %v1383 = vsel %vm1382, %v1369, %v1234
    %1385 = vrot.lane.b32.xlu0 %v1376, 96
    %v1386 = vpop.permute.xlu0 %1385
    %1388 = vst.msk [vmem:[#allocation3 + $0x18] sm:$0xff] %vm939, %v1386
    %1389 = vst.msk [vmem:[#allocation3 + $0x60] sm:$0xff] %vm941, %v1383
    %v1390 = vsel %vm939, %v1386, %v1383
    %v1392 = vsel %vm792, %v1390, 0
    %1394 = vmatprep.subr.mxu0 0.0
    %1395 = vmatpush1.msra.mxu0 0.0
    %1396 = vmatprep.subr.mxu0 0.0
    %1397 = vmatpush1.msra.mxu0 0.0
    %1398 = vmatprep.subr.mxu0 0.0
    %1399 = vmatpush1.msra.mxu0 0.0
    %1400 = vmatprep.subr.mxu0 0.0
    %1401 = vmatpush1.msra.mxu0 0.0
    %1402 = vmatprep.subr.mxu0 0.0
    %1403 = vmatpush1.msra.mxu0 0.0
    %1404 = vmatprep.subr.mxu0 0.0
    %1405 = vmatpush1.msra.mxu0 0.0
    %1406 = vmatprep.subr.mxu0 0.0
    %1407 = vmatpush1.msra.mxu0 0.0
    %1408 = vmatprep.subr.mxu0 0.0
    %1409 = vmatpush1.msra.mxu0 0.0
    %1410 = vmatprep.subr.mxu0 %v779
    %1411 = vmatpush1.msra.mxu0 %v778
    %1412 = vmatprep.subr.mxu0 %v777
    %1413 = vmatpush1.msra.mxu0 %v776
    %1414 = vmatprep.subr.mxu0 %v775
    %1415 = vmatpush1.msra.mxu0 %v774
    %1416 = vmatprep.subr.mxu0 %v773
    %1417 = vmatpush1.msra.mxu0 %v772
    %1418 = vmatprep.subr.mxu0 %v771
    %1419 = vmatpush1.msra.mxu0 %v770
    %1420 = vmatprep.subr.mxu0 %v769
    %1421 = vmatpush1.msra.mxu0 %v768
    %1422 = vmatprep.subr.mxu0 %v767
    %1423 = vmatpush1.msra.mxu0 %v766
    %1424 = vmatprep.subr.mxu0 %v765
    %1425 = vmatpush1.msra.mxu0 %v764
    %1426 = vmatprep.subr.mxu0 0.0
    %1427 = vmatpush2.msra.mxu0 0.0
    %1428 = vmatprep.subr.mxu0 0.0
    %1429 = vmatpush2.msra.mxu0 0.0
    %1430 = vmatprep.subr.mxu0 0.0
    %1431 = vmatpush2.msra.mxu0 0.0
    %1432 = vmatprep.subr.mxu0 0.0
    %1433 = vmatpush2.msra.mxu0 0.0
    %1434 = vmatprep.subr.mxu0 0.0
    %1435 = vmatpush2.msra.mxu0 0.0
    %1436 = vmatprep.subr.mxu0 0.0
    %1437 = vmatpush2.msra.mxu0 0.0
    %1438 = vmatprep.subr.mxu0 0.0
    %1439 = vmatpush2.msra.mxu0 0.0
    %1440 = vmatprep.subr.mxu0 0.0
    %1441 = vmatpush2.msra.mxu0 0.0
    %1442 = vmatprep.subr.mxu0 0.0
    %1443 = vmatpush2.msra.mxu0 0.0
    %1444 = vmatprep.subr.mxu0 0.0
    %1445 = vmatpush2.msra.mxu0 0.0
    %1446 = vmatprep.subr.mxu0 0.0
    %1447 = vmatpush2.msra.mxu0 0.0
    %1448 = vmatprep.subr.mxu0 0.0
    %1449 = vmatpush2.msra.mxu0 0.0
    %1450 = vmatprep.subr.mxu0 0.0
    %1451 = vmatpush2.msra.mxu0 0.0
    %1452 = vmatprep.subr.mxu0 0.0
    %1453 = vmatpush2.msra.mxu0 0.0
    %1454 = vmatprep.subr.mxu0 0.0
    %1455 = vmatpush2.msra.mxu0 0.0
    %1456 = vmatprep.subr.mxu0 0.0
    %1457 = vmatpush2.msra.mxu0 0.0
    %1458 = vmatprep.mubr.f32.mxu0 0.0
    %1459 = vmatmul.mubr.f32.gmra.mxu0 %v1392
    %v1460 = vpop.f32.mrf.mxu0
    %v1461 = vadd.f32 %v785, %v1460
    %v1462 = vpop.f32.mrf.mxu0
    %v1463 = vadd.f32 %v789, %v1462
    %1464 = vdwg.mxu0
    %v1465 = vld [vmem:[#allocation2 + $0x40] sm:$0xff]
    %v1466 = vld [vmem:[#allocation2 + $0xb8] sm:$0xff]
    %v1467 = vadd.f32 %v1465, %v1461
    %v1468 = vxor.u32 %v1467, 2147483648
    %v1469 = vmul.f32 %v1468, 1.442695
    %v1470 = vpow.pop %v1469
    %v1471 = vadd.f32 %v1470, 1.0
    %v1472 = vrcp.pop %v1471
    %v1473 = vmul.f32 1.0, %v1472
    %1475 = vrot.lane.b32.xlu0 %v1461, 64
    %v1476 = vpop.permute.xlu0 %1475
    %v1478 = vmul.f32 %v1473, %v1476
    %1480 = vrot.lane.b32.xlu0 %v1478, 64
    %v1481 = vpop.permute.xlu0 %1480
    %v1483 = vadd.f32 %v1465, %v1481
    %v1484 = vtanh.pop %v1483
    %v1485 = vsub.f32 1.0, %v1473
    %1487 = vrot.lane.b32.xlu0 %v1484, 96
    %v1488 = vpop.permute.xlu0 %1487
    %v1490 = vmul.f32 %v1485, %v1488
    %v1491 = vmul.f32 %v1473, %v1376
    %v1492 = vadd.f32 %v1490, %v1491
    %v1493 = vadd.f32 %v1466, %v1463
    %v1494 = vxor.u32 %v1493, 2147483648
    %v1495 = vmul.f32 %v1494, 1.442695
    %v1496 = vpow.pop %v1495
    %v1497 = vadd.f32 %v1496, 1.0
    %v1498 = vrcp.pop %v1497
    %v1499 = vmul.f32 1.0, %v1498
    %1501 = vrot.lane.b32.xlu0 %v1463, 64
    %v1502 = vpop.permute.xlu0 %1501
    %v1504 = vmul.f32 %v1499, %v1502
    %1506 = vrot.lane.b32.xlu0 %v1504, 64
    %v1507 = vpop.permute.xlu0 %1506
    %v1509 = vadd.f32 %v1466, %v1507
    %v1510 = vtanh.pop %v1509
    %v1511 = vsub.f32 1.0, %v1499
    %1513 = vrot.lane.b32.xlu0 %v1510, 96
    %v1514 = vpop.permute.xlu0 %1513
    %v1516 = vmul.f32 %v1511, %v1514
    %v1517 = vmul.f32 %v1499, %v1383
    %v1518 = vadd.f32 %v1516, %v1517
    %vm1519 = vcmp.gt.s32.totalorder %v135, 4
    %v1520 = vsel %vm1519, 1, 0
    %1521 = vset.pattern.permute.xlu0 0
    %1522 = vperm.xlu0 %1521, %v1520
    %v1523 = vpop.permute.xlu0 %1522
    %vm1524 = vcmp.eq.s32.totalorder %v1523, 1
    %v1525 = vsel %vm1524, %v1492, %v1376
    %vm1526 = vcmp.gt.s32.totalorder %v135, 11
    %v1527 = vsel %vm1526, 1, 0
    %1528 = vset.pattern.permute.xlu0 0
    %1529 = vperm.xlu0 %1528, %v1527
    %v1530 = vpop.permute.xlu0 %1529
    %vm1531 = vcmp.eq.s32.totalorder %v1530, 1
    %v1532 = vsel %vm1531, %v1518, %v1383
    %1534 = vrot.lane.b32.xlu0 %v1525, 96
    %v1535 = vpop.permute.xlu0 %1534
    %1537 = vst.msk [vmem:[#allocation3 + $0x20] sm:$0xff] %vm939, %v1535
    %1538 = vst.msk [vmem:[#allocation3 + $0x58] sm:$0xff] %vm941, %v1532
    %v1539 = vsel %vm939, %v1535, %v1532
    %v1541 = vsel %vm792, %v1539, 0
    %1543 = vmatprep.subr.mxu0 0.0
    %1544 = vmatpush1.msra.mxu0 0.0
    %1545 = vmatprep.subr.mxu0 0.0
    %1546 = vmatpush1.msra.mxu0 0.0
    %1547 = vmatprep.subr.mxu0 0.0
    %1548 = vmatpush1.msra.mxu0 0.0
    %1549 = vmatprep.subr.mxu0 0.0
    %1550 = vmatpush1.msra.mxu0 0.0
    %1551 = vmatprep.subr.mxu0 0.0
    %1552 = vmatpush1.msra.mxu0 0.0
    %1553 = vmatprep.subr.mxu0 0.0
    %1554 = vmatpush1.msra.mxu0 0.0
    %1555 = vmatprep.subr.mxu0 0.0
    %1556 = vmatpush1.msra.mxu0 0.0
    %1557 = vmatprep.subr.mxu0 0.0
    %1558 = vmatpush1.msra.mxu0 0.0
    %1559 = vmatprep.subr.mxu0 %v779
    %1560 = vmatpush1.msra.mxu0 %v778
    %1561 = vmatprep.subr.mxu0 %v777
    %1562 = vmatpush1.msra.mxu0 %v776
    %1563 = vmatprep.subr.mxu0 %v775
    %1564 = vmatpush1.msra.mxu0 %v774
    %1565 = vmatprep.subr.mxu0 %v773
    %1566 = vmatpush1.msra.mxu0 %v772
    %1567 = vmatprep.subr.mxu0 %v771
    %1568 = vmatpush1.msra.mxu0 %v770
    %1569 = vmatprep.subr.mxu0 %v769
    %1570 = vmatpush1.msra.mxu0 %v768
    %1571 = vmatprep.subr.mxu0 %v767
    %1572 = vmatpush1.msra.mxu0 %v766
    %1573 = vmatprep.subr.mxu0 %v765
    %1574 = vmatpush1.msra.mxu0 %v764
    %1575 = vmatprep.subr.mxu0 0.0
    %1576 = vmatpush2.msra.mxu0 0.0
    %1577 = vmatprep.subr.mxu0 0.0
    %1578 = vmatpush2.msra.mxu0 0.0
    %1579 = vmatprep.subr.mxu0 0.0
    %1580 = vmatpush2.msra.mxu0 0.0
    %1581 = vmatprep.subr.mxu0 0.0
    %1582 = vmatpush2.msra.mxu0 0.0
    %1583 = vmatprep.subr.mxu0 0.0
    %1584 = vmatpush2.msra.mxu0 0.0
    %1585 = vmatprep.subr.mxu0 0.0
    %1586 = vmatpush2.msra.mxu0 0.0
    %1587 = vmatprep.subr.mxu0 0.0
    %1588 = vmatpush2.msra.mxu0 0.0
    %1589 = vmatprep.subr.mxu0 0.0
    %1590 = vmatpush2.msra.mxu0 0.0
    %1591 = vmatprep.subr.mxu0 0.0
    %1592 = vmatpush2.msra.mxu0 0.0
    %1593 = vmatprep.subr.mxu0 0.0
    %1594 = vmatpush2.msra.mxu0 0.0
    %1595 = vmatprep.subr.mxu0 0.0
    %1596 = vmatpush2.msra.mxu0 0.0
    %1597 = vmatprep.subr.mxu0 0.0
    %1598 = vmatpush2.msra.mxu0 0.0
    %1599 = vmatprep.subr.mxu0 0.0
    %1600 = vmatpush2.msra.mxu0 0.0
    %1601 = vmatprep.subr.mxu0 0.0
    %1602 = vmatpush2.msra.mxu0 0.0
    %1603 = vmatprep.subr.mxu0 0.0
    %1604 = vmatpush2.msra.mxu0 0.0
    %1605 = vmatprep.subr.mxu0 0.0
    %1606 = vmatpush2.msra.mxu0 0.0
    %1607 = vmatprep.mubr.f32.mxu0 0.0
    %1608 = vmatmul.mubr.f32.gmra.mxu0 %v1541
    %v1609 = vpop.f32.mrf.mxu0
    %v1610 = vadd.f32 %v785, %v1609
    %v1611 = vpop.f32.mrf.mxu0
    %v1612 = vadd.f32 %v789, %v1611
    %1613 = vdwg.mxu0
    %v1614 = vld [vmem:[#allocation2 + $0x50] sm:$0xff]
    %v1615 = vld [vmem:[#allocation2 + $0xa8] sm:$0xff]
    %v1616 = vadd.f32 %v1614, %v1610
    %v1617 = vxor.u32 %v1616, 2147483648
    %v1618 = vmul.f32 %v1617, 1.442695
    %v1619 = vpow.pop %v1618
    %v1620 = vadd.f32 %v1619, 1.0
    %v1621 = vrcp.pop %v1620
    %v1622 = vmul.f32 1.0, %v1621
    %1624 = vrot.lane.b32.xlu0 %v1610, 64
    %v1625 = vpop.permute.xlu0 %1624
    %v1627 = vmul.f32 %v1622, %v1625
    %1629 = vrot.lane.b32.xlu0 %v1627, 64
    %v1630 = vpop.permute.xlu0 %1629
    %v1632 = vadd.f32 %v1614, %v1630
    %v1633 = vtanh.pop %v1632
    %v1634 = vsub.f32 1.0, %v1622
    %1636 = vrot.lane.b32.xlu0 %v1633, 96
    %v1637 = vpop.permute.xlu0 %1636
    %v1639 = vmul.f32 %v1634, %v1637
    %v1640 = vmul.f32 %v1622, %v1525
    %v1641 = vadd.f32 %v1639, %v1640
    %v1642 = vadd.f32 %v1615, %v1612
    %v1643 = vxor.u32 %v1642, 2147483648
    %v1644 = vmul.f32 %v1643, 1.442695
    %v1645 = vpow.pop %v1644
    %v1646 = vadd.f32 %v1645, 1.0
    %v1647 = vrcp.pop %v1646
    %v1648 = vmul.f32 1.0, %v1647
    %1650 = vrot.lane.b32.xlu0 %v1612, 64
    %v1651 = vpop.permute.xlu0 %1650
    %v1653 = vmul.f32 %v1648, %v1651
    %1655 = vrot.lane.b32.xlu0 %v1653, 64
    %v1656 = vpop.permute.xlu0 %1655
    %v1658 = vadd.f32 %v1615, %v1656
    %v1659 = vtanh.pop %v1658
    %v1660 = vsub.f32 1.0, %v1648
    %1662 = vrot.lane.b32.xlu0 %v1659, 96
    %v1663 = vpop.permute.xlu0 %1662
    %v1665 = vmul.f32 %v1660, %v1663
    %v1666 = vmul.f32 %v1648, %v1532
    %v1667 = vadd.f32 %v1665, %v1666
    %vm1668 = vcmp.gt.s32.totalorder %v135, 5
    %v1669 = vsel %vm1668, 1, 0
    %1670 = vset.pattern.permute.xlu0 0
    %1671 = vperm.xlu0 %1670, %v1669
    %v1672 = vpop.permute.xlu0 %1671
    %vm1673 = vcmp.eq.s32.totalorder %v1672, 1
    %v1674 = vsel %vm1673, %v1641, %v1525
    %vm1675 = vcmp.gt.s32.totalorder %v135, 10
    %v1676 = vsel %vm1675, 1, 0
    %1677 = vset.pattern.permute.xlu0 0
    %1678 = vperm.xlu0 %1677, %v1676
    %v1679 = vpop.permute.xlu0 %1678
    %vm1680 = vcmp.eq.s32.totalorder %v1679, 1
    %v1681 = vsel %vm1680, %v1667, %v1532
    %1683 = vrot.lane.b32.xlu0 %v1674, 96
    %v1684 = vpop.permute.xlu0 %1683
    %1686 = vst.msk [vmem:[#allocation3 + $0x28] sm:$0xff] %vm939, %v1684
    %1687 = vst.msk [vmem:[#allocation3 + $0x50] sm:$0xff] %vm941, %v1681
    %v1688 = vsel %vm939, %v1684, %v1681
    %v1690 = vsel %vm792, %v1688, 0
    %1692 = vmatprep.subr.mxu0 0.0
    %1693 = vmatpush1.msra.mxu0 0.0
    %1694 = vmatprep.subr.mxu0 0.0
    %1695 = vmatpush1.msra.mxu0 0.0
    %1696 = vmatprep.subr.mxu0 0.0
    %1697 = vmatpush1.msra.mxu0 0.0
    %1698 = vmatprep.subr.mxu0 0.0
    %1699 = vmatpush1.msra.mxu0 0.0
    %1700 = vmatprep.subr.mxu0 0.0
    %1701 = vmatpush1.msra.mxu0 0.0
    %1702 = vmatprep.subr.mxu0 0.0
    %1703 = vmatpush1.msra.mxu0 0.0
    %1704 = vmatprep.subr.mxu0 0.0
    %1705 = vmatpush1.msra.mxu0 0.0
    %1706 = vmatprep.subr.mxu0 0.0
    %1707 = vmatpush1.msra.mxu0 0.0
    %1708 = vmatprep.subr.mxu0 %v779
    %1709 = vmatpush1.msra.mxu0 %v778
    %1710 = vmatprep.subr.mxu0 %v777
    %1711 = vmatpush1.msra.mxu0 %v776
    %1712 = vmatprep.subr.mxu0 %v775
    %1713 = vmatpush1.msra.mxu0 %v774
    %1714 = vmatprep.subr.mxu0 %v773
    %1715 = vmatpush1.msra.mxu0 %v772
    %1716 = vmatprep.subr.mxu0 %v771
    %1717 = vmatpush1.msra.mxu0 %v770
    %1718 = vmatprep.subr.mxu0 %v769
    %1719 = vmatpush1.msra.mxu0 %v768
    %1720 = vmatprep.subr.mxu0 %v767
    %1721 = vmatpush1.msra.mxu0 %v766
    %1722 = vmatprep.subr.mxu0 %v765
    %1723 = vmatpush1.msra.mxu0 %v764
    %1724 = vmatprep.subr.mxu0 0.0
    %1725 = vmatpush2.msra.mxu0 0.0
    %1726 = vmatprep.subr.mxu0 0.0
    %1727 = vmatpush2.msra.mxu0 0.0
    %1728 = vmatprep.subr.mxu0 0.0
    %1729 = vmatpush2.msra.mxu0 0.0
    %1730 = vmatprep.subr.mxu0 0.0
    %1731 = vmatpush2.msra.mxu0 0.0
    %1732 = vmatprep.subr.mxu0 0.0
    %1733 = vmatpush2.msra.mxu0 0.0
    %1734 = vmatprep.subr.mxu0 0.0
    %1735 = vmatpush2.msra.mxu0 0.0
    %1736 = vmatprep.subr.mxu0 0.0
    %1737 = vmatpush2.msra.mxu0 0.0
    %1738 = vmatprep.subr.mxu0 0.0
    %1739 = vmatpush2.msra.mxu0 0.0
    %1740 = vmatprep.subr.mxu0 0.0
    %1741 = vmatpush2.msra.mxu0 0.0
    %1742 = vmatprep.subr.mxu0 0.0
    %1743 = vmatpush2.msra.mxu0 0.0
    %1744 = vmatprep.subr.mxu0 0.0
    %1745 = vmatpush2.msra.mxu0 0.0
    %1746 = vmatprep.subr.mxu0 0.0
    %1747 = vmatpush2.msra.mxu0 0.0
    %1748 = vmatprep.subr.mxu0 0.0
    %1749 = vmatpush2.msra.mxu0 0.0
    %1750 = vmatprep.subr.mxu0 0.0
    %1751 = vmatpush2.msra.mxu0 0.0
    %1752 = vmatprep.subr.mxu0 0.0
    %1753 = vmatpush2.msra.mxu0 0.0
    %1754 = vmatprep.subr.mxu0 0.0
    %1755 = vmatpush2.msra.mxu0 0.0
    %1756 = vmatprep.mubr.f32.mxu0 0.0
    %1757 = vmatmul.mubr.f32.gmra.mxu0 %v1690
    %v1758 = vpop.f32.mrf.mxu0
    %v1759 = vadd.f32 %v785, %v1758
    %v1760 = vpop.f32.mrf.mxu0
    %v1761 = vadd.f32 %v789, %v1760
    %1762 = vdwg.mxu0
    %v1763 = vld [vmem:[#allocation2 + $0x60] sm:$0xff]
    %v1764 = vld [vmem:[#allocation2 + $0x98] sm:$0xff]
    %v1765 = vadd.f32 %v1763, %v1759
    %v1766 = vxor.u32 %v1765, 2147483648
    %v1767 = vmul.f32 %v1766, 1.442695
    %v1768 = vpow.pop %v1767
    %v1769 = vadd.f32 %v1768, 1.0
    %v1770 = vrcp.pop %v1769
    %v1771 = vmul.f32 1.0, %v1770
    %1773 = vrot.lane.b32.xlu0 %v1759, 64
    %v1774 = vpop.permute.xlu0 %1773
    %v1776 = vmul.f32 %v1771, %v1774
    %1778 = vrot.lane.b32.xlu0 %v1776, 64
    %v1779 = vpop.permute.xlu0 %1778
    %v1781 = vadd.f32 %v1763, %v1779
    %v1782 = vtanh.pop %v1781
    %v1783 = vsub.f32 1.0, %v1771
    %1785 = vrot.lane.b32.xlu0 %v1782, 96
    %v1786 = vpop.permute.xlu0 %1785
    %v1788 = vmul.f32 %v1783, %v1786
    %v1789 = vmul.f32 %v1771, %v1674
    %v1790 = vadd.f32 %v1788, %v1789
    %v1791 = vadd.f32 %v1764, %v1761
    %v1792 = vxor.u32 %v1791, 2147483648
    %v1793 = vmul.f32 %v1792, 1.442695
    %v1794 = vpow.pop %v1793
    %v1795 = vadd.f32 %v1794, 1.0
    %v1796 = vrcp.pop %v1795
    %v1797 = vmul.f32 1.0, %v1796
    %1799 = vrot.lane.b32.xlu0 %v1761, 64
    %v1800 = vpop.permute.xlu0 %1799
    %v1802 = vmul.f32 %v1797, %v1800
    %1804 = vrot.lane.b32.xlu0 %v1802, 64
    %v1805 = vpop.permute.xlu0 %1804
    %v1807 = vadd.f32 %v1764, %v1805
    %v1808 = vtanh.pop %v1807
    %v1809 = vsub.f32 1.0, %v1797
    %1811 = vrot.lane.b32.xlu0 %v1808, 96
    %v1812 = vpop.permute.xlu0 %1811
    %v1814 = vmul.f32 %v1809, %v1812
    %v1815 = vmul.f32 %v1797, %v1681
    %v1816 = vadd.f32 %v1814, %v1815
    %vm1817 = vcmp.gt.s32.totalorder %v135, 6
    %v1818 = vsel %vm1817, 1, 0
    %1819 = vset.pattern.permute.xlu0 0
    %1820 = vperm.xlu0 %1819, %v1818
    %v1821 = vpop.permute.xlu0 %1820
    %vm1822 = vcmp.eq.s32.totalorder %v1821, 1
    %v1823 = vsel %vm1822, %v1790, %v1674
    %vm1824 = vcmp.gt.s32.totalorder %v135, 9
    %v1825 = vsel %vm1824, 1, 0
    %1826 = vset.pattern.permute.xlu0 0
    %1827 = vperm.xlu0 %1826, %v1825
    %v1828 = vpop.permute.xlu0 %1827
    %vm1829 = vcmp.eq.s32.totalorder %v1828, 1
    %v1830 = vsel %vm1829, %v1816, %v1681
    %1832 = vrot.lane.b32.xlu0 %v1823, 96
    %v1833 = vpop.permute.xlu0 %1832
    %1835 = vst.msk [vmem:[#allocation3 + $0x30] sm:$0xff] %vm939, %v1833
    %1836 = vst.msk [vmem:[#allocation3 + $0x48] sm:$0xff] %vm941, %v1830
    %v1837 = vsel %vm939, %v1833, %v1830
    %v1839 = vsel %vm792, %v1837, 0
    %1841 = vmatprep.subr.mxu0 0.0
    %1842 = vmatpush1.msra.mxu0 0.0
    %1843 = vmatprep.subr.mxu0 0.0
    %1844 = vmatpush1.msra.mxu0 0.0
    %1845 = vmatprep.subr.mxu0 0.0
    %1846 = vmatpush1.msra.mxu0 0.0
    %1847 = vmatprep.subr.mxu0 0.0
    %1848 = vmatpush1.msra.mxu0 0.0
    %1849 = vmatprep.subr.mxu0 0.0
    %1850 = vmatpush1.msra.mxu0 0.0
    %1851 = vmatprep.subr.mxu0 0.0
    %1852 = vmatpush1.msra.mxu0 0.0
    %1853 = vmatprep.subr.mxu0 0.0
    %1854 = vmatpush1.msra.mxu0 0.0
    %1855 = vmatprep.subr.mxu0 0.0
    %1856 = vmatpush1.msra.mxu0 0.0
    %1857 = vmatprep.subr.mxu0 %v779
    %1858 = vmatpush1.msra.mxu0 %v778
    %1859 = vmatprep.subr.mxu0 %v777
    %1860 = vmatpush1.msra.mxu0 %v776
    %1861 = vmatprep.subr.mxu0 %v775
    %1862 = vmatpush1.msra.mxu0 %v774
    %1863 = vmatprep.subr.mxu0 %v773
    %1864 = vmatpush1.msra.mxu0 %v772
    %1865 = vmatprep.subr.mxu0 %v771
    %1866 = vmatpush1.msra.mxu0 %v770
    %1867 = vmatprep.subr.mxu0 %v769
    %1868 = vmatpush1.msra.mxu0 %v768
    %1869 = vmatprep.subr.mxu0 %v767
    %1870 = vmatpush1.msra.mxu0 %v766
    %1871 = vmatprep.subr.mxu0 %v765
    %1872 = vmatpush1.msra.mxu0 %v764
    %1873 = vmatprep.subr.mxu0 0.0
    %1874 = vmatpush2.msra.mxu0 0.0
    %1875 = vmatprep.subr.mxu0 0.0
    %1876 = vmatpush2.msra.mxu0 0.0
    %1877 = vmatprep.subr.mxu0 0.0
    %1878 = vmatpush2.msra.mxu0 0.0
    %1879 = vmatprep.subr.mxu0 0.0
    %1880 = vmatpush2.msra.mxu0 0.0
    %1881 = vmatprep.subr.mxu0 0.0
    %1882 = vmatpush2.msra.mxu0 0.0
    %1883 = vmatprep.subr.mxu0 0.0
    %1884 = vmatpush2.msra.mxu0 0.0
    %1885 = vmatprep.subr.mxu0 0.0
    %1886 = vmatpush2.msra.mxu0 0.0
    %1887 = vmatprep.subr.mxu0 0.0
    %1888 = vmatpush2.msra.mxu0 0.0
    %1889 = vmatprep.subr.mxu0 0.0
    %1890 = vmatpush2.msra.mxu0 0.0
    %1891 = vmatprep.subr.mxu0 0.0
    %1892 = vmatpush2.msra.mxu0 0.0
    %1893 = vmatprep.subr.mxu0 0.0
    %1894 = vmatpush2.msra.mxu0 0.0
    %1895 = vmatprep.subr.mxu0 0.0
    %1896 = vmatpush2.msra.mxu0 0.0
    %1897 = vmatprep.subr.mxu0 0.0
    %1898 = vmatpush2.msra.mxu0 0.0
    %1899 = vmatprep.subr.mxu0 0.0
    %1900 = vmatpush2.msra.mxu0 0.0
    %1901 = vmatprep.subr.mxu0 0.0
    %1902 = vmatpush2.msra.mxu0 0.0
    %1903 = vmatprep.subr.mxu0 0.0
    %1904 = vmatpush2.msra.mxu0 0.0
    %1905 = vmatprep.mubr.f32.mxu0 0.0
    %1906 = vmatmul.mubr.f32.gmra.mxu0 %v1839
    %v1907 = vpop.f32.mrf.mxu0
    %v1908 = vadd.f32 %v785, %v1907
    %v1909 = vpop.f32.mrf.mxu0
    %v1910 = vadd.f32 %v789, %v1909
    %1911 = vdwg.mxu0
    %v1912 = vld [vmem:[#allocation2 + $0x70] sm:$0xff]
    %v1913 = vld [vmem:[#allocation2 + $0x88] sm:$0xff]
    %v1914 = vadd.f32 %v1912, %v1908
    %v1915 = vxor.u32 %v1914, 2147483648
    %v1916 = vmul.f32 %v1915, 1.442695
    %v1917 = vpow.pop %v1916
    %v1918 = vadd.f32 %v1917, 1.0
    %v1919 = vrcp.pop %v1918
    %v1920 = vmul.f32 1.0, %v1919
    %1922 = vrot.lane.b32.xlu0 %v1908, 64
    %v1923 = vpop.permute.xlu0 %1922
    %v1925 = vmul.f32 %v1920, %v1923
    %1927 = vrot.lane.b32.xlu0 %v1925, 64
    %v1928 = vpop.permute.xlu0 %1927
    %v1930 = vadd.f32 %v1912, %v1928
    %v1931 = vtanh.pop %v1930
    %v1932 = vsub.f32 1.0, %v1920
    %1934 = vrot.lane.b32.xlu0 %v1931, 96
    %v1935 = vpop.permute.xlu0 %1934
    %v1937 = vmul.f32 %v1932, %v1935
    %v1938 = vmul.f32 %v1920, %v1823
    %v1939 = vadd.f32 %v1937, %v1938
    %v1940 = vadd.f32 %v1913, %v1910
    %v1941 = vxor.u32 %v1940, 2147483648
    %v1942 = vmul.f32 %v1941, 1.442695
    %v1943 = vpow.pop %v1942
    %v1944 = vadd.f32 %v1943, 1.0
    %v1945 = vrcp.pop %v1944
    %v1946 = vmul.f32 1.0, %v1945
    %1948 = vrot.lane.b32.xlu0 %v1910, 64
    %v1949 = vpop.permute.xlu0 %1948
    %v1951 = vmul.f32 %v1946, %v1949
    %1953 = vrot.lane.b32.xlu0 %v1951, 64
    %v1954 = vpop.permute.xlu0 %1953
    %v1956 = vadd.f32 %v1913, %v1954
    %v1957 = vtanh.pop %v1956
    %v1958 = vsub.f32 1.0, %v1946
    %1960 = vrot.lane.b32.xlu0 %v1957, 96
    %v1961 = vpop.permute.xlu0 %1960
    %v1963 = vmul.f32 %v1958, %v1961
    %v1964 = vmul.f32 %v1946, %v1830
    %v1965 = vadd.f32 %v1963, %v1964
    %vm1966 = vcmp.gt.s32.totalorder %v135, 7
    %v1967 = vsel %vm1966, 1, 0
    %1968 = vset.pattern.permute.xlu0 0
    %1969 = vperm.xlu0 %1968, %v1967
    %v1970 = vpop.permute.xlu0 %1969
    %vm1971 = vcmp.eq.s32.totalorder %v1970, 1
    %v1972 = vsel %vm1971, %v1939, %v1823
    %vm1973 = vcmp.gt.s32.totalorder %v135, 8
    %v1974 = vsel %vm1973, 1, 0
    %1975 = vset.pattern.permute.xlu0 0
    %1976 = vperm.xlu0 %1975, %v1974
    %v1977 = vpop.permute.xlu0 %1976
    %vm1978 = vcmp.eq.s32.totalorder %v1977, 1
    %v1979 = vsel %vm1978, %v1965, %v1830
    %1981 = vrot.lane.b32.xlu0 %v1972, 96
    %v1982 = vpop.permute.xlu0 %1981
    %1984 = vst.msk [vmem:[#allocation3 + $0x38] sm:$0xff] %vm939, %v1982
    %1985 = vst.msk [vmem:[#allocation3 + $0x40] sm:$0xff] %vm941, %v1979
    %v1986 = vsel %vm939, %v1982, %v1979
    %v1988 = vsel %vm792, %v1986, 0
    %1990 = vmatprep.subr.mxu0 0.0
    %1991 = vmatpush1.msra.mxu0 0.0
    %1992 = vmatprep.subr.mxu0 0.0
    %1993 = vmatpush1.msra.mxu0 0.0
    %1994 = vmatprep.subr.mxu0 0.0
    %1995 = vmatpush1.msra.mxu0 0.0
    %1996 = vmatprep.subr.mxu0 0.0
    %1997 = vmatpush1.msra.mxu0 0.0
    %1998 = vmatprep.subr.mxu0 0.0
    %1999 = vmatpush1.msra.mxu0 0.0
    %2000 = vmatprep.subr.mxu0 0.0
    %2001 = vmatpush1.msra.mxu0 0.0
    %2002 = vmatprep.subr.mxu0 0.0
    %2003 = vmatpush1.msra.mxu0 0.0
    %2004 = vmatprep.subr.mxu0 0.0
    %2005 = vmatpush1.msra.mxu0 0.0
    %2006 = vmatprep.subr.mxu0 %v779
    %2007 = vmatpush1.msra.mxu0 %v778
    %2008 = vmatprep.subr.mxu0 %v777
    %2009 = vmatpush1.msra.mxu0 %v776
    %2010 = vmatprep.subr.mxu0 %v775
    %2011 = vmatpush1.msra.mxu0 %v774
    %2012 = vmatprep.subr.mxu0 %v773
    %2013 = vmatpush1.msra.mxu0 %v772
    %2014 = vmatprep.subr.mxu0 %v771
    %2015 = vmatpush1.msra.mxu0 %v770
    %2016 = vmatprep.subr.mxu0 %v769
    %2017 = vmatpush1.msra.mxu0 %v768
    %2018 = vmatprep.subr.mxu0 %v767
    %2019 = vmatpush1.msra.mxu0 %v766
    %2020 = vmatprep.subr.mxu0 %v765
    %2021 = vmatpush1.msra.mxu0 %v764
    %2022 = vmatprep.subr.mxu0 0.0
    %2023 = vmatpush2.msra.mxu0 0.0
    %2024 = vmatprep.subr.mxu0 0.0
    %2025 = vmatpush2.msra.mxu0 0.0
    %2026 = vmatprep.subr.mxu0 0.0
    %2027 = vmatpush2.msra.mxu0 0.0
    %2028 = vmatprep.subr.mxu0 0.0
    %2029 = vmatpush2.msra.mxu0 0.0
    %2030 = vmatprep.subr.mxu0 0.0
    %2031 = vmatpush2.msra.mxu0 0.0
    %2032 = vmatprep.subr.mxu0 0.0
    %2033 = vmatpush2.msra.mxu0 0.0
    %2034 = vmatprep.subr.mxu0 0.0
    %2035 = vmatpush2.msra.mxu0 0.0
    %2036 = vmatprep.subr.mxu0 0.0
    %2037 = vmatpush2.msra.mxu0 0.0
    %2038 = vmatprep.subr.mxu0 0.0
    %2039 = vmatpush2.msra.mxu0 0.0
    %2040 = vmatprep.subr.mxu0 0.0
    %2041 = vmatpush2.msra.mxu0 0.0
    %2042 = vmatprep.subr.mxu0 0.0
    %2043 = vmatpush2.msra.mxu0 0.0
    %2044 = vmatprep.subr.mxu0 0.0
    %2045 = vmatpush2.msra.mxu0 0.0
    %2046 = vmatprep.subr.mxu0 0.0
    %2047 = vmatpush2.msra.mxu0 0.0
    %2048 = vmatprep.subr.mxu0 0.0
    %2049 = vmatpush2.msra.mxu0 0.0
    %2050 = vmatprep.subr.mxu0 0.0
    %2051 = vmatpush2.msra.mxu0 0.0
    %2052 = vmatprep.subr.mxu0 0.0
    %2053 = vmatpush2.msra.mxu0 0.0
    %2054 = vmatprep.mubr.f32.mxu0 0.0
    %2055 = vmatmul.mubr.f32.gmra.mxu0 %v1988
    %v2056 = vpop.f32.mrf.mxu0
    %v2057 = vadd.f32 %v785, %v2056
    %v2058 = vpop.f32.mrf.mxu0
    %v2059 = vadd.f32 %v789, %v2058
    %2060 = vdwg.mxu0
    %v2061 = vld [vmem:[#allocation2 + $0x80] sm:$0xff]
    %v2062 = vld [vmem:[#allocation2 + $0x78] sm:$0xff]
    %v2063 = vadd.f32 %v2061, %v2057
    %v2064 = vxor.u32 %v2063, 2147483648
    %v2065 = vmul.f32 %v2064, 1.442695
    %v2066 = vpow.pop %v2065
    %v2067 = vadd.f32 %v2066, 1.0
    %v2068 = vrcp.pop %v2067
    %v2069 = vmul.f32 1.0, %v2068
    %2071 = vrot.lane.b32.xlu0 %v2057, 64
    %v2072 = vpop.permute.xlu0 %2071
    %v2074 = vmul.f32 %v2069, %v2072
    %2076 = vrot.lane.b32.xlu0 %v2074, 64
    %v2077 = vpop.permute.xlu0 %2076
    %v2079 = vadd.f32 %v2061, %v2077
    %v2080 = vtanh.pop %v2079
    %v2081 = vsub.f32 1.0, %v2069
    %2083 = vrot.lane.b32.xlu0 %v2080, 96
    %v2084 = vpop.permute.xlu0 %2083
    %v2086 = vmul.f32 %v2081, %v2084
    %v2087 = vmul.f32 %v2069, %v1972
    %v2088 = vadd.f32 %v2086, %v2087
    %v2089 = vadd.f32 %v2062, %v2059
    %v2090 = vxor.u32 %v2089, 2147483648
    %v2091 = vmul.f32 %v2090, 1.442695
    %v2092 = vpow.pop %v2091
    %v2093 = vadd.f32 %v2092, 1.0
    %v2094 = vrcp.pop %v2093
    %v2095 = vmul.f32 1.0, %v2094
    %2097 = vrot.lane.b32.xlu0 %v2059, 64
    %v2098 = vpop.permute.xlu0 %2097
    %v2100 = vmul.f32 %v2095, %v2098
    %2102 = vrot.lane.b32.xlu0 %v2100, 64
    %v2103 = vpop.permute.xlu0 %2102
    %v2105 = vadd.f32 %v2062, %v2103
    %v2106 = vtanh.pop %v2105
    %v2107 = vsub.f32 1.0, %v2095
    %2109 = vrot.lane.b32.xlu0 %v2106, 96
    %v2110 = vpop.permute.xlu0 %2109
    %v2112 = vmul.f32 %v2107, %v2110
    %v2113 = vmul.f32 %v2095, %v1979
    %v2114 = vadd.f32 %v2112, %v2113
    %v2115 = vsel %vm1978, %v2088, %v1972
    %v2116 = vsel %vm1971, %v2114, %v1979
    %2118 = vrot.lane.b32.xlu0 %v2115, 96
    %v2119 = vpop.permute.xlu0 %2118
    %2121 = vst.msk [vmem:[#allocation3 + $0x40] sm:$0xff] %vm939, %v2119
    %2122 = vst.msk [vmem:[#allocation3 + $0x38] sm:$0xff] %vm941, %v2116
    %v2123 = vsel %vm939, %v2119, %v2116
    %v2125 = vsel %vm792, %v2123, 0
    %2127 = vmatprep.subr.mxu0 0.0
    %2128 = vmatpush1.msra.mxu0 0.0
    %2129 = vmatprep.subr.mxu0 0.0
    %2130 = vmatpush1.msra.mxu0 0.0
    %2131 = vmatprep.subr.mxu0 0.0
    %2132 = vmatpush1.msra.mxu0 0.0
    %2133 = vmatprep.subr.mxu0 0.0
    %2134 = vmatpush1.msra.mxu0 0.0
    %2135 = vmatprep.subr.mxu0 0.0
    %2136 = vmatpush1.msra.mxu0 0.0
    %2137 = vmatprep.subr.mxu0 0.0
    %2138 = vmatpush1.msra.mxu0 0.0
    %2139 = vmatprep.subr.mxu0 0.0
    %2140 = vmatpush1.msra.mxu0 0.0
    %2141 = vmatprep.subr.mxu0 0.0
    %2142 = vmatpush1.msra.mxu0 0.0
    %2143 = vmatprep.subr.mxu0 %v779
    %2144 = vmatpush1.msra.mxu0 %v778
    %2145 = vmatprep.subr.mxu0 %v777
    %2146 = vmatpush1.msra.mxu0 %v776
    %2147 = vmatprep.subr.mxu0 %v775
    %2148 = vmatpush1.msra.mxu0 %v774
    %2149 = vmatprep.subr.mxu0 %v773
    %2150 = vmatpush1.msra.mxu0 %v772
    %2151 = vmatprep.subr.mxu0 %v771
    %2152 = vmatpush1.msra.mxu0 %v770
    %2153 = vmatprep.subr.mxu0 %v769
    %2154 = vmatpush1.msra.mxu0 %v768
    %2155 = vmatprep.subr.mxu0 %v767
    %2156 = vmatpush1.msra.mxu0 %v766
    %2157 = vmatprep.subr.mxu0 %v765
    %2158 = vmatpush1.msra.mxu0 %v764
    %2159 = vmatprep.subr.mxu0 0.0
    %2160 = vmatpush2.msra.mxu0 0.0
    %2161 = vmatprep.subr.mxu0 0.0
    %2162 = vmatpush2.msra.mxu0 0.0
    %2163 = vmatprep.subr.mxu0 0.0
    %2164 = vmatpush2.msra.mxu0 0.0
    %2165 = vmatprep.subr.mxu0 0.0
    %2166 = vmatpush2.msra.mxu0 0.0
    %2167 = vmatprep.subr.mxu0 0.0
    %2168 = vmatpush2.msra.mxu0 0.0
    %2169 = vmatprep.subr.mxu0 0.0
    %2170 = vmatpush2.msra.mxu0 0.0
    %2171 = vmatprep.subr.mxu0 0.0
    %2172 = vmatpush2.msra.mxu0 0.0
    %2173 = vmatprep.subr.mxu0 0.0
    %2174 = vmatpush2.msra.mxu0 0.0
    %2175 = vmatprep.subr.mxu0 0.0
    %2176 = vmatpush2.msra.mxu0 0.0
    %2177 = vmatprep.subr.mxu0 0.0
    %2178 = vmatpush2.msra.mxu0 0.0
    %2179 = vmatprep.subr.mxu0 0.0
    %2180 = vmatpush2.msra.mxu0 0.0
    %2181 = vmatprep.subr.mxu0 0.0
    %2182 = vmatpush2.msra.mxu0 0.0
    %2183 = vmatprep.subr.mxu0 0.0
    %2184 = vmatpush2.msra.mxu0 0.0
    %2185 = vmatprep.subr.mxu0 0.0
    %2186 = vmatpush2.msra.mxu0 0.0
    %2187 = vmatprep.subr.mxu0 0.0
    %2188 = vmatpush2.msra.mxu0 0.0
    %2189 = vmatprep.subr.mxu0 0.0
    %2190 = vmatpush2.msra.mxu0 0.0
    %2191 = vmatprep.mubr.f32.mxu0 0.0
    %2192 = vmatmul.mubr.f32.gmra.mxu0 %v2125
    %v2193 = vpop.f32.mrf.mxu0
    %v2194 = vadd.f32 %v785, %v2193
    %v2195 = vpop.f32.mrf.mxu0
    %v2196 = vadd.f32 %v789, %v2195
    %2197 = vdwg.mxu0
    %v2198 = vld [vmem:[#allocation2 + $0x90] sm:$0xff]
    %v2199 = vld [vmem:[#allocation2 + $0x68] sm:$0xff]
    %v2200 = vadd.f32 %v2198, %v2194
    %v2201 = vxor.u32 %v2200, 2147483648
    %v2202 = vmul.f32 %v2201, 1.442695
    %v2203 = vpow.pop %v2202
    %v2204 = vadd.f32 %v2203, 1.0
    %v2205 = vrcp.pop %v2204
    %v2206 = vmul.f32 1.0, %v2205
    %2208 = vrot.lane.b32.xlu0 %v2194, 64
    %v2209 = vpop.permute.xlu0 %2208
    %v2211 = vmul.f32 %v2206, %v2209
    %2213 = vrot.lane.b32.xlu0 %v2211, 64
    %v2214 = vpop.permute.xlu0 %2213
    %v2216 = vadd.f32 %v2198, %v2214
    %v2217 = vtanh.pop %v2216
    %v2218 = vsub.f32 1.0, %v2206
    %2220 = vrot.lane.b32.xlu0 %v2217, 96
    %v2221 = vpop.permute.xlu0 %2220
    %v2223 = vmul.f32 %v2218, %v2221
    %v2224 = vmul.f32 %v2206, %v2115
    %v2225 = vadd.f32 %v2223, %v2224
    %v2226 = vadd.f32 %v2199, %v2196
    %v2227 = vxor.u32 %v2226, 2147483648
    %v2228 = vmul.f32 %v2227, 1.442695
    %v2229 = vpow.pop %v2228
    %v2230 = vadd.f32 %v2229, 1.0
    %v2231 = vrcp.pop %v2230
    %v2232 = vmul.f32 1.0, %v2231
    %2234 = vrot.lane.b32.xlu0 %v2196, 64
    %v2235 = vpop.permute.xlu0 %2234
    %v2237 = vmul.f32 %v2232, %v2235
    %2239 = vrot.lane.b32.xlu0 %v2237, 64
    %v2240 = vpop.permute.xlu0 %2239
    %v2242 = vadd.f32 %v2199, %v2240
    %v2243 = vtanh.pop %v2242
    %v2244 = vsub.f32 1.0, %v2232
    %2246 = vrot.lane.b32.xlu0 %v2243, 96
    %v2247 = vpop.permute.xlu0 %2246
    %v2249 = vmul.f32 %v2244, %v2247
    %v2250 = vmul.f32 %v2232, %v2116
    %v2251 = vadd.f32 %v2249, %v2250
    %v2252 = vsel %vm1829, %v2225, %v2115
    %v2253 = vsel %vm1822, %v2251, %v2116
    %2255 = vrot.lane.b32.xlu0 %v2252, 96
    %v2256 = vpop.permute.xlu0 %2255
    %2258 = vst.msk [vmem:[#allocation3 + $0x48] sm:$0xff] %vm939, %v2256
    %2259 = vst.msk [vmem:[#allocation3 + $0x30] sm:$0xff] %vm941, %v2253
    %v2260 = vsel %vm939, %v2256, %v2253
    %v2262 = vsel %vm792, %v2260, 0
    %2264 = vmatprep.subr.mxu0 0.0
    %2265 = vmatpush1.msra.mxu0 0.0
    %2266 = vmatprep.subr.mxu0 0.0
    %2267 = vmatpush1.msra.mxu0 0.0
    %2268 = vmatprep.subr.mxu0 0.0
    %2269 = vmatpush1.msra.mxu0 0.0
    %2270 = vmatprep.subr.mxu0 0.0
    %2271 = vmatpush1.msra.mxu0 0.0
    %2272 = vmatprep.subr.mxu0 0.0
    %2273 = vmatpush1.msra.mxu0 0.0
    %2274 = vmatprep.subr.mxu0 0.0
    %2275 = vmatpush1.msra.mxu0 0.0
    %2276 = vmatprep.subr.mxu0 0.0
    %2277 = vmatpush1.msra.mxu0 0.0
    %2278 = vmatprep.subr.mxu0 0.0
    %2279 = vmatpush1.msra.mxu0 0.0
    %2280 = vmatprep.subr.mxu0 %v779
    %2281 = vmatpush1.msra.mxu0 %v778
    %2282 = vmatprep.subr.mxu0 %v777
    %2283 = vmatpush1.msra.mxu0 %v776
    %2284 = vmatprep.subr.mxu0 %v775
    %2285 = vmatpush1.msra.mxu0 %v774
    %2286 = vmatprep.subr.mxu0 %v773
    %2287 = vmatpush1.msra.mxu0 %v772
    %2288 = vmatprep.subr.mxu0 %v771
    %2289 = vmatpush1.msra.mxu0 %v770
    %2290 = vmatprep.subr.mxu0 %v769
    %2291 = vmatpush1.msra.mxu0 %v768
    %2292 = vmatprep.subr.mxu0 %v767
    %2293 = vmatpush1.msra.mxu0 %v766
    %2294 = vmatprep.subr.mxu0 %v765
    %2295 = vmatpush1.msra.mxu0 %v764
    %2296 = vmatprep.subr.mxu0 0.0
    %2297 = vmatpush2.msra.mxu0 0.0
    %2298 = vmatprep.subr.mxu0 0.0
    %2299 = vmatpush2.msra.mxu0 0.0
    %2300 = vmatprep.subr.mxu0 0.0
    %2301 = vmatpush2.msra.mxu0 0.0
    %2302 = vmatprep.subr.mxu0 0.0
    %2303 = vmatpush2.msra.mxu0 0.0
    %2304 = vmatprep.subr.mxu0 0.0
    %2305 = vmatpush2.msra.mxu0 0.0
    %2306 = vmatprep.subr.mxu0 0.0
    %2307 = vmatpush2.msra.mxu0 0.0
    %2308 = vmatprep.subr.mxu0 0.0
    %2309 = vmatpush2.msra.mxu0 0.0
    %2310 = vmatprep.subr.mxu0 0.0
    %2311 = vmatpush2.msra.mxu0 0.0
    %2312 = vmatprep.subr.mxu0 0.0
    %2313 = vmatpush2.msra.mxu0 0.0
    %2314 = vmatprep.subr.mxu0 0.0
    %2315 = vmatpush2.msra.mxu0 0.0
    %2316 = vmatprep.subr.mxu0 0.0
    %2317 = vmatpush2.msra.mxu0 0.0
    %2318 = vmatprep.subr.mxu0 0.0
    %2319 = vmatpush2.msra.mxu0 0.0
    %2320 = vmatprep.subr.mxu0 0.0
    %2321 = vmatpush2.msra.mxu0 0.0
    %2322 = vmatprep.subr.mxu0 0.0
    %2323 = vmatpush2.msra.mxu0 0.0
    %2324 = vmatprep.subr.mxu0 0.0
    %2325 = vmatpush2.msra.mxu0 0.0
    %2326 = vmatprep.subr.mxu0 0.0
    %2327 = vmatpush2.msra.mxu0 0.0
    %2328 = vmatprep.mubr.f32.mxu0 0.0
    %2329 = vmatmul.mubr.f32.gmra.mxu0 %v2262
    %v2330 = vpop.f32.mrf.mxu0
    %v2331 = vadd.f32 %v785, %v2330
    %v2332 = vpop.f32.mrf.mxu0
    %v2333 = vadd.f32 %v789, %v2332
    %2334 = vdwg.mxu0
    %v2335 = vld [vmem:[#allocation2 + $0xa0] sm:$0xff]
    %v2336 = vld [vmem:[#allocation2 + $0x58] sm:$0xff]
    %v2337 = vadd.f32 %v2335, %v2331
    %v2338 = vxor.u32 %v2337, 2147483648
    %v2339 = vmul.f32 %v2338, 1.442695
    %v2340 = vpow.pop %v2339
    %v2341 = vadd.f32 %v2340, 1.0
    %v2342 = vrcp.pop %v2341
    %v2343 = vmul.f32 1.0, %v2342
    %2345 = vrot.lane.b32.xlu0 %v2331, 64
    %v2346 = vpop.permute.xlu0 %2345
    %v2348 = vmul.f32 %v2343, %v2346
    %2350 = vrot.lane.b32.xlu0 %v2348, 64
    %v2351 = vpop.permute.xlu0 %2350
    %v2353 = vadd.f32 %v2335, %v2351
    %v2354 = vtanh.pop %v2353
    %v2355 = vsub.f32 1.0, %v2343
    %2357 = vrot.lane.b32.xlu0 %v2354, 96
    %v2358 = vpop.permute.xlu0 %2357
    %v2360 = vmul.f32 %v2355, %v2358
    %v2361 = vmul.f32 %v2343, %v2252
    %v2362 = vadd.f32 %v2360, %v2361
    %v2363 = vadd.f32 %v2336, %v2333
    %v2364 = vxor.u32 %v2363, 2147483648
    %v2365 = vmul.f32 %v2364, 1.442695
    %v2366 = vpow.pop %v2365
    %v2367 = vadd.f32 %v2366, 1.0
    %v2368 = vrcp.pop %v2367
    %v2369 = vmul.f32 1.0, %v2368
    %2371 = vrot.lane.b32.xlu0 %v2333, 64
    %v2372 = vpop.permute.xlu0 %2371
    %v2374 = vmul.f32 %v2369, %v2372
    %2376 = vrot.lane.b32.xlu0 %v2374, 64
    %v2377 = vpop.permute.xlu0 %2376
    %v2379 = vadd.f32 %v2336, %v2377
    %v2380 = vtanh.pop %v2379
    %v2381 = vsub.f32 1.0, %v2369
    %2383 = vrot.lane.b32.xlu0 %v2380, 96
    %v2384 = vpop.permute.xlu0 %2383
    %v2386 = vmul.f32 %v2381, %v2384
    %v2387 = vmul.f32 %v2369, %v2253
    %v2388 = vadd.f32 %v2386, %v2387
    %v2389 = vsel %vm1680, %v2362, %v2252
    %v2390 = vsel %vm1673, %v2388, %v2253
    %2392 = vrot.lane.b32.xlu0 %v2389, 96
    %v2393 = vpop.permute.xlu0 %2392
    %2395 = vst.msk [vmem:[#allocation3 + $0x50] sm:$0xff] %vm939, %v2393
    %2396 = vst.msk [vmem:[#allocation3 + $0x28] sm:$0xff] %vm941, %v2390
    %v2397 = vsel %vm939, %v2393, %v2390
    %v2399 = vsel %vm792, %v2397, 0
    %2401 = vmatprep.subr.mxu0 0.0
    %2402 = vmatpush1.msra.mxu0 0.0
    %2403 = vmatprep.subr.mxu0 0.0
    %2404 = vmatpush1.msra.mxu0 0.0
    %2405 = vmatprep.subr.mxu0 0.0
    %2406 = vmatpush1.msra.mxu0 0.0
    %2407 = vmatprep.subr.mxu0 0.0
    %2408 = vmatpush1.msra.mxu0 0.0
    %2409 = vmatprep.subr.mxu0 0.0
    %2410 = vmatpush1.msra.mxu0 0.0
    %2411 = vmatprep.subr.mxu0 0.0
    %2412 = vmatpush1.msra.mxu0 0.0
    %2413 = vmatprep.subr.mxu0 0.0
    %2414 = vmatpush1.msra.mxu0 0.0
    %2415 = vmatprep.subr.mxu0 0.0
    %2416 = vmatpush1.msra.mxu0 0.0
    %2417 = vmatprep.subr.mxu0 %v779
    %2418 = vmatpush1.msra.mxu0 %v778
    %2419 = vmatprep.subr.mxu0 %v777
    %2420 = vmatpush1.msra.mxu0 %v776
    %2421 = vmatprep.subr.mxu0 %v775
    %2422 = vmatpush1.msra.mxu0 %v774
    %2423 = vmatprep.subr.mxu0 %v773
    %2424 = vmatpush1.msra.mxu0 %v772
    %2425 = vmatprep.subr.mxu0 %v771
    %2426 = vmatpush1.msra.mxu0 %v770
    %2427 = vmatprep.subr.mxu0 %v769
    %2428 = vmatpush1.msra.mxu0 %v768
    %2429 = vmatprep.subr.mxu0 %v767
    %2430 = vmatpush1.msra.mxu0 %v766
    %2431 = vmatprep.subr.mxu0 %v765
    %2432 = vmatpush1.msra.mxu0 %v764
    %2433 = vmatprep.subr.mxu0 0.0
    %2434 = vmatpush2.msra.mxu0 0.0
    %2435 = vmatprep.subr.mxu0 0.0
    %2436 = vmatpush2.msra.mxu0 0.0
    %2437 = vmatprep.subr.mxu0 0.0
    %2438 = vmatpush2.msra.mxu0 0.0
    %2439 = vmatprep.subr.mxu0 0.0
    %2440 = vmatpush2.msra.mxu0 0.0
    %2441 = vmatprep.subr.mxu0 0.0
    %2442 = vmatpush2.msra.mxu0 0.0
    %2443 = vmatprep.subr.mxu0 0.0
    %2444 = vmatpush2.msra.mxu0 0.0
    %2445 = vmatprep.subr.mxu0 0.0
    %2446 = vmatpush2.msra.mxu0 0.0
    %2447 = vmatprep.subr.mxu0 0.0
    %2448 = vmatpush2.msra.mxu0 0.0
    %2449 = vmatprep.subr.mxu0 0.0
    %2450 = vmatpush2.msra.mxu0 0.0
    %2451 = vmatprep.subr.mxu0 0.0
    %2452 = vmatpush2.msra.mxu0 0.0
    %2453 = vmatprep.subr.mxu0 0.0
    %2454 = vmatpush2.msra.mxu0 0.0
    %2455 = vmatprep.subr.mxu0 0.0
    %2456 = vmatpush2.msra.mxu0 0.0
    %2457 = vmatprep.subr.mxu0 0.0
    %2458 = vmatpush2.msra.mxu0 0.0
    %2459 = vmatprep.subr.mxu0 0.0
    %2460 = vmatpush2.msra.mxu0 0.0
    %2461 = vmatprep.subr.mxu0 0.0
    %2462 = vmatpush2.msra.mxu0 0.0
    %2463 = vmatprep.subr.mxu0 0.0
    %2464 = vmatpush2.msra.mxu0 0.0
    %2465 = vmatprep.mubr.f32.mxu0 0.0
    %2466 = vmatmul.mubr.f32.gmra.mxu0 %v2399
    %v2467 = vpop.f32.mrf.mxu0
    %v2468 = vadd.f32 %v785, %v2467
    %v2469 = vpop.f32.mrf.mxu0
    %v2470 = vadd.f32 %v789, %v2469
    %2471 = vdwg.mxu0
    %v2472 = vld [vmem:[#allocation2 + $0xb0] sm:$0xff]
    %v2473 = vld [vmem:[#allocation2 + $0x48] sm:$0xff]
    %v2474 = vadd.f32 %v2472, %v2468
    %v2475 = vxor.u32 %v2474, 2147483648
    %v2476 = vmul.f32 %v2475, 1.442695
    %v2477 = vpow.pop %v2476
    %v2478 = vadd.f32 %v2477, 1.0
    %v2479 = vrcp.pop %v2478
    %v2480 = vmul.f32 1.0, %v2479
    %2482 = vrot.lane.b32.xlu0 %v2468, 64
    %v2483 = vpop.permute.xlu0 %2482
    %v2485 = vmul.f32 %v2480, %v2483
    %2487 = vrot.lane.b32.xlu0 %v2485, 64
    %v2488 = vpop.permute.xlu0 %2487
    %v2490 = vadd.f32 %v2472, %v2488
    %v2491 = vtanh.pop %v2490
    %v2492 = vsub.f32 1.0, %v2480
    %2494 = vrot.lane.b32.xlu0 %v2491, 96
    %v2495 = vpop.permute.xlu0 %2494
    %v2497 = vmul.f32 %v2492, %v2495
    %v2498 = vmul.f32 %v2480, %v2389
    %v2499 = vadd.f32 %v2497, %v2498
    %v2500 = vadd.f32 %v2473, %v2470
    %v2501 = vxor.u32 %v2500, 2147483648
    %v2502 = vmul.f32 %v2501, 1.442695
    %v2503 = vpow.pop %v2502
    %v2504 = vadd.f32 %v2503, 1.0
    %v2505 = vrcp.pop %v2504
    %v2506 = vmul.f32 1.0, %v2505
    %2508 = vrot.lane.b32.xlu0 %v2470, 64
    %v2509 = vpop.permute.xlu0 %2508
    %v2511 = vmul.f32 %v2506, %v2509
    %2513 = vrot.lane.b32.xlu0 %v2511, 64
    %v2514 = vpop.permute.xlu0 %2513
    %v2516 = vadd.f32 %v2473, %v2514
    %v2517 = vtanh.pop %v2516
    %v2518 = vsub.f32 1.0, %v2506
    %2520 = vrot.lane.b32.xlu0 %v2517, 96
    %v2521 = vpop.permute.xlu0 %2520
    %v2523 = vmul.f32 %v2518, %v2521
    %v2524 = vmul.f32 %v2506, %v2390
    %v2525 = vadd.f32 %v2523, %v2524
    %v2526 = vsel %vm1531, %v2499, %v2389
    %v2527 = vsel %vm1524, %v2525, %v2390
    %2529 = vrot.lane.b32.xlu0 %v2526, 96
    %v2530 = vpop.permute.xlu0 %2529
    %2532 = vst.msk [vmem:[#allocation3 + $0x58] sm:$0xff] %vm939, %v2530
    %2533 = vst.msk [vmem:[#allocation3 + $0x20] sm:$0xff] %vm941, %v2527
    %v2534 = vsel %vm939, %v2530, %v2527
    %v2536 = vsel %vm792, %v2534, 0
    %2538 = vmatprep.subr.mxu0 0.0
    %2539 = vmatpush1.msra.mxu0 0.0
    %2540 = vmatprep.subr.mxu0 0.0
    %2541 = vmatpush1.msra.mxu0 0.0
    %2542 = vmatprep.subr.mxu0 0.0
    %2543 = vmatpush1.msra.mxu0 0.0
    %2544 = vmatprep.subr.mxu0 0.0
    %2545 = vmatpush1.msra.mxu0 0.0
    %2546 = vmatprep.subr.mxu0 0.0
    %2547 = vmatpush1.msra.mxu0 0.0
    %2548 = vmatprep.subr.mxu0 0.0
    %2549 = vmatpush1.msra.mxu0 0.0
    %2550 = vmatprep.subr.mxu0 0.0
    %2551 = vmatpush1.msra.mxu0 0.0
    %2552 = vmatprep.subr.mxu0 0.0
    %2553 = vmatpush1.msra.mxu0 0.0
    %2554 = vmatprep.subr.mxu0 %v779
    %2555 = vmatpush1.msra.mxu0 %v778
    %2556 = vmatprep.subr.mxu0 %v777
    %2557 = vmatpush1.msra.mxu0 %v776
    %2558 = vmatprep.subr.mxu0 %v775
    %2559 = vmatpush1.msra.mxu0 %v774
    %2560 = vmatprep.subr.mxu0 %v773
    %2561 = vmatpush1.msra.mxu0 %v772
    %2562 = vmatprep.subr.mxu0 %v771
    %2563 = vmatpush1.msra.mxu0 %v770
    %2564 = vmatprep.subr.mxu0 %v769
    %2565 = vmatpush1.msra.mxu0 %v768
    %2566 = vmatprep.subr.mxu0 %v767
    %2567 = vmatpush1.msra.mxu0 %v766
    %2568 = vmatprep.subr.mxu0 %v765
    %2569 = vmatpush1.msra.mxu0 %v764
    %2570 = vmatprep.subr.mxu0 0.0
    %2571 = vmatpush2.msra.mxu0 0.0
    %2572 = vmatprep.subr.mxu0 0.0
    %2573 = vmatpush2.msra.mxu0 0.0
    %2574 = vmatprep.subr.mxu0 0.0
    %2575 = vmatpush2.msra.mxu0 0.0
    %2576 = vmatprep.subr.mxu0 0.0
    %2577 = vmatpush2.msra.mxu0 0.0
    %2578 = vmatprep.subr.mxu0 0.0
    %2579 = vmatpush2.msra.mxu0 0.0
    %2580 = vmatprep.subr.mxu0 0.0
    %2581 = vmatpush2.msra.mxu0 0.0
    %2582 = vmatprep.subr.mxu0 0.0
    %2583 = vmatpush2.msra.mxu0 0.0
    %2584 = vmatprep.subr.mxu0 0.0
    %2585 = vmatpush2.msra.mxu0 0.0
    %2586 = vmatprep.subr.mxu0 0.0
    %2587 = vmatpush2.msra.mxu0 0.0
    %2588 = vmatprep.subr.mxu0 0.0
    %2589 = vmatpush2.msra.mxu0 0.0
    %2590 = vmatprep.subr.mxu0 0.0
    %2591 = vmatpush2.msra.mxu0 0.0
    %2592 = vmatprep.subr.mxu0 0.0
    %2593 = vmatpush2.msra.mxu0 0.0
    %2594 = vmatprep.subr.mxu0 0.0
    %2595 = vmatpush2.msra.mxu0 0.0
    %2596 = vmatprep.subr.mxu0 0.0
    %2597 = vmatpush2.msra.mxu0 0.0
    %2598 = vmatprep.subr.mxu0 0.0
    %2599 = vmatpush2.msra.mxu0 0.0
    %2600 = vmatprep.subr.mxu0 0.0
    %2601 = vmatpush2.msra.mxu0 0.0
    %2602 = vmatprep.mubr.f32.mxu0 0.0
    %2603 = vmatmul.mubr.f32.gmra.mxu0 %v2536
    %v2604 = vpop.f32.mrf.mxu0
    %v2605 = vadd.f32 %v785, %v2604
    %v2606 = vpop.f32.mrf.mxu0
    %v2607 = vadd.f32 %v789, %v2606
    %2608 = vdwg.mxu0
    %v2609 = vld [vmem:[#allocation2 + $0xc0] sm:$0xff]
    %v2610 = vld [vmem:[#allocation2 + $0x38] sm:$0xff]
    %v2611 = vadd.f32 %v2609, %v2605
    %v2612 = vxor.u32 %v2611, 2147483648
    %v2613 = vmul.f32 %v2612, 1.442695
    %v2614 = vpow.pop %v2613
    %v2615 = vadd.f32 %v2614, 1.0
    %v2616 = vrcp.pop %v2615
    %v2617 = vmul.f32 1.0, %v2616
    %2619 = vrot.lane.b32.xlu0 %v2605, 64
    %v2620 = vpop.permute.xlu0 %2619
    %v2622 = vmul.f32 %v2617, %v2620
    %2624 = vrot.lane.b32.xlu0 %v2622, 64
    %v2625 = vpop.permute.xlu0 %2624
    %v2627 = vadd.f32 %v2609, %v2625
    %v2628 = vtanh.pop %v2627
    %v2629 = vsub.f32 1.0, %v2617
    %2631 = vrot.lane.b32.xlu0 %v2628, 96
    %v2632 = vpop.permute.xlu0 %2631
    %v2634 = vmul.f32 %v2629, %v2632
    %v2635 = vmul.f32 %v2617, %v2526
    %v2636 = vadd.f32 %v2634, %v2635
    %v2637 = vadd.f32 %v2610, %v2607
    %v2638 = vxor.u32 %v2637, 2147483648
    %v2639 = vmul.f32 %v2638, 1.442695
    %v2640 = vpow.pop %v2639
    %v2641 = vadd.f32 %v2640, 1.0
    %v2642 = vrcp.pop %v2641
    %v2643 = vmul.f32 1.0, %v2642
    %2645 = vrot.lane.b32.xlu0 %v2607, 64
    %v2646 = vpop.permute.xlu0 %2645
    %v2648 = vmul.f32 %v2643, %v2646
    %2650 = vrot.lane.b32.xlu0 %v2648, 64
    %v2651 = vpop.permute.xlu0 %2650
    %v2653 = vadd.f32 %v2610, %v2651
    %v2654 = vtanh.pop %v2653
    %v2655 = vsub.f32 1.0, %v2643
    %2657 = vrot.lane.b32.xlu0 %v2654, 96
    %v2658 = vpop.permute.xlu0 %2657
    %v2660 = vmul.f32 %v2655, %v2658
    %v2661 = vmul.f32 %v2643, %v2527
    %v2662 = vadd.f32 %v2660, %v2661
    %v2663 = vsel %vm1382, %v2636, %v2526
    %v2664 = vsel %vm1375, %v2662, %v2527
    %2666 = vrot.lane.b32.xlu0 %v2663, 96
    %v2667 = vpop.permute.xlu0 %2666
    %2669 = vst.msk [vmem:[#allocation3 + $0x60] sm:$0xff] %vm939, %v2667
    %2670 = vst.msk [vmem:[#allocation3 + $0x18] sm:$0xff] %vm941, %v2664
    %v2671 = vsel %vm939, %v2667, %v2664
    %v2673 = vsel %vm792, %v2671, 0
    %2675 = vmatprep.subr.mxu0 0.0
    %2676 = vmatpush1.msra.mxu0 0.0
    %2677 = vmatprep.subr.mxu0 0.0
    %2678 = vmatpush1.msra.mxu0 0.0
    %2679 = vmatprep.subr.mxu0 0.0
    %2680 = vmatpush1.msra.mxu0 0.0
    %2681 = vmatprep.subr.mxu0 0.0
    %2682 = vmatpush1.msra.mxu0 0.0
    %2683 = vmatprep.subr.mxu0 0.0
    %2684 = vmatpush1.msra.mxu0 0.0
    %2685 = vmatprep.subr.mxu0 0.0
    %2686 = vmatpush1.msra.mxu0 0.0
    %2687 = vmatprep.subr.mxu0 0.0
    %2688 = vmatpush1.msra.mxu0 0.0
    %2689 = vmatprep.subr.mxu0 0.0
    %2690 = vmatpush1.msra.mxu0 0.0
    %2691 = vmatprep.subr.mxu0 %v779
    %2692 = vmatpush1.msra.mxu0 %v778
    %2693 = vmatprep.subr.mxu0 %v777
    %2694 = vmatpush1.msra.mxu0 %v776
    %2695 = vmatprep.subr.mxu0 %v775
    %2696 = vmatpush1.msra.mxu0 %v774
    %2697 = vmatprep.subr.mxu0 %v773
    %2698 = vmatpush1.msra.mxu0 %v772
    %2699 = vmatprep.subr.mxu0 %v771
    %2700 = vmatpush1.msra.mxu0 %v770
    %2701 = vmatprep.subr.mxu0 %v769
    %2702 = vmatpush1.msra.mxu0 %v768
    %2703 = vmatprep.subr.mxu0 %v767
    %2704 = vmatpush1.msra.mxu0 %v766
    %2705 = vmatprep.subr.mxu0 %v765
    %2706 = vmatpush1.msra.mxu0 %v764
    %2707 = vmatprep.subr.mxu0 0.0
    %2708 = vmatpush2.msra.mxu0 0.0
    %2709 = vmatprep.subr.mxu0 0.0
    %2710 = vmatpush2.msra.mxu0 0.0
    %2711 = vmatprep.subr.mxu0 0.0
    %2712 = vmatpush2.msra.mxu0 0.0
    %2713 = vmatprep.subr.mxu0 0.0
    %2714 = vmatpush2.msra.mxu0 0.0
    %2715 = vmatprep.subr.mxu0 0.0
    %2716 = vmatpush2.msra.mxu0 0.0
    %2717 = vmatprep.subr.mxu0 0.0
    %2718 = vmatpush2.msra.mxu0 0.0
    %2719 = vmatprep.subr.mxu0 0.0
    %2720 = vmatpush2.msra.mxu0 0.0
    %2721 = vmatprep.subr.mxu0 0.0
    %2722 = vmatpush2.msra.mxu0 0.0
    %2723 = vmatprep.subr.mxu0 0.0
    %2724 = vmatpush2.msra.mxu0 0.0
    %2725 = vmatprep.subr.mxu0 0.0
    %2726 = vmatpush2.msra.mxu0 0.0
    %2727 = vmatprep.subr.mxu0 0.0
    %2728 = vmatpush2.msra.mxu0 0.0
    %2729 = vmatprep.subr.mxu0 0.0
    %2730 = vmatpush2.msra.mxu0 0.0
    %2731 = vmatprep.subr.mxu0 0.0
    %2732 = vmatpush2.msra.mxu0 0.0
    %2733 = vmatprep.subr.mxu0 0.0
    %2734 = vmatpush2.msra.mxu0 0.0
    %2735 = vmatprep.subr.mxu0 0.0
    %2736 = vmatpush2.msra.mxu0 0.0
    %2737 = vmatprep.subr.mxu0 0.0
    %2738 = vmatpush2.msra.mxu0 0.0
    %2739 = vmatprep.mubr.f32.mxu0 0.0
    %2740 = vmatmul.mubr.f32.gmra.mxu0 %v2673
    %v2741 = vpop.f32.mrf.mxu0
    %v2742 = vadd.f32 %v785, %v2741
    %v2743 = vpop.f32.mrf.mxu0
    %v2744 = vadd.f32 %v789, %v2743
    %2745 = vdwg.mxu0
    %v2746 = vld [vmem:[#allocation2 + $0xd0] sm:$0xff]
    %v2747 = vld [vmem:[#allocation2 + $0x28] sm:$0xff]
    %v2748 = vadd.f32 %v2746, %v2742
    %v2749 = vxor.u32 %v2748, 2147483648
    %v2750 = vmul.f32 %v2749, 1.442695
    %v2751 = vpow.pop %v2750
    %v2752 = vadd.f32 %v2751, 1.0
    %v2753 = vrcp.pop %v2752
    %v2754 = vmul.f32 1.0, %v2753
    %2756 = vrot.lane.b32.xlu0 %v2742, 64
    %v2757 = vpop.permute.xlu0 %2756
    %v2759 = vmul.f32 %v2754, %v2757
    %2761 = vrot.lane.b32.xlu0 %v2759, 64
    %v2762 = vpop.permute.xlu0 %2761
    %v2764 = vadd.f32 %v2746, %v2762
    %v2765 = vtanh.pop %v2764
    %v2766 = vsub.f32 1.0, %v2754
    %2768 = vrot.lane.b32.xlu0 %v2765, 96
    %v2769 = vpop.permute.xlu0 %2768
    %v2771 = vmul.f32 %v2766, %v2769
    %v2772 = vmul.f32 %v2754, %v2663
    %v2773 = vadd.f32 %v2771, %v2772
    %v2774 = vadd.f32 %v2747, %v2744
    %v2775 = vxor.u32 %v2774, 2147483648
    %v2776 = vmul.f32 %v2775, 1.442695
    %v2777 = vpow.pop %v2776
    %v2778 = vadd.f32 %v2777, 1.0
    %v2779 = vrcp.pop %v2778
    %v2780 = vmul.f32 1.0, %v2779
    %2782 = vrot.lane.b32.xlu0 %v2744, 64
    %v2783 = vpop.permute.xlu0 %2782
    %v2785 = vmul.f32 %v2780, %v2783
    %2787 = vrot.lane.b32.xlu0 %v2785, 64
    %v2788 = vpop.permute.xlu0 %2787
    %v2790 = vadd.f32 %v2747, %v2788
    %v2791 = vtanh.pop %v2790
    %v2792 = vsub.f32 1.0, %v2780
    %2794 = vrot.lane.b32.xlu0 %v2791, 96
    %v2795 = vpop.permute.xlu0 %2794
    %v2797 = vmul.f32 %v2792, %v2795
    %v2798 = vmul.f32 %v2780, %v2664
    %v2799 = vadd.f32 %v2797, %v2798
    %v2800 = vsel %vm1233, %v2773, %v2663
    %v2801 = vsel %vm1226, %v2799, %v2664
    %2803 = vrot.lane.b32.xlu0 %v2800, 96
    %v2804 = vpop.permute.xlu0 %2803
    %2806 = vst.msk [vmem:[#allocation3 + $0x68] sm:$0xff] %vm939, %v2804
    %2807 = vst.msk [vmem:[#allocation3 + $0x10] sm:$0xff] %vm941, %v2801
    %v2808 = vsel %vm939, %v2804, %v2801
    %v2810 = vsel %vm792, %v2808, 0
    %2812 = vmatprep.subr.mxu0 0.0
    %2813 = vmatpush1.msra.mxu0 0.0
    %2814 = vmatprep.subr.mxu0 0.0
    %2815 = vmatpush1.msra.mxu0 0.0
    %2816 = vmatprep.subr.mxu0 0.0
    %2817 = vmatpush1.msra.mxu0 0.0
    %2818 = vmatprep.subr.mxu0 0.0
    %2819 = vmatpush1.msra.mxu0 0.0
    %2820 = vmatprep.subr.mxu0 0.0
    %2821 = vmatpush1.msra.mxu0 0.0
    %2822 = vmatprep.subr.mxu0 0.0
    %2823 = vmatpush1.msra.mxu0 0.0
    %2824 = vmatprep.subr.mxu0 0.0
    %2825 = vmatpush1.msra.mxu0 0.0
    %2826 = vmatprep.subr.mxu0 0.0
    %2827 = vmatpush1.msra.mxu0 0.0
    %2828 = vmatprep.subr.mxu0 %v779
    %2829 = vmatpush1.msra.mxu0 %v778
    %2830 = vmatprep.subr.mxu0 %v777
    %2831 = vmatpush1.msra.mxu0 %v776
    %2832 = vmatprep.subr.mxu0 %v775
    %2833 = vmatpush1.msra.mxu0 %v774
    %2834 = vmatprep.subr.mxu0 %v773
    %2835 = vmatpush1.msra.mxu0 %v772
    %2836 = vmatprep.subr.mxu0 %v771
    %2837 = vmatpush1.msra.mxu0 %v770
    %2838 = vmatprep.subr.mxu0 %v769
    %2839 = vmatpush1.msra.mxu0 %v768
    %2840 = vmatprep.subr.mxu0 %v767
    %2841 = vmatpush1.msra.mxu0 %v766
    %2842 = vmatprep.subr.mxu0 %v765
    %2843 = vmatpush1.msra.mxu0 %v764
    %2844 = vmatprep.subr.mxu0 0.0
    %2845 = vmatpush2.msra.mxu0 0.0
    %2846 = vmatprep.subr.mxu0 0.0
    %2847 = vmatpush2.msra.mxu0 0.0
    %2848 = vmatprep.subr.mxu0 0.0
    %2849 = vmatpush2.msra.mxu0 0.0
    %2850 = vmatprep.subr.mxu0 0.0
    %2851 = vmatpush2.msra.mxu0 0.0
    %2852 = vmatprep.subr.mxu0 0.0
    %2853 = vmatpush2.msra.mxu0 0.0
    %2854 = vmatprep.subr.mxu0 0.0
    %2855 = vmatpush2.msra.mxu0 0.0
    %2856 = vmatprep.subr.mxu0 0.0
    %2857 = vmatpush2.msra.mxu0 0.0
    %2858 = vmatprep.subr.mxu0 0.0
    %2859 = vmatpush2.msra.mxu0 0.0
    %2860 = vmatprep.subr.mxu0 0.0
    %2861 = vmatpush2.msra.mxu0 0.0
    %2862 = vmatprep.subr.mxu0 0.0
    %2863 = vmatpush2.msra.mxu0 0.0
    %2864 = vmatprep.subr.mxu0 0.0
    %2865 = vmatpush2.msra.mxu0 0.0
    %2866 = vmatprep.subr.mxu0 0.0
    %2867 = vmatpush2.msra.mxu0 0.0
    %2868 = vmatprep.subr.mxu0 0.0
    %2869 = vmatpush2.msra.mxu0 0.0
    %2870 = vmatprep.subr.mxu0 0.0
    %2871 = vmatpush2.msra.mxu0 0.0
    %2872 = vmatprep.subr.mxu0 0.0
    %2873 = vmatpush2.msra.mxu0 0.0
    %2874 = vmatprep.subr.mxu0 0.0
    %2875 = vmatpush2.msra.mxu0 0.0
    %2876 = vmatprep.mubr.f32.mxu0 0.0
    %2877 = vmatmul.mubr.f32.gmra.mxu0 %v2810
    %v2878 = vpop.f32.mrf.mxu0
    %v2879 = vadd.f32 %v785, %v2878
    %v2880 = vpop.f32.mrf.mxu0
    %v2881 = vadd.f32 %v789, %v2880
    %2882 = vdwg.mxu0
    %v2883 = vld [vmem:[#allocation2 + $0xe0] sm:$0xff]
    %v2884 = vld [vmem:[#allocation2 + $0x18] sm:$0xff]
    %v2885 = vadd.f32 %v2883, %v2879
    %v2886 = vxor.u32 %v2885, 2147483648
    %v2887 = vmul.f32 %v2886, 1.442695
    %v2888 = vpow.pop %v2887
    %v2889 = vadd.f32 %v2888, 1.0
    %v2890 = vrcp.pop %v2889
    %v2891 = vmul.f32 1.0, %v2890
    %2893 = vrot.lane.b32.xlu0 %v2879, 64
    %v2894 = vpop.permute.xlu0 %2893
    %v2896 = vmul.f32 %v2891, %v2894
    %2898 = vrot.lane.b32.xlu0 %v2896, 64
    %v2899 = vpop.permute.xlu0 %2898
    %v2901 = vadd.f32 %v2883, %v2899
    %v2902 = vtanh.pop %v2901
    %v2903 = vsub.f32 1.0, %v2891
    %2905 = vrot.lane.b32.xlu0 %v2902, 96
    %v2906 = vpop.permute.xlu0 %2905
    %v2908 = vmul.f32 %v2903, %v2906
    %v2909 = vmul.f32 %v2891, %v2800
    %v2910 = vadd.f32 %v2908, %v2909
    %v2911 = vadd.f32 %v2884, %v2881
    %v2912 = vxor.u32 %v2911, 2147483648
    %v2913 = vmul.f32 %v2912, 1.442695
    %v2914 = vpow.pop %v2913
    %v2915 = vadd.f32 %v2914, 1.0
    %v2916 = vrcp.pop %v2915
    %v2917 = vmul.f32 1.0, %v2916
    %2919 = vrot.lane.b32.xlu0 %v2881, 64
    %v2920 = vpop.permute.xlu0 %2919
    %v2922 = vmul.f32 %v2917, %v2920
    %2924 = vrot.lane.b32.xlu0 %v2922, 64
    %v2925 = vpop.permute.xlu0 %2924
    %v2927 = vadd.f32 %v2884, %v2925
    %v2928 = vtanh.pop %v2927
    %v2929 = vsub.f32 1.0, %v2917
    %2931 = vrot.lane.b32.xlu0 %v2928, 96
    %v2932 = vpop.permute.xlu0 %2931
    %v2934 = vmul.f32 %v2929, %v2932
    %v2935 = vmul.f32 %v2917, %v2801
    %v2936 = vadd.f32 %v2934, %v2935
    %v2937 = vsel %vm1084, %v2910, %v2800
    %v2938 = vsel %vm1077, %v2936, %v2801
    %2940 = vrot.lane.b32.xlu0 %v2937, 96
    %v2941 = vpop.permute.xlu0 %2940
    %2943 = vst.msk [vmem:[#allocation3 + $0x70] sm:$0xff] %vm939, %v2941
    %2944 = vst.msk [vmem:[#allocation3 + $0x8] sm:$0xff] %vm941, %v2938
    %v2945 = vsel %vm939, %v2941, %v2938
    %v2947 = vsel %vm792, %v2945, 0
    %2949 = vmatprep.subr.mxu0 0.0
    %2950 = vmatpush1.msra.mxu0 0.0
    %2951 = vmatprep.subr.mxu0 0.0
    %2952 = vmatpush1.msra.mxu0 0.0
    %2953 = vmatprep.subr.mxu0 0.0
    %2954 = vmatpush1.msra.mxu0 0.0
    %2955 = vmatprep.subr.mxu0 0.0
    %2956 = vmatpush1.msra.mxu0 0.0
    %2957 = vmatprep.subr.mxu0 0.0
    %2958 = vmatpush1.msra.mxu0 0.0
    %2959 = vmatprep.subr.mxu0 0.0
    %2960 = vmatpush1.msra.mxu0 0.0
    %2961 = vmatprep.subr.mxu0 0.0
    %2962 = vmatpush1.msra.mxu0 0.0
    %2963 = vmatprep.subr.mxu0 0.0
    %2964 = vmatpush1.msra.mxu0 0.0
    %2965 = vmatprep.subr.mxu0 %v779
    %2966 = vmatpush1.msra.mxu0 %v778
    %2967 = vmatprep.subr.mxu0 %v777
    %2968 = vmatpush1.msra.mxu0 %v776
    %2969 = vmatprep.subr.mxu0 %v775
    %2970 = vmatpush1.msra.mxu0 %v774
    %2971 = vmatprep.subr.mxu0 %v773
    %2972 = vmatpush1.msra.mxu0 %v772
    %2973 = vmatprep.subr.mxu0 %v771
    %2974 = vmatpush1.msra.mxu0 %v770
    %2975 = vmatprep.subr.mxu0 %v769
    %2976 = vmatpush1.msra.mxu0 %v768
    %2977 = vmatprep.subr.mxu0 %v767
    %2978 = vmatpush1.msra.mxu0 %v766
    %2979 = vmatprep.subr.mxu0 %v765
    %2980 = vmatpush1.msra.mxu0 %v764
    %2981 = vmatprep.subr.mxu0 0.0
    %2982 = vmatpush2.msra.mxu0 0.0
    %2983 = vmatprep.subr.mxu0 0.0
    %2984 = vmatpush2.msra.mxu0 0.0
    %2985 = vmatprep.subr.mxu0 0.0
    %2986 = vmatpush2.msra.mxu0 0.0
    %2987 = vmatprep.subr.mxu0 0.0
    %2988 = vmatpush2.msra.mxu0 0.0
    %2989 = vmatprep.subr.mxu0 0.0
    %2990 = vmatpush2.msra.mxu0 0.0
    %2991 = vmatprep.subr.mxu0 0.0
    %2992 = vmatpush2.msra.mxu0 0.0
    %2993 = vmatprep.subr.mxu0 0.0
    %2994 = vmatpush2.msra.mxu0 0.0
    %2995 = vmatprep.subr.mxu0 0.0
    %2996 = vmatpush2.msra.mxu0 0.0
    %2997 = vmatprep.subr.mxu0 0.0
    %2998 = vmatpush2.msra.mxu0 0.0
    %2999 = vmatprep.subr.mxu0 0.0
    %3000 = vmatpush2.msra.mxu0 0.0
    %3001 = vmatprep.subr.mxu0 0.0
    %3002 = vmatpush2.msra.mxu0 0.0
    %3003 = vmatprep.subr.mxu0 0.0
    %3004 = vmatpush2.msra.mxu0 0.0
    %3005 = vmatprep.subr.mxu0 0.0
    %3006 = vmatpush2.msra.mxu0 0.0
    %3007 = vmatprep.subr.mxu0 0.0
    %3008 = vmatpush2.msra.mxu0 0.0
    %3009 = vmatprep.subr.mxu0 0.0
    %3010 = vmatpush2.msra.mxu0 0.0
    %3011 = vmatprep.subr.mxu0 0.0
    %3012 = vmatpush2.msra.mxu0 0.0
    %3013 = vmatprep.mubr.f32.mxu0 0.0
    %3014 = vmatmul.mubr.f32.gmra.mxu0 %v2947
    %v3015 = vpop.f32.mrf.mxu0
    %v3016 = vadd.f32 %v785, %v3015
    %v3017 = vpop.f32.mrf.mxu0
    %v3018 = vadd.f32 %v789, %v3017
    %3019 = vdwg.mxu0
    %v3020 = vld [vmem:[#allocation2 + $0xf0] sm:$0xff]
    %v3021 = vld [vmem:[#allocation2 + $0x8] sm:$0xff]
    %v3022 = vadd.f32 %v3020, %v3016
    %v3023 = vxor.u32 %v3022, 2147483648
    %v3024 = vmul.f32 %v3023, 1.442695
    %v3025 = vpow.pop %v3024
    %v3026 = vadd.f32 %v3025, 1.0
    %v3027 = vrcp.pop %v3026
    %v3028 = vmul.f32 1.0, %v3027
    %3030 = vrot.lane.b32.xlu0 %v3016, 64
    %v3031 = vpop.permute.xlu0 %3030
    %v3033 = vmul.f32 %v3028, %v3031
    %3035 = vrot.lane.b32.xlu0 %v3033, 64
    %v3036 = vpop.permute.xlu0 %3035
    %v3038 = vadd.f32 %v3020, %v3036
    %v3039 = vtanh.pop %v3038
    %v3040 = vsub.f32 1.0, %v3028
    %3042 = vrot.lane.b32.xlu0 %v3039, 96
    %v3043 = vpop.permute.xlu0 %3042
    %v3045 = vmul.f32 %v3040, %v3043
    %v3046 = vmul.f32 %v3028, %v2937
    %v3047 = vadd.f32 %v3045, %v3046
    %v3048 = vadd.f32 %v3021, %v3018
    %v3049 = vxor.u32 %v3048, 2147483648
    %v3050 = vmul.f32 %v3049, 1.442695
    %v3051 = vpow.pop %v3050
    %v3052 = vadd.f32 %v3051, 1.0
    %v3053 = vrcp.pop %v3052
    %v3054 = vmul.f32 1.0, %v3053
    %3056 = vrot.lane.b32.xlu0 %v3018, 64
    %v3057 = vpop.permute.xlu0 %3056
    %v3059 = vmul.f32 %v3054, %v3057
    %3061 = vrot.lane.b32.xlu0 %v3059, 64
    %v3062 = vpop.permute.xlu0 %3061
    %v3064 = vadd.f32 %v3021, %v3062
    %v3065 = vtanh.pop %v3064
    %v3066 = vsub.f32 1.0, %v3054
    %3068 = vrot.lane.b32.xlu0 %v3065, 96
    %v3069 = vpop.permute.xlu0 %3068
    %v3071 = vmul.f32 %v3066, %v3069
    %v3072 = vmul.f32 %v3054, %v2938
    %v3073 = vadd.f32 %v3071, %v3072
    %v3074 = vsel %vm933, %v3047, %v2937
    %v3075 = vsel %vm926, %v3073, %v2938
    %3077 = vrot.lane.b32.xlu0 %v3074, 96
    %v3078 = vpop.permute.xlu0 %3077
    %3080 = vst.msk [vmem:[#allocation3 + $0x78] sm:$0xff] %vm939, %v3078
    %3081 = vst.msk [vmem:[#allocation3] sm:$0xff] %vm941, %v3075
    %v3082 = vld [vmem:[#allocation3] sm:$0xff]
    %v3083 = vld [vmem:[#allocation3 + $0x8] sm:$0xff]
    %v3084 = vld [vmem:[#allocation3 + $0x10] sm:$0xff]
    %v3085 = vld [vmem:[#allocation3 + $0x18] sm:$0xff]
    %v3086 = vld [vmem:[#allocation3 + $0x20] sm:$0xff]
    %v3087 = vld [vmem:[#allocation3 + $0x28] sm:$0xff]
    %v3088 = vld [vmem:[#allocation3 + $0x30] sm:$0xff]
    %v3089 = vld [vmem:[#allocation3 + $0x38] sm:$0xff]
    %v3090 = vld [vmem:[#allocation3 + $0x40] sm:$0xff]
    %v3091 = vld [vmem:[#allocation3 + $0x48] sm:$0xff]
    %v3092 = vld [vmem:[#allocation3 + $0x50] sm:$0xff]
    %v3093 = vld [vmem:[#allocation3 + $0x58] sm:$0xff]
    %v3094 = vld [vmem:[#allocation3 + $0x60] sm:$0xff]
    %v3095 = vld [vmem:[#allocation3 + $0x68] sm:$0xff]
    %v3096 = vld [vmem:[#allocation3 + $0x70] sm:$0xff]
    %v3097 = vld [vmem:[#allocation3 + $0x78] sm:$0xff]
    %v3098 = vld [vmem:[#allocation11] sm:$0xff]
    %v3099 = vld [vmem:[#allocation11 + $0x8] sm:$0xff]
    %v3100 = vld [vmem:[#allocation11 + $0x10] sm:$0xff]
    %v3101 = vld [vmem:[#allocation11 + $0x18] sm:$0xff]
    %v3102 = vld [vmem:[#allocation11 + $0x20] sm:$0xff]
    %v3103 = vld [vmem:[#allocation11 + $0x28] sm:$0xff]
    %v3104 = vld [vmem:[#allocation11 + $0x30] sm:$0xff]
    %v3105 = vld [vmem:[#allocation11 + $0x38] sm:$0xff]
    %v3106 = vld [vmem:[#allocation11 + $0x40] sm:$0xff]
    %v3107 = vld [vmem:[#allocation11 + $0x48] sm:$0xff]
    %v3108 = vld [vmem:[#allocation11 + $0x50] sm:$0xff]
    %v3109 = vld [vmem:[#allocation11 + $0x58] sm:$0xff]
    %v3110 = vld [vmem:[#allocation11 + $0x60] sm:$0xff]
    %v3111 = vld [vmem:[#allocation11 + $0x68] sm:$0xff]
    %v3112 = vld [vmem:[#allocation11 + $0x70] sm:$0xff]
    %v3113 = vld [vmem:[#allocation11 + $0x78] sm:$0xff]
    %v3114 = vld [vmem:[%s10] sm:$0x3]
    %v3116 = vlaneseq
    %v3117 = vshrl.u32 %v3116, 7
    %v3118 = vsub.s32 0, %v3117
    %v3119 = vrot.slane %v3114, %v3118
    %v3120 = vlaneseq
    %v3121 = vshrl.u32 %v3120, 7
    %v3122 = vsub.s32 1, %v3121
    %v3123 = vrot.slane %v3114, %v3122
    %v3127 = vsel %vm792, %v3082, 0
    %v3130 = vsel %vm792, %v3083, 0
    %v3133 = vsel %vm792, %v3084, 0
    %v3136 = vsel %vm792, %v3085, 0
    %v3139 = vsel %vm792, %v3086, 0
    %v3142 = vsel %vm792, %v3087, 0
    %v3145 = vsel %vm792, %v3088, 0
    %v3148 = vsel %vm792, %v3089, 0
    %v3151 = vsel %vm792, %v3090, 0
    %v3154 = vsel %vm792, %v3091, 0
    %v3157 = vsel %vm792, %v3092, 0
    %v3160 = vsel %vm792, %v3093, 0
    %v3163 = vsel %vm792, %v3094, 0
    %v3166 = vsel %vm792, %v3095, 0
    %v3169 = vsel %vm792, %v3096, 0
    %v3172 = vsel %vm792, %v3097, 0
    %3174 = vmatprep.subr.mxu0 0.0
    %3175 = vmatpush1.msra.mxu0 0.0
    %3176 = vmatprep.subr.mxu0 0.0
    %3177 = vmatpush1.msra.mxu0 0.0
    %3178 = vmatprep.subr.mxu0 0.0
    %3179 = vmatpush1.msra.mxu0 0.0
    %3180 = vmatprep.subr.mxu0 0.0
    %3181 = vmatpush1.msra.mxu0 0.0
    %3182 = vmatprep.subr.mxu0 0.0
    %3183 = vmatpush1.msra.mxu0 0.0
    %3184 = vmatprep.subr.mxu0 0.0
    %3185 = vmatpush1.msra.mxu0 0.0
    %3186 = vmatprep.subr.mxu0 0.0
    %3187 = vmatpush1.msra.mxu0 0.0
    %3188 = vmatprep.subr.mxu0 0.0
    %3189 = vmatpush1.msra.mxu0 0.0
    %3190 = vmatprep.subr.mxu0 %v3113
    %3191 = vmatpush1.msra.mxu0 %v3112
    %3192 = vmatprep.subr.mxu0 %v3111
    %3193 = vmatpush1.msra.mxu0 %v3110
    %3194 = vmatprep.subr.mxu0 %v3109
    %3195 = vmatpush1.msra.mxu0 %v3108
    %3196 = vmatprep.subr.mxu0 %v3107
    %3197 = vmatpush1.msra.mxu0 %v3106
    %3198 = vmatprep.subr.mxu0 %v3105
    %3199 = vmatpush1.msra.mxu0 %v3104
    %3200 = vmatprep.subr.mxu0 %v3103
    %3201 = vmatpush1.msra.mxu0 %v3102
    %3202 = vmatprep.subr.mxu0 %v3101
    %3203 = vmatpush1.msra.mxu0 %v3100
    %3204 = vmatprep.subr.mxu0 %v3099
    %3205 = vmatpush1.msra.mxu0 %v3098
    %3206 = vmatprep.subr.mxu0 0.0
    %3207 = vmatpush2.msra.mxu0 0.0
    %3208 = vmatprep.subr.mxu0 0.0
    %3209 = vmatpush2.msra.mxu0 0.0
    %3210 = vmatprep.subr.mxu0 0.0
    %3211 = vmatpush2.msra.mxu0 0.0
    %3212 = vmatprep.subr.mxu0 0.0
    %3213 = vmatpush2.msra.mxu0 0.0
    %3214 = vmatprep.subr.mxu0 0.0
    %3215 = vmatpush2.msra.mxu0 0.0
    %3216 = vmatprep.subr.mxu0 0.0
    %3217 = vmatpush2.msra.mxu0 0.0
    %3218 = vmatprep.subr.mxu0 0.0
    %3219 = vmatpush2.msra.mxu0 0.0
    %3220 = vmatprep.subr.mxu0 0.0
    %3221 = vmatpush2.msra.mxu0 0.0
    %3222 = vmatprep.subr.mxu0 0.0
    %3223 = vmatpush2.msra.mxu0 0.0
    %3224 = vmatprep.subr.mxu0 0.0
    %3225 = vmatpush2.msra.mxu0 0.0
    %3226 = vmatprep.subr.mxu0 0.0
    %3227 = vmatpush2.msra.mxu0 0.0
    %3228 = vmatprep.subr.mxu0 0.0
    %3229 = vmatpush2.msra.mxu0 0.0
    %3230 = vmatprep.subr.mxu0 0.0
    %3231 = vmatpush2.msra.mxu0 0.0
    %3232 = vmatprep.subr.mxu0 0.0
    %3233 = vmatpush2.msra.mxu0 0.0
    %3234 = vmatprep.subr.mxu0 0.0
    %3235 = vmatpush2.msra.mxu0 0.0
    %3236 = vmatprep.subr.mxu0 0.0
    %3237 = vmatpush2.msra.mxu0 0.0
    %3238 = vmatprep.mubr.f32.mxu0 0.0
    %3239 = vmatmul.mubr.f32.gmra.mxu0 %v3127
    %v3240 = vpop.f32.mrf.mxu0
    %v3241 = vadd.f32 %v3119, %v3240
    %v3242 = vpop.f32.mrf.mxu0
    %v3243 = vadd.f32 %v3123, %v3242
    %3244 = vmatprep.mubr.f32.mxu0 0.0
    %3245 = vmatmul.mubr.f32.gmra.mxu0 %v3130
    %v3246 = vpop.f32.mrf.mxu0
    %v3247 = vadd.f32 %v3119, %v3246
    %v3248 = vpop.f32.mrf.mxu0
    %v3249 = vadd.f32 %v3123, %v3248
    %3250 = vmatprep.mubr.f32.mxu0 0.0
    %3251 = vmatmul.mubr.f32.gmra.mxu0 %v3133
    %v3252 = vpop.f32.mrf.mxu0
    %v3253 = vadd.f32 %v3119, %v3252
    %v3254 = vpop.f32.mrf.mxu0
    %v3255 = vadd.f32 %v3123, %v3254
    %3256 = vmatprep.mubr.f32.mxu0 0.0
    %3257 = vmatmul.mubr.f32.gmra.mxu0 %v3136
    %v3258 = vpop.f32.mrf.mxu0
    %v3259 = vadd.f32 %v3119, %v3258
    %v3260 = vpop.f32.mrf.mxu0
    %v3261 = vadd.f32 %v3123, %v3260
    %3262 = vmatprep.mubr.f32.mxu0 0.0
    %3263 = vmatmul.mubr.f32.gmra.mxu0 %v3139
    %v3264 = vpop.f32.mrf.mxu0
    %v3265 = vadd.f32 %v3119, %v3264
    %v3266 = vpop.f32.mrf.mxu0
    %v3267 = vadd.f32 %v3123, %v3266
    %3268 = vmatprep.mubr.f32.mxu0 0.0
    %3269 = vmatmul.mubr.f32.gmra.mxu0 %v3142
    %v3270 = vpop.f32.mrf.mxu0
    %v3271 = vadd.f32 %v3119, %v3270
    %v3272 = vpop.f32.mrf.mxu0
    %v3273 = vadd.f32 %v3123, %v3272
    %3274 = vmatprep.mubr.f32.mxu0 0.0
    %3275 = vmatmul.mubr.f32.gmra.mxu0 %v3145
    %v3276 = vpop.f32.mrf.mxu0
    %v3277 = vadd.f32 %v3119, %v3276
    %v3278 = vpop.f32.mrf.mxu0
    %v3279 = vadd.f32 %v3123, %v3278
    %3280 = vmatprep.mubr.f32.mxu0 0.0
    %3281 = vmatmul.mubr.f32.gmra.mxu0 %v3148
    %v3282 = vpop.f32.mrf.mxu0
    %v3283 = vadd.f32 %v3119, %v3282
    %v3284 = vpop.f32.mrf.mxu0
    %v3285 = vadd.f32 %v3123, %v3284
    %3286 = vmatprep.mubr.f32.mxu0 0.0
    %3287 = vmatmul.mubr.f32.gmra.mxu0 %v3151
    %v3288 = vpop.f32.mrf.mxu0
    %v3289 = vadd.f32 %v3119, %v3288
    %v3290 = vpop.f32.mrf.mxu0
    %v3291 = vadd.f32 %v3123, %v3290
    %3292 = vmatprep.mubr.f32.mxu0 0.0
    %3293 = vmatmul.mubr.f32.gmra.mxu0 %v3154
    %v3294 = vpop.f32.mrf.mxu0
    %v3295 = vadd.f32 %v3119, %v3294
    %v3296 = vpop.f32.mrf.mxu0
    %v3297 = vadd.f32 %v3123, %v3296
    %3298 = vmatprep.mubr.f32.mxu0 0.0
    %3299 = vmatmul.mubr.f32.gmra.mxu0 %v3157
    %v3300 = vpop.f32.mrf.mxu0
    %v3301 = vadd.f32 %v3119, %v3300
    %v3302 = vpop.f32.mrf.mxu0
    %v3303 = vadd.f32 %v3123, %v3302
    %3304 = vmatprep.mubr.f32.mxu0 0.0
    %3305 = vmatmul.mubr.f32.gmra.mxu0 %v3160
    %v3306 = vpop.f32.mrf.mxu0
    %v3307 = vadd.f32 %v3119, %v3306
    %v3308 = vpop.f32.mrf.mxu0
    %v3309 = vadd.f32 %v3123, %v3308
    %3310 = vmatprep.mubr.f32.mxu0 0.0
    %3311 = vmatmul.mubr.f32.gmra.mxu0 %v3163
    %v3312 = vpop.f32.mrf.mxu0
    %v3313 = vadd.f32 %v3119, %v3312
    %v3314 = vpop.f32.mrf.mxu0
    %v3315 = vadd.f32 %v3123, %v3314
    %3316 = vmatprep.mubr.f32.mxu0 0.0
    %3317 = vmatmul.mubr.f32.gmra.mxu0 %v3166
    %v3318 = vpop.f32.mrf.mxu0
    %v3319 = vadd.f32 %v3119, %v3318
    %v3320 = vpop.f32.mrf.mxu0
    %v3321 = vadd.f32 %v3123, %v3320
    %3322 = vmatprep.mubr.f32.mxu0 0.0
    %3323 = vmatmul.mubr.f32.gmra.mxu0 %v3169
    %v3324 = vpop.f32.mrf.mxu0
    %v3325 = vadd.f32 %v3119, %v3324
    %v3326 = vpop.f32.mrf.mxu0
    %v3327 = vadd.f32 %v3123, %v3326
    %3328 = vmatprep.mubr.f32.mxu0 0.0
    %3329 = vmatmul.mubr.f32.gmra.mxu0 %v3172
    %v3330 = vpop.f32.mrf.mxu0
    %v3331 = vadd.f32 %v3119, %v3330
    %v3332 = vpop.f32.mrf.mxu0
    %v3333 = vadd.f32 %v3123, %v3332
    %3334 = vdwg.mxu0
    %3335 = vst [vmem:[#allocation2] sm:$0xff] %v3241
    %3336 = vst [vmem:[#allocation2 + $0x8] sm:$0xff] %v3243
    %3337 = vst [vmem:[#allocation2 + $0x10] sm:$0xff] %v3247
    %3338 = vst [vmem:[#allocation2 + $0x18] sm:$0xff] %v3249
    %3339 = vst [vmem:[#allocation2 + $0x20] sm:$0xff] %v3253
    %3340 = vst [vmem:[#allocation2 + $0x28] sm:$0xff] %v3255
    %3341 = vst [vmem:[#allocation2 + $0x30] sm:$0xff] %v3259
    %3342 = vst [vmem:[#allocation2 + $0x38] sm:$0xff] %v3261
    %3343 = vst [vmem:[#allocation2 + $0x40] sm:$0xff] %v3265
    %3344 = vst [vmem:[#allocation2 + $0x48] sm:$0xff] %v3267
    %3345 = vst [vmem:[#allocation2 + $0x50] sm:$0xff] %v3271
    %3346 = vst [vmem:[#allocation2 + $0x58] sm:$0xff] %v3273
    %3347 = vst [vmem:[#allocation2 + $0x60] sm:$0xff] %v3277
    %3348 = vst [vmem:[#allocation2 + $0x68] sm:$0xff] %v3279
    %3349 = vst [vmem:[#allocation2 + $0x70] sm:$0xff] %v3283
    %3350 = vst [vmem:[#allocation2 + $0x78] sm:$0xff] %v3285
    %3351 = vst [vmem:[#allocation2 + $0x80] sm:$0xff] %v3289
    %3352 = vst [vmem:[#allocation2 + $0x88] sm:$0xff] %v3291
    %3353 = vst [vmem:[#allocation2 + $0x90] sm:$0xff] %v3295
    %3354 = vst [vmem:[#allocation2 + $0x98] sm:$0xff] %v3297
    %3355 = vst [vmem:[#allocation2 + $0xa0] sm:$0xff] %v3301
    %3356 = vst [vmem:[#allocation2 + $0xa8] sm:$0xff] %v3303
    %3357 = vst [vmem:[#allocation2 + $0xb0] sm:$0xff] %v3307
    %3358 = vst [vmem:[#allocation2 + $0xb8] sm:$0xff] %v3309
    %3359 = vst [vmem:[#allocation2 + $0xc0] sm:$0xff] %v3313
    %3360 = vst [vmem:[#allocation2 + $0xc8] sm:$0xff] %v3315
    %3361 = vst [vmem:[#allocation2 + $0xd0] sm:$0xff] %v3319
    %3362 = vst [vmem:[#allocation2 + $0xd8] sm:$0xff] %v3321
    %3363 = vst [vmem:[#allocation2 + $0xe0] sm:$0xff] %v3325
    %3364 = vst [vmem:[#allocation2 + $0xe8] sm:$0xff] %v3327
    %3365 = vst [vmem:[#allocation2 + $0xf0] sm:$0xff] %v3331
    %3366 = vst [vmem:[#allocation2 + $0xf8] sm:$0xff] %v3333
    %v3367 = vld [vmem:[#allocation12] sm:$0xff]
    %v3368 = vld [vmem:[#allocation12 + $0x8] sm:$0xff]
    %v3369 = vld [vmem:[#allocation12 + $0x10] sm:$0xff]
    %v3370 = vld [vmem:[#allocation12 + $0x18] sm:$0xff]
    %v3371 = vld [vmem:[#allocation12 + $0x20] sm:$0xff]
    %v3372 = vld [vmem:[#allocation12 + $0x28] sm:$0xff]
    %v3373 = vld [vmem:[#allocation12 + $0x30] sm:$0xff]
    %v3374 = vld [vmem:[#allocation12 + $0x38] sm:$0xff]
    %v3375 = vld [vmem:[#allocation12 + $0x40] sm:$0xff]
    %v3376 = vld [vmem:[#allocation12 + $0x48] sm:$0xff]
    %v3377 = vld [vmem:[#allocation12 + $0x50] sm:$0xff]
    %v3378 = vld [vmem:[#allocation12 + $0x58] sm:$0xff]
    %v3379 = vld [vmem:[#allocation12 + $0x60] sm:$0xff]
    %v3380 = vld [vmem:[#allocation12 + $0x68] sm:$0xff]
    %v3381 = vld [vmem:[#allocation12 + $0x70] sm:$0xff]
    %v3382 = vld [vmem:[#allocation12 + $0x78] sm:$0xff]
    %v3383 = vld [vmem:[%s11] sm:$0x3]
    %v3385 = vlaneseq
    %v3386 = vshrl.u32 %v3385, 7
    %v3387 = vsub.s32 0, %v3386
    %v3388 = vrot.slane %v3383, %v3387
    %v3389 = vlaneseq
    %v3390 = vshrl.u32 %v3389, 7
    %v3391 = vsub.s32 1, %v3390
    %v3392 = vrot.slane %v3383, %v3391
    %3395 = vmatprep.subr.mxu0 0.0
    %3396 = vmatpush1.msra.mxu0 0.0
    %3397 = vmatprep.subr.mxu0 0.0
    %3398 = vmatpush1.msra.mxu0 0.0
    %3399 = vmatprep.subr.mxu0 0.0
    %3400 = vmatpush1.msra.mxu0 0.0
    %3401 = vmatprep.subr.mxu0 0.0
    %3402 = vmatpush1.msra.mxu0 0.0
    %3403 = vmatprep.subr.mxu0 0.0
    %3404 = vmatpush1.msra.mxu0 0.0
    %3405 = vmatprep.subr.mxu0 0.0
    %3406 = vmatpush1.msra.mxu0 0.0
    %3407 = vmatprep.subr.mxu0 0.0
    %3408 = vmatpush1.msra.mxu0 0.0
    %3409 = vmatprep.subr.mxu0 0.0
    %3410 = vmatpush1.msra.mxu0 0.0
    %3411 = vmatprep.subr.mxu0 %v3382
    %3412 = vmatpush1.msra.mxu0 %v3381
    %3413 = vmatprep.subr.mxu0 %v3380
    %3414 = vmatpush1.msra.mxu0 %v3379
    %3415 = vmatprep.subr.mxu0 %v3378
    %3416 = vmatpush1.msra.mxu0 %v3377
    %3417 = vmatprep.subr.mxu0 %v3376
    %3418 = vmatpush1.msra.mxu0 %v3375
    %3419 = vmatprep.subr.mxu0 %v3374
    %3420 = vmatpush1.msra.mxu0 %v3373
    %3421 = vmatprep.subr.mxu0 %v3372
    %3422 = vmatpush1.msra.mxu0 %v3371
    %3423 = vmatprep.subr.mxu0 %v3370
    %3424 = vmatpush1.msra.mxu0 %v3369
    %3425 = vmatprep.subr.mxu0 %v3368
    %3426 = vmatpush1.msra.mxu0 %v3367
    %3427 = vmatprep.subr.mxu0 0.0
    %3428 = vmatpush2.msra.mxu0 0.0
    %3429 = vmatprep.subr.mxu0 0.0
    %3430 = vmatpush2.msra.mxu0 0.0
    %3431 = vmatprep.subr.mxu0 0.0
    %3432 = vmatpush2.msra.mxu0 0.0
    %3433 = vmatprep.subr.mxu0 0.0
    %3434 = vmatpush2.msra.mxu0 0.0
    %3435 = vmatprep.subr.mxu0 0.0
    %3436 = vmatpush2.msra.mxu0 0.0
    %3437 = vmatprep.subr.mxu0 0.0
    %3438 = vmatpush2.msra.mxu0 0.0
    %3439 = vmatprep.subr.mxu0 0.0
    %3440 = vmatpush2.msra.mxu0 0.0
    %3441 = vmatprep.subr.mxu0 0.0
    %3442 = vmatpush2.msra.mxu0 0.0
    %3443 = vmatprep.subr.mxu0 0.0
    %3444 = vmatpush2.msra.mxu0 0.0
    %3445 = vmatprep.subr.mxu0 0.0
    %3446 = vmatpush2.msra.mxu0 0.0
    %3447 = vmatprep.subr.mxu0 0.0
    %3448 = vmatpush2.msra.mxu0 0.0
    %3449 = vmatprep.subr.mxu0 0.0
    %3450 = vmatpush2.msra.mxu0 0.0
    %3451 = vmatprep.subr.mxu0 0.0
    %3452 = vmatpush2.msra.mxu0 0.0
    %3453 = vmatprep.subr.mxu0 0.0
    %3454 = vmatpush2.msra.mxu0 0.0
    %3455 = vmatprep.subr.mxu0 0.0
    %3456 = vmatpush2.msra.mxu0 0.0
    %3457 = vmatprep.subr.mxu0 0.0
    %3458 = vmatpush2.msra.mxu0 0.0
    %3459 = vmatprep.mubr.f32.mxu0 0.0
    %3460 = vmatmul.mubr.f32.gmra.mxu0 %v794
    %v3461 = vpop.f32.mrf.mxu0
    %v3462 = vadd.f32 %v3388, %v3461
    %v3463 = vpop.f32.mrf.mxu0
    %v3464 = vadd.f32 %v3392, %v3463
    %3465 = vdwg.mxu0
    %v3466 = vld [vmem:[#allocation2] sm:$0xff]
    %v3467 = vld [vmem:[#allocation2 + $0xf8] sm:$0xff]
    %v3468 = vadd.f32 %v3466, %v3462
    %v3469 = vxor.u32 %v3468, 2147483648
    %v3470 = vmul.f32 %v3469, 1.442695
    %v3471 = vpow.pop %v3470
    %v3472 = vadd.f32 %v3471, 1.0
    %v3473 = vrcp.pop %v3472
    %v3474 = vmul.f32 1.0, %v3473
    %3476 = vrot.lane.b32.xlu0 %v3462, 64
    %v3477 = vpop.permute.xlu0 %3476
    %v3479 = vmul.f32 %v3474, %v3477
    %3481 = vrot.lane.b32.xlu0 %v3479, 64
    %v3482 = vpop.permute.xlu0 %3481
    %v3484 = vadd.f32 %v3466, %v3482
    %v3485 = vtanh.pop %v3484
    %v3486 = vsub.f32 1.0, %v3474
    %3488 = vrot.lane.b32.xlu0 %v3485, 96
    %v3489 = vpop.permute.xlu0 %3488
    %v3491 = vmul.f32 %v3486, %v3489
    %v3492 = vmul.f32 %v3474, 0.0
    %v3493 = vadd.f32 %v3491, %v3492
    %v3494 = vadd.f32 %v3467, %v3464
    %v3495 = vxor.u32 %v3494, 2147483648
    %v3496 = vmul.f32 %v3495, 1.442695
    %v3497 = vpow.pop %v3496
    %v3498 = vadd.f32 %v3497, 1.0
    %v3499 = vrcp.pop %v3498
    %v3500 = vmul.f32 1.0, %v3499
    %3502 = vrot.lane.b32.xlu0 %v3464, 64
    %v3503 = vpop.permute.xlu0 %3502
    %v3505 = vmul.f32 %v3500, %v3503
    %3507 = vrot.lane.b32.xlu0 %v3505, 64
    %v3508 = vpop.permute.xlu0 %3507
    %v3510 = vadd.f32 %v3467, %v3508
    %v3511 = vtanh.pop %v3510
    %v3512 = vsub.f32 1.0, %v3500
    %3514 = vrot.lane.b32.xlu0 %v3511, 96
    %v3515 = vpop.permute.xlu0 %3514
    %v3517 = vmul.f32 %v3512, %v3515
    %v3518 = vmul.f32 %v3500, 0.0
    %v3519 = vadd.f32 %v3517, %v3518
    %v3520 = vsel %vm926, %v3493, 0.0
    %v3521 = vsel %vm933, %v3519, 0.0
    %3523 = vrot.lane.b32.xlu0 %v3520, 96
    %v3524 = vpop.permute.xlu0 %3523
    %v3526 = vsel %vm939, %v3524, %v3521
    %v3528 = vsel %vm792, %v3526, 0
    %3530 = vmatprep.subr.mxu0 0.0
    %3531 = vmatpush1.msra.mxu0 0.0
    %3532 = vmatprep.subr.mxu0 0.0
    %3533 = vmatpush1.msra.mxu0 0.0
    %3534 = vmatprep.subr.mxu0 0.0
    %3535 = vmatpush1.msra.mxu0 0.0
    %3536 = vmatprep.subr.mxu0 0.0
    %3537 = vmatpush1.msra.mxu0 0.0
    %3538 = vmatprep.subr.mxu0 0.0
    %3539 = vmatpush1.msra.mxu0 0.0
    %3540 = vmatprep.subr.mxu0 0.0
    %3541 = vmatpush1.msra.mxu0 0.0
    %3542 = vmatprep.subr.mxu0 0.0
    %3543 = vmatpush1.msra.mxu0 0.0
    %3544 = vmatprep.subr.mxu0 0.0
    %3545 = vmatpush1.msra.mxu0 0.0
    %3546 = vmatprep.subr.mxu0 %v3382
    %3547 = vmatpush1.msra.mxu0 %v3381
    %3548 = vmatprep.subr.mxu0 %v3380
    %3549 = vmatpush1.msra.mxu0 %v3379
    %3550 = vmatprep.subr.mxu0 %v3378
    %3551 = vmatpush1.msra.mxu0 %v3377
    %3552 = vmatprep.subr.mxu0 %v3376
    %3553 = vmatpush1.msra.mxu0 %v3375
    %3554 = vmatprep.subr.mxu0 %v3374
    %3555 = vmatpush1.msra.mxu0 %v3373
    %3556 = vmatprep.subr.mxu0 %v3372
    %3557 = vmatpush1.msra.mxu0 %v3371
    %3558 = vmatprep.subr.mxu0 %v3370
    %3559 = vmatpush1.msra.mxu0 %v3369
    %3560 = vmatprep.subr.mxu0 %v3368
    %3561 = vmatpush1.msra.mxu0 %v3367
    %3562 = vmatprep.subr.mxu0 0.0
    %3563 = vmatpush2.msra.mxu0 0.0
    %3564 = vmatprep.subr.mxu0 0.0
    %3565 = vmatpush2.msra.mxu0 0.0
    %3566 = vmatprep.subr.mxu0 0.0
    %3567 = vmatpush2.msra.mxu0 0.0
    %3568 = vmatprep.subr.mxu0 0.0
    %3569 = vmatpush2.msra.mxu0 0.0
    %3570 = vmatprep.subr.mxu0 0.0
    %3571 = vmatpush2.msra.mxu0 0.0
    %3572 = vmatprep.subr.mxu0 0.0
    %3573 = vmatpush2.msra.mxu0 0.0
    %3574 = vmatprep.subr.mxu0 0.0
    %3575 = vmatpush2.msra.mxu0 0.0
    %3576 = vmatprep.subr.mxu0 0.0
    %3577 = vmatpush2.msra.mxu0 0.0
    %3578 = vmatprep.subr.mxu0 0.0
    %3579 = vmatpush2.msra.mxu0 0.0
    %3580 = vmatprep.subr.mxu0 0.0
    %3581 = vmatpush2.msra.mxu0 0.0
    %3582 = vmatprep.subr.mxu0 0.0
    %3583 = vmatpush2.msra.mxu0 0.0
    %3584 = vmatprep.subr.mxu0 0.0
    %3585 = vmatpush2.msra.mxu0 0.0
    %3586 = vmatprep.subr.mxu0 0.0
    %3587 = vmatpush2.msra.mxu0 0.0
    %3588 = vmatprep.subr.mxu0 0.0
    %3589 = vmatpush2.msra.mxu0 0.0
    %3590 = vmatprep.subr.mxu0 0.0
    %3591 = vmatpush2.msra.mxu0 0.0
    %3592 = vmatprep.subr.mxu0 0.0
    %3593 = vmatpush2.msra.mxu0 0.0
    %3594 = vmatprep.mubr.f32.mxu0 0.0
    %3595 = vmatmul.mubr.f32.gmra.mxu0 %v3528
    %v3596 = vpop.f32.mrf.mxu0
    %v3597 = vadd.f32 %v3388, %v3596
    %v3598 = vpop.f32.mrf.mxu0
    %v3599 = vadd.f32 %v3392, %v3598
    %3600 = vdwg.mxu0
    %v3601 = vld [vmem:[#allocation2 + $0x10] sm:$0xff]
    %v3602 = vld [vmem:[#allocation2 + $0xe8] sm:$0xff]
    %v3603 = vadd.f32 %v3601, %v3597
    %v3604 = vxor.u32 %v3603, 2147483648
    %v3605 = vmul.f32 %v3604, 1.442695
    %v3606 = vpow.pop %v3605
    %v3607 = vadd.f32 %v3606, 1.0
    %v3608 = vrcp.pop %v3607
    %v3609 = vmul.f32 1.0, %v3608
    %3611 = vrot.lane.b32.xlu0 %v3597, 64
    %v3612 = vpop.permute.xlu0 %3611
    %v3614 = vmul.f32 %v3609, %v3612
    %3616 = vrot.lane.b32.xlu0 %v3614, 64
    %v3617 = vpop.permute.xlu0 %3616
    %v3619 = vadd.f32 %v3601, %v3617
    %v3620 = vtanh.pop %v3619
    %v3621 = vsub.f32 1.0, %v3609
    %3623 = vrot.lane.b32.xlu0 %v3620, 96
    %v3624 = vpop.permute.xlu0 %3623
    %v3626 = vmul.f32 %v3621, %v3624
    %v3627 = vmul.f32 %v3609, %v3520
    %v3628 = vadd.f32 %v3626, %v3627
    %v3629 = vadd.f32 %v3602, %v3599
    %v3630 = vxor.u32 %v3629, 2147483648
    %v3631 = vmul.f32 %v3630, 1.442695
    %v3632 = vpow.pop %v3631
    %v3633 = vadd.f32 %v3632, 1.0
    %v3634 = vrcp.pop %v3633
    %v3635 = vmul.f32 1.0, %v3634
    %3637 = vrot.lane.b32.xlu0 %v3599, 64
    %v3638 = vpop.permute.xlu0 %3637
    %v3640 = vmul.f32 %v3635, %v3638
    %3642 = vrot.lane.b32.xlu0 %v3640, 64
    %v3643 = vpop.permute.xlu0 %3642
    %v3645 = vadd.f32 %v3602, %v3643
    %v3646 = vtanh.pop %v3645
    %v3647 = vsub.f32 1.0, %v3635
    %3649 = vrot.lane.b32.xlu0 %v3646, 96
    %v3650 = vpop.permute.xlu0 %3649
    %v3652 = vmul.f32 %v3647, %v3650
    %v3653 = vmul.f32 %v3635, %v3521
    %v3654 = vadd.f32 %v3652, %v3653
    %v3655 = vsel %vm1077, %v3628, %v3520
    %v3656 = vsel %vm1084, %v3654, %v3521
    %3658 = vrot.lane.b32.xlu0 %v3655, 96
    %v3659 = vpop.permute.xlu0 %3658
    %v3661 = vsel %vm939, %v3659, %v3656
    %v3663 = vsel %vm792, %v3661, 0
    %3665 = vmatprep.subr.mxu0 0.0
    %3666 = vmatpush1.msra.mxu0 0.0
    %3667 = vmatprep.subr.mxu0 0.0
    %3668 = vmatpush1.msra.mxu0 0.0
    %3669 = vmatprep.subr.mxu0 0.0
    %3670 = vmatpush1.msra.mxu0 0.0
    %3671 = vmatprep.subr.mxu0 0.0
    %3672 = vmatpush1.msra.mxu0 0.0
    %3673 = vmatprep.subr.mxu0 0.0
    %3674 = vmatpush1.msra.mxu0 0.0
    %3675 = vmatprep.subr.mxu0 0.0
    %3676 = vmatpush1.msra.mxu0 0.0
    %3677 = vmatprep.subr.mxu0 0.0
    %3678 = vmatpush1.msra.mxu0 0.0
    %3679 = vmatprep.subr.mxu0 0.0
    %3680 = vmatpush1.msra.mxu0 0.0
    %3681 = vmatprep.subr.mxu0 %v3382
    %3682 = vmatpush1.msra.mxu0 %v3381
    %3683 = vmatprep.subr.mxu0 %v3380
    %3684 = vmatpush1.msra.mxu0 %v3379
    %3685 = vmatprep.subr.mxu0 %v3378
    %3686 = vmatpush1.msra.mxu0 %v3377
    %3687 = vmatprep.subr.mxu0 %v3376
    %3688 = vmatpush1.msra.mxu0 %v3375
    %3689 = vmatprep.subr.mxu0 %v3374
    %3690 = vmatpush1.msra.mxu0 %v3373
    %3691 = vmatprep.subr.mxu0 %v3372
    %3692 = vmatpush1.msra.mxu0 %v3371
    %3693 = vmatprep.subr.mxu0 %v3370
    %3694 = vmatpush1.msra.mxu0 %v3369
    %3695 = vmatprep.subr.mxu0 %v3368
    %3696 = vmatpush1.msra.mxu0 %v3367
    %3697 = vmatprep.subr.mxu0 0.0
    %3698 = vmatpush2.msra.mxu0 0.0
    %3699 = vmatprep.subr.mxu0 0.0
    %3700 = vmatpush2.msra.mxu0 0.0
    %3701 = vmatprep.subr.mxu0 0.0
    %3702 = vmatpush2.msra.mxu0 0.0
    %3703 = vmatprep.subr.mxu0 0.0
    %3704 = vmatpush2.msra.mxu0 0.0
    %3705 = vmatprep.subr.mxu0 0.0
    %3706 = vmatpush2.msra.mxu0 0.0
    %3707 = vmatprep.subr.mxu0 0.0
    %3708 = vmatpush2.msra.mxu0 0.0
    %3709 = vmatprep.subr.mxu0 0.0
    %3710 = vmatpush2.msra.mxu0 0.0
    %3711 = vmatprep.subr.mxu0 0.0
    %3712 = vmatpush2.msra.mxu0 0.0
    %3713 = vmatprep.subr.mxu0 0.0
    %3714 = vmatpush2.msra.mxu0 0.0
    %3715 = vmatprep.subr.mxu0 0.0
    %3716 = vmatpush2.msra.mxu0 0.0
    %3717 = vmatprep.subr.mxu0 0.0
    %3718 = vmatpush2.msra.mxu0 0.0
    %3719 = vmatprep.subr.mxu0 0.0
    %3720 = vmatpush2.msra.mxu0 0.0
    %3721 = vmatprep.subr.mxu0 0.0
    %3722 = vmatpush2.msra.mxu0 0.0
    %3723 = vmatprep.subr.mxu0 0.0
    %3724 = vmatpush2.msra.mxu0 0.0
    %3725 = vmatprep.subr.mxu0 0.0
    %3726 = vmatpush2.msra.mxu0 0.0
    %3727 = vmatprep.subr.mxu0 0.0
    %3728 = vmatpush2.msra.mxu0 0.0
    %3729 = vmatprep.mubr.f32.mxu0 0.0
    %3730 = vmatmul.mubr.f32.gmra.mxu0 %v3663
    %v3731 = vpop.f32.mrf.mxu0
    %v3732 = vadd.f32 %v3388, %v3731
    %v3733 = vpop.f32.mrf.mxu0
    %v3734 = vadd.f32 %v3392, %v3733
    %3735 = vdwg.mxu0
    %v3736 = vld [vmem:[#allocation2 + $0x20] sm:$0xff]
    %v3737 = vld [vmem:[#allocation2 + $0xd8] sm:$0xff]
    %v3738 = vadd.f32 %v3736, %v3732
    %v3739 = vxor.u32 %v3738, 2147483648
    %v3740 = vmul.f32 %v3739, 1.442695
    %v3741 = vpow.pop %v3740
    %v3742 = vadd.f32 %v3741, 1.0
    %v3743 = vrcp.pop %v3742
    %v3744 = vmul.f32 1.0, %v3743
    %3746 = vrot.lane.b32.xlu0 %v3732, 64
    %v3747 = vpop.permute.xlu0 %3746
    %v3749 = vmul.f32 %v3744, %v3747
    %3751 = vrot.lane.b32.xlu0 %v3749, 64
    %v3752 = vpop.permute.xlu0 %3751
    %v3754 = vadd.f32 %v3736, %v3752
    %v3755 = vtanh.pop %v3754
    %v3756 = vsub.f32 1.0, %v3744
    %3758 = vrot.lane.b32.xlu0 %v3755, 96
    %v3759 = vpop.permute.xlu0 %3758
    %v3761 = vmul.f32 %v3756, %v3759
    %v3762 = vmul.f32 %v3744, %v3655
    %v3763 = vadd.f32 %v3761, %v3762
    %v3764 = vadd.f32 %v3737, %v3734
    %v3765 = vxor.u32 %v3764, 2147483648
    %v3766 = vmul.f32 %v3765, 1.442695
    %v3767 = vpow.pop %v3766
    %v3768 = vadd.f32 %v3767, 1.0
    %v3769 = vrcp.pop %v3768
    %v3770 = vmul.f32 1.0, %v3769
    %3772 = vrot.lane.b32.xlu0 %v3734, 64
    %v3773 = vpop.permute.xlu0 %3772
    %v3775 = vmul.f32 %v3770, %v3773
    %3777 = vrot.lane.b32.xlu0 %v3775, 64
    %v3778 = vpop.permute.xlu0 %3777
    %v3780 = vadd.f32 %v3737, %v3778
    %v3781 = vtanh.pop %v3780
    %v3782 = vsub.f32 1.0, %v3770
    %3784 = vrot.lane.b32.xlu0 %v3781, 96
    %v3785 = vpop.permute.xlu0 %3784
    %v3787 = vmul.f32 %v3782, %v3785
    %v3788 = vmul.f32 %v3770, %v3656
    %v3789 = vadd.f32 %v3787, %v3788
    %v3790 = vsel %vm1226, %v3763, %v3655
    %v3791 = vsel %vm1233, %v3789, %v3656
    %3793 = vrot.lane.b32.xlu0 %v3790, 96
    %v3794 = vpop.permute.xlu0 %3793
    %v3796 = vsel %vm939, %v3794, %v3791
    %v3798 = vsel %vm792, %v3796, 0
    %3800 = vmatprep.subr.mxu0 0.0
    %3801 = vmatpush1.msra.mxu0 0.0
    %3802 = vmatprep.subr.mxu0 0.0
    %3803 = vmatpush1.msra.mxu0 0.0
    %3804 = vmatprep.subr.mxu0 0.0
    %3805 = vmatpush1.msra.mxu0 0.0
    %3806 = vmatprep.subr.mxu0 0.0
    %3807 = vmatpush1.msra.mxu0 0.0
    %3808 = vmatprep.subr.mxu0 0.0
    %3809 = vmatpush1.msra.mxu0 0.0
    %3810 = vmatprep.subr.mxu0 0.0
    %3811 = vmatpush1.msra.mxu0 0.0
    %3812 = vmatprep.subr.mxu0 0.0
    %3813 = vmatpush1.msra.mxu0 0.0
    %3814 = vmatprep.subr.mxu0 0.0
    %3815 = vmatpush1.msra.mxu0 0.0
    %3816 = vmatprep.subr.mxu0 %v3382
    %3817 = vmatpush1.msra.mxu0 %v3381
    %3818 = vmatprep.subr.mxu0 %v3380
    %3819 = vmatpush1.msra.mxu0 %v3379
    %3820 = vmatprep.subr.mxu0 %v3378
    %3821 = vmatpush1.msra.mxu0 %v3377
    %3822 = vmatprep.subr.mxu0 %v3376
    %3823 = vmatpush1.msra.mxu0 %v3375
    %3824 = vmatprep.subr.mxu0 %v3374
    %3825 = vmatpush1.msra.mxu0 %v3373
    %3826 = vmatprep.subr.mxu0 %v3372
    %3827 = vmatpush1.msra.mxu0 %v3371
    %3828 = vmatprep.subr.mxu0 %v3370
    %3829 = vmatpush1.msra.mxu0 %v3369
    %3830 = vmatprep.subr.mxu0 %v3368
    %3831 = vmatpush1.msra.mxu0 %v3367
    %3832 = vmatprep.subr.mxu0 0.0
    %3833 = vmatpush2.msra.mxu0 0.0
    %3834 = vmatprep.subr.mxu0 0.0
    %3835 = vmatpush2.msra.mxu0 0.0
    %3836 = vmatprep.subr.mxu0 0.0
    %3837 = vmatpush2.msra.mxu0 0.0
    %3838 = vmatprep.subr.mxu0 0.0
    %3839 = vmatpush2.msra.mxu0 0.0
    %3840 = vmatprep.subr.mxu0 0.0
    %3841 = vmatpush2.msra.mxu0 0.0
    %3842 = vmatprep.subr.mxu0 0.0
    %3843 = vmatpush2.msra.mxu0 0.0
    %3844 = vmatprep.subr.mxu0 0.0
    %3845 = vmatpush2.msra.mxu0 0.0
    %3846 = vmatprep.subr.mxu0 0.0
    %3847 = vmatpush2.msra.mxu0 0.0
    %3848 = vmatprep.subr.mxu0 0.0
    %3849 = vmatpush2.msra.mxu0 0.0
    %3850 = vmatprep.subr.mxu0 0.0
    %3851 = vmatpush2.msra.mxu0 0.0
    %3852 = vmatprep.subr.mxu0 0.0
    %3853 = vmatpush2.msra.mxu0 0.0
    %3854 = vmatprep.subr.mxu0 0.0
    %3855 = vmatpush2.msra.mxu0 0.0
    %3856 = vmatprep.subr.mxu0 0.0
    %3857 = vmatpush2.msra.mxu0 0.0
    %3858 = vmatprep.subr.mxu0 0.0
    %3859 = vmatpush2.msra.mxu0 0.0
    %3860 = vmatprep.subr.mxu0 0.0
    %3861 = vmatpush2.msra.mxu0 0.0
    %3862 = vmatprep.subr.mxu0 0.0
    %3863 = vmatpush2.msra.mxu0 0.0
    %3864 = vmatprep.mubr.f32.mxu0 0.0
    %3865 = vmatmul.mubr.f32.gmra.mxu0 %v3798
    %v3866 = vpop.f32.mrf.mxu0
    %v3867 = vadd.f32 %v3388, %v3866
    %v3868 = vpop.f32.mrf.mxu0
    %v3869 = vadd.f32 %v3392, %v3868
    %3870 = vdwg.mxu0
    %v3871 = vld [vmem:[#allocation2 + $0x30] sm:$0xff]
    %v3872 = vld [vmem:[#allocation2 + $0xc8] sm:$0xff]
    %v3873 = vadd.f32 %v3871, %v3867
    %v3874 = vxor.u32 %v3873, 2147483648
    %v3875 = vmul.f32 %v3874, 1.442695
    %v3876 = vpow.pop %v3875
    %v3877 = vadd.f32 %v3876, 1.0
    %v3878 = vrcp.pop %v3877
    %v3879 = vmul.f32 1.0, %v3878
    %3881 = vrot.lane.b32.xlu0 %v3867, 64
    %v3882 = vpop.permute.xlu0 %3881
    %v3884 = vmul.f32 %v3879, %v3882
    %3886 = vrot.lane.b32.xlu0 %v3884, 64
    %v3887 = vpop.permute.xlu0 %3886
    %v3889 = vadd.f32 %v3871, %v3887
    %v3890 = vtanh.pop %v3889
    %v3891 = vsub.f32 1.0, %v3879
    %3893 = vrot.lane.b32.xlu0 %v3890, 96
    %v3894 = vpop.permute.xlu0 %3893
    %v3896 = vmul.f32 %v3891, %v3894
    %v3897 = vmul.f32 %v3879, %v3790
    %v3898 = vadd.f32 %v3896, %v3897
    %v3899 = vadd.f32 %v3872, %v3869
    %v3900 = vxor.u32 %v3899, 2147483648
    %v3901 = vmul.f32 %v3900, 1.442695
    %v3902 = vpow.pop %v3901
    %v3903 = vadd.f32 %v3902, 1.0
    %v3904 = vrcp.pop %v3903
    %v3905 = vmul.f32 1.0, %v3904
    %3907 = vrot.lane.b32.xlu0 %v3869, 64
    %v3908 = vpop.permute.xlu0 %3907
    %v3910 = vmul.f32 %v3905, %v3908
    %3912 = vrot.lane.b32.xlu0 %v3910, 64
    %v3913 = vpop.permute.xlu0 %3912
    %v3915 = vadd.f32 %v3872, %v3913
    %v3916 = vtanh.pop %v3915
    %v3917 = vsub.f32 1.0, %v3905
    %3919 = vrot.lane.b32.xlu0 %v3916, 96
    %v3920 = vpop.permute.xlu0 %3919
    %v3922 = vmul.f32 %v3917, %v3920
    %v3923 = vmul.f32 %v3905, %v3791
    %v3924 = vadd.f32 %v3922, %v3923
    %v3925 = vsel %vm1375, %v3898, %v3790
    %v3926 = vsel %vm1382, %v3924, %v3791
    %3928 = vrot.lane.b32.xlu0 %v3925, 96
    %v3929 = vpop.permute.xlu0 %3928
    %v3931 = vsel %vm939, %v3929, %v3926
    %v3933 = vsel %vm792, %v3931, 0
    %3935 = vmatprep.subr.mxu0 0.0
    %3936 = vmatpush1.msra.mxu0 0.0
    %3937 = vmatprep.subr.mxu0 0.0
    %3938 = vmatpush1.msra.mxu0 0.0
    %3939 = vmatprep.subr.mxu0 0.0
    %3940 = vmatpush1.msra.mxu0 0.0
    %3941 = vmatprep.subr.mxu0 0.0
    %3942 = vmatpush1.msra.mxu0 0.0
    %3943 = vmatprep.subr.mxu0 0.0
    %3944 = vmatpush1.msra.mxu0 0.0
    %3945 = vmatprep.subr.mxu0 0.0
    %3946 = vmatpush1.msra.mxu0 0.0
    %3947 = vmatprep.subr.mxu0 0.0
    %3948 = vmatpush1.msra.mxu0 0.0
    %3949 = vmatprep.subr.mxu0 0.0
    %3950 = vmatpush1.msra.mxu0 0.0
    %3951 = vmatprep.subr.mxu0 %v3382
    %3952 = vmatpush1.msra.mxu0 %v3381
    %3953 = vmatprep.subr.mxu0 %v3380
    %3954 = vmatpush1.msra.mxu0 %v3379
    %3955 = vmatprep.subr.mxu0 %v3378
    %3956 = vmatpush1.msra.mxu0 %v3377
    %3957 = vmatprep.subr.mxu0 %v3376
    %3958 = vmatpush1.msra.mxu0 %v3375
    %3959 = vmatprep.subr.mxu0 %v3374
    %3960 = vmatpush1.msra.mxu0 %v3373
    %3961 = vmatprep.subr.mxu0 %v3372
    %3962 = vmatpush1.msra.mxu0 %v3371
    %3963 = vmatprep.subr.mxu0 %v3370
    %3964 = vmatpush1.msra.mxu0 %v3369
    %3965 = vmatprep.subr.mxu0 %v3368
    %3966 = vmatpush1.msra.mxu0 %v3367
    %3967 = vmatprep.subr.mxu0 0.0
    %3968 = vmatpush2.msra.mxu0 0.0
    %3969 = vmatprep.subr.mxu0 0.0
    %3970 = vmatpush2.msra.mxu0 0.0
    %3971 = vmatprep.subr.mxu0 0.0
    %3972 = vmatpush2.msra.mxu0 0.0
    %3973 = vmatprep.subr.mxu0 0.0
    %3974 = vmatpush2.msra.mxu0 0.0
    %3975 = vmatprep.subr.mxu0 0.0
    %3976 = vmatpush2.msra.mxu0 0.0
    %3977 = vmatprep.subr.mxu0 0.0
    %3978 = vmatpush2.msra.mxu0 0.0
    %3979 = vmatprep.subr.mxu0 0.0
    %3980 = vmatpush2.msra.mxu0 0.0
    %3981 = vmatprep.subr.mxu0 0.0
    %3982 = vmatpush2.msra.mxu0 0.0
    %3983 = vmatprep.subr.mxu0 0.0
    %3984 = vmatpush2.msra.mxu0 0.0
    %3985 = vmatprep.subr.mxu0 0.0
    %3986 = vmatpush2.msra.mxu0 0.0
    %3987 = vmatprep.subr.mxu0 0.0
    %3988 = vmatpush2.msra.mxu0 0.0
    %3989 = vmatprep.subr.mxu0 0.0
    %3990 = vmatpush2.msra.mxu0 0.0
    %3991 = vmatprep.subr.mxu0 0.0
    %3992 = vmatpush2.msra.mxu0 0.0
    %3993 = vmatprep.subr.mxu0 0.0
    %3994 = vmatpush2.msra.mxu0 0.0
    %3995 = vmatprep.subr.mxu0 0.0
    %3996 = vmatpush2.msra.mxu0 0.0
    %3997 = vmatprep.subr.mxu0 0.0
    %3998 = vmatpush2.msra.mxu0 0.0
    %3999 = vmatprep.mubr.f32.mxu0 0.0
    %4000 = vmatmul.mubr.f32.gmra.mxu0 %v3933
    %v4001 = vpop.f32.mrf.mxu0
    %v4002 = vadd.f32 %v3388, %v4001
    %v4003 = vpop.f32.mrf.mxu0
    %v4004 = vadd.f32 %v3392, %v4003
    %4005 = vdwg.mxu0
    %v4006 = vld [vmem:[#allocation2 + $0x40] sm:$0xff]
    %v4007 = vld [vmem:[#allocation2 + $0xb8] sm:$0xff]
    %v4008 = vadd.f32 %v4006, %v4002
    %v4009 = vxor.u32 %v4008, 2147483648
    %v4010 = vmul.f32 %v4009, 1.442695
    %v4011 = vpow.pop %v4010
    %v4012 = vadd.f32 %v4011, 1.0
    %v4013 = vrcp.pop %v4012
    %v4014 = vmul.f32 1.0, %v4013
    %4016 = vrot.lane.b32.xlu0 %v4002, 64
    %v4017 = vpop.permute.xlu0 %4016
    %v4019 = vmul.f32 %v4014, %v4017
    %4021 = vrot.lane.b32.xlu0 %v4019, 64
    %v4022 = vpop.permute.xlu0 %4021
    %v4024 = vadd.f32 %v4006, %v4022
    %v4025 = vtanh.pop %v4024
    %v4026 = vsub.f32 1.0, %v4014
    %4028 = vrot.lane.b32.xlu0 %v4025, 96
    %v4029 = vpop.permute.xlu0 %4028
    %v4031 = vmul.f32 %v4026, %v4029
    %v4032 = vmul.f32 %v4014, %v3925
    %v4033 = vadd.f32 %v4031, %v4032
    %v4034 = vadd.f32 %v4007, %v4004
    %v4035 = vxor.u32 %v4034, 2147483648
    %v4036 = vmul.f32 %v4035, 1.442695
    %v4037 = vpow.pop %v4036
    %v4038 = vadd.f32 %v4037, 1.0
    %v4039 = vrcp.pop %v4038
    %v4040 = vmul.f32 1.0, %v4039
    %4042 = vrot.lane.b32.xlu0 %v4004, 64
    %v4043 = vpop.permute.xlu0 %4042
    %v4045 = vmul.f32 %v4040, %v4043
    %4047 = vrot.lane.b32.xlu0 %v4045, 64
    %v4048 = vpop.permute.xlu0 %4047
    %v4050 = vadd.f32 %v4007, %v4048
    %v4051 = vtanh.pop %v4050
    %v4052 = vsub.f32 1.0, %v4040
    %4054 = vrot.lane.b32.xlu0 %v4051, 96
    %v4055 = vpop.permute.xlu0 %4054
    %v4057 = vmul.f32 %v4052, %v4055
    %v4058 = vmul.f32 %v4040, %v3926
    %v4059 = vadd.f32 %v4057, %v4058
    %v4060 = vsel %vm1524, %v4033, %v3925
    %v4061 = vsel %vm1531, %v4059, %v3926
    %4063 = vrot.lane.b32.xlu0 %v4060, 96
    %v4064 = vpop.permute.xlu0 %4063
    %v4066 = vsel %vm939, %v4064, %v4061
    %v4068 = vsel %vm792, %v4066, 0
    %4070 = vmatprep.subr.mxu0 0.0
    %4071 = vmatpush1.msra.mxu0 0.0
    %4072 = vmatprep.subr.mxu0 0.0
    %4073 = vmatpush1.msra.mxu0 0.0
    %4074 = vmatprep.subr.mxu0 0.0
    %4075 = vmatpush1.msra.mxu0 0.0
    %4076 = vmatprep.subr.mxu0 0.0
    %4077 = vmatpush1.msra.mxu0 0.0
    %4078 = vmatprep.subr.mxu0 0.0
    %4079 = vmatpush1.msra.mxu0 0.0
    %4080 = vmatprep.subr.mxu0 0.0
    %4081 = vmatpush1.msra.mxu0 0.0
    %4082 = vmatprep.subr.mxu0 0.0
    %4083 = vmatpush1.msra.mxu0 0.0
    %4084 = vmatprep.subr.mxu0 0.0
    %4085 = vmatpush1.msra.mxu0 0.0
    %4086 = vmatprep.subr.mxu0 %v3382
    %4087 = vmatpush1.msra.mxu0 %v3381
    %4088 = vmatprep.subr.mxu0 %v3380
    %4089 = vmatpush1.msra.mxu0 %v3379
    %4090 = vmatprep.subr.mxu0 %v3378
    %4091 = vmatpush1.msra.mxu0 %v3377
    %4092 = vmatprep.subr.mxu0 %v3376
    %4093 = vmatpush1.msra.mxu0 %v3375
    %4094 = vmatprep.subr.mxu0 %v3374
    %4095 = vmatpush1.msra.mxu0 %v3373
    %4096 = vmatprep.subr.mxu0 %v3372
    %4097 = vmatpush1.msra.mxu0 %v3371
    %4098 = vmatprep.subr.mxu0 %v3370
    %4099 = vmatpush1.msra.mxu0 %v3369
    %4100 = vmatprep.subr.mxu0 %v3368
    %4101 = vmatpush1.msra.mxu0 %v3367
    %4102 = vmatprep.subr.mxu0 0.0
    %4103 = vmatpush2.msra.mxu0 0.0
    %4104 = vmatprep.subr.mxu0 0.0
    %4105 = vmatpush2.msra.mxu0 0.0
    %4106 = vmatprep.subr.mxu0 0.0
    %4107 = vmatpush2.msra.mxu0 0.0
    %4108 = vmatprep.subr.mxu0 0.0
    %4109 = vmatpush2.msra.mxu0 0.0
    %4110 = vmatprep.subr.mxu0 0.0
    %4111 = vmatpush2.msra.mxu0 0.0
    %4112 = vmatprep.subr.mxu0 0.0
    %4113 = vmatpush2.msra.mxu0 0.0
    %4114 = vmatprep.subr.mxu0 0.0
    %4115 = vmatpush2.msra.mxu0 0.0
    %4116 = vmatprep.subr.mxu0 0.0
    %4117 = vmatpush2.msra.mxu0 0.0
    %4118 = vmatprep.subr.mxu0 0.0
    %4119 = vmatpush2.msra.mxu0 0.0
    %4120 = vmatprep.subr.mxu0 0.0
    %4121 = vmatpush2.msra.mxu0 0.0
    %4122 = vmatprep.subr.mxu0 0.0
    %4123 = vmatpush2.msra.mxu0 0.0
    %4124 = vmatprep.subr.mxu0 0.0
    %4125 = vmatpush2.msra.mxu0 0.0
    %4126 = vmatprep.subr.mxu0 0.0
    %4127 = vmatpush2.msra.mxu0 0.0
    %4128 = vmatprep.subr.mxu0 0.0
    %4129 = vmatpush2.msra.mxu0 0.0
    %4130 = vmatprep.subr.mxu0 0.0
    %4131 = vmatpush2.msra.mxu0 0.0
    %4132 = vmatprep.subr.mxu0 0.0
    %4133 = vmatpush2.msra.mxu0 0.0
    %4134 = vmatprep.mubr.f32.mxu0 0.0
    %4135 = vmatmul.mubr.f32.gmra.mxu0 %v4068
    %v4136 = vpop.f32.mrf.mxu0
    %v4137 = vadd.f32 %v3388, %v4136
    %v4138 = vpop.f32.mrf.mxu0
    %v4139 = vadd.f32 %v3392, %v4138
    %4140 = vdwg.mxu0
    %v4141 = vld [vmem:[#allocation2 + $0x50] sm:$0xff]
    %v4142 = vld [vmem:[#allocation2 + $0xa8] sm:$0xff]
    %v4143 = vadd.f32 %v4141, %v4137
    %v4144 = vxor.u32 %v4143, 2147483648
    %v4145 = vmul.f32 %v4144, 1.442695
    %v4146 = vpow.pop %v4145
    %v4147 = vadd.f32 %v4146, 1.0
    %v4148 = vrcp.pop %v4147
    %v4149 = vmul.f32 1.0, %v4148
    %4151 = vrot.lane.b32.xlu0 %v4137, 64
    %v4152 = vpop.permute.xlu0 %4151
    %v4154 = vmul.f32 %v4149, %v4152
    %4156 = vrot.lane.b32.xlu0 %v4154, 64
    %v4157 = vpop.permute.xlu0 %4156
    %v4159 = vadd.f32 %v4141, %v4157
    %v4160 = vtanh.pop %v4159
    %v4161 = vsub.f32 1.0, %v4149
    %4163 = vrot.lane.b32.xlu0 %v4160, 96
    %v4164 = vpop.permute.xlu0 %4163
    %v4166 = vmul.f32 %v4161, %v4164
    %v4167 = vmul.f32 %v4149, %v4060
    %v4168 = vadd.f32 %v4166, %v4167
    %v4169 = vadd.f32 %v4142, %v4139
    %v4170 = vxor.u32 %v4169, 2147483648
    %v4171 = vmul.f32 %v4170, 1.442695
    %v4172 = vpow.pop %v4171
    %v4173 = vadd.f32 %v4172, 1.0
    %v4174 = vrcp.pop %v4173
    %v4175 = vmul.f32 1.0, %v4174
    %4177 = vrot.lane.b32.xlu0 %v4139, 64
    %v4178 = vpop.permute.xlu0 %4177
    %v4180 = vmul.f32 %v4175, %v4178
    %4182 = vrot.lane.b32.xlu0 %v4180, 64
    %v4183 = vpop.permute.xlu0 %4182
    %v4185 = vadd.f32 %v4142, %v4183
    %v4186 = vtanh.pop %v4185
    %v4187 = vsub.f32 1.0, %v4175
    %4189 = vrot.lane.b32.xlu0 %v4186, 96
    %v4190 = vpop.permute.xlu0 %4189
    %v4192 = vmul.f32 %v4187, %v4190
    %v4193 = vmul.f32 %v4175, %v4061
    %v4194 = vadd.f32 %v4192, %v4193
    %v4195 = vsel %vm1673, %v4168, %v4060
    %v4196 = vsel %vm1680, %v4194, %v4061
    %4198 = vrot.lane.b32.xlu0 %v4195, 96
    %v4199 = vpop.permute.xlu0 %4198
    %v4201 = vsel %vm939, %v4199, %v4196
    %v4203 = vsel %vm792, %v4201, 0
    %4205 = vmatprep.subr.mxu0 0.0
    %4206 = vmatpush1.msra.mxu0 0.0
    %4207 = vmatprep.subr.mxu0 0.0
    %4208 = vmatpush1.msra.mxu0 0.0
    %4209 = vmatprep.subr.mxu0 0.0
    %4210 = vmatpush1.msra.mxu0 0.0
    %4211 = vmatprep.subr.mxu0 0.0
    %4212 = vmatpush1.msra.mxu0 0.0
    %4213 = vmatprep.subr.mxu0 0.0
    %4214 = vmatpush1.msra.mxu0 0.0
    %4215 = vmatprep.subr.mxu0 0.0
    %4216 = vmatpush1.msra.mxu0 0.0
    %4217 = vmatprep.subr.mxu0 0.0
    %4218 = vmatpush1.msra.mxu0 0.0
    %4219 = vmatprep.subr.mxu0 0.0
    %4220 = vmatpush1.msra.mxu0 0.0
    %4221 = vmatprep.subr.mxu0 %v3382
    %4222 = vmatpush1.msra.mxu0 %v3381
    %4223 = vmatprep.subr.mxu0 %v3380
    %4224 = vmatpush1.msra.mxu0 %v3379
    %4225 = vmatprep.subr.mxu0 %v3378
    %4226 = vmatpush1.msra.mxu0 %v3377
    %4227 = vmatprep.subr.mxu0 %v3376
    %4228 = vmatpush1.msra.mxu0 %v3375
    %4229 = vmatprep.subr.mxu0 %v3374
    %4230 = vmatpush1.msra.mxu0 %v3373
    %4231 = vmatprep.subr.mxu0 %v3372
    %4232 = vmatpush1.msra.mxu0 %v3371
    %4233 = vmatprep.subr.mxu0 %v3370
    %4234 = vmatpush1.msra.mxu0 %v3369
    %4235 = vmatprep.subr.mxu0 %v3368
    %4236 = vmatpush1.msra.mxu0 %v3367
    %4237 = vmatprep.subr.mxu0 0.0
    %4238 = vmatpush2.msra.mxu0 0.0
    %4239 = vmatprep.subr.mxu0 0.0
    %4240 = vmatpush2.msra.mxu0 0.0
    %4241 = vmatprep.subr.mxu0 0.0
    %4242 = vmatpush2.msra.mxu0 0.0
    %4243 = vmatprep.subr.mxu0 0.0
    %4244 = vmatpush2.msra.mxu0 0.0
    %4245 = vmatprep.subr.mxu0 0.0
    %4246 = vmatpush2.msra.mxu0 0.0
    %4247 = vmatprep.subr.mxu0 0.0
    %4248 = vmatpush2.msra.mxu0 0.0
    %4249 = vmatprep.subr.mxu0 0.0
    %4250 = vmatpush2.msra.mxu0 0.0
    %4251 = vmatprep.subr.mxu0 0.0
    %4252 = vmatpush2.msra.mxu0 0.0
    %4253 = vmatprep.subr.mxu0 0.0
    %4254 = vmatpush2.msra.mxu0 0.0
    %4255 = vmatprep.subr.mxu0 0.0
    %4256 = vmatpush2.msra.mxu0 0.0
    %4257 = vmatprep.subr.mxu0 0.0
    %4258 = vmatpush2.msra.mxu0 0.0
    %4259 = vmatprep.subr.mxu0 0.0
    %4260 = vmatpush2.msra.mxu0 0.0
    %4261 = vmatprep.subr.mxu0 0.0
    %4262 = vmatpush2.msra.mxu0 0.0
    %4263 = vmatprep.subr.mxu0 0.0
    %4264 = vmatpush2.msra.mxu0 0.0
    %4265 = vmatprep.subr.mxu0 0.0
    %4266 = vmatpush2.msra.mxu0 0.0
    %4267 = vmatprep.subr.mxu0 0.0
    %4268 = vmatpush2.msra.mxu0 0.0
    %4269 = vmatprep.mubr.f32.mxu0 0.0
    %4270 = vmatmul.mubr.f32.gmra.mxu0 %v4203
    %v4271 = vpop.f32.mrf.mxu0
    %v4272 = vadd.f32 %v3388, %v4271
    %v4273 = vpop.f32.mrf.mxu0
    %v4274 = vadd.f32 %v3392, %v4273
    %4275 = vdwg.mxu0
    %v4276 = vld [vmem:[#allocation2 + $0x60] sm:$0xff]
    %v4277 = vld [vmem:[#allocation2 + $0x98] sm:$0xff]
    %v4278 = vadd.f32 %v4276, %v4272
    %v4279 = vxor.u32 %v4278, 2147483648
    %v4280 = vmul.f32 %v4279, 1.442695
    %v4281 = vpow.pop %v4280
    %v4282 = vadd.f32 %v4281, 1.0
    %v4283 = vrcp.pop %v4282
    %v4284 = vmul.f32 1.0, %v4283
    %4286 = vrot.lane.b32.xlu0 %v4272, 64
    %v4287 = vpop.permute.xlu0 %4286
    %v4289 = vmul.f32 %v4284, %v4287
    %4291 = vrot.lane.b32.xlu0 %v4289, 64
    %v4292 = vpop.permute.xlu0 %4291
    %v4294 = vadd.f32 %v4276, %v4292
    %v4295 = vtanh.pop %v4294
    %v4296 = vsub.f32 1.0, %v4284
    %4298 = vrot.lane.b32.xlu0 %v4295, 96
    %v4299 = vpop.permute.xlu0 %4298
    %v4301 = vmul.f32 %v4296, %v4299
    %v4302 = vmul.f32 %v4284, %v4195
    %v4303 = vadd.f32 %v4301, %v4302
    %v4304 = vadd.f32 %v4277, %v4274
    %v4305 = vxor.u32 %v4304, 2147483648
    %v4306 = vmul.f32 %v4305, 1.442695
    %v4307 = vpow.pop %v4306
    %v4308 = vadd.f32 %v4307, 1.0
    %v4309 = vrcp.pop %v4308
    %v4310 = vmul.f32 1.0, %v4309
    %4312 = vrot.lane.b32.xlu0 %v4274, 64
    %v4313 = vpop.permute.xlu0 %4312
    %v4315 = vmul.f32 %v4310, %v4313
    %4317 = vrot.lane.b32.xlu0 %v4315, 64
    %v4318 = vpop.permute.xlu0 %4317
    %v4320 = vadd.f32 %v4277, %v4318
    %v4321 = vtanh.pop %v4320
    %v4322 = vsub.f32 1.0, %v4310
    %4324 = vrot.lane.b32.xlu0 %v4321, 96
    %v4325 = vpop.permute.xlu0 %4324
    %v4327 = vmul.f32 %v4322, %v4325
    %v4328 = vmul.f32 %v4310, %v4196
    %v4329 = vadd.f32 %v4327, %v4328
    %v4330 = vsel %vm1822, %v4303, %v4195
    %v4331 = vsel %vm1829, %v4329, %v4196
    %4333 = vrot.lane.b32.xlu0 %v4330, 96
    %v4334 = vpop.permute.xlu0 %4333
    %v4336 = vsel %vm939, %v4334, %v4331
    %v4338 = vsel %vm792, %v4336, 0
    %4340 = vmatprep.subr.mxu0 0.0
    %4341 = vmatpush1.msra.mxu0 0.0
    %4342 = vmatprep.subr.mxu0 0.0
    %4343 = vmatpush1.msra.mxu0 0.0
    %4344 = vmatprep.subr.mxu0 0.0
    %4345 = vmatpush1.msra.mxu0 0.0
    %4346 = vmatprep.subr.mxu0 0.0
    %4347 = vmatpush1.msra.mxu0 0.0
    %4348 = vmatprep.subr.mxu0 0.0
    %4349 = vmatpush1.msra.mxu0 0.0
    %4350 = vmatprep.subr.mxu0 0.0
    %4351 = vmatpush1.msra.mxu0 0.0
    %4352 = vmatprep.subr.mxu0 0.0
    %4353 = vmatpush1.msra.mxu0 0.0
    %4354 = vmatprep.subr.mxu0 0.0
    %4355 = vmatpush1.msra.mxu0 0.0
    %4356 = vmatprep.subr.mxu0 %v3382
    %4357 = vmatpush1.msra.mxu0 %v3381
    %4358 = vmatprep.subr.mxu0 %v3380
    %4359 = vmatpush1.msra.mxu0 %v3379
    %4360 = vmatprep.subr.mxu0 %v3378
    %4361 = vmatpush1.msra.mxu0 %v3377
    %4362 = vmatprep.subr.mxu0 %v3376
    %4363 = vmatpush1.msra.mxu0 %v3375
    %4364 = vmatprep.subr.mxu0 %v3374
    %4365 = vmatpush1.msra.mxu0 %v3373
    %4366 = vmatprep.subr.mxu0 %v3372
    %4367 = vmatpush1.msra.mxu0 %v3371
    %4368 = vmatprep.subr.mxu0 %v3370
    %4369 = vmatpush1.msra.mxu0 %v3369
    %4370 = vmatprep.subr.mxu0 %v3368
    %4371 = vmatpush1.msra.mxu0 %v3367
    %4372 = vmatprep.subr.mxu0 0.0
    %4373 = vmatpush2.msra.mxu0 0.0
    %4374 = vmatprep.subr.mxu0 0.0
    %4375 = vmatpush2.msra.mxu0 0.0
    %4376 = vmatprep.subr.mxu0 0.0
    %4377 = vmatpush2.msra.mxu0 0.0
    %4378 = vmatprep.subr.mxu0 0.0
    %4379 = vmatpush2.msra.mxu0 0.0
    %4380 = vmatprep.subr.mxu0 0.0
    %4381 = vmatpush2.msra.mxu0 0.0
    %4382 = vmatprep.subr.mxu0 0.0
    %4383 = vmatpush2.msra.mxu0 0.0
    %4384 = vmatprep.subr.mxu0 0.0
    %4385 = vmatpush2.msra.mxu0 0.0
    %4386 = vmatprep.subr.mxu0 0.0
    %4387 = vmatpush2.msra.mxu0 0.0
    %4388 = vmatprep.subr.mxu0 0.0
    %4389 = vmatpush2.msra.mxu0 0.0
    %4390 = vmatprep.subr.mxu0 0.0
    %4391 = vmatpush2.msra.mxu0 0.0
    %4392 = vmatprep.subr.mxu0 0.0
    %4393 = vmatpush2.msra.mxu0 0.0
    %4394 = vmatprep.subr.mxu0 0.0
    %4395 = vmatpush2.msra.mxu0 0.0
    %4396 = vmatprep.subr.mxu0 0.0
    %4397 = vmatpush2.msra.mxu0 0.0
    %4398 = vmatprep.subr.mxu0 0.0
    %4399 = vmatpush2.msra.mxu0 0.0
    %4400 = vmatprep.subr.mxu0 0.0
    %4401 = vmatpush2.msra.mxu0 0.0
    %4402 = vmatprep.subr.mxu0 0.0
    %4403 = vmatpush2.msra.mxu0 0.0
    %4404 = vmatprep.mubr.f32.mxu0 0.0
    %4405 = vmatmul.mubr.f32.gmra.mxu0 %v4338
    %v4406 = vpop.f32.mrf.mxu0
    %v4407 = vadd.f32 %v3388, %v4406
    %v4408 = vpop.f32.mrf.mxu0
    %v4409 = vadd.f32 %v3392, %v4408
    %4410 = vdwg.mxu0
    %v4411 = vld [vmem:[#allocation2 + $0x70] sm:$0xff]
    %v4412 = vld [vmem:[#allocation2 + $0x88] sm:$0xff]
    %v4413 = vadd.f32 %v4411, %v4407
    %v4414 = vxor.u32 %v4413, 2147483648
    %v4415 = vmul.f32 %v4414, 1.442695
    %v4416 = vpow.pop %v4415
    %v4417 = vadd.f32 %v4416, 1.0
    %v4418 = vrcp.pop %v4417
    %v4419 = vmul.f32 1.0, %v4418
    %4421 = vrot.lane.b32.xlu0 %v4407, 64
    %v4422 = vpop.permute.xlu0 %4421
    %v4424 = vmul.f32 %v4419, %v4422
    %4426 = vrot.lane.b32.xlu0 %v4424, 64
    %v4427 = vpop.permute.xlu0 %4426
    %v4429 = vadd.f32 %v4411, %v4427
    %v4430 = vtanh.pop %v4429
    %v4431 = vsub.f32 1.0, %v4419
    %4433 = vrot.lane.b32.xlu0 %v4430, 96
    %v4434 = vpop.permute.xlu0 %4433
    %v4436 = vmul.f32 %v4431, %v4434
    %v4437 = vmul.f32 %v4419, %v4330
    %v4438 = vadd.f32 %v4436, %v4437
    %v4439 = vadd.f32 %v4412, %v4409
    %v4440 = vxor.u32 %v4439, 2147483648
    %v4441 = vmul.f32 %v4440, 1.442695
    %v4442 = vpow.pop %v4441
    %v4443 = vadd.f32 %v4442, 1.0
    %v4444 = vrcp.pop %v4443
    %v4445 = vmul.f32 1.0, %v4444
    %4447 = vrot.lane.b32.xlu0 %v4409, 64
    %v4448 = vpop.permute.xlu0 %4447
    %v4450 = vmul.f32 %v4445, %v4448
    %4452 = vrot.lane.b32.xlu0 %v4450, 64
    %v4453 = vpop.permute.xlu0 %4452
    %v4455 = vadd.f32 %v4412, %v4453
    %v4456 = vtanh.pop %v4455
    %v4457 = vsub.f32 1.0, %v4445
    %4459 = vrot.lane.b32.xlu0 %v4456, 96
    %v4460 = vpop.permute.xlu0 %4459
    %v4462 = vmul.f32 %v4457, %v4460
    %v4463 = vmul.f32 %v4445, %v4331
    %v4464 = vadd.f32 %v4462, %v4463
    %v4465 = vsel %vm1971, %v4438, %v4330
    %v4466 = vsel %vm1978, %v4464, %v4331
    %4468 = vrot.lane.b32.xlu0 %v4465, 96
    %v4469 = vpop.permute.xlu0 %4468
    %v4471 = vsel %vm939, %v4469, %v4466
    %v4473 = vsel %vm792, %v4471, 0
    %4475 = vmatprep.subr.mxu0 0.0
    %4476 = vmatpush1.msra.mxu0 0.0
    %4477 = vmatprep.subr.mxu0 0.0
    %4478 = vmatpush1.msra.mxu0 0.0
    %4479 = vmatprep.subr.mxu0 0.0
    %4480 = vmatpush1.msra.mxu0 0.0
    %4481 = vmatprep.subr.mxu0 0.0
    %4482 = vmatpush1.msra.mxu0 0.0
    %4483 = vmatprep.subr.mxu0 0.0
    %4484 = vmatpush1.msra.mxu0 0.0
    %4485 = vmatprep.subr.mxu0 0.0
    %4486 = vmatpush1.msra.mxu0 0.0
    %4487 = vmatprep.subr.mxu0 0.0
    %4488 = vmatpush1.msra.mxu0 0.0
    %4489 = vmatprep.subr.mxu0 0.0
    %4490 = vmatpush1.msra.mxu0 0.0
    %4491 = vmatprep.subr.mxu0 %v3382
    %4492 = vmatpush1.msra.mxu0 %v3381
    %4493 = vmatprep.subr.mxu0 %v3380
    %4494 = vmatpush1.msra.mxu0 %v3379
    %4495 = vmatprep.subr.mxu0 %v3378
    %4496 = vmatpush1.msra.mxu0 %v3377
    %4497 = vmatprep.subr.mxu0 %v3376
    %4498 = vmatpush1.msra.mxu0 %v3375
    %4499 = vmatprep.subr.mxu0 %v3374
    %4500 = vmatpush1.msra.mxu0 %v3373
    %4501 = vmatprep.subr.mxu0 %v3372
    %4502 = vmatpush1.msra.mxu0 %v3371
    %4503 = vmatprep.subr.mxu0 %v3370
    %4504 = vmatpush1.msra.mxu0 %v3369
    %4505 = vmatprep.subr.mxu0 %v3368
    %4506 = vmatpush1.msra.mxu0 %v3367
    %4507 = vmatprep.subr.mxu0 0.0
    %4508 = vmatpush2.msra.mxu0 0.0
    %4509 = vmatprep.subr.mxu0 0.0
    %4510 = vmatpush2.msra.mxu0 0.0
    %4511 = vmatprep.subr.mxu0 0.0
    %4512 = vmatpush2.msra.mxu0 0.0
    %4513 = vmatprep.subr.mxu0 0.0
    %4514 = vmatpush2.msra.mxu0 0.0
    %4515 = vmatprep.subr.mxu0 0.0
    %4516 = vmatpush2.msra.mxu0 0.0
    %4517 = vmatprep.subr.mxu0 0.0
    %4518 = vmatpush2.msra.mxu0 0.0
    %4519 = vmatprep.subr.mxu0 0.0
    %4520 = vmatpush2.msra.mxu0 0.0
    %4521 = vmatprep.subr.mxu0 0.0
    %4522 = vmatpush2.msra.mxu0 0.0
    %4523 = vmatprep.subr.mxu0 0.0
    %4524 = vmatpush2.msra.mxu0 0.0
    %4525 = vmatprep.subr.mxu0 0.0
    %4526 = vmatpush2.msra.mxu0 0.0
    %4527 = vmatprep.subr.mxu0 0.0
    %4528 = vmatpush2.msra.mxu0 0.0
    %4529 = vmatprep.subr.mxu0 0.0
    %4530 = vmatpush2.msra.mxu0 0.0
    %4531 = vmatprep.subr.mxu0 0.0
    %4532 = vmatpush2.msra.mxu0 0.0
    %4533 = vmatprep.subr.mxu0 0.0
    %4534 = vmatpush2.msra.mxu0 0.0
    %4535 = vmatprep.subr.mxu0 0.0
    %4536 = vmatpush2.msra.mxu0 0.0
    %4537 = vmatprep.subr.mxu0 0.0
    %4538 = vmatpush2.msra.mxu0 0.0
    %4539 = vmatprep.mubr.f32.mxu0 0.0
    %4540 = vmatmul.mubr.f32.gmra.mxu0 %v4473
    %v4541 = vpop.f32.mrf.mxu0
    %v4542 = vadd.f32 %v3388, %v4541
    %v4543 = vpop.f32.mrf.mxu0
    %v4544 = vadd.f32 %v3392, %v4543
    %4545 = vdwg.mxu0
    %v4546 = vld [vmem:[#allocation2 + $0x80] sm:$0xff]
    %v4547 = vld [vmem:[#allocation2 + $0x78] sm:$0xff]
    %v4548 = vadd.f32 %v4546, %v4542
    %v4549 = vxor.u32 %v4548, 2147483648
    %v4550 = vmul.f32 %v4549, 1.442695
    %v4551 = vpow.pop %v4550
    %v4552 = vadd.f32 %v4551, 1.0
    %v4553 = vrcp.pop %v4552
    %v4554 = vmul.f32 1.0, %v4553
    %4556 = vrot.lane.b32.xlu0 %v4542, 64
    %v4557 = vpop.permute.xlu0 %4556
    %v4559 = vmul.f32 %v4554, %v4557
    %4561 = vrot.lane.b32.xlu0 %v4559, 64
    %v4562 = vpop.permute.xlu0 %4561
    %v4564 = vadd.f32 %v4546, %v4562
    %v4565 = vtanh.pop %v4564
    %v4566 = vsub.f32 1.0, %v4554
    %4568 = vrot.lane.b32.xlu0 %v4565, 96
    %v4569 = vpop.permute.xlu0 %4568
    %v4571 = vmul.f32 %v4566, %v4569
    %v4572 = vmul.f32 %v4554, %v4465
    %v4573 = vadd.f32 %v4571, %v4572
    %v4574 = vadd.f32 %v4547, %v4544
    %v4575 = vxor.u32 %v4574, 2147483648
    %v4576 = vmul.f32 %v4575, 1.442695
    %v4577 = vpow.pop %v4576
    %v4578 = vadd.f32 %v4577, 1.0
    %v4579 = vrcp.pop %v4578
    %v4580 = vmul.f32 1.0, %v4579
    %4582 = vrot.lane.b32.xlu0 %v4544, 64
    %v4583 = vpop.permute.xlu0 %4582
    %v4585 = vmul.f32 %v4580, %v4583
    %4587 = vrot.lane.b32.xlu0 %v4585, 64
    %v4588 = vpop.permute.xlu0 %4587
    %v4590 = vadd.f32 %v4547, %v4588
    %v4591 = vtanh.pop %v4590
    %v4592 = vsub.f32 1.0, %v4580
    %4594 = vrot.lane.b32.xlu0 %v4591, 96
    %v4595 = vpop.permute.xlu0 %4594
    %v4597 = vmul.f32 %v4592, %v4595
    %v4598 = vmul.f32 %v4580, %v4466
    %v4599 = vadd.f32 %v4597, %v4598
    %v4600 = vsel %vm1978, %v4573, %v4465
    %v4601 = vsel %vm1971, %v4599, %v4466
    %4603 = vrot.lane.b32.xlu0 %v4600, 96
    %v4604 = vpop.permute.xlu0 %4603
    %v4606 = vsel %vm939, %v4604, %v4601
    %v4608 = vsel %vm792, %v4606, 0
    %4610 = vmatprep.subr.mxu0 0.0
    %4611 = vmatpush1.msra.mxu0 0.0
    %4612 = vmatprep.subr.mxu0 0.0
    %4613 = vmatpush1.msra.mxu0 0.0
    %4614 = vmatprep.subr.mxu0 0.0
    %4615 = vmatpush1.msra.mxu0 0.0
    %4616 = vmatprep.subr.mxu0 0.0
    %4617 = vmatpush1.msra.mxu0 0.0
    %4618 = vmatprep.subr.mxu0 0.0
    %4619 = vmatpush1.msra.mxu0 0.0
    %4620 = vmatprep.subr.mxu0 0.0
    %4621 = vmatpush1.msra.mxu0 0.0
    %4622 = vmatprep.subr.mxu0 0.0
    %4623 = vmatpush1.msra.mxu0 0.0
    %4624 = vmatprep.subr.mxu0 0.0
    %4625 = vmatpush1.msra.mxu0 0.0
    %4626 = vmatprep.subr.mxu0 %v3382
    %4627 = vmatpush1.msra.mxu0 %v3381
    %4628 = vmatprep.subr.mxu0 %v3380
    %4629 = vmatpush1.msra.mxu0 %v3379
    %4630 = vmatprep.subr.mxu0 %v3378
    %4631 = vmatpush1.msra.mxu0 %v3377
    %4632 = vmatprep.subr.mxu0 %v3376
    %4633 = vmatpush1.msra.mxu0 %v3375
    %4634 = vmatprep.subr.mxu0 %v3374
    %4635 = vmatpush1.msra.mxu0 %v3373
    %4636 = vmatprep.subr.mxu0 %v3372
    %4637 = vmatpush1.msra.mxu0 %v3371
    %4638 = vmatprep.subr.mxu0 %v3370
    %4639 = vmatpush1.msra.mxu0 %v3369
    %4640 = vmatprep.subr.mxu0 %v3368
    %4641 = vmatpush1.msra.mxu0 %v3367
    %4642 = vmatprep.subr.mxu0 0.0
    %4643 = vmatpush2.msra.mxu0 0.0
    %4644 = vmatprep.subr.mxu0 0.0
    %4645 = vmatpush2.msra.mxu0 0.0
    %4646 = vmatprep.subr.mxu0 0.0
    %4647 = vmatpush2.msra.mxu0 0.0
    %4648 = vmatprep.subr.mxu0 0.0
    %4649 = vmatpush2.msra.mxu0 0.0
    %4650 = vmatprep.subr.mxu0 0.0
    %4651 = vmatpush2.msra.mxu0 0.0
    %4652 = vmatprep.subr.mxu0 0.0
    %4653 = vmatpush2.msra.mxu0 0.0
    %4654 = vmatprep.subr.mxu0 0.0
    %4655 = vmatpush2.msra.mxu0 0.0
    %4656 = vmatprep.subr.mxu0 0.0
    %4657 = vmatpush2.msra.mxu0 0.0
    %4658 = vmatprep.subr.mxu0 0.0
    %4659 = vmatpush2.msra.mxu0 0.0
    %4660 = vmatprep.subr.mxu0 0.0
    %4661 = vmatpush2.msra.mxu0 0.0
    %4662 = vmatprep.subr.mxu0 0.0
    %4663 = vmatpush2.msra.mxu0 0.0
    %4664 = vmatprep.subr.mxu0 0.0
    %4665 = vmatpush2.msra.mxu0 0.0
    %4666 = vmatprep.subr.mxu0 0.0
    %4667 = vmatpush2.msra.mxu0 0.0
    %4668 = vmatprep.subr.mxu0 0.0
    %4669 = vmatpush2.msra.mxu0 0.0
    %4670 = vmatprep.subr.mxu0 0.0
    %4671 = vmatpush2.msra.mxu0 0.0
    %4672 = vmatprep.subr.mxu0 0.0
    %4673 = vmatpush2.msra.mxu0 0.0
    %4674 = vmatprep.mubr.f32.mxu0 0.0
    %4675 = vmatmul.mubr.f32.gmra.mxu0 %v4608
    %v4676 = vpop.f32.mrf.mxu0
    %v4677 = vadd.f32 %v3388, %v4676
    %v4678 = vpop.f32.mrf.mxu0
    %v4679 = vadd.f32 %v3392, %v4678
    %4680 = vdwg.mxu0
    %v4681 = vld [vmem:[#allocation2 + $0x90] sm:$0xff]
    %v4682 = vld [vmem:[#allocation2 + $0x68] sm:$0xff]
    %v4683 = vadd.f32 %v4681, %v4677
    %v4684 = vxor.u32 %v4683, 2147483648
    %v4685 = vmul.f32 %v4684, 1.442695
    %v4686 = vpow.pop %v4685
    %v4687 = vadd.f32 %v4686, 1.0
    %v4688 = vrcp.pop %v4687
    %v4689 = vmul.f32 1.0, %v4688
    %4691 = vrot.lane.b32.xlu0 %v4677, 64
    %v4692 = vpop.permute.xlu0 %4691
    %v4694 = vmul.f32 %v4689, %v4692
    %4696 = vrot.lane.b32.xlu0 %v4694, 64
    %v4697 = vpop.permute.xlu0 %4696
    %v4699 = vadd.f32 %v4681, %v4697
    %v4700 = vtanh.pop %v4699
    %v4701 = vsub.f32 1.0, %v4689
    %4703 = vrot.lane.b32.xlu0 %v4700, 96
    %v4704 = vpop.permute.xlu0 %4703
    %v4706 = vmul.f32 %v4701, %v4704
    %v4707 = vmul.f32 %v4689, %v4600
    %v4708 = vadd.f32 %v4706, %v4707
    %v4709 = vadd.f32 %v4682, %v4679
    %v4710 = vxor.u32 %v4709, 2147483648
    %v4711 = vmul.f32 %v4710, 1.442695
    %v4712 = vpow.pop %v4711
    %v4713 = vadd.f32 %v4712, 1.0
    %v4714 = vrcp.pop %v4713
    %v4715 = vmul.f32 1.0, %v4714
    %4717 = vrot.lane.b32.xlu0 %v4679, 64
    %v4718 = vpop.permute.xlu0 %4717
    %v4720 = vmul.f32 %v4715, %v4718
    %4722 = vrot.lane.b32.xlu0 %v4720, 64
    %v4723 = vpop.permute.xlu0 %4722
    %v4725 = vadd.f32 %v4682, %v4723
    %v4726 = vtanh.pop %v4725
    %v4727 = vsub.f32 1.0, %v4715
    %4729 = vrot.lane.b32.xlu0 %v4726, 96
    %v4730 = vpop.permute.xlu0 %4729
    %v4732 = vmul.f32 %v4727, %v4730
    %v4733 = vmul.f32 %v4715, %v4601
    %v4734 = vadd.f32 %v4732, %v4733
    %v4735 = vsel %vm1829, %v4708, %v4600
    %v4736 = vsel %vm1822, %v4734, %v4601
    %4738 = vrot.lane.b32.xlu0 %v4735, 96
    %v4739 = vpop.permute.xlu0 %4738
    %v4741 = vsel %vm939, %v4739, %v4736
    %v4743 = vsel %vm792, %v4741, 0
    %4745 = vmatprep.subr.mxu0 0.0
    %4746 = vmatpush1.msra.mxu0 0.0
    %4747 = vmatprep.subr.mxu0 0.0
    %4748 = vmatpush1.msra.mxu0 0.0
    %4749 = vmatprep.subr.mxu0 0.0
    %4750 = vmatpush1.msra.mxu0 0.0
    %4751 = vmatprep.subr.mxu0 0.0
    %4752 = vmatpush1.msra.mxu0 0.0
    %4753 = vmatprep.subr.mxu0 0.0
    %4754 = vmatpush1.msra.mxu0 0.0
    %4755 = vmatprep.subr.mxu0 0.0
    %4756 = vmatpush1.msra.mxu0 0.0
    %4757 = vmatprep.subr.mxu0 0.0
    %4758 = vmatpush1.msra.mxu0 0.0
    %4759 = vmatprep.subr.mxu0 0.0
    %4760 = vmatpush1.msra.mxu0 0.0
    %4761 = vmatprep.subr.mxu0 %v3382
    %4762 = vmatpush1.msra.mxu0 %v3381
    %4763 = vmatprep.subr.mxu0 %v3380
    %4764 = vmatpush1.msra.mxu0 %v3379
    %4765 = vmatprep.subr.mxu0 %v3378
    %4766 = vmatpush1.msra.mxu0 %v3377
    %4767 = vmatprep.subr.mxu0 %v3376
    %4768 = vmatpush1.msra.mxu0 %v3375
    %4769 = vmatprep.subr.mxu0 %v3374
    %4770 = vmatpush1.msra.mxu0 %v3373
    %4771 = vmatprep.subr.mxu0 %v3372
    %4772 = vmatpush1.msra.mxu0 %v3371
    %4773 = vmatprep.subr.mxu0 %v3370
    %4774 = vmatpush1.msra.mxu0 %v3369
    %4775 = vmatprep.subr.mxu0 %v3368
    %4776 = vmatpush1.msra.mxu0 %v3367
    %4777 = vmatprep.subr.mxu0 0.0
    %4778 = vmatpush2.msra.mxu0 0.0
    %4779 = vmatprep.subr.mxu0 0.0
    %4780 = vmatpush2.msra.mxu0 0.0
    %4781 = vmatprep.subr.mxu0 0.0
    %4782 = vmatpush2.msra.mxu0 0.0
    %4783 = vmatprep.subr.mxu0 0.0
    %4784 = vmatpush2.msra.mxu0 0.0
    %4785 = vmatprep.subr.mxu0 0.0
    %4786 = vmatpush2.msra.mxu0 0.0
    %4787 = vmatprep.subr.mxu0 0.0
    %4788 = vmatpush2.msra.mxu0 0.0
    %4789 = vmatprep.subr.mxu0 0.0
    %4790 = vmatpush2.msra.mxu0 0.0
    %4791 = vmatprep.subr.mxu0 0.0
    %4792 = vmatpush2.msra.mxu0 0.0
    %4793 = vmatprep.subr.mxu0 0.0
    %4794 = vmatpush2.msra.mxu0 0.0
    %4795 = vmatprep.subr.mxu0 0.0
    %4796 = vmatpush2.msra.mxu0 0.0
    %4797 = vmatprep.subr.mxu0 0.0
    %4798 = vmatpush2.msra.mxu0 0.0
    %4799 = vmatprep.subr.mxu0 0.0
    %4800 = vmatpush2.msra.mxu0 0.0
    %4801 = vmatprep.subr.mxu0 0.0
    %4802 = vmatpush2.msra.mxu0 0.0
    %4803 = vmatprep.subr.mxu0 0.0
    %4804 = vmatpush2.msra.mxu0 0.0
    %4805 = vmatprep.subr.mxu0 0.0
    %4806 = vmatpush2.msra.mxu0 0.0
    %4807 = vmatprep.subr.mxu0 0.0
    %4808 = vmatpush2.msra.mxu0 0.0
    %4809 = vmatprep.mubr.f32.mxu0 0.0
    %4810 = vmatmul.mubr.f32.gmra.mxu0 %v4743
    %v4811 = vpop.f32.mrf.mxu0
    %v4812 = vadd.f32 %v3388, %v4811
    %v4813 = vpop.f32.mrf.mxu0
    %v4814 = vadd.f32 %v3392, %v4813
    %4815 = vdwg.mxu0
    %v4816 = vld [vmem:[#allocation2 + $0xa0] sm:$0xff]
    %v4817 = vld [vmem:[#allocation2 + $0x58] sm:$0xff]
    %v4818 = vadd.f32 %v4816, %v4812
    %v4819 = vxor.u32 %v4818, 2147483648
    %v4820 = vmul.f32 %v4819, 1.442695
    %v4821 = vpow.pop %v4820
    %v4822 = vadd.f32 %v4821, 1.0
    %v4823 = vrcp.pop %v4822
    %v4824 = vmul.f32 1.0, %v4823
    %4826 = vrot.lane.b32.xlu0 %v4812, 64
    %v4827 = vpop.permute.xlu0 %4826
    %v4829 = vmul.f32 %v4824, %v4827
    %4831 = vrot.lane.b32.xlu0 %v4829, 64
    %v4832 = vpop.permute.xlu0 %4831
    %v4834 = vadd.f32 %v4816, %v4832
    %v4835 = vtanh.pop %v4834
    %v4836 = vsub.f32 1.0, %v4824
    %4838 = vrot.lane.b32.xlu0 %v4835, 96
    %v4839 = vpop.permute.xlu0 %4838
    %v4841 = vmul.f32 %v4836, %v4839
    %v4842 = vmul.f32 %v4824, %v4735
    %v4843 = vadd.f32 %v4841, %v4842
    %v4844 = vadd.f32 %v4817, %v4814
    %v4845 = vxor.u32 %v4844, 2147483648
    %v4846 = vmul.f32 %v4845, 1.442695
    %v4847 = vpow.pop %v4846
    %v4848 = vadd.f32 %v4847, 1.0
    %v4849 = vrcp.pop %v4848
    %v4850 = vmul.f32 1.0, %v4849
    %4852 = vrot.lane.b32.xlu0 %v4814, 64
    %v4853 = vpop.permute.xlu0 %4852
    %v4855 = vmul.f32 %v4850, %v4853
    %4857 = vrot.lane.b32.xlu0 %v4855, 64
    %v4858 = vpop.permute.xlu0 %4857
    %v4860 = vadd.f32 %v4817, %v4858
    %v4861 = vtanh.pop %v4860
    %v4862 = vsub.f32 1.0, %v4850
    %4864 = vrot.lane.b32.xlu0 %v4861, 96
    %v4865 = vpop.permute.xlu0 %4864
    %v4867 = vmul.f32 %v4862, %v4865
    %v4868 = vmul.f32 %v4850, %v4736
    %v4869 = vadd.f32 %v4867, %v4868
    %v4870 = vsel %vm1680, %v4843, %v4735
    %v4871 = vsel %vm1673, %v4869, %v4736
    %4873 = vrot.lane.b32.xlu0 %v4870, 96
    %v4874 = vpop.permute.xlu0 %4873
    %v4876 = vsel %vm939, %v4874, %v4871
    %v4878 = vsel %vm792, %v4876, 0
    %4880 = vmatprep.subr.mxu0 0.0
    %4881 = vmatpush1.msra.mxu0 0.0
    %4882 = vmatprep.subr.mxu0 0.0
    %4883 = vmatpush1.msra.mxu0 0.0
    %4884 = vmatprep.subr.mxu0 0.0
    %4885 = vmatpush1.msra.mxu0 0.0
    %4886 = vmatprep.subr.mxu0 0.0
    %4887 = vmatpush1.msra.mxu0 0.0
    %4888 = vmatprep.subr.mxu0 0.0
    %4889 = vmatpush1.msra.mxu0 0.0
    %4890 = vmatprep.subr.mxu0 0.0
    %4891 = vmatpush1.msra.mxu0 0.0
    %4892 = vmatprep.subr.mxu0 0.0
    %4893 = vmatpush1.msra.mxu0 0.0
    %4894 = vmatprep.subr.mxu0 0.0
    %4895 = vmatpush1.msra.mxu0 0.0
    %4896 = vmatprep.subr.mxu0 %v3382
    %4897 = vmatpush1.msra.mxu0 %v3381
    %4898 = vmatprep.subr.mxu0 %v3380
    %4899 = vmatpush1.msra.mxu0 %v3379
    %4900 = vmatprep.subr.mxu0 %v3378
    %4901 = vmatpush1.msra.mxu0 %v3377
    %4902 = vmatprep.subr.mxu0 %v3376
    %4903 = vmatpush1.msra.mxu0 %v3375
    %4904 = vmatprep.subr.mxu0 %v3374
    %4905 = vmatpush1.msra.mxu0 %v3373
    %4906 = vmatprep.subr.mxu0 %v3372
    %4907 = vmatpush1.msra.mxu0 %v3371
    %4908 = vmatprep.subr.mxu0 %v3370
    %4909 = vmatpush1.msra.mxu0 %v3369
    %4910 = vmatprep.subr.mxu0 %v3368
    %4911 = vmatpush1.msra.mxu0 %v3367
    %4912 = vmatprep.subr.mxu0 0.0
    %4913 = vmatpush2.msra.mxu0 0.0
    %4914 = vmatprep.subr.mxu0 0.0
    %4915 = vmatpush2.msra.mxu0 0.0
    %4916 = vmatprep.subr.mxu0 0.0
    %4917 = vmatpush2.msra.mxu0 0.0
    %4918 = vmatprep.subr.mxu0 0.0
    %4919 = vmatpush2.msra.mxu0 0.0
    %4920 = vmatprep.subr.mxu0 0.0
    %4921 = vmatpush2.msra.mxu0 0.0
    %4922 = vmatprep.subr.mxu0 0.0
    %4923 = vmatpush2.msra.mxu0 0.0
    %4924 = vmatprep.subr.mxu0 0.0
    %4925 = vmatpush2.msra.mxu0 0.0
    %4926 = vmatprep.subr.mxu0 0.0
    %4927 = vmatpush2.msra.mxu0 0.0
    %4928 = vmatprep.subr.mxu0 0.0
    %4929 = vmatpush2.msra.mxu0 0.0
    %4930 = vmatprep.subr.mxu0 0.0
    %4931 = vmatpush2.msra.mxu0 0.0
    %4932 = vmatprep.subr.mxu0 0.0
    %4933 = vmatpush2.msra.mxu0 0.0
    %4934 = vmatprep.subr.mxu0 0.0
    %4935 = vmatpush2.msra.mxu0 0.0
    %4936 = vmatprep.subr.mxu0 0.0
    %4937 = vmatpush2.msra.mxu0 0.0
    %4938 = vmatprep.subr.mxu0 0.0
    %4939 = vmatpush2.msra.mxu0 0.0
    %4940 = vmatprep.subr.mxu0 0.0
    %4941 = vmatpush2.msra.mxu0 0.0
    %4942 = vmatprep.subr.mxu0 0.0
    %4943 = vmatpush2.msra.mxu0 0.0
    %4944 = vmatprep.mubr.f32.mxu0 0.0
    %4945 = vmatmul.mubr.f32.gmra.mxu0 %v4878
    %v4946 = vpop.f32.mrf.mxu0
    %v4947 = vadd.f32 %v3388, %v4946
    %v4948 = vpop.f32.mrf.mxu0
    %v4949 = vadd.f32 %v3392, %v4948
    %4950 = vdwg.mxu0
    %v4951 = vld [vmem:[#allocation2 + $0xb0] sm:$0xff]
    %v4952 = vld [vmem:[#allocation2 + $0x48] sm:$0xff]
    %v4953 = vadd.f32 %v4951, %v4947
    %v4954 = vxor.u32 %v4953, 2147483648
    %v4955 = vmul.f32 %v4954, 1.442695
    %v4956 = vpow.pop %v4955
    %v4957 = vadd.f32 %v4956, 1.0
    %v4958 = vrcp.pop %v4957
    %v4959 = vmul.f32 1.0, %v4958
    %4961 = vrot.lane.b32.xlu0 %v4947, 64
    %v4962 = vpop.permute.xlu0 %4961
    %v4964 = vmul.f32 %v4959, %v4962
    %4966 = vrot.lane.b32.xlu0 %v4964, 64
    %v4967 = vpop.permute.xlu0 %4966
    %v4969 = vadd.f32 %v4951, %v4967
    %v4970 = vtanh.pop %v4969
    %v4971 = vsub.f32 1.0, %v4959
    %4973 = vrot.lane.b32.xlu0 %v4970, 96
    %v4974 = vpop.permute.xlu0 %4973
    %v4976 = vmul.f32 %v4971, %v4974
    %v4977 = vmul.f32 %v4959, %v4870
    %v4978 = vadd.f32 %v4976, %v4977
    %v4979 = vadd.f32 %v4952, %v4949
    %v4980 = vxor.u32 %v4979, 2147483648
    %v4981 = vmul.f32 %v4980, 1.442695
    %v4982 = vpow.pop %v4981
    %v4983 = vadd.f32 %v4982, 1.0
    %v4984 = vrcp.pop %v4983
    %v4985 = vmul.f32 1.0, %v4984
    %4987 = vrot.lane.b32.xlu0 %v4949, 64
    %v4988 = vpop.permute.xlu0 %4987
    %v4990 = vmul.f32 %v4985, %v4988
    %4992 = vrot.lane.b32.xlu0 %v4990, 64
    %v4993 = vpop.permute.xlu0 %4992
    %v4995 = vadd.f32 %v4952, %v4993
    %v4996 = vtanh.pop %v4995
    %v4997 = vsub.f32 1.0, %v4985
    %4999 = vrot.lane.b32.xlu0 %v4996, 96
    %v5000 = vpop.permute.xlu0 %4999
    %v5002 = vmul.f32 %v4997, %v5000
    %v5003 = vmul.f32 %v4985, %v4871
    %v5004 = vadd.f32 %v5002, %v5003
    %v5005 = vsel %vm1531, %v4978, %v4870
    %v5006 = vsel %vm1524, %v5004, %v4871
    %5008 = vrot.lane.b32.xlu0 %v5005, 96
    %v5009 = vpop.permute.xlu0 %5008
    %v5011 = vsel %vm939, %v5009, %v5006
    %v5013 = vsel %vm792, %v5011, 0
    %5015 = vmatprep.subr.mxu0 0.0
    %5016 = vmatpush1.msra.mxu0 0.0
    %5017 = vmatprep.subr.mxu0 0.0
    %5018 = vmatpush1.msra.mxu0 0.0
    %5019 = vmatprep.subr.mxu0 0.0
    %5020 = vmatpush1.msra.mxu0 0.0
    %5021 = vmatprep.subr.mxu0 0.0
    %5022 = vmatpush1.msra.mxu0 0.0
    %5023 = vmatprep.subr.mxu0 0.0
    %5024 = vmatpush1.msra.mxu0 0.0
    %5025 = vmatprep.subr.mxu0 0.0
    %5026 = vmatpush1.msra.mxu0 0.0
    %5027 = vmatprep.subr.mxu0 0.0
    %5028 = vmatpush1.msra.mxu0 0.0
    %5029 = vmatprep.subr.mxu0 0.0
    %5030 = vmatpush1.msra.mxu0 0.0
    %5031 = vmatprep.subr.mxu0 %v3382
    %5032 = vmatpush1.msra.mxu0 %v3381
    %5033 = vmatprep.subr.mxu0 %v3380
    %5034 = vmatpush1.msra.mxu0 %v3379
    %5035 = vmatprep.subr.mxu0 %v3378
    %5036 = vmatpush1.msra.mxu0 %v3377
    %5037 = vmatprep.subr.mxu0 %v3376
    %5038 = vmatpush1.msra.mxu0 %v3375
    %5039 = vmatprep.subr.mxu0 %v3374
    %5040 = vmatpush1.msra.mxu0 %v3373
    %5041 = vmatprep.subr.mxu0 %v3372
    %5042 = vmatpush1.msra.mxu0 %v3371
    %5043 = vmatprep.subr.mxu0 %v3370
    %5044 = vmatpush1.msra.mxu0 %v3369
    %5045 = vmatprep.subr.mxu0 %v3368
    %5046 = vmatpush1.msra.mxu0 %v3367
    %5047 = vmatprep.subr.mxu0 0.0
    %5048 = vmatpush2.msra.mxu0 0.0
    %5049 = vmatprep.subr.mxu0 0.0
    %5050 = vmatpush2.msra.mxu0 0.0
    %5051 = vmatprep.subr.mxu0 0.0
    %5052 = vmatpush2.msra.mxu0 0.0
    %5053 = vmatprep.subr.mxu0 0.0
    %5054 = vmatpush2.msra.mxu0 0.0
    %5055 = vmatprep.subr.mxu0 0.0
    %5056 = vmatpush2.msra.mxu0 0.0
    %5057 = vmatprep.subr.mxu0 0.0
    %5058 = vmatpush2.msra.mxu0 0.0
    %5059 = vmatprep.subr.mxu0 0.0
    %5060 = vmatpush2.msra.mxu0 0.0
    %5061 = vmatprep.subr.mxu0 0.0
    %5062 = vmatpush2.msra.mxu0 0.0
    %5063 = vmatprep.subr.mxu0 0.0
    %5064 = vmatpush2.msra.mxu0 0.0
    %5065 = vmatprep.subr.mxu0 0.0
    %5066 = vmatpush2.msra.mxu0 0.0
    %5067 = vmatprep.subr.mxu0 0.0
    %5068 = vmatpush2.msra.mxu0 0.0
    %5069 = vmatprep.subr.mxu0 0.0
    %5070 = vmatpush2.msra.mxu0 0.0
    %5071 = vmatprep.subr.mxu0 0.0
    %5072 = vmatpush2.msra.mxu0 0.0
    %5073 = vmatprep.subr.mxu0 0.0
    %5074 = vmatpush2.msra.mxu0 0.0
    %5075 = vmatprep.subr.mxu0 0.0
    %5076 = vmatpush2.msra.mxu0 0.0
    %5077 = vmatprep.subr.mxu0 0.0
    %5078 = vmatpush2.msra.mxu0 0.0
    %5079 = vmatprep.mubr.f32.mxu0 0.0
    %5080 = vmatmul.mubr.f32.gmra.mxu0 %v5013
    %v5081 = vpop.f32.mrf.mxu0
    %v5082 = vadd.f32 %v3388, %v5081
    %v5083 = vpop.f32.mrf.mxu0
    %v5084 = vadd.f32 %v3392, %v5083
    %5085 = vdwg.mxu0
    %v5086 = vld [vmem:[#allocation2 + $0xc0] sm:$0xff]
    %v5087 = vld [vmem:[#allocation2 + $0x38] sm:$0xff]
    %v5088 = vadd.f32 %v5086, %v5082
    %v5089 = vxor.u32 %v5088, 2147483648
    %v5090 = vmul.f32 %v5089, 1.442695
    %v5091 = vpow.pop %v5090
    %v5092 = vadd.f32 %v5091, 1.0
    %v5093 = vrcp.pop %v5092
    %v5094 = vmul.f32 1.0, %v5093
    %5096 = vrot.lane.b32.xlu0 %v5082, 64
    %v5097 = vpop.permute.xlu0 %5096
    %v5099 = vmul.f32 %v5094, %v5097
    %5101 = vrot.lane.b32.xlu0 %v5099, 64
    %v5102 = vpop.permute.xlu0 %5101
    %v5104 = vadd.f32 %v5086, %v5102
    %v5105 = vtanh.pop %v5104
    %v5106 = vsub.f32 1.0, %v5094
    %5108 = vrot.lane.b32.xlu0 %v5105, 96
    %v5109 = vpop.permute.xlu0 %5108
    %v5111 = vmul.f32 %v5106, %v5109
    %v5112 = vmul.f32 %v5094, %v5005
    %v5113 = vadd.f32 %v5111, %v5112
    %v5114 = vadd.f32 %v5087, %v5084
    %v5115 = vxor.u32 %v5114, 2147483648
    %v5116 = vmul.f32 %v5115, 1.442695
    %v5117 = vpow.pop %v5116
    %v5118 = vadd.f32 %v5117, 1.0
    %v5119 = vrcp.pop %v5118
    %v5120 = vmul.f32 1.0, %v5119
    %5122 = vrot.lane.b32.xlu0 %v5084, 64
    %v5123 = vpop.permute.xlu0 %5122
    %v5125 = vmul.f32 %v5120, %v5123
    %5127 = vrot.lane.b32.xlu0 %v5125, 64
    %v5128 = vpop.permute.xlu0 %5127
    %v5130 = vadd.f32 %v5087, %v5128
    %v5131 = vtanh.pop %v5130
    %v5132 = vsub.f32 1.0, %v5120
    %5134 = vrot.lane.b32.xlu0 %v5131, 96
    %v5135 = vpop.permute.xlu0 %5134
    %v5137 = vmul.f32 %v5132, %v5135
    %v5138 = vmul.f32 %v5120, %v5006
    %v5139 = vadd.f32 %v5137, %v5138
    %v5140 = vsel %vm1382, %v5113, %v5005
    %v5141 = vsel %vm1375, %v5139, %v5006
    %5143 = vrot.lane.b32.xlu0 %v5140, 96
    %v5144 = vpop.permute.xlu0 %5143
    %v5146 = vsel %vm939, %v5144, %v5141
    %v5148 = vsel %vm792, %v5146, 0
    %5150 = vmatprep.subr.mxu0 0.0
    %5151 = vmatpush1.msra.mxu0 0.0
    %5152 = vmatprep.subr.mxu0 0.0
    %5153 = vmatpush1.msra.mxu0 0.0
    %5154 = vmatprep.subr.mxu0 0.0
    %5155 = vmatpush1.msra.mxu0 0.0
    %5156 = vmatprep.subr.mxu0 0.0
    %5157 = vmatpush1.msra.mxu0 0.0
    %5158 = vmatprep.subr.mxu0 0.0
    %5159 = vmatpush1.msra.mxu0 0.0
    %5160 = vmatprep.subr.mxu0 0.0
    %5161 = vmatpush1.msra.mxu0 0.0
    %5162 = vmatprep.subr.mxu0 0.0
    %5163 = vmatpush1.msra.mxu0 0.0
    %5164 = vmatprep.subr.mxu0 0.0
    %5165 = vmatpush1.msra.mxu0 0.0
    %5166 = vmatprep.subr.mxu0 %v3382
    %5167 = vmatpush1.msra.mxu0 %v3381
    %5168 = vmatprep.subr.mxu0 %v3380
    %5169 = vmatpush1.msra.mxu0 %v3379
    %5170 = vmatprep.subr.mxu0 %v3378
    %5171 = vmatpush1.msra.mxu0 %v3377
    %5172 = vmatprep.subr.mxu0 %v3376
    %5173 = vmatpush1.msra.mxu0 %v3375
    %5174 = vmatprep.subr.mxu0 %v3374
    %5175 = vmatpush1.msra.mxu0 %v3373
    %5176 = vmatprep.subr.mxu0 %v3372
    %5177 = vmatpush1.msra.mxu0 %v3371
    %5178 = vmatprep.subr.mxu0 %v3370
    %5179 = vmatpush1.msra.mxu0 %v3369
    %5180 = vmatprep.subr.mxu0 %v3368
    %5181 = vmatpush1.msra.mxu0 %v3367
    %5182 = vmatprep.subr.mxu0 0.0
    %5183 = vmatpush2.msra.mxu0 0.0
    %5184 = vmatprep.subr.mxu0 0.0
    %5185 = vmatpush2.msra.mxu0 0.0
    %5186 = vmatprep.subr.mxu0 0.0
    %5187 = vmatpush2.msra.mxu0 0.0
    %5188 = vmatprep.subr.mxu0 0.0
    %5189 = vmatpush2.msra.mxu0 0.0
    %5190 = vmatprep.subr.mxu0 0.0
    %5191 = vmatpush2.msra.mxu0 0.0
    %5192 = vmatprep.subr.mxu0 0.0
    %5193 = vmatpush2.msra.mxu0 0.0
    %5194 = vmatprep.subr.mxu0 0.0
    %5195 = vmatpush2.msra.mxu0 0.0
    %5196 = vmatprep.subr.mxu0 0.0
    %5197 = vmatpush2.msra.mxu0 0.0
    %5198 = vmatprep.subr.mxu0 0.0
    %5199 = vmatpush2.msra.mxu0 0.0
    %5200 = vmatprep.subr.mxu0 0.0
    %5201 = vmatpush2.msra.mxu0 0.0
    %5202 = vmatprep.subr.mxu0 0.0
    %5203 = vmatpush2.msra.mxu0 0.0
    %5204 = vmatprep.subr.mxu0 0.0
    %5205 = vmatpush2.msra.mxu0 0.0
    %5206 = vmatprep.subr.mxu0 0.0
    %5207 = vmatpush2.msra.mxu0 0.0
    %5208 = vmatprep.subr.mxu0 0.0
    %5209 = vmatpush2.msra.mxu0 0.0
    %5210 = vmatprep.subr.mxu0 0.0
    %5211 = vmatpush2.msra.mxu0 0.0
    %5212 = vmatprep.subr.mxu0 0.0
    %5213 = vmatpush2.msra.mxu0 0.0
    %5214 = vmatprep.mubr.f32.mxu0 0.0
    %5215 = vmatmul.mubr.f32.gmra.mxu0 %v5148
    %v5216 = vpop.f32.mrf.mxu0
    %v5217 = vadd.f32 %v3388, %v5216
    %v5218 = vpop.f32.mrf.mxu0
    %v5219 = vadd.f32 %v3392, %v5218
    %5220 = vdwg.mxu0
    %v5221 = vld [vmem:[#allocation2 + $0xd0] sm:$0xff]
    %v5222 = vld [vmem:[#allocation2 + $0x28] sm:$0xff]
    %v5223 = vadd.f32 %v5221, %v5217
    %v5224 = vxor.u32 %v5223, 2147483648
    %v5225 = vmul.f32 %v5224, 1.442695
    %v5226 = vpow.pop %v5225
    %v5227 = vadd.f32 %v5226, 1.0
    %v5228 = vrcp.pop %v5227
    %v5229 = vmul.f32 1.0, %v5228
    %5231 = vrot.lane.b32.xlu0 %v5217, 64
    %v5232 = vpop.permute.xlu0 %5231
    %v5234 = vmul.f32 %v5229, %v5232
    %5236 = vrot.lane.b32.xlu0 %v5234, 64
    %v5237 = vpop.permute.xlu0 %5236
    %v5239 = vadd.f32 %v5221, %v5237
    %v5240 = vtanh.pop %v5239
    %v5241 = vsub.f32 1.0, %v5229
    %5243 = vrot.lane.b32.xlu0 %v5240, 96
    %v5244 = vpop.permute.xlu0 %5243
    %v5246 = vmul.f32 %v5241, %v5244
    %v5247 = vmul.f32 %v5229, %v5140
    %v5248 = vadd.f32 %v5246, %v5247
    %v5249 = vadd.f32 %v5222, %v5219
    %v5250 = vxor.u32 %v5249, 2147483648
    %v5251 = vmul.f32 %v5250, 1.442695
    %v5252 = vpow.pop %v5251
    %v5253 = vadd.f32 %v5252, 1.0
    %v5254 = vrcp.pop %v5253
    %v5255 = vmul.f32 1.0, %v5254
    %5257 = vrot.lane.b32.xlu0 %v5219, 64
    %v5258 = vpop.permute.xlu0 %5257
    %v5260 = vmul.f32 %v5255, %v5258
    %5262 = vrot.lane.b32.xlu0 %v5260, 64
    %v5263 = vpop.permute.xlu0 %5262
    %v5265 = vadd.f32 %v5222, %v5263
    %v5266 = vtanh.pop %v5265
    %v5267 = vsub.f32 1.0, %v5255
    %5269 = vrot.lane.b32.xlu0 %v5266, 96
    %v5270 = vpop.permute.xlu0 %5269
    %v5272 = vmul.f32 %v5267, %v5270
    %v5273 = vmul.f32 %v5255, %v5141
    %v5274 = vadd.f32 %v5272, %v5273
    %v5275 = vsel %vm1233, %v5248, %v5140
    %v5276 = vsel %vm1226, %v5274, %v5141
    %5278 = vrot.lane.b32.xlu0 %v5275, 96
    %v5279 = vpop.permute.xlu0 %5278
    %v5281 = vsel %vm939, %v5279, %v5276
    %v5283 = vsel %vm792, %v5281, 0
    %5285 = vmatprep.subr.mxu0 0.0
    %5286 = vmatpush1.msra.mxu0 0.0
    %5287 = vmatprep.subr.mxu0 0.0
    %5288 = vmatpush1.msra.mxu0 0.0
    %5289 = vmatprep.subr.mxu0 0.0
    %5290 = vmatpush1.msra.mxu0 0.0
    %5291 = vmatprep.subr.mxu0 0.0
    %5292 = vmatpush1.msra.mxu0 0.0
    %5293 = vmatprep.subr.mxu0 0.0
    %5294 = vmatpush1.msra.mxu0 0.0
    %5295 = vmatprep.subr.mxu0 0.0
    %5296 = vmatpush1.msra.mxu0 0.0
    %5297 = vmatprep.subr.mxu0 0.0
    %5298 = vmatpush1.msra.mxu0 0.0
    %5299 = vmatprep.subr.mxu0 0.0
    %5300 = vmatpush1.msra.mxu0 0.0
    %5301 = vmatprep.subr.mxu0 %v3382
    %5302 = vmatpush1.msra.mxu0 %v3381
    %5303 = vmatprep.subr.mxu0 %v3380
    %5304 = vmatpush1.msra.mxu0 %v3379
    %5305 = vmatprep.subr.mxu0 %v3378
    %5306 = vmatpush1.msra.mxu0 %v3377
    %5307 = vmatprep.subr.mxu0 %v3376
    %5308 = vmatpush1.msra.mxu0 %v3375
    %5309 = vmatprep.subr.mxu0 %v3374
    %5310 = vmatpush1.msra.mxu0 %v3373
    %5311 = vmatprep.subr.mxu0 %v3372
    %5312 = vmatpush1.msra.mxu0 %v3371
    %5313 = vmatprep.subr.mxu0 %v3370
    %5314 = vmatpush1.msra.mxu0 %v3369
    %5315 = vmatprep.subr.mxu0 %v3368
    %5316 = vmatpush1.msra.mxu0 %v3367
    %5317 = vmatprep.subr.mxu0 0.0
    %5318 = vmatpush2.msra.mxu0 0.0
    %5319 = vmatprep.subr.mxu0 0.0
    %5320 = vmatpush2.msra.mxu0 0.0
    %5321 = vmatprep.subr.mxu0 0.0
    %5322 = vmatpush2.msra.mxu0 0.0
    %5323 = vmatprep.subr.mxu0 0.0
    %5324 = vmatpush2.msra.mxu0 0.0
    %5325 = vmatprep.subr.mxu0 0.0
    %5326 = vmatpush2.msra.mxu0 0.0
    %5327 = vmatprep.subr.mxu0 0.0
    %5328 = vmatpush2.msra.mxu0 0.0
    %5329 = vmatprep.subr.mxu0 0.0
    %5330 = vmatpush2.msra.mxu0 0.0
    %5331 = vmatprep.subr.mxu0 0.0
    %5332 = vmatpush2.msra.mxu0 0.0
    %5333 = vmatprep.subr.mxu0 0.0
    %5334 = vmatpush2.msra.mxu0 0.0
    %5335 = vmatprep.subr.mxu0 0.0
    %5336 = vmatpush2.msra.mxu0 0.0
    %5337 = vmatprep.subr.mxu0 0.0
    %5338 = vmatpush2.msra.mxu0 0.0
    %5339 = vmatprep.subr.mxu0 0.0
    %5340 = vmatpush2.msra.mxu0 0.0
    %5341 = vmatprep.subr.mxu0 0.0
    %5342 = vmatpush2.msra.mxu0 0.0
    %5343 = vmatprep.subr.mxu0 0.0
    %5344 = vmatpush2.msra.mxu0 0.0
    %5345 = vmatprep.subr.mxu0 0.0
    %5346 = vmatpush2.msra.mxu0 0.0
    %5347 = vmatprep.subr.mxu0 0.0
    %5348 = vmatpush2.msra.mxu0 0.0
    %5349 = vmatprep.mubr.f32.mxu0 0.0
    %5350 = vmatmul.mubr.f32.gmra.mxu0 %v5283
    %v5351 = vpop.f32.mrf.mxu0
    %v5352 = vadd.f32 %v3388, %v5351
    %v5353 = vpop.f32.mrf.mxu0
    %v5354 = vadd.f32 %v3392, %v5353
    %5355 = vdwg.mxu0
    %v5356 = vld [vmem:[#allocation2 + $0xe0] sm:$0xff]
    %v5357 = vld [vmem:[#allocation2 + $0x18] sm:$0xff]
    %v5358 = vadd.f32 %v5356, %v5352
    %v5359 = vxor.u32 %v5358, 2147483648
    %v5360 = vmul.f32 %v5359, 1.442695
    %v5361 = vpow.pop %v5360
    %v5362 = vadd.f32 %v5361, 1.0
    %v5363 = vrcp.pop %v5362
    %v5364 = vmul.f32 1.0, %v5363
    %5366 = vrot.lane.b32.xlu0 %v5352, 64
    %v5367 = vpop.permute.xlu0 %5366
    %v5369 = vmul.f32 %v5364, %v5367
    %5371 = vrot.lane.b32.xlu0 %v5369, 64
    %v5372 = vpop.permute.xlu0 %5371
    %v5374 = vadd.f32 %v5356, %v5372
    %v5375 = vtanh.pop %v5374
    %v5376 = vsub.f32 1.0, %v5364
    %5378 = vrot.lane.b32.xlu0 %v5375, 96
    %v5379 = vpop.permute.xlu0 %5378
    %v5381 = vmul.f32 %v5376, %v5379
    %v5382 = vmul.f32 %v5364, %v5275
    %v5383 = vadd.f32 %v5381, %v5382
    %v5384 = vadd.f32 %v5357, %v5354
    %v5385 = vxor.u32 %v5384, 2147483648
    %v5386 = vmul.f32 %v5385, 1.442695
    %v5387 = vpow.pop %v5386
    %v5388 = vadd.f32 %v5387, 1.0
    %v5389 = vrcp.pop %v5388
    %v5390 = vmul.f32 1.0, %v5389
    %5392 = vrot.lane.b32.xlu0 %v5354, 64
    %v5393 = vpop.permute.xlu0 %5392
    %v5395 = vmul.f32 %v5390, %v5393
    %5397 = vrot.lane.b32.xlu0 %v5395, 64
    %v5398 = vpop.permute.xlu0 %5397
    %v5400 = vadd.f32 %v5357, %v5398
    %v5401 = vtanh.pop %v5400
    %v5402 = vsub.f32 1.0, %v5390
    %5404 = vrot.lane.b32.xlu0 %v5401, 96
    %v5405 = vpop.permute.xlu0 %5404
    %v5407 = vmul.f32 %v5402, %v5405
    %v5408 = vmul.f32 %v5390, %v5276
    %v5409 = vadd.f32 %v5407, %v5408
    %v5410 = vsel %vm1084, %v5383, %v5275
    %v5411 = vsel %vm1077, %v5409, %v5276
    %5413 = vrot.lane.b32.xlu0 %v5410, 96
    %v5414 = vpop.permute.xlu0 %5413
    %v5416 = vsel %vm939, %v5414, %v5411
    %v5418 = vsel %vm792, %v5416, 0
    %5420 = vmatprep.subr.mxu0 0.0
    %5421 = vmatpush1.msra.mxu0 0.0
    %5422 = vmatprep.subr.mxu0 0.0
    %5423 = vmatpush1.msra.mxu0 0.0
    %5424 = vmatprep.subr.mxu0 0.0
    %5425 = vmatpush1.msra.mxu0 0.0
    %5426 = vmatprep.subr.mxu0 0.0
    %5427 = vmatpush1.msra.mxu0 0.0
    %5428 = vmatprep.subr.mxu0 0.0
    %5429 = vmatpush1.msra.mxu0 0.0
    %5430 = vmatprep.subr.mxu0 0.0
    %5431 = vmatpush1.msra.mxu0 0.0
    %5432 = vmatprep.subr.mxu0 0.0
    %5433 = vmatpush1.msra.mxu0 0.0
    %5434 = vmatprep.subr.mxu0 0.0
    %5435 = vmatpush1.msra.mxu0 0.0
    %5436 = vmatprep.subr.mxu0 %v3382
    %5437 = vmatpush1.msra.mxu0 %v3381
    %5438 = vmatprep.subr.mxu0 %v3380
    %5439 = vmatpush1.msra.mxu0 %v3379
    %5440 = vmatprep.subr.mxu0 %v3378
    %5441 = vmatpush1.msra.mxu0 %v3377
    %5442 = vmatprep.subr.mxu0 %v3376
    %5443 = vmatpush1.msra.mxu0 %v3375
    %5444 = vmatprep.subr.mxu0 %v3374
    %5445 = vmatpush1.msra.mxu0 %v3373
    %5446 = vmatprep.subr.mxu0 %v3372
    %5447 = vmatpush1.msra.mxu0 %v3371
    %5448 = vmatprep.subr.mxu0 %v3370
    %5449 = vmatpush1.msra.mxu0 %v3369
    %5450 = vmatprep.subr.mxu0 %v3368
    %5451 = vmatpush1.msra.mxu0 %v3367
    %5452 = vmatprep.subr.mxu0 0.0
    %5453 = vmatpush2.msra.mxu0 0.0
    %5454 = vmatprep.subr.mxu0 0.0
    %5455 = vmatpush2.msra.mxu0 0.0
    %5456 = vmatprep.subr.mxu0 0.0
    %5457 = vmatpush2.msra.mxu0 0.0
    %5458 = vmatprep.subr.mxu0 0.0
    %5459 = vmatpush2.msra.mxu0 0.0
    %5460 = vmatprep.subr.mxu0 0.0
    %5461 = vmatpush2.msra.mxu0 0.0
    %5462 = vmatprep.subr.mxu0 0.0
    %5463 = vmatpush2.msra.mxu0 0.0
    %5464 = vmatprep.subr.mxu0 0.0
    %5465 = vmatpush2.msra.mxu0 0.0
    %5466 = vmatprep.subr.mxu0 0.0
    %5467 = vmatpush2.msra.mxu0 0.0
    %5468 = vmatprep.subr.mxu0 0.0
    %5469 = vmatpush2.msra.mxu0 0.0
    %5470 = vmatprep.subr.mxu0 0.0
    %5471 = vmatpush2.msra.mxu0 0.0
    %5472 = vmatprep.subr.mxu0 0.0
    %5473 = vmatpush2.msra.mxu0 0.0
    %5474 = vmatprep.subr.mxu0 0.0
    %5475 = vmatpush2.msra.mxu0 0.0
    %5476 = vmatprep.subr.mxu0 0.0
    %5477 = vmatpush2.msra.mxu0 0.0
    %5478 = vmatprep.subr.mxu0 0.0
    %5479 = vmatpush2.msra.mxu0 0.0
    %5480 = vmatprep.subr.mxu0 0.0
    %5481 = vmatpush2.msra.mxu0 0.0
    %5482 = vmatprep.subr.mxu0 0.0
    %5483 = vmatpush2.msra.mxu0 0.0
    %5484 = vmatprep.mubr.f32.mxu0 0.0
    %5485 = vmatmul.mubr.f32.gmra.mxu0 %v5418
    %v5486 = vpop.f32.mrf.mxu0
    %v5487 = vadd.f32 %v3388, %v5486
    %v5488 = vpop.f32.mrf.mxu0
    %v5489 = vadd.f32 %v3392, %v5488
    %5490 = vdwg.mxu0
    %v5491 = vld [vmem:[#allocation2 + $0xf0] sm:$0xff]
    %v5492 = vld [vmem:[#allocation2 + $0x8] sm:$0xff]
    %v5493 = vadd.f32 %v5491, %v5487
    %v5494 = vxor.u32 %v5493, 2147483648
    %v5495 = vmul.f32 %v5494, 1.442695
    %v5496 = vpow.pop %v5495
    %v5497 = vadd.f32 %v5496, 1.0
    %v5498 = vrcp.pop %v5497
    %v5499 = vmul.f32 1.0, %v5498
    %5501 = vrot.lane.b32.xlu0 %v5487, 64
    %v5502 = vpop.permute.xlu0 %5501
    %v5504 = vmul.f32 %v5499, %v5502
    %5506 = vrot.lane.b32.xlu0 %v5504, 64
    %v5507 = vpop.permute.xlu0 %5506
    %v5509 = vadd.f32 %v5491, %v5507
    %v5510 = vtanh.pop %v5509
    %v5511 = vsub.f32 1.0, %v5499
    %5513 = vrot.lane.b32.xlu0 %v5510, 96
    %v5514 = vpop.permute.xlu0 %5513
    %v5516 = vmul.f32 %v5511, %v5514
    %v5517 = vmul.f32 %v5499, %v5410
    %v5518 = vadd.f32 %v5516, %v5517
    %v5519 = vadd.f32 %v5492, %v5489
    %v5520 = vxor.u32 %v5519, 2147483648
    %v5521 = vmul.f32 %v5520, 1.442695
    %v5522 = vpow.pop %v5521
    %v5523 = vadd.f32 %v5522, 1.0
    %v5524 = vrcp.pop %v5523
    %v5525 = vmul.f32 1.0, %v5524
    %5527 = vrot.lane.b32.xlu0 %v5489, 64
    %v5528 = vpop.permute.xlu0 %5527
    %v5530 = vmul.f32 %v5525, %v5528
    %5532 = vrot.lane.b32.xlu0 %v5530, 64
    %v5533 = vpop.permute.xlu0 %5532
    %v5535 = vadd.f32 %v5492, %v5533
    %v5536 = vtanh.pop %v5535
    %v5537 = vsub.f32 1.0, %v5525
    %5539 = vrot.lane.b32.xlu0 %v5536, 96
    %v5540 = vpop.permute.xlu0 %5539
    %v5542 = vmul.f32 %v5537, %v5540
    %v5543 = vmul.f32 %v5525, %v5411
    %v5544 = vadd.f32 %v5542, %v5543
    %v5545 = vsel %vm933, %v5518, %v5410
    %v5546 = vsel %vm926, %v5544, %v5411
    %5548 = vrot.lane.b32.xlu0 %v5545, 96
    %v5549 = vpop.permute.xlu0 %5548
    %v5551 = vsel %vm939, %v5549, %v5546
    %v5552 = vld [vmem:[%s12] sm:$0xff]
    %v5553 = vld [vmem:[%s12 + $0x8] sm:$0xff]
    %v5554 = vld [vmem:[%s12 + $0x10] sm:$0xff]
    %v5555 = vld [vmem:[%s12 + $0x18] sm:$0xff]
    %v5556 = vld [vmem:[%s12 + $0x20] sm:$0xff]
    %v5557 = vld [vmem:[%s12 + $0x28] sm:$0xff]
    %v5558 = vld [vmem:[%s12 + $0x30] sm:$0xff]
    %v5559 = vld [vmem:[%s12 + $0x38] sm:$0xff]
    %v5560 = vld [vmem:[%s13] sm:$0x1]
    %v5562 = vlaneseq
    %v5563 = vshrl.u32 %v5562, 7
    %v5564 = vsub.s32 0, %v5563
    %v5565 = vrot.slane %v5560, %v5564
    %v5568 = vsel %vm792, %v5551, 0
    %5570 = vmatprep.subr.mxu0 0.0
    %5571 = vmatpush1.msra.mxu0 0.0
    %5572 = vmatprep.subr.mxu0 0.0
    %5573 = vmatpush1.msra.mxu0 0.0
    %5574 = vmatprep.subr.mxu0 0.0
    %5575 = vmatpush1.msra.mxu0 0.0
    %5576 = vmatprep.subr.mxu0 0.0
    %5577 = vmatpush1.msra.mxu0 0.0
    %5578 = vmatprep.subr.mxu0 0.0
    %5579 = vmatpush1.msra.mxu0 0.0
    %5580 = vmatprep.subr.mxu0 0.0
    %5581 = vmatpush1.msra.mxu0 0.0
    %5582 = vmatprep.subr.mxu0 0.0
    %5583 = vmatpush1.msra.mxu0 0.0
    %5584 = vmatprep.subr.mxu0 0.0
    %5585 = vmatpush1.msra.mxu0 0.0
    %5586 = vmatprep.subr.mxu0 0.0
    %5587 = vmatpush1.msra.mxu0 %v5559
    %5588 = vmatprep.subr.mxu0 0.0
    %5589 = vmatpush1.msra.mxu0 %v5558
    %5590 = vmatprep.subr.mxu0 0.0
    %5591 = vmatpush1.msra.mxu0 %v5557
    %5592 = vmatprep.subr.mxu0 0.0
    %5593 = vmatpush1.msra.mxu0 %v5556
    %5594 = vmatprep.subr.mxu0 0.0
    %5595 = vmatpush1.msra.mxu0 %v5555
    %5596 = vmatprep.subr.mxu0 0.0
    %5597 = vmatpush1.msra.mxu0 %v5554
    %5598 = vmatprep.subr.mxu0 0.0
    %5599 = vmatpush1.msra.mxu0 %v5553
    %5600 = vmatprep.subr.mxu0 0.0
    %5601 = vmatpush1.msra.mxu0 %v5552
    %5602 = vmatprep.subr.mxu0 0.0
    %5603 = vmatpush2.msra.mxu0 0.0
    %5604 = vmatprep.subr.mxu0 0.0
    %5605 = vmatpush2.msra.mxu0 0.0
    %5606 = vmatprep.subr.mxu0 0.0
    %5607 = vmatpush2.msra.mxu0 0.0
    %5608 = vmatprep.subr.mxu0 0.0
    %5609 = vmatpush2.msra.mxu0 0.0
    %5610 = vmatprep.subr.mxu0 0.0
    %5611 = vmatpush2.msra.mxu0 0.0
    %5612 = vmatprep.subr.mxu0 0.0
    %5613 = vmatpush2.msra.mxu0 0.0
    %5614 = vmatprep.subr.mxu0 0.0
    %5615 = vmatpush2.msra.mxu0 0.0
    %5616 = vmatprep.subr.mxu0 0.0
    %5617 = vmatpush2.msra.mxu0 0.0
    %5618 = vmatprep.subr.mxu0 0.0
    %5619 = vmatpush2.msra.mxu0 0.0
    %5620 = vmatprep.subr.mxu0 0.0
    %5621 = vmatpush2.msra.mxu0 0.0
    %5622 = vmatprep.subr.mxu0 0.0
    %5623 = vmatpush2.msra.mxu0 0.0
    %5624 = vmatprep.subr.mxu0 0.0
    %5625 = vmatpush2.msra.mxu0 0.0
    %5626 = vmatprep.subr.mxu0 0.0
    %5627 = vmatpush2.msra.mxu0 0.0
    %5628 = vmatprep.subr.mxu0 0.0
    %5629 = vmatpush2.msra.mxu0 0.0
    %5630 = vmatprep.subr.mxu0 0.0
    %5631 = vmatpush2.msra.mxu0 0.0
    %5632 = vmatprep.subr.mxu0 0.0
    %5633 = vmatpush2.msra.mxu0 0.0
    %5634 = vmatprep.mubr.f32.mxu0 0.0
    %5635 = vmatmul.mubr.f32.gmra.mxu0 %v5568
    %v5636 = vpop.f32.mrf.mxu0
    %v5637 = vadd.f32 %v5565, %v5636
    %v5638 = vpop.f32.mrf.mxu0
    %5639 = vdwg.mxu0
    %v5640 = vmax.f32 %v5637, 0.0
    %v5641 = vld [vmem:[%s14] sm:$0xff]
    %v5642 = vld [vmem:[%s14 + $0x8] sm:$0xff]
    %v5643 = vld [vmem:[%s15] sm:$0x1]
    %v5645 = vlaneseq
    %v5646 = vshrl.u32 %v5645, 7
    %v5647 = vsub.s32 0, %v5646
    %v5648 = vrot.slane %v5643, %v5647
    %vm5650 = vcmask 130048
    %v5652 = vsel %vm5650, %v5640, 0
    %5654 = vmatprep.subr.mxu0 0.0
    %5655 = vmatpush1.msra.mxu0 0.0
    %5656 = vmatprep.subr.mxu0 0.0
    %5657 = vmatpush1.msra.mxu0 0.0
    %5658 = vmatprep.subr.mxu0 0.0
    %5659 = vmatpush1.msra.mxu0 0.0
    %5660 = vmatprep.subr.mxu0 0.0
    %5661 = vmatpush1.msra.mxu0 0.0
    %5662 = vmatprep.subr.mxu0 0.0
    %5663 = vmatpush1.msra.mxu0 0.0
    %5664 = vmatprep.subr.mxu0 0.0
    %5665 = vmatpush1.msra.mxu0 0.0
    %5666 = vmatprep.subr.mxu0 0.0
    %5667 = vmatpush1.msra.mxu0 0.0
    %5668 = vmatprep.subr.mxu0 0.0
    %5669 = vmatpush1.msra.mxu0 0.0
    %5670 = vmatprep.subr.mxu0 0.0
    %5671 = vmatpush1.msra.mxu0 0.0
    %5672 = vmatprep.subr.mxu0 0.0
    %5673 = vmatpush1.msra.mxu0 0.0
    %5674 = vmatprep.subr.mxu0 0.0
    %5675 = vmatpush1.msra.mxu0 0.0
    %5676 = vmatprep.subr.mxu0 0.0
    %5677 = vmatpush1.msra.mxu0 0.0
    %5678 = vmatprep.subr.mxu0 0.0
    %5679 = vmatpush1.msra.mxu0 0.0
    %5680 = vmatprep.subr.mxu0 0.0
    %5681 = vmatpush1.msra.mxu0 0.0
    %5682 = vmatprep.subr.mxu0 0.0
    %5683 = vmatpush1.msra.mxu0 %v5642
    %5684 = vmatprep.subr.mxu0 0.0
    %5685 = vmatpush1.msra.mxu0 %v5641
    %5686 = vmatprep.subr.mxu0 0.0
    %5687 = vmatpush2.msra.mxu0 0.0
    %5688 = vmatprep.subr.mxu0 0.0
    %5689 = vmatpush2.msra.mxu0 0.0
    %5690 = vmatprep.subr.mxu0 0.0
    %5691 = vmatpush2.msra.mxu0 0.0
    %5692 = vmatprep.subr.mxu0 0.0
    %5693 = vmatpush2.msra.mxu0 0.0
    %5694 = vmatprep.subr.mxu0 0.0
    %5695 = vmatpush2.msra.mxu0 0.0
    %5696 = vmatprep.subr.mxu0 0.0
    %5697 = vmatpush2.msra.mxu0 0.0
    %5698 = vmatprep.subr.mxu0 0.0
    %5699 = vmatpush2.msra.mxu0 0.0
    %5700 = vmatprep.subr.mxu0 0.0
    %5701 = vmatpush2.msra.mxu0 0.0
    %5702 = vmatprep.subr.mxu0 0.0
    %5703 = vmatpush2.msra.mxu0 0.0
    %5704 = vmatprep.subr.mxu0 0.0
    %5705 = vmatpush2.msra.mxu0 0.0
    %5706 = vmatprep.subr.mxu0 0.0
    %5707 = vmatpush2.msra.mxu0 0.0
    %5708 = vmatprep.subr.mxu0 0.0
    %5709 = vmatpush2.msra.mxu0 0.0
    %5710 = vmatprep.subr.mxu0 0.0
    %5711 = vmatpush2.msra.mxu0 0.0
    %5712 = vmatprep.subr.mxu0 0.0
    %5713 = vmatpush2.msra.mxu0 0.0
    %5714 = vmatprep.subr.mxu0 0.0
    %5715 = vmatpush2.msra.mxu0 0.0
    %5716 = vmatprep.subr.mxu0 0.0
    %5717 = vmatpush2.msra.mxu0 0.0
    %5718 = vmatprep.mubr.f32.mxu0 0.0
    %5719 = vmatmul.mubr.f32.gmra.mxu0 %v5652
    %v5720 = vpop.f32.mrf.mxu0
    %v5721 = vadd.f32 %v5648, %v5720
    %v5722 = vpop.f32.mrf.mxu0
    %5723 = vdwg.mxu0
    %vm5724 = vcmask 15360
    %5725 = vst.msk [vmem:[%s16] sm:$0xff] %vm5724, %v5721
    // Predicated region
    $region90: #{tpu_custom_call.1} parent=1 // pred_check
      _
    $region91: #{tpu_custom_call.1} parent=1 // pred_check_branch
      %5727 = sbr.rel (0) target = $region93
    $region92: #{tpu_custom_call.1} parent=1 // pred_region
      _
    $region93: #{tpu_custom_call.1} parent=1 // pred_fallthru
      _
    // Predicated region
    $region94: #{tpu_custom_call.1} parent=1 // pred_check
      _
    $region95: #{tpu_custom_call.1} parent=1 // pred_check_branch
      %5729 = sbr.rel (0) target = $region97
    $region96: #{tpu_custom_call.1} parent=1 // pred_region
      _
    $region97: #{tpu_custom_call.1} parent=1 // pred_fallthru
      _
    %5730 = vsyncpa [#allocation5], 1
    %5731 = vsyncpa [#allocation7], 1
    %5732 = vsyncpa [#allocation10], 1
    %5733 = vsyncpa [#allocation13], 1

</llo_original>
